<compile_context>
chip_gen: v5e
topology: v5e:2x2
jax: 0.10.0
libtpu: 0.0.40
codegen_flags: <defaults>
</compile_context>

<pallas_src>
import functools

import jax
import jax.numpy as jnp
from jax.experimental import pallas as pl
from jax.experimental.pallas import tpu as pltpu


def _mlp_classifier_kernel(h_ref, w1_ref, b1_ref, wa1_ref, ba1_ref,
                           wa2_ref, ba2_ref, wc_ref, bc_ref,   # inputs
                           logits_ref,                         # output
                           m_sc, l_sc, acc_sc,                 # VMEM scratch
                           *, tile_n, n_valid):
    i = pl.program_id(0)

    @pl.when(i == 0)
    def _init():
        m_sc[...] = jnp.full_like(m_sc, -jnp.inf)
        l_sc[...] = jnp.zeros_like(l_sc)
        acc_sc[...] = jnp.zeros_like(acc_sc)

    # ---- fc: ReLU(h @ W1 + b1) ----------------------------------------------
    # h arrives in its source dtype (no whole-bag host-side cast/pad pass);
    # the per-tile bf16 cast is a handful of VPU pack ops hidden under the MXU.
    h = h_ref[...].astype(jnp.bfloat16)                          # (TN, L)
    h1 = jnp.dot(h, w1_ref[...], preferred_element_type=jnp.float32)
    h1 = jnp.maximum(h1 + b1_ref[...], 0.0)                      # (TN, 512) f32

    # Rows past the true bag length (ragged last tile) read undefined VMEM:
    # zero h1 there so no NaN/Inf can leak into the weighted-sum reduction.
    row = i * tile_n + jax.lax.broadcasted_iota(jnp.int32, (tile_n, 1), 0)
    valid = row < n_valid
    h1 = jnp.where(valid, h1, 0.0)

    # ---- Attn_Net: Tanh(h1 @ Wa1 + ba1) -------------------------------------
    a = jnp.dot(h1.astype(jnp.bfloat16), wa1_ref[...],
                preferred_element_type=jnp.float32)
    a = jnp.tanh(a + ba1_ref[...])                               # (TN, 256) f32

    # ---- attention score (width-1 Linear): VPU multiply + lane reduce -------
    s = jnp.sum(a * wa2_ref[...], axis=-1, keepdims=True) + ba2_ref[...]
    s = jnp.where(valid, s, -jnp.inf)                            # (TN, 1)

    # ---- online softmax over N (flash-attention style accumulation) ---------
    # NOTE: assumes a non-empty bag (first tile always holds >= 1 valid row).
    m_new = jnp.maximum(m_sc[...], jnp.max(s, axis=0, keepdims=True))   # (1,1)
    corr = jnp.exp(m_sc[...] - m_new)                                   # (1,1)
    p = jnp.exp(s - m_new)                                              # (TN,1)
    l_sc[...] = corr * l_sc[...] + jnp.sum(p, axis=0, keepdims=True)
    acc_sc[...] = corr * acc_sc[...] + jnp.sum(p * h1, axis=0, keepdims=True)
    m_sc[...] = m_new

    # ---- finalize: M = softmax(A) @ h1 ; logits = M @ Wc + bc ---------------
    @pl.when(i == pl.num_programs(0) - 1)
    def _finalize():
        # Exact divide: runs once per forward, precision > speed here.
        M = acc_sc[...] / l_sc[...]                                     # (1,512)
        logits_ref[...] = (jnp.dot(M, wc_ref[...],
                                   preferred_element_type=jnp.float32)
                           + bc_ref[...])


def mlp_classifier_forward(h, params, *, tile_n=1024):
    """params = (w1, b1, wa1, ba1, wa2, ba2, wc, bc), weights as (in, out)."""
    # Mirror PyTorch: a leading singleton batch dim gets squeezed away.
    if h.ndim == 3 and h.shape[0] == 1:
        h = jnp.squeeze(h, axis=0)

    w1, b1, wa1, ba1, wa2, ba2, wc, bc = params
    N, L = h.shape
    H = w1.shape[1]       # 512
    D = wa1.shape[1]      # 256
    C = wc.shape[1]       # n_classes

    # Sublane-align the tile and clamp it so one block never exceeds ceil8(N)
    # rows (avoids oversized blocks for tiny bags; the masked tail handles the
    # remainder).
    tile_n = int(min(tile_n, ((N + 7) // 8) * 8))
    tile_n = max(8, (tile_n // 8) * 8)
    n_tiles = int(pl.cdiv(N, tile_n))

    # Weights/biases are tiny and VMEM-resident; cast once here.  h itself is
    # passed untouched (no whole-bag cast/pad HBM pass).
    w1_bf = w1.astype(jnp.bfloat16)
    wa1_bf = wa1.astype(jnp.bfloat16)
    wa2_row = jnp.reshape(wa2, (1, D)).astype(jnp.float32)
    b1_f = jnp.reshape(b1, (1, H)).astype(jnp.float32)
    ba1_f = jnp.reshape(ba1, (1, D)).astype(jnp.float32)
    ba2_f = jnp.reshape(ba2, (1, 1)).astype(jnp.float32)
    wc_f = wc.astype(jnp.float32)
    bc_f = jnp.reshape(bc, (1, C)).astype(jnp.float32)

    resident = lambda i: (0, 0)   # weights/biases: same block every step

    grid_spec = pltpu.PrefetchScalarGridSpec(
        num_scalar_prefetch=0,
        grid=(n_tiles,),
        in_specs=[
            pl.BlockSpec((tile_n, L), lambda i: (i, 0)),   # streamed h tile
            pl.BlockSpec((L, H), resident),                # w1  (bf16)
            pl.BlockSpec((1, H), resident),                # b1
            pl.BlockSpec((H, D), resident),                # wa1 (bf16)
            pl.BlockSpec((1, D), resident),                # ba1
            pl.BlockSpec((1, D), resident),                # wa2 as a row
            pl.BlockSpec((1, 1), resident),                # ba2
            pl.BlockSpec((H, C), resident),                # wc
            pl.BlockSpec((1, C), resident),                # bc
        ],
        out_specs=pl.BlockSpec((1, C), resident),
        scratch_shapes=[
            pltpu.VMEM((1, 1), jnp.float32),      # running max
            pltpu.VMEM((1, 1), jnp.float32),      # running sum-exp
            pltpu.VMEM((1, H), jnp.float32),      # running sum(exp * h1)
        ],
    )

    kernel = functools.partial(_mlp_classifier_kernel, tile_n=tile_n, n_valid=N)

    itemsize = jnp.dtype(h.dtype).itemsize
    cost = pl.CostEstimate(
        flops=2 * N * (L * H + H * D + D) + 2 * H * C,
        transcendentals=N * (D + 1),                 # tanh(a) + exp per row
        bytes_accessed=(N * L * itemsize             # the streamed bag
                        + (L * H + H * D) * 2        # bf16 weights
                        + (H + D + 1 + H * C + C) * 4
                        + C * 4),
    )

    return pl.pallas_call(
        kernel,
        out_shape=jax.ShapeDtypeStruct((1, C), jnp.float32),
        grid_spec=grid_spec,
        compiler_params=pltpu.CompilerParams(
            # The N-tile axis carries the online-softmax state -> sequential.
            # TODO(synk): v7x megacore: split the bag over a leading 2-wide
            # "parallel" core axis with per-core (m, l, acc) partials and a
            # tiny merge epilogue so both TensorCores are used.
            dimension_semantics=("arbitrary",),
            # <= 48 MiB keeps headroom on v7x (64 MiB physical VMEM); plenty
            # of room on v5e/v6e (128 MiB).
            vmem_limit_bytes=48 * 1024 * 1024,
        ),
        cost_estimate=cost,
    )(h, w1_bf, b1_f, wa1_bf, ba1_f, wa2_row, ba2_f, wc_f, bc_f)


def _init_linear(key, fan_in, fan_out):
    """Deterministic PyTorch-like Linear init; weight returned as (in, out)."""
    kw, kb = jax.random.split(key)
    bound = 1.0 / (fan_in ** 0.5)
    w = jax.random.uniform(kw, (fan_in, fan_out), jnp.float32, -bound, bound)
    b = jax.random.uniform(kb, (1, fan_out), jnp.float32, -bound, bound)
    return w, b


def _reference_forward(h, params):
    """Pure-JAX f32 reference mirroring the PyTorch forward."""
    w1, b1, wa1, ba1, wa2, ba2, wc, bc = params
    if h.ndim == 3 and h.shape[0] == 1:
        h = jnp.squeeze(h, axis=0)
    h1 = jnp.maximum(h @ w1 + b1, 0.0)
    a = jnp.tanh(h1 @ wa1 + ba1)
    A = a @ wa2 + ba2                      # (N, 1)
    A = jax.nn.softmax(A.T, axis=1)        # (1, N)
    M = A @ h1                             # (1, 512)
    return M @ wc + bc                     # (1, n_classes)


def _reference_forward_bf16(h, params):
    """Reference emulating the kernel's bf16 MXU operands (tighter check)."""
    w1, b1, wa1, ba1, wa2, ba2, wc, bc = params
    if h.ndim == 3 and h.shape[0] == 1:
        h = jnp.squeeze(h, axis=0)
    h1 = jnp.maximum(
        jnp.dot(h.astype(jnp.bfloat16), w1.astype(jnp.bfloat16),
                preferred_element_type=jnp.float32) + b1, 0.0)
    a = jnp.tanh(
        jnp.dot(h1.astype(jnp.bfloat16), wa1.astype(jnp.bfloat16),
                preferred_element_type=jnp.float32) + ba1)
    A = a @ wa2 + ba2
    A = jax.nn.softmax(A.T, axis=1)
    M = A @ h1
    return M @ wc + bc


if __name__ == "__main__":
    # Small, module-consistent shapes: embed_dim=128 -> size = [128, 512, 256],
    # n_classes=2.  N=600 is intentionally NOT a tile multiple so the in-kernel
    # ragged-tail masking and multi-tile online-softmax paths are exercised.
    N, embed_dim, hidden, D, n_classes = 600, 128, 512, 256, 2

    key = jax.random.PRNGKey(0)
    k_h, k1, k2, k3, k4 = jax.random.split(key, 5)

    h = jax.random.normal(k_h, (N, embed_dim), dtype=jnp.float32)

    w1, b1 = _init_linear(k1, embed_dim, hidden)      # fc Linear(128, 512)
    wa1, ba1 = _init_linear(k2, hidden, D)            # Attn_Net Linear(512, 256)
    wa2, ba2 = _init_linear(k3, D, 1)                 # Attn_Net Linear(256, 1)
    wc, bc = _init_linear(k4, hidden, n_classes)      # classifiers Linear(512, 2)
    params = (w1, b1, wa1, ba1, wa2, ba2, wc, bc)

    ref_bf16 = _reference_forward_bf16(h, params)
    ref_f32 = _reference_forward(h, params)

    # Default (large-tile) path: one 608-row tile with an 8-row masked tail.
    logits = jax.block_until_ready(mlp_classifier_forward(h, params))
    assert logits.shape == (1, n_classes), logits.shape
    assert jnp.allclose(logits, ref_bf16, atol=1e-2, rtol=1e-2), (logits, ref_bf16)
    assert jnp.allclose(logits, ref_f32, atol=3e-2, rtol=3e-2), (logits, ref_f32)

    # Small-tile path: 3 tiles of 256 rows, ragged last tile + multi-step
    # online-softmax accumulation.
    logits_small = jax.block_until_ready(
        mlp_classifier_forward(h, params, tile_n=256))
    assert jnp.allclose(logits_small, ref_bf16, atol=1e-2, rtol=1e-2), (
        logits_small, ref_bf16)
    assert jnp.allclose(logits_small, ref_f32, atol=3e-2, rtol=3e-2), (
        logits_small, ref_f32)

    print("KERNEL_OK")
</pallas_src>

<mosaic_0001>
module attributes {stable_mosaic.version = 11 : i64} {
  func.func @_mlp_classifier_kernel(%arg0: i32, %arg1: memref<600x128xf32, #tpu.memory_space<vmem>>, %arg2: memref<128x512xbf16, #tpu.memory_space<vmem>>, %arg3: memref<1x512xf32, #tpu.memory_space<vmem>>, %arg4: memref<512x256xbf16, #tpu.memory_space<vmem>>, %arg5: memref<1x256xf32, #tpu.memory_space<vmem>>, %arg6: memref<1x256xf32, #tpu.memory_space<vmem>>, %arg7: memref<1x1xf32, #tpu.memory_space<vmem>>, %arg8: memref<512x2xf32, #tpu.memory_space<vmem>>, %arg9: memref<1x2xf32, #tpu.memory_space<vmem>>, %arg10: memref<1x2xf32, #tpu.memory_space<vmem>>, %arg11: memref<1x1xf32, #tpu.memory_space<vmem>>, %arg12: memref<1x1xf32, #tpu.memory_space<vmem>>, %arg13: memref<1x512xf32, #tpu.memory_space<vmem>>) attributes {dimension_semantics = [#tpu.dimension_semantics<arbitrary>], iteration_bounds = array<i64: 1>, scalar_prefetch = 0 : i64, scratch_operands = 3 : i64, tpu.core_type = #tpu.core_type<tc>, window_params = [{transform_indices = @transform_0, window_bounds = array<i64: 600, 128>}, {pipeline_mode = #tpu.pipeline_mode<synchronous>, transform_indices = @transform_1, window_bounds = array<i64: 128, 512>}, {pipeline_mode = #tpu.pipeline_mode<synchronous>, transform_indices = @transform_2, window_bounds = array<i64: 1, 512>}, {pipeline_mode = #tpu.pipeline_mode<synchronous>, transform_indices = @transform_3, window_bounds = array<i64: 512, 256>}, {pipeline_mode = #tpu.pipeline_mode<synchronous>, transform_indices = @transform_4, window_bounds = array<i64: 1, 256>}, {pipeline_mode = #tpu.pipeline_mode<synchronous>, transform_indices = @transform_5, window_bounds = array<i64: 1, 256>}, {pipeline_mode = #tpu.pipeline_mode<synchronous>, transform_indices = @transform_6, window_bounds = array<i64: 1, 1>}, {pipeline_mode = #tpu.pipeline_mode<synchronous>, transform_indices = @transform_7, window_bounds = array<i64: 512, 2>}, {pipeline_mode = #tpu.pipeline_mode<synchronous>, transform_indices = @transform_8, window_bounds = array<i64: 1, 2>}, {pipeline_mode = #tpu.pipeline_mode<synchronous>, transform_indices = @transform_9, window_bounds = array<i64: 1, 2>}]} {
    %c0_i32 = arith.constant 0 : i32
    %0 = arith.cmpi eq, %arg0, %c0_i32 : i32
    %1 = arith.extui %0 : i1 to i32
    %c0_i32_0 = arith.constant 0 : i32
    %2 = arith.cmpi ne, %1, %c0_i32_0 : i32
    scf.if %2 {
      %cst_39 = arith.constant 0xFF800000 : f32
      %68 = vector.broadcast %cst_39 : f32 to vector<1x1xf32>
      %c0_40 = arith.constant 0 : index
      %c0_41 = arith.constant 0 : index
      %69 = vector.load %arg11[%c0_40, %c0_41] : memref<1x1xf32, #tpu.memory_space<vmem>>, vector<1x1xf32>
      tpu.vector_store %arg11[%c0_40, %c0_41], %68 {strides = array<i32>} : memref<1x1xf32, #tpu.memory_space<vmem>>, vector<1x1xf32>,
      %cst_42 = arith.constant 0.000000e+00 : f32
      %70 = vector.broadcast %cst_42 : f32 to vector<1x1xf32>
      %c0_43 = arith.constant 0 : index
      %c0_44 = arith.constant 0 : index
      %71 = vector.load %arg12[%c0_43, %c0_44] : memref<1x1xf32, #tpu.memory_space<vmem>>, vector<1x1xf32>
      tpu.vector_store %arg12[%c0_43, %c0_44], %70 {strides = array<i32>} : memref<1x1xf32, #tpu.memory_space<vmem>>, vector<1x1xf32>,
      %cst_45 = arith.constant 0.000000e+00 : f32
      %72 = vector.broadcast %cst_45 : f32 to vector<1x512xf32>
      %c0_46 = arith.constant 0 : index
      %c0_47 = arith.constant 0 : index
      %73 = vector.load %arg13[%c0_46, %c0_47] : memref<1x512xf32, #tpu.memory_space<vmem>>, vector<1x512xf32>
      tpu.vector_store %arg13[%c0_46, %c0_47], %72 {strides = array<i32>} : memref<1x512xf32, #tpu.memory_space<vmem>>, vector<1x512xf32>,
    } else {
    }
    %c0 = arith.constant 0 : index
    %c0_1 = arith.constant 0 : index
    %3 = vector.load %arg1[%c0, %c0_1] : memref<600x128xf32, #tpu.memory_space<vmem>>, vector<600x128xf32>
    %4 = arith.truncf %3 : vector<600x128xf32> to vector<600x128xbf16>
    %c0_2 = arith.constant 0 : index
    %c0_3 = arith.constant 0 : index
    %5 = vector.load %arg2[%c0_2, %c0_3] : memref<128x512xbf16, #tpu.memory_space<vmem>>, vector<128x512xbf16>
    %cst = arith.constant dense<0.000000e+00> : vector<600x512xf32>
    %6 = tpu.matmul %4, %5, %cst {dimension_numbers = #tpu.dot_dimension_numbers<[1], [0], [0], [1], [0, 0, 1, 1], [], []>} : vector<600x128xbf16>, vector<128x512xbf16>, vector<600x512xf32> -> vector<600x512xf32>
    %c0_4 = arith.constant 0 : index
    %c0_5 = arith.constant 0 : index
    %7 = vector.load %arg3[%c0_4, %c0_5] : memref<1x512xf32, #tpu.memory_space<vmem>>, vector<1x512xf32>
    %8 = vector.broadcast %7 : vector<1x512xf32> to vector<600x512xf32>
    %9 = arith.addf %6, %8 : vector<600x512xf32>
    %cst_6 = arith.constant 0.000000e+00 : f32
    %10 = vector.broadcast %cst_6 : f32 to vector<600x512xf32>
    %11 = arith.maximumf %9, %10 : vector<600x512xf32>
    %c600_i32 = arith.constant 600 : i32
    %12 = arith.muli %arg0, %c600_i32 : i32
    %13 = tpu.iota {dimensions = array<i32: 0>} : vector<600x1xi32>
    %14 = vector.broadcast %12 : i32 to vector<600x1xi32>
    %15 = arith.addi %14, %13 : vector<600x1xi32>
    %c600_i32_7 = arith.constant 600 : i32
    %16 = vector.broadcast %c600_i32_7 : i32 to vector<600x1xi32>
    %17 = arith.cmpi slt, %15, %16 : vector<600x1xi32>
    %cst_8 = arith.constant 0.000000e+00 : f32
    %18 = vector.shape_cast %17 : vector<600x1xi1> to vector<600x1xi1>
    %19 = vector.broadcast %18 : vector<600x1xi1> to vector<600x512xi1>
    %20 = vector.broadcast %cst_8 : f32 to vector<600x512xf32>
    %21 = arith.select %19, %11, %20 : vector<600x512xi1>, vector<600x512xf32>
    %22 = arith.truncf %21 : vector<600x512xf32> to vector<600x512xbf16>
    %c0_9 = arith.constant 0 : index
    %c0_10 = arith.constant 0 : index
    %23 = vector.load %arg4[%c0_9, %c0_10] : memref<512x256xbf16, #tpu.memory_space<vmem>>, vector<512x256xbf16>
    %cst_11 = arith.constant dense<0.000000e+00> : vector<600x256xf32>
    %24 = tpu.matmul %22, %23, %cst_11 {dimension_numbers = #tpu.dot_dimension_numbers<[1], [0], [0], [1], [0, 0, 1, 1], [], []>} : vector<600x512xbf16>, vector<512x256xbf16>, vector<600x256xf32> -> vector<600x256xf32>
    %c0_12 = arith.constant 0 : index
    %c0_13 = arith.constant 0 : index
    %25 = vector.load %arg5[%c0_12, %c0_13] : memref<1x256xf32, #tpu.memory_space<vmem>>, vector<1x256xf32>
    %26 = vector.broadcast %25 : vector<1x256xf32> to vector<600x256xf32>
    %27 = arith.addf %24, %26 : vector<600x256xf32>
    %28 = math.tanh %27 : vector<600x256xf32>
    %c0_14 = arith.constant 0 : index
    %c0_15 = arith.constant 0 : index
    %29 = vector.load %arg6[%c0_14, %c0_15] : memref<1x256xf32, #tpu.memory_space<vmem>>, vector<1x256xf32>
    %30 = vector.broadcast %29 : vector<1x256xf32> to vector<600x256xf32>
    %31 = arith.mulf %28, %30 : vector<600x256xf32>
    %cst_16 = arith.constant dense<0.000000e+00> : vector<600xf32>
    %32 = vector.multi_reduction <add>, %31, %cst_16 [1] : vector<600x256xf32> to vector<600xf32>
    %33 = vector.shape_cast %32 : vector<600xf32> to vector<600x1xf32>
    %c0_17 = arith.constant 0 : index
    %c0_18 = arith.constant 0 : index
    %34 = vector.load %arg7[%c0_17, %c0_18] : memref<1x1xf32, #tpu.memory_space<vmem>>, vector<1x1xf32>
    %35 = vector.broadcast %34 : vector<1x1xf32> to vector<600x1xf32>
    %36 = arith.addf %33, %35 : vector<600x1xf32>
    %cst_19 = arith.constant 0xFF800000 : f32
    %37 = vector.broadcast %cst_19 : f32 to vector<600x1xf32>
    %38 = arith.select %17, %36, %37 : vector<600x1xi1>, vector<600x1xf32>
    %c0_20 = arith.constant 0 : index
    %c0_21 = arith.constant 0 : index
    %39 = vector.load %arg11[%c0_20, %c0_21] : memref<1x1xf32, #tpu.memory_space<vmem>>, vector<1x1xf32>
    %cst_22 = arith.constant dense<0xFF800000> : vector<1xf32>
    %40 = vector.multi_reduction <maximumf>, %38, %cst_22 [0] : vector<600x1xf32> to vector<1xf32>
    %41 = vector.shape_cast %40 : vector<1xf32> to vector<1x1xf32>
    %42 = arith.maximumf %39, %41 : vector<1x1xf32>
    %c0_23 = arith.constant 0 : index
    %c0_24 = arith.constant 0 : index
    %43 = vector.load %arg11[%c0_23, %c0_24] : memref<1x1xf32, #tpu.memory_space<vmem>>, vector<1x1xf32>
    %44 = arith.subf %43, %42 : vector<1x1xf32>
    %45 = math.exp %44 : vector<1x1xf32>
    %46 = vector.broadcast %42 : vector<1x1xf32> to vector<600x1xf32>
    %47 = arith.subf %38, %46 : vector<600x1xf32>
    %48 = math.exp %47 : vector<600x1xf32>
    %c0_25 = arith.constant 0 : index
    %c0_26 = arith.constant 0 : index
    %49 = vector.load %arg12[%c0_25, %c0_26] : memref<1x1xf32, #tpu.memory_space<vmem>>, vector<1x1xf32>
    %50 = arith.mulf %45, %49 : vector<1x1xf32>
    %cst_27 = arith.constant dense<0.000000e+00> : vector<1xf32>
    %51 = vector.multi_reduction <add>, %48, %cst_27 [0] : vector<600x1xf32> to vector<1xf32>
    %52 = vector.shape_cast %51 : vector<1xf32> to vector<1x1xf32>
    %53 = arith.addf %50, %52 : vector<1x1xf32>
    %c0_28 = arith.constant 0 : index
    %c0_29 = arith.constant 0 : index
    %54 = vector.load %arg12[%c0_28, %c0_29] : memref<1x1xf32, #tpu.memory_space<vmem>>, vector<1x1xf32>
    tpu.vector_store %arg12[%c0_28, %c0_29], %53 {strides = array<i32>} : memref<1x1xf32, #tpu.memory_space<vmem>>, vector<1x1xf32>,
    %c0_30 = arith.constant 0 : index
    %c0_31 = arith.constant 0 : index
    %55 = vector.load %arg13[%c0_30, %c0_31] : memref<1x512xf32, #tpu.memory_space<vmem>>, vector<1x512xf32>
    %56 = vector.broadcast %45 : vector<1x1xf32> to vector<1x512xf32>
    %57 = arith.mulf %56, %55 : vector<1x512xf32>
    %58 = vector.broadcast %48 : vector<600x1xf32> to vector<600x512xf32>
    %59 = arith.mulf %58, %21 : vector<600x512xf32>
    %cst_32 = arith.constant dense<0.000000e+00> : vector<512xf32>
    %60 = vector.multi_reduction <add>, %59, %cst_32 [0] : vector<600x512xf32> to vector<512xf32>
    %61 = vector.shape_cast %60 : vector<512xf32> to vector<1x512xf32>
    %62 = arith.addf %57, %61 : vector<1x512xf32>
    %c0_33 = arith.constant 0 : index
    %c0_34 = arith.constant 0 : index
    %63 = vector.load %arg13[%c0_33, %c0_34] : memref<1x512xf32, #tpu.memory_space<vmem>>, vector<1x512xf32>
    tpu.vector_store %arg13[%c0_33, %c0_34], %62 {strides = array<i32>} : memref<1x512xf32, #tpu.memory_space<vmem>>, vector<1x512xf32>,
    %c0_35 = arith.constant 0 : index
    %c0_36 = arith.constant 0 : index
    %64 = vector.load %arg11[%c0_35, %c0_36] : memref<1x1xf32, #tpu.memory_space<vmem>>, vector<1x1xf32>
    tpu.vector_store %arg11[%c0_35, %c0_36], %42 {strides = array<i32>} : memref<1x1xf32, #tpu.memory_space<vmem>>, vector<1x1xf32>,
    %c0_i32_37 = arith.constant 0 : i32
    %65 = arith.cmpi eq, %arg0, %c0_i32_37 : i32
    %66 = arith.extui %65 : i1 to i32
    %c0_i32_38 = arith.constant 0 : i32
    %67 = arith.cmpi ne, %66, %c0_i32_38 : i32
    scf.if %67 {
      %c0_39 = arith.constant 0 : index
      %c0_40 = arith.constant 0 : index
      %68 = vector.load %arg13[%c0_39, %c0_40] : memref<1x512xf32, #tpu.memory_space<vmem>>, vector<1x512xf32>
      %c0_41 = arith.constant 0 : index
      %c0_42 = arith.constant 0 : index
      %69 = vector.load %arg12[%c0_41, %c0_42] : memref<1x1xf32, #tpu.memory_space<vmem>>, vector<1x1xf32>
      %70 = vector.broadcast %69 : vector<1x1xf32> to vector<1x512xf32>
      %71 = arith.divf %68, %70 : vector<1x512xf32>
      %c0_43 = arith.constant 0 : index
      %c0_44 = arith.constant 0 : index
      %72 = vector.load %arg8[%c0_43, %c0_44] : memref<512x2xf32, #tpu.memory_space<vmem>>, vector<512x2xf32>
      %cst_45 = arith.constant dense<0.000000e+00> : vector<1x2xf32>
      %73 = tpu.matmul %71, %72, %cst_45 {dimension_numbers = #tpu.dot_dimension_numbers<[1], [0], [0], [1], [0, 0, 1, 1], [], []>} : vector<1x512xf32>, vector<512x2xf32>, vector<1x2xf32> -> vector<1x2xf32>
      %c0_46 = arith.constant 0 : index
      %c0_47 = arith.constant 0 : index
      %74 = vector.load %arg9[%c0_46, %c0_47] : memref<1x2xf32, #tpu.memory_space<vmem>>, vector<1x2xf32>
      %75 = arith.addf %73, %74 : vector<1x2xf32>
      %c0_48 = arith.constant 0 : index
      %c0_49 = arith.constant 0 : index
      %76 = vector.load %arg10[%c0_48, %c0_49] : memref<1x2xf32, #tpu.memory_space<vmem>>, vector<1x2xf32>
      tpu.vector_store %arg10[%c0_48, %c0_49], %75 {strides = array<i32>} : memref<1x2xf32, #tpu.memory_space<vmem>>, vector<1x2xf32>,
    } else {
    }
    return
  }
  func.func @transform_0(%arg0: i32) -> (i32, i32) {
    %c0_i32 = arith.constant 0 : i32
    %c0_i32_0 = arith.constant 0 : i32
    return %arg0, %c0_i32 : i32, i32
  }
  func.func @transform_1(%arg0: i32) -> (i32, i32) {
    %c0_i32 = arith.constant 0 : i32
    %c0_i32_0 = arith.constant 0 : i32
    %c0_i32_1 = arith.constant 0 : i32
    return %c0_i32, %c0_i32_0 : i32, i32
  }
  func.func @transform_2(%arg0: i32) -> (i32, i32) {
    %c0_i32 = arith.constant 0 : i32
    %c0_i32_0 = arith.constant 0 : i32
    %c0_i32_1 = arith.constant 0 : i32
    return %c0_i32, %c0_i32_0 : i32, i32
  }
  func.func @transform_3(%arg0: i32) -> (i32, i32) {
    %c0_i32 = arith.constant 0 : i32
    %c0_i32_0 = arith.constant 0 : i32
    %c0_i32_1 = arith.constant 0 : i32
    return %c0_i32, %c0_i32_0 : i32, i32
  }
  func.func @transform_4(%arg0: i32) -> (i32, i32) {
    %c0_i32 = arith.constant 0 : i32
    %c0_i32_0 = arith.constant 0 : i32
    %c0_i32_1 = arith.constant 0 : i32
    return %c0_i32, %c0_i32_0 : i32, i32
  }
  func.func @transform_5(%arg0: i32) -> (i32, i32) {
    %c0_i32 = arith.constant 0 : i32
    %c0_i32_0 = arith.constant 0 : i32
    %c0_i32_1 = arith.constant 0 : i32
    return %c0_i32, %c0_i32_0 : i32, i32
  }
  func.func @transform_6(%arg0: i32) -> (i32, i32) {
    %c0_i32 = arith.constant 0 : i32
    %c0_i32_0 = arith.constant 0 : i32
    %c0_i32_1 = arith.constant 0 : i32
    return %c0_i32, %c0_i32_0 : i32, i32
  }
  func.func @transform_7(%arg0: i32) -> (i32, i32) {
    %c0_i32 = arith.constant 0 : i32
    %c0_i32_0 = arith.constant 0 : i32
    %c0_i32_1 = arith.constant 0 : i32
    return %c0_i32, %c0_i32_0 : i32, i32
  }
  func.func @transform_8(%arg0: i32) -> (i32, i32) {
    %c0_i32 = arith.constant 0 : i32
    %c0_i32_0 = arith.constant 0 : i32
    %c0_i32_1 = arith.constant 0 : i32
    return %c0_i32, %c0_i32_0 : i32, i32
  }
  func.func @transform_9(%arg0: i32) -> (i32, i32) {
    %c0_i32 = arith.constant 0 : i32
    %c0_i32_0 = arith.constant 0 : i32
    %c0_i32_1 = arith.constant 0 : i32
    return %c0_i32, %c0_i32_0 : i32, i32
  }
}

</mosaic_0001>

<llo_original>
// kernel: tpu_custom_call.1
$region0: #{tpu_custom_call.1}
  #allocation0 [shape = 'u32[]', space=smem, size = 0x4, offset = 0x4, fixed_abs, tag = 'smem constant byte address 0x4 - core index']
  #allocation1 [shape = 'u32[72,128]{1,0:T(1,128)}', space=vmem, size = 0x9000, scoped, tag = 'internal scratch']
  #allocation2 [shape = 'f32[1,1]{1,0:T(1,128)}', space=vmem, size = 0x200, scoped, tag = 'scratch operand']
  #allocation3 [shape = 'f32[1,1]{1,0:T(1,128)}', space=vmem, size = 0x200, scoped, tag = 'scratch operand']
  #allocation4 [shape = 'f32[1,512]{1,0:T(1,128)}', space=vmem, size = 0x800, scoped, tag = 'scratch operand']
  #allocation5 [shape = 'f32[1,1]{1,0:T(1,128)S(1)}', space=vmem, size = 0x200, scoped, tag = 'scoped memory for tpu_custom_call.1']
  %s0 = inlined_call_operand.hbm [shape: f32[600,128], index: 0, kind: input, shape index: {}]
  %s1 = inlined_call_operand.hbm [shape: bf16[128,512], index: 1, kind: input, shape index: {}]
  %s2 = inlined_call_operand.vmem [shape: f32[1,512], index: 2, kind: input, shape index: {}]
  %s3 = inlined_call_operand.vmem [shape: bf16[512,256], index: 3, kind: input, shape index: {}]
  %s4 = inlined_call_operand.vmem [shape: f32[1,256], index: 4, kind: input, shape index: {}]
  %s5 = inlined_call_operand.vmem [shape: f32[1,256], index: 5, kind: input, shape index: {}]
  %s6 = inlined_call_operand.<no memory space> [shape: f32[1,1], index: 6, kind: input, shape index: {}]
  %s7 = inlined_call_operand.vmem [shape: f32[512,2], index: 7, kind: input, shape index: {}]
  %s8 = inlined_call_operand.vmem [shape: f32[1,2], index: 8, kind: input, shape index: {}]
  %s9 = inlined_call_operand.hbm [shape: f32[1,2], index: 9, kind: output, shape index: {}]
  %s10 = sld [smem:[#allocation0]]
  $region62: #{tpu_custom_call.1} parent=0
    _
  %s12 = ssub.s32 1, %s10
  %s13 = scalar_select 0, %s12, %s10
  %v14 = vstv %s6
  %15 = vst [vmem:[#allocation5] sm:$0x1] %v14
  $region1: #{tpu_custom_call.1} parent=0
    #allocation6 [shape = 'u8[307200]{0}', space=vmem, size = 0x4b000, scoped, tag = 'input window, operand 0, single buffered']
    #allocation7 [shape = 's32[1]{0}', space=sflag, size = 0x4, scoped, tag = 'scoped memory for tpu_custom_call.1']
    #allocation8 [shape = 's32[1]{0}', space=sflag, size = 0x4, scoped, tag = 'scoped memory for tpu_custom_call.1']
    #allocation9 [shape = 'u8[131072]{0}', space=vmem, size = 0x20000, scoped, tag = 'input window, operand 1, single buffered']
    #allocation10 [shape = 's32[1]{0}', space=sflag, size = 0x4, scoped, tag = 'scoped memory for tpu_custom_call.1']
    #allocation11 [shape = 'u8[512]{0}', space=vmem, size = 0x400, scoped, tag = 'output window, operand 0, single buffered']
    %16 = vsyncpa [#allocation7], 0
    %17 = vsyncpa [#allocation10], 0
    %18 = vsyncpa [#allocation8], 0
    // Predicated region
    $region2: #{tpu_custom_call.1} parent=1 // pred_check
      _
    $region3: #{tpu_custom_call.1} parent=1 // pred_check_branch
      %20 = sbr.rel (0) target = $region5
    $region4: #{tpu_custom_call.1} parent=1 // pred_region
      %22 = vsyncadd [#allocation7], 0
      %s23 = sshll.u32 %s0, 4
      %s24 = int_to_ptr.hbm [resolvable:$true] %s23
      %s25 = sshll.u32 [#allocation6], 4
      %s26 = int_to_ptr.vmem [resolvable:$true] %s25
      %31 = dma.hbm_to_vmem [thread:$0]  %s24, 9600, %s26, [#allocation7], 128, 128, 8
    $region5: #{tpu_custom_call.1} parent=1 // pred_fallthru
      _
    // Predicated region
    $region6: #{tpu_custom_call.1} parent=1 // pred_check
      _
    $region7: #{tpu_custom_call.1} parent=1 // pred_check_branch
      %33 = sbr.rel (0) target = $region9
    $region8: #{tpu_custom_call.1} parent=1 // pred_region
      %35 = vsyncadd [#allocation10], 0
      %s36 = sshll.u32 %s1, 4
      %s37 = int_to_ptr.hbm [resolvable:$true] %s36
      %s38 = sshll.u32 [#allocation9], 4
      %s39 = int_to_ptr.vmem [resolvable:$true] %s38
      %44 = dma.hbm_to_vmem [thread:$0]  %s37, 4096, %s39, [#allocation10], 256, 256, 16
    $region9: #{tpu_custom_call.1} parent=1 // pred_fallthru
      _
    // Predicated region
    $region10: #{tpu_custom_call.1} parent=1 // pred_check
      _
    $region11: #{tpu_custom_call.1} parent=1 // pred_check_branch
      %46 = sbr.rel (0) target = $region13
    $region12: #{tpu_custom_call.1} parent=1 // pred_region
      _
    $region13: #{tpu_custom_call.1} parent=1 // pred_fallthru
      _
    // Predicated region
    $region14: #{tpu_custom_call.1} parent=1 // pred_check
      _
    $region15: #{tpu_custom_call.1} parent=1 // pred_check_branch
      %48 = sbr.rel (0) target = $region17
    $region16: #{tpu_custom_call.1} parent=1 // pred_region
      _
    $region17: #{tpu_custom_call.1} parent=1 // pred_fallthru
      _
    // Predicated region
    $region18: #{tpu_custom_call.1} parent=1 // pred_check
      _
    $region19: #{tpu_custom_call.1} parent=1 // pred_check_branch
      %50 = sbr.rel (0) target = $region21
    $region20: #{tpu_custom_call.1} parent=1 // pred_region
      _
    $region21: #{tpu_custom_call.1} parent=1 // pred_fallthru
      _
    // Predicated region
    $region22: #{tpu_custom_call.1} parent=1 // pred_check
      _
    $region23: #{tpu_custom_call.1} parent=1 // pred_check_branch
      %52 = sbr.rel (0) target = $region25
    $region24: #{tpu_custom_call.1} parent=1 // pred_region
      _
    $region25: #{tpu_custom_call.1} parent=1 // pred_fallthru
      _
    // Predicated region
    $region26: #{tpu_custom_call.1} parent=1 // pred_check
      _
    $region27: #{tpu_custom_call.1} parent=1 // pred_check_branch
      %54 = sbr.rel (0) target = $region29
    $region28: #{tpu_custom_call.1} parent=1 // pred_region
      _
    $region29: #{tpu_custom_call.1} parent=1 // pred_fallthru
      _
    // Predicated region
    $region30: #{tpu_custom_call.1} parent=1 // pred_check
      _
    $region31: #{tpu_custom_call.1} parent=1 // pred_check_branch
      %56 = sbr.rel (0) target = $region33
    $region32: #{tpu_custom_call.1} parent=1 // pred_region
      _
    $region33: #{tpu_custom_call.1} parent=1 // pred_fallthru
      _
    // Predicated region
    $region34: #{tpu_custom_call.1} parent=1 // pred_check
      _
    $region35: #{tpu_custom_call.1} parent=1 // pred_check_branch
      %58 = sbr.rel (0) target = $region37
    $region36: #{tpu_custom_call.1} parent=1 // pred_region
      _
    $region37: #{tpu_custom_call.1} parent=1 // pred_fallthru
      _
    // Predicated region
    $region38: #{tpu_custom_call.1} parent=1 // pred_check
      _
    $region39: #{tpu_custom_call.1} parent=1 // pred_check_branch
      %60 = sbr.rel (0) target = $region41
    $region40: #{tpu_custom_call.1} parent=1 // pred_region
      %62 = dma.done [#allocation7], 9600
    $region41: #{tpu_custom_call.1} parent=1 // pred_fallthru
      _
    // Predicated region
    $region42: #{tpu_custom_call.1} parent=1 // pred_check
      _
    $region43: #{tpu_custom_call.1} parent=1 // pred_check_branch
      %64 = sbr.rel (0) target = $region45
    $region44: #{tpu_custom_call.1} parent=1 // pred_region
      %66 = dma.done [#allocation10], 4096
    $region45: #{tpu_custom_call.1} parent=1 // pred_fallthru
      _
    %p67 = scmp.eq.s32.totalorder 0, 0
    // Predicated region
    $region46: #{tpu_custom_call.1} parent=1 // pred_check
      %p68 = pneg %p67
    $region47: #{tpu_custom_call.1} parent=1 // pred_check_branch
      %70 = sbr.rel (%p68) target = $region49
    $region48: #{tpu_custom_call.1} parent=1 // pred_region
      %vm71 = vcmask 0
      %72 = vst.msk [vmem:[#allocation2] sm:$0x1] %vm71, -inf
      %73 = vst.msk [vmem:[#allocation3] sm:$0x1] %vm71, 0.0
      %v74 = vlaneseq
      %vm75 = vcmp.ge.s32.totalorder %v74, 0
      %vm76 = vcmp.lt.s32.totalorder %v74, 512
      %vm77 = vmand %vm75, %vm76
      %78 = vst.msk [vmem:[#allocation4] sm:$0xf] %vm77, 0.0
    $region49: #{tpu_custom_call.1} parent=1 // pred_fallthru
      _
    %v79 = vld [vmem:[#allocation6] sm:$0xff]
    %v80 = vld [vmem:[#allocation6 + $0x8] sm:$0xff]
    %v81 = vld [vmem:[#allocation6 + $0x10] sm:$0xff]
    %v82 = vld [vmem:[#allocation6 + $0x18] sm:$0xff]
    %v83 = vld [vmem:[#allocation6 + $0x20] sm:$0xff]
    %v84 = vld [vmem:[#allocation6 + $0x28] sm:$0xff]
    %v85 = vld [vmem:[#allocation6 + $0x30] sm:$0xff]
    %v86 = vld [vmem:[#allocation6 + $0x38] sm:$0xff]
    %v87 = vld [vmem:[#allocation6 + $0x40] sm:$0xff]
    %v88 = vld [vmem:[#allocation6 + $0x48] sm:$0xff]
    %v89 = vld [vmem:[#allocation6 + $0x50] sm:$0xff]
    %v90 = vld [vmem:[#allocation6 + $0x58] sm:$0xff]
    %v91 = vld [vmem:[#allocation6 + $0x60] sm:$0xff]
    %v92 = vld [vmem:[#allocation6 + $0x68] sm:$0xff]
    %v93 = vld [vmem:[#allocation6 + $0x70] sm:$0xff]
    %v94 = vld [vmem:[#allocation6 + $0x78] sm:$0xff]
    %v95 = vld [vmem:[#allocation6 + $0x80] sm:$0xff]
    %v96 = vld [vmem:[#allocation6 + $0x88] sm:$0xff]
    %v97 = vld [vmem:[#allocation6 + $0x90] sm:$0xff]
    %v98 = vld [vmem:[#allocation6 + $0x98] sm:$0xff]
    %v99 = vld [vmem:[#allocation6 + $0xa0] sm:$0xff]
    %v100 = vld [vmem:[#allocation6 + $0xa8] sm:$0xff]
    %v101 = vld [vmem:[#allocation6 + $0xb0] sm:$0xff]
    %v102 = vld [vmem:[#allocation6 + $0xb8] sm:$0xff]
    %v103 = vld [vmem:[#allocation6 + $0xc0] sm:$0xff]
    %v104 = vld [vmem:[#allocation6 + $0xc8] sm:$0xff]
    %v105 = vld [vmem:[#allocation6 + $0xd0] sm:$0xff]
    %v106 = vld [vmem:[#allocation6 + $0xd8] sm:$0xff]
    %v107 = vld [vmem:[#allocation6 + $0xe0] sm:$0xff]
    %v108 = vld [vmem:[#allocation6 + $0xe8] sm:$0xff]
    %v109 = vld [vmem:[#allocation6 + $0xf0] sm:$0xff]
    %v110 = vld [vmem:[#allocation6 + $0xf8] sm:$0xff]
    %v111 = vld [vmem:[#allocation6 + $0x100] sm:$0xff]
    %v112 = vld [vmem:[#allocation6 + $0x108] sm:$0xff]
    %v113 = vld [vmem:[#allocation6 + $0x110] sm:$0xff]
    %v114 = vld [vmem:[#allocation6 + $0x118] sm:$0xff]
    %v115 = vld [vmem:[#allocation6 + $0x120] sm:$0xff]
    %v116 = vld [vmem:[#allocation6 + $0x128] sm:$0xff]
    %v117 = vld [vmem:[#allocation6 + $0x130] sm:$0xff]
    %v118 = vld [vmem:[#allocation6 + $0x138] sm:$0xff]
    %v119 = vld [vmem:[#allocation6 + $0x140] sm:$0xff]
    %v120 = vld [vmem:[#allocation6 + $0x148] sm:$0xff]
    %v121 = vld [vmem:[#allocation6 + $0x150] sm:$0xff]
    %v122 = vld [vmem:[#allocation6 + $0x158] sm:$0xff]
    %v123 = vld [vmem:[#allocation6 + $0x160] sm:$0xff]
    %v124 = vld [vmem:[#allocation6 + $0x168] sm:$0xff]
    %v125 = vld [vmem:[#allocation6 + $0x170] sm:$0xff]
    %v126 = vld [vmem:[#allocation6 + $0x178] sm:$0xff]
    %v127 = vld [vmem:[#allocation6 + $0x180] sm:$0xff]
    %v128 = vld [vmem:[#allocation6 + $0x188] sm:$0xff]
    %v129 = vld [vmem:[#allocation6 + $0x190] sm:$0xff]
    %v130 = vld [vmem:[#allocation6 + $0x198] sm:$0xff]
    %v131 = vld [vmem:[#allocation6 + $0x1a0] sm:$0xff]
    %v132 = vld [vmem:[#allocation6 + $0x1a8] sm:$0xff]
    %v133 = vld [vmem:[#allocation6 + $0x1b0] sm:$0xff]
    %v134 = vld [vmem:[#allocation6 + $0x1b8] sm:$0xff]
    %v135 = vld [vmem:[#allocation6 + $0x1c0] sm:$0xff]
    %v136 = vld [vmem:[#allocation6 + $0x1c8] sm:$0xff]
    %v137 = vld [vmem:[#allocation6 + $0x1d0] sm:$0xff]
    %v138 = vld [vmem:[#allocation6 + $0x1d8] sm:$0xff]
    %v139 = vld [vmem:[#allocation6 + $0x1e0] sm:$0xff]
    %v140 = vld [vmem:[#allocation6 + $0x1e8] sm:$0xff]
    %v141 = vld [vmem:[#allocation6 + $0x1f0] sm:$0xff]
    %v142 = vld [vmem:[#allocation6 + $0x1f8] sm:$0xff]
    %v143 = vld [vmem:[#allocation6 + $0x200] sm:$0xff]
    %v144 = vld [vmem:[#allocation6 + $0x208] sm:$0xff]
    %v145 = vld [vmem:[#allocation6 + $0x210] sm:$0xff]
    %v146 = vld [vmem:[#allocation6 + $0x218] sm:$0xff]
    %v147 = vld [vmem:[#allocation6 + $0x220] sm:$0xff]
    %v148 = vld [vmem:[#allocation6 + $0x228] sm:$0xff]
    %v149 = vld [vmem:[#allocation6 + $0x230] sm:$0xff]
    %v150 = vld [vmem:[#allocation6 + $0x238] sm:$0xff]
    %v151 = vld [vmem:[#allocation6 + $0x240] sm:$0xff]
    %v152 = vld [vmem:[#allocation6 + $0x248] sm:$0xff]
    %v153 = vld [vmem:[#allocation6 + $0x250] sm:$0xff]
    %v154 = vpack.c.bf16 %v80, %v79
    %v155 = vpack.c.bf16 %v82, %v81
    %v156 = vpack.c.bf16 %v84, %v83
    %v157 = vpack.c.bf16 %v86, %v85
    %v158 = vpack.c.bf16 %v88, %v87
    %v159 = vpack.c.bf16 %v90, %v89
    %v160 = vpack.c.bf16 %v92, %v91
    %v161 = vpack.c.bf16 %v94, %v93
    %v162 = vpack.c.bf16 %v96, %v95
    %v163 = vpack.c.bf16 %v98, %v97
    %v164 = vpack.c.bf16 %v100, %v99
    %v165 = vpack.c.bf16 %v102, %v101
    %v166 = vpack.c.bf16 %v104, %v103
    %v167 = vpack.c.bf16 %v106, %v105
    %v168 = vpack.c.bf16 %v108, %v107
    %v169 = vpack.c.bf16 %v110, %v109
    %v170 = vpack.c.bf16 %v112, %v111
    %v171 = vpack.c.bf16 %v114, %v113
    %v172 = vpack.c.bf16 %v116, %v115
    %v173 = vpack.c.bf16 %v118, %v117
    %v174 = vpack.c.bf16 %v120, %v119
    %v175 = vpack.c.bf16 %v122, %v121
    %v176 = vpack.c.bf16 %v124, %v123
    %v177 = vpack.c.bf16 %v126, %v125
    %v178 = vpack.c.bf16 %v128, %v127
    %v179 = vpack.c.bf16 %v130, %v129
    %v180 = vpack.c.bf16 %v132, %v131
    %v181 = vpack.c.bf16 %v134, %v133
    %v182 = vpack.c.bf16 %v136, %v135
    %v183 = vpack.c.bf16 %v138, %v137
    %v184 = vpack.c.bf16 %v140, %v139
    %v185 = vpack.c.bf16 %v142, %v141
    %v186 = vpack.c.bf16 %v144, %v143
    %v187 = vpack.c.bf16 %v146, %v145
    %v188 = vpack.c.bf16 %v148, %v147
    %v189 = vpack.c.bf16 %v150, %v149
    %v190 = vpack.c.bf16 %v152, %v151
    %v191 = vpack.c.bf16 %v153, %v153
    %v192 = vld [vmem:[#allocation9] sm:$0xff]
    %v193 = vld [vmem:[#allocation9 + $0x8] sm:$0xff]
    %v194 = vld [vmem:[#allocation9 + $0x10] sm:$0xff]
    %v195 = vld [vmem:[#allocation9 + $0x18] sm:$0xff]
    %v196 = vld [vmem:[#allocation9 + $0x20] sm:$0xff]
    %v197 = vld [vmem:[#allocation9 + $0x28] sm:$0xff]
    %v198 = vld [vmem:[#allocation9 + $0x30] sm:$0xff]
    %v199 = vld [vmem:[#allocation9 + $0x38] sm:$0xff]
    %v200 = vld [vmem:[#allocation9 + $0x40] sm:$0xff]
    %v201 = vld [vmem:[#allocation9 + $0x48] sm:$0xff]
    %v202 = vld [vmem:[#allocation9 + $0x50] sm:$0xff]
    %v203 = vld [vmem:[#allocation9 + $0x58] sm:$0xff]
    %v204 = vld [vmem:[#allocation9 + $0x60] sm:$0xff]
    %v205 = vld [vmem:[#allocation9 + $0x68] sm:$0xff]
    %v206 = vld [vmem:[#allocation9 + $0x70] sm:$0xff]
    %v207 = vld [vmem:[#allocation9 + $0x78] sm:$0xff]
    %v208 = vld [vmem:[#allocation9 + $0x80] sm:$0xff]
    %v209 = vld [vmem:[#allocation9 + $0x88] sm:$0xff]
    %v210 = vld [vmem:[#allocation9 + $0x90] sm:$0xff]
    %v211 = vld [vmem:[#allocation9 + $0x98] sm:$0xff]
    %v212 = vld [vmem:[#allocation9 + $0xa0] sm:$0xff]
    %v213 = vld [vmem:[#allocation9 + $0xa8] sm:$0xff]
    %v214 = vld [vmem:[#allocation9 + $0xb0] sm:$0xff]
    %v215 = vld [vmem:[#allocation9 + $0xb8] sm:$0xff]
    %v216 = vld [vmem:[#allocation9 + $0xc0] sm:$0xff]
    %v217 = vld [vmem:[#allocation9 + $0xc8] sm:$0xff]
    %v218 = vld [vmem:[#allocation9 + $0xd0] sm:$0xff]
    %v219 = vld [vmem:[#allocation9 + $0xd8] sm:$0xff]
    %v220 = vld [vmem:[#allocation9 + $0xe0] sm:$0xff]
    %v221 = vld [vmem:[#allocation9 + $0xe8] sm:$0xff]
    %v222 = vld [vmem:[#allocation9 + $0xf0] sm:$0xff]
    %v223 = vld [vmem:[#allocation9 + $0xf8] sm:$0xff]
    %v224 = vld [vmem:[%s2] sm:$0xf]
    %v226 = vperm.slane %v224, 0
    %v227 = vperm.slane %v224, 1
    %v228 = vperm.slane %v224, 2
    %v229 = vperm.slane %v224, 3
    %v266 = vunpack.c.l.b16 %v192
    %v267 = vunpack.c.h.b16 %v192
    %v268 = vunpack.c.l.b16 %v193
    %v269 = vunpack.c.h.b16 %v193
    %v270 = vunpack.c.l.b16 %v194
    %v271 = vunpack.c.h.b16 %v194
    %v272 = vunpack.c.l.b16 %v195
    %v273 = vunpack.c.h.b16 %v195
    %v274 = vunpack.c.l.b16 %v196
    %v275 = vunpack.c.h.b16 %v196
    %v276 = vunpack.c.l.b16 %v197
    %v277 = vunpack.c.h.b16 %v197
    %v278 = vunpack.c.l.b16 %v198
    %v279 = vunpack.c.h.b16 %v198
    %v280 = vunpack.c.l.b16 %v199
    %v281 = vunpack.c.h.b16 %v199
    %v282 = vunpack.c.l.b16 %v200
    %v283 = vunpack.c.h.b16 %v200
    %v284 = vunpack.c.l.b16 %v201
    %v285 = vunpack.c.h.b16 %v201
    %v286 = vunpack.c.l.b16 %v202
    %v287 = vunpack.c.h.b16 %v202
    %v288 = vunpack.c.l.b16 %v203
    %v289 = vunpack.c.h.b16 %v203
    %v290 = vunpack.c.l.b16 %v204
    %v291 = vunpack.c.h.b16 %v204
    %v292 = vunpack.c.l.b16 %v205
    %v293 = vunpack.c.h.b16 %v205
    %v294 = vunpack.c.l.b16 %v206
    %v295 = vunpack.c.h.b16 %v206
    %v296 = vunpack.c.l.b16 %v207
    %v297 = vunpack.c.h.b16 %v207
    %v298 = vunpack.c.l.b16 %v208
    %v299 = vunpack.c.h.b16 %v208
    %v300 = vunpack.c.l.b16 %v209
    %v301 = vunpack.c.h.b16 %v209
    %v302 = vunpack.c.l.b16 %v210
    %v303 = vunpack.c.h.b16 %v210
    %v304 = vunpack.c.l.b16 %v211
    %v305 = vunpack.c.h.b16 %v211
    %v306 = vunpack.c.l.b16 %v212
    %v307 = vunpack.c.h.b16 %v212
    %v308 = vunpack.c.l.b16 %v213
    %v309 = vunpack.c.h.b16 %v213
    %v310 = vunpack.c.l.b16 %v214
    %v311 = vunpack.c.h.b16 %v214
    %v312 = vunpack.c.l.b16 %v215
    %v313 = vunpack.c.h.b16 %v215
    %v314 = vunpack.c.l.b16 %v216
    %v315 = vunpack.c.h.b16 %v216
    %v316 = vunpack.c.l.b16 %v217
    %v317 = vunpack.c.h.b16 %v217
    %v318 = vunpack.c.l.b16 %v218
    %v319 = vunpack.c.h.b16 %v218
    %v320 = vunpack.c.l.b16 %v219
    %v321 = vunpack.c.h.b16 %v219
    %v322 = vunpack.c.l.b16 %v220
    %v323 = vunpack.c.h.b16 %v220
    %v324 = vunpack.c.l.b16 %v221
    %v325 = vunpack.c.h.b16 %v221
    %v326 = vunpack.c.l.b16 %v222
    %v327 = vunpack.c.h.b16 %v222
    %v328 = vunpack.c.l.b16 %v223
    %v329 = vunpack.c.h.b16 %v223
    %v330 = vpack.c.b16 %v270, %v266
    %v331 = vpack.c.b16 %v271, %v267
    %v332 = vpack.c.b16 %v272, %v268
    %v333 = vpack.c.b16 %v273, %v269
    %v334 = vpack.c.b16 %v278, %v274
    %v335 = vpack.c.b16 %v279, %v275
    %v336 = vpack.c.b16 %v280, %v276
    %v337 = vpack.c.b16 %v281, %v277
    %v338 = vpack.c.b16 %v286, %v282
    %v339 = vpack.c.b16 %v287, %v283
    %v340 = vpack.c.b16 %v288, %v284
    %v341 = vpack.c.b16 %v289, %v285
    %v342 = vpack.c.b16 %v294, %v290
    %v343 = vpack.c.b16 %v295, %v291
    %v344 = vpack.c.b16 %v296, %v292
    %v345 = vpack.c.b16 %v297, %v293
    %v346 = vpack.c.b16 %v302, %v298
    %v347 = vpack.c.b16 %v303, %v299
    %v348 = vpack.c.b16 %v304, %v300
    %v349 = vpack.c.b16 %v305, %v301
    %v350 = vpack.c.b16 %v310, %v306
    %v351 = vpack.c.b16 %v311, %v307
    %v352 = vpack.c.b16 %v312, %v308
    %v353 = vpack.c.b16 %v313, %v309
    %v354 = vpack.c.b16 %v318, %v314
    %v355 = vpack.c.b16 %v319, %v315
    %v356 = vpack.c.b16 %v320, %v316
    %v357 = vpack.c.b16 %v321, %v317
    %v358 = vpack.c.b16 %v326, %v322
    %v359 = vpack.c.b16 %v327, %v323
    %v360 = vpack.c.b16 %v328, %v324
    %v361 = vpack.c.b16 %v329, %v325
    %394 = vmatpush.bf16.msra.mxu0 %v358
    %395 = vmatpush.bf16.msra.mxu0 %v354
    %396 = vmatpush.bf16.msra.mxu0 %v350
    %397 = vmatpush.bf16.msra.mxu0 %v346
    %398 = vmatpush.bf16.msra.mxu0 %v342
    %399 = vmatpush.bf16.msra.mxu0 %v338
    %400 = vmatpush.bf16.msra.mxu0 %v334
    %401 = vmatpush.bf16.msra.mxu0 %v330
    %402 = vmatmul.bf16.gmra.mxu0 %v154
    %v403 = vpop.f32.mrf.mxu0
    %v404 = vadd.f32 %v226, %v403
    %v405 = vpop.f32.mrf.mxu0
    %v406 = vadd.f32 %v226, %v405
    %407 = vmatmul.bf16.gmra.mxu0 %v155
    %v408 = vpop.f32.mrf.mxu0
    %v409 = vadd.f32 %v226, %v408
    %v410 = vpop.f32.mrf.mxu0
    %v411 = vadd.f32 %v226, %v410
    %412 = vmatmul.bf16.gmra.mxu0 %v156
    %v413 = vpop.f32.mrf.mxu0
    %v414 = vadd.f32 %v226, %v413
    %v415 = vpop.f32.mrf.mxu0
    %v416 = vadd.f32 %v226, %v415
    %417 = vmatmul.bf16.gmra.mxu0 %v157
    %v418 = vpop.f32.mrf.mxu0
    %v419 = vadd.f32 %v226, %v418
    %v420 = vpop.f32.mrf.mxu0
    %v421 = vadd.f32 %v226, %v420
    %422 = vmatmul.bf16.gmra.mxu0 %v158
    %v423 = vpop.f32.mrf.mxu0
    %v424 = vadd.f32 %v226, %v423
    %v425 = vpop.f32.mrf.mxu0
    %v426 = vadd.f32 %v226, %v425
    %427 = vmatmul.bf16.gmra.mxu0 %v159
    %v428 = vpop.f32.mrf.mxu0
    %v429 = vadd.f32 %v226, %v428
    %v430 = vpop.f32.mrf.mxu0
    %v431 = vadd.f32 %v226, %v430
    %432 = vmatmul.bf16.gmra.mxu0 %v160
    %v433 = vpop.f32.mrf.mxu0
    %v434 = vadd.f32 %v226, %v433
    %v435 = vpop.f32.mrf.mxu0
    %v436 = vadd.f32 %v226, %v435
    %437 = vmatmul.bf16.gmra.mxu0 %v161
    %v438 = vpop.f32.mrf.mxu0
    %v439 = vadd.f32 %v226, %v438
    %v440 = vpop.f32.mrf.mxu0
    %v441 = vadd.f32 %v226, %v440
    %442 = vmatmul.bf16.gmra.mxu0 %v162
    %v443 = vpop.f32.mrf.mxu0
    %v444 = vadd.f32 %v226, %v443
    %v445 = vpop.f32.mrf.mxu0
    %v446 = vadd.f32 %v226, %v445
    %447 = vmatmul.bf16.gmra.mxu0 %v163
    %v448 = vpop.f32.mrf.mxu0
    %v449 = vadd.f32 %v226, %v448
    %v450 = vpop.f32.mrf.mxu0
    %v451 = vadd.f32 %v226, %v450
    %452 = vmatmul.bf16.gmra.mxu0 %v164
    %v453 = vpop.f32.mrf.mxu0
    %v454 = vadd.f32 %v226, %v453
    %v455 = vpop.f32.mrf.mxu0
    %v456 = vadd.f32 %v226, %v455
    %457 = vmatmul.bf16.gmra.mxu0 %v165
    %v458 = vpop.f32.mrf.mxu0
    %v459 = vadd.f32 %v226, %v458
    %v460 = vpop.f32.mrf.mxu0
    %v461 = vadd.f32 %v226, %v460
    %462 = vmatmul.bf16.gmra.mxu0 %v166
    %v463 = vpop.f32.mrf.mxu0
    %v464 = vadd.f32 %v226, %v463
    %v465 = vpop.f32.mrf.mxu0
    %v466 = vadd.f32 %v226, %v465
    %467 = vmatmul.bf16.gmra.mxu0 %v167
    %v468 = vpop.f32.mrf.mxu0
    %v469 = vadd.f32 %v226, %v468
    %v470 = vpop.f32.mrf.mxu0
    %v471 = vadd.f32 %v226, %v470
    %472 = vmatmul.bf16.gmra.mxu0 %v168
    %v473 = vpop.f32.mrf.mxu0
    %v474 = vadd.f32 %v226, %v473
    %v475 = vpop.f32.mrf.mxu0
    %v476 = vadd.f32 %v226, %v475
    %477 = vmatmul.bf16.gmra.mxu0 %v169
    %v478 = vpop.f32.mrf.mxu0
    %v479 = vadd.f32 %v226, %v478
    %v480 = vpop.f32.mrf.mxu0
    %v481 = vadd.f32 %v226, %v480
    %482 = vmatmul.bf16.gmra.mxu0 %v170
    %v483 = vpop.f32.mrf.mxu0
    %v484 = vadd.f32 %v226, %v483
    %v485 = vpop.f32.mrf.mxu0
    %v486 = vadd.f32 %v226, %v485
    %487 = vmatmul.bf16.gmra.mxu0 %v171
    %v488 = vpop.f32.mrf.mxu0
    %v489 = vadd.f32 %v226, %v488
    %v490 = vpop.f32.mrf.mxu0
    %v491 = vadd.f32 %v226, %v490
    %492 = vmatmul.bf16.gmra.mxu0 %v172
    %v493 = vpop.f32.mrf.mxu0
    %v494 = vadd.f32 %v226, %v493
    %v495 = vpop.f32.mrf.mxu0
    %v496 = vadd.f32 %v226, %v495
    %497 = vmatmul.bf16.gmra.mxu0 %v173
    %v498 = vpop.f32.mrf.mxu0
    %v499 = vadd.f32 %v226, %v498
    %v500 = vpop.f32.mrf.mxu0
    %v501 = vadd.f32 %v226, %v500
    %502 = vmatmul.bf16.gmra.mxu0 %v174
    %v503 = vpop.f32.mrf.mxu0
    %v504 = vadd.f32 %v226, %v503
    %v505 = vpop.f32.mrf.mxu0
    %v506 = vadd.f32 %v226, %v505
    %507 = vmatmul.bf16.gmra.mxu0 %v175
    %v508 = vpop.f32.mrf.mxu0
    %v509 = vadd.f32 %v226, %v508
    %v510 = vpop.f32.mrf.mxu0
    %v511 = vadd.f32 %v226, %v510
    %512 = vmatmul.bf16.gmra.mxu0 %v176
    %v513 = vpop.f32.mrf.mxu0
    %v514 = vadd.f32 %v226, %v513
    %v515 = vpop.f32.mrf.mxu0
    %v516 = vadd.f32 %v226, %v515
    %517 = vmatmul.bf16.gmra.mxu0 %v177
    %v518 = vpop.f32.mrf.mxu0
    %v519 = vadd.f32 %v226, %v518
    %v520 = vpop.f32.mrf.mxu0
    %v521 = vadd.f32 %v226, %v520
    %522 = vmatmul.bf16.gmra.mxu0 %v178
    %v523 = vpop.f32.mrf.mxu0
    %v524 = vadd.f32 %v226, %v523
    %v525 = vpop.f32.mrf.mxu0
    %v526 = vadd.f32 %v226, %v525
    %527 = vmatmul.bf16.gmra.mxu0 %v179
    %v528 = vpop.f32.mrf.mxu0
    %v529 = vadd.f32 %v226, %v528
    %v530 = vpop.f32.mrf.mxu0
    %v531 = vadd.f32 %v226, %v530
    %532 = vmatmul.bf16.gmra.mxu0 %v180
    %v533 = vpop.f32.mrf.mxu0
    %v534 = vadd.f32 %v226, %v533
    %v535 = vpop.f32.mrf.mxu0
    %v536 = vadd.f32 %v226, %v535
    %537 = vmatmul.bf16.gmra.mxu0 %v181
    %v538 = vpop.f32.mrf.mxu0
    %v539 = vadd.f32 %v226, %v538
    %v540 = vpop.f32.mrf.mxu0
    %v541 = vadd.f32 %v226, %v540
    %542 = vmatmul.bf16.gmra.mxu0 %v182
    %v543 = vpop.f32.mrf.mxu0
    %v544 = vadd.f32 %v226, %v543
    %v545 = vpop.f32.mrf.mxu0
    %v546 = vadd.f32 %v226, %v545
    %547 = vmatmul.bf16.gmra.mxu0 %v183
    %v548 = vpop.f32.mrf.mxu0
    %v549 = vadd.f32 %v226, %v548
    %v550 = vpop.f32.mrf.mxu0
    %v551 = vadd.f32 %v226, %v550
    %552 = vmatmul.bf16.gmra.mxu0 %v184
    %v553 = vpop.f32.mrf.mxu0
    %v554 = vadd.f32 %v226, %v553
    %v555 = vpop.f32.mrf.mxu0
    %v556 = vadd.f32 %v226, %v555
    %557 = vmatmul.bf16.gmra.mxu0 %v185
    %v558 = vpop.f32.mrf.mxu0
    %v559 = vadd.f32 %v226, %v558
    %v560 = vpop.f32.mrf.mxu0
    %v561 = vadd.f32 %v226, %v560
    %562 = vmatmul.bf16.gmra.mxu0 %v186
    %v563 = vpop.f32.mrf.mxu0
    %v564 = vadd.f32 %v226, %v563
    %v565 = vpop.f32.mrf.mxu0
    %v566 = vadd.f32 %v226, %v565
    %567 = vmatmul.bf16.gmra.mxu0 %v187
    %v568 = vpop.f32.mrf.mxu0
    %v569 = vadd.f32 %v226, %v568
    %v570 = vpop.f32.mrf.mxu0
    %v571 = vadd.f32 %v226, %v570
    %572 = vmatmul.bf16.gmra.mxu0 %v188
    %v573 = vpop.f32.mrf.mxu0
    %v574 = vadd.f32 %v226, %v573
    %v575 = vpop.f32.mrf.mxu0
    %v576 = vadd.f32 %v226, %v575
    %577 = vmatmul.bf16.gmra.mxu0 %v189
    %v578 = vpop.f32.mrf.mxu0
    %v579 = vadd.f32 %v226, %v578
    %v580 = vpop.f32.mrf.mxu0
    %v581 = vadd.f32 %v226, %v580
    %582 = vmatmul.bf16.gmra.mxu0 %v190
    %v583 = vpop.f32.mrf.mxu0
    %v584 = vadd.f32 %v226, %v583
    %v585 = vpop.f32.mrf.mxu0
    %v586 = vadd.f32 %v226, %v585
    %587 = vmatmul.bf16.gmra.mxu0 %v191
    %v588 = vpop.f32.mrf.mxu0
    %v589 = vadd.f32 %v226, %v588
    %v590 = vpop.f32.mrf.mxu0
    %591 = vdwg.mxu0
    %592 = vmatpush.bf16.msra.mxu0 %v359
    %593 = vmatpush.bf16.msra.mxu0 %v355
    %594 = vmatpush.bf16.msra.mxu0 %v351
    %595 = vmatpush.bf16.msra.mxu0 %v347
    %596 = vmatpush.bf16.msra.mxu0 %v343
    %597 = vmatpush.bf16.msra.mxu0 %v339
    %598 = vmatpush.bf16.msra.mxu0 %v335
    %599 = vmatpush.bf16.msra.mxu0 %v331
    %600 = vmatmul.bf16.gmra.mxu0 %v154
    %v601 = vpop.f32.mrf.mxu0
    %v602 = vadd.f32 %v227, %v601
    %v603 = vpop.f32.mrf.mxu0
    %v604 = vadd.f32 %v227, %v603
    %605 = vmatmul.bf16.gmra.mxu0 %v155
    %v606 = vpop.f32.mrf.mxu0
    %v607 = vadd.f32 %v227, %v606
    %v608 = vpop.f32.mrf.mxu0
    %v609 = vadd.f32 %v227, %v608
    %610 = vmatmul.bf16.gmra.mxu0 %v156
    %v611 = vpop.f32.mrf.mxu0
    %v612 = vadd.f32 %v227, %v611
    %v613 = vpop.f32.mrf.mxu0
    %v614 = vadd.f32 %v227, %v613
    %615 = vmatmul.bf16.gmra.mxu0 %v157
    %v616 = vpop.f32.mrf.mxu0
    %v617 = vadd.f32 %v227, %v616
    %v618 = vpop.f32.mrf.mxu0
    %v619 = vadd.f32 %v227, %v618
    %620 = vmatmul.bf16.gmra.mxu0 %v158
    %v621 = vpop.f32.mrf.mxu0
    %v622 = vadd.f32 %v227, %v621
    %v623 = vpop.f32.mrf.mxu0
    %v624 = vadd.f32 %v227, %v623
    %625 = vmatmul.bf16.gmra.mxu0 %v159
    %v626 = vpop.f32.mrf.mxu0
    %v627 = vadd.f32 %v227, %v626
    %v628 = vpop.f32.mrf.mxu0
    %v629 = vadd.f32 %v227, %v628
    %630 = vmatmul.bf16.gmra.mxu0 %v160
    %v631 = vpop.f32.mrf.mxu0
    %v632 = vadd.f32 %v227, %v631
    %v633 = vpop.f32.mrf.mxu0
    %v634 = vadd.f32 %v227, %v633
    %635 = vmatmul.bf16.gmra.mxu0 %v161
    %v636 = vpop.f32.mrf.mxu0
    %v637 = vadd.f32 %v227, %v636
    %v638 = vpop.f32.mrf.mxu0
    %v639 = vadd.f32 %v227, %v638
    %640 = vmatmul.bf16.gmra.mxu0 %v162
    %v641 = vpop.f32.mrf.mxu0
    %v642 = vadd.f32 %v227, %v641
    %v643 = vpop.f32.mrf.mxu0
    %v644 = vadd.f32 %v227, %v643
    %645 = vmatmul.bf16.gmra.mxu0 %v163
    %v646 = vpop.f32.mrf.mxu0
    %v647 = vadd.f32 %v227, %v646
    %v648 = vpop.f32.mrf.mxu0
    %v649 = vadd.f32 %v227, %v648
    %650 = vmatmul.bf16.gmra.mxu0 %v164
    %v651 = vpop.f32.mrf.mxu0
    %v652 = vadd.f32 %v227, %v651
    %v653 = vpop.f32.mrf.mxu0
    %v654 = vadd.f32 %v227, %v653
    %655 = vmatmul.bf16.gmra.mxu0 %v165
    %v656 = vpop.f32.mrf.mxu0
    %v657 = vadd.f32 %v227, %v656
    %v658 = vpop.f32.mrf.mxu0
    %v659 = vadd.f32 %v227, %v658
    %660 = vmatmul.bf16.gmra.mxu0 %v166
    %v661 = vpop.f32.mrf.mxu0
    %v662 = vadd.f32 %v227, %v661
    %v663 = vpop.f32.mrf.mxu0
    %v664 = vadd.f32 %v227, %v663
    %665 = vmatmul.bf16.gmra.mxu0 %v167
    %v666 = vpop.f32.mrf.mxu0
    %v667 = vadd.f32 %v227, %v666
    %v668 = vpop.f32.mrf.mxu0
    %v669 = vadd.f32 %v227, %v668
    %670 = vmatmul.bf16.gmra.mxu0 %v168
    %v671 = vpop.f32.mrf.mxu0
    %v672 = vadd.f32 %v227, %v671
    %v673 = vpop.f32.mrf.mxu0
    %v674 = vadd.f32 %v227, %v673
    %675 = vmatmul.bf16.gmra.mxu0 %v169
    %v676 = vpop.f32.mrf.mxu0
    %v677 = vadd.f32 %v227, %v676
    %v678 = vpop.f32.mrf.mxu0
    %v679 = vadd.f32 %v227, %v678
    %680 = vmatmul.bf16.gmra.mxu0 %v170
    %v681 = vpop.f32.mrf.mxu0
    %v682 = vadd.f32 %v227, %v681
    %v683 = vpop.f32.mrf.mxu0
    %v684 = vadd.f32 %v227, %v683
    %685 = vmatmul.bf16.gmra.mxu0 %v171
    %v686 = vpop.f32.mrf.mxu0
    %v687 = vadd.f32 %v227, %v686
    %v688 = vpop.f32.mrf.mxu0
    %v689 = vadd.f32 %v227, %v688
    %690 = vmatmul.bf16.gmra.mxu0 %v172
    %v691 = vpop.f32.mrf.mxu0
    %v692 = vadd.f32 %v227, %v691
    %v693 = vpop.f32.mrf.mxu0
    %v694 = vadd.f32 %v227, %v693
    %695 = vmatmul.bf16.gmra.mxu0 %v173
    %v696 = vpop.f32.mrf.mxu0
    %v697 = vadd.f32 %v227, %v696
    %v698 = vpop.f32.mrf.mxu0
    %v699 = vadd.f32 %v227, %v698
    %700 = vmatmul.bf16.gmra.mxu0 %v174
    %v701 = vpop.f32.mrf.mxu0
    %v702 = vadd.f32 %v227, %v701
    %v703 = vpop.f32.mrf.mxu0
    %v704 = vadd.f32 %v227, %v703
    %705 = vmatmul.bf16.gmra.mxu0 %v175
    %v706 = vpop.f32.mrf.mxu0
    %v707 = vadd.f32 %v227, %v706
    %v708 = vpop.f32.mrf.mxu0
    %v709 = vadd.f32 %v227, %v708
    %710 = vmatmul.bf16.gmra.mxu0 %v176
    %v711 = vpop.f32.mrf.mxu0
    %v712 = vadd.f32 %v227, %v711
    %v713 = vpop.f32.mrf.mxu0
    %v714 = vadd.f32 %v227, %v713
    %715 = vmatmul.bf16.gmra.mxu0 %v177
    %v716 = vpop.f32.mrf.mxu0
    %v717 = vadd.f32 %v227, %v716
    %v718 = vpop.f32.mrf.mxu0
    %v719 = vadd.f32 %v227, %v718
    %720 = vmatmul.bf16.gmra.mxu0 %v178
    %v721 = vpop.f32.mrf.mxu0
    %v722 = vadd.f32 %v227, %v721
    %v723 = vpop.f32.mrf.mxu0
    %v724 = vadd.f32 %v227, %v723
    %725 = vmatmul.bf16.gmra.mxu0 %v179
    %v726 = vpop.f32.mrf.mxu0
    %v727 = vadd.f32 %v227, %v726
    %v728 = vpop.f32.mrf.mxu0
    %v729 = vadd.f32 %v227, %v728
    %730 = vmatmul.bf16.gmra.mxu0 %v180
    %v731 = vpop.f32.mrf.mxu0
    %v732 = vadd.f32 %v227, %v731
    %v733 = vpop.f32.mrf.mxu0
    %v734 = vadd.f32 %v227, %v733
    %735 = vmatmul.bf16.gmra.mxu0 %v181
    %v736 = vpop.f32.mrf.mxu0
    %v737 = vadd.f32 %v227, %v736
    %v738 = vpop.f32.mrf.mxu0
    %v739 = vadd.f32 %v227, %v738
    %740 = vmatmul.bf16.gmra.mxu0 %v182
    %v741 = vpop.f32.mrf.mxu0
    %v742 = vadd.f32 %v227, %v741
    %v743 = vpop.f32.mrf.mxu0
    %v744 = vadd.f32 %v227, %v743
    %745 = vmatmul.bf16.gmra.mxu0 %v183
    %v746 = vpop.f32.mrf.mxu0
    %v747 = vadd.f32 %v227, %v746
    %v748 = vpop.f32.mrf.mxu0
    %v749 = vadd.f32 %v227, %v748
    %750 = vmatmul.bf16.gmra.mxu0 %v184
    %v751 = vpop.f32.mrf.mxu0
    %v752 = vadd.f32 %v227, %v751
    %v753 = vpop.f32.mrf.mxu0
    %v754 = vadd.f32 %v227, %v753
    %755 = vmatmul.bf16.gmra.mxu0 %v185
    %v756 = vpop.f32.mrf.mxu0
    %v757 = vadd.f32 %v227, %v756
    %v758 = vpop.f32.mrf.mxu0
    %v759 = vadd.f32 %v227, %v758
    %760 = vmatmul.bf16.gmra.mxu0 %v186
    %v761 = vpop.f32.mrf.mxu0
    %v762 = vadd.f32 %v227, %v761
    %v763 = vpop.f32.mrf.mxu0
    %v764 = vadd.f32 %v227, %v763
    %765 = vmatmul.bf16.gmra.mxu0 %v187
    %v766 = vpop.f32.mrf.mxu0
    %v767 = vadd.f32 %v227, %v766
    %v768 = vpop.f32.mrf.mxu0
    %v769 = vadd.f32 %v227, %v768
    %770 = vmatmul.bf16.gmra.mxu0 %v188
    %v771 = vpop.f32.mrf.mxu0
    %v772 = vadd.f32 %v227, %v771
    %v773 = vpop.f32.mrf.mxu0
    %v774 = vadd.f32 %v227, %v773
    %775 = vmatmul.bf16.gmra.mxu0 %v189
    %v776 = vpop.f32.mrf.mxu0
    %v777 = vadd.f32 %v227, %v776
    %v778 = vpop.f32.mrf.mxu0
    %v779 = vadd.f32 %v227, %v778
    %780 = vmatmul.bf16.gmra.mxu0 %v190
    %v781 = vpop.f32.mrf.mxu0
    %v782 = vadd.f32 %v227, %v781
    %v783 = vpop.f32.mrf.mxu0
    %v784 = vadd.f32 %v227, %v783
    %785 = vmatmul.bf16.gmra.mxu0 %v191
    %v786 = vpop.f32.mrf.mxu0
    %v787 = vadd.f32 %v227, %v786
    %v788 = vpop.f32.mrf.mxu0
    %789 = vdwg.mxu0
    %790 = vmatpush.bf16.msra.mxu0 %v360
    %791 = vmatpush.bf16.msra.mxu0 %v356
    %792 = vmatpush.bf16.msra.mxu0 %v352
    %793 = vmatpush.bf16.msra.mxu0 %v348
    %794 = vmatpush.bf16.msra.mxu0 %v344
    %795 = vmatpush.bf16.msra.mxu0 %v340
    %796 = vmatpush.bf16.msra.mxu0 %v336
    %797 = vmatpush.bf16.msra.mxu0 %v332
    %798 = vmatmul.bf16.gmra.mxu0 %v154
    %v799 = vpop.f32.mrf.mxu0
    %v800 = vadd.f32 %v228, %v799
    %v801 = vpop.f32.mrf.mxu0
    %v802 = vadd.f32 %v228, %v801
    %803 = vmatmul.bf16.gmra.mxu0 %v155
    %v804 = vpop.f32.mrf.mxu0
    %v805 = vadd.f32 %v228, %v804
    %v806 = vpop.f32.mrf.mxu0
    %v807 = vadd.f32 %v228, %v806
    %808 = vmatmul.bf16.gmra.mxu0 %v156
    %v809 = vpop.f32.mrf.mxu0
    %v810 = vadd.f32 %v228, %v809
    %v811 = vpop.f32.mrf.mxu0
    %v812 = vadd.f32 %v228, %v811
    %813 = vmatmul.bf16.gmra.mxu0 %v157
    %v814 = vpop.f32.mrf.mxu0
    %v815 = vadd.f32 %v228, %v814
    %v816 = vpop.f32.mrf.mxu0
    %v817 = vadd.f32 %v228, %v816
    %818 = vmatmul.bf16.gmra.mxu0 %v158
    %v819 = vpop.f32.mrf.mxu0
    %v820 = vadd.f32 %v228, %v819
    %v821 = vpop.f32.mrf.mxu0
    %v822 = vadd.f32 %v228, %v821
    %823 = vmatmul.bf16.gmra.mxu0 %v159
    %v824 = vpop.f32.mrf.mxu0
    %v825 = vadd.f32 %v228, %v824
    %v826 = vpop.f32.mrf.mxu0
    %v827 = vadd.f32 %v228, %v826
    %828 = vmatmul.bf16.gmra.mxu0 %v160
    %v829 = vpop.f32.mrf.mxu0
    %v830 = vadd.f32 %v228, %v829
    %v831 = vpop.f32.mrf.mxu0
    %v832 = vadd.f32 %v228, %v831
    %833 = vmatmul.bf16.gmra.mxu0 %v161
    %v834 = vpop.f32.mrf.mxu0
    %v835 = vadd.f32 %v228, %v834
    %v836 = vpop.f32.mrf.mxu0
    %v837 = vadd.f32 %v228, %v836
    %838 = vmatmul.bf16.gmra.mxu0 %v162
    %v839 = vpop.f32.mrf.mxu0
    %v840 = vadd.f32 %v228, %v839
    %v841 = vpop.f32.mrf.mxu0
    %v842 = vadd.f32 %v228, %v841
    %843 = vmatmul.bf16.gmra.mxu0 %v163
    %v844 = vpop.f32.mrf.mxu0
    %v845 = vadd.f32 %v228, %v844
    %v846 = vpop.f32.mrf.mxu0
    %v847 = vadd.f32 %v228, %v846
    %848 = vmatmul.bf16.gmra.mxu0 %v164
    %v849 = vpop.f32.mrf.mxu0
    %v850 = vadd.f32 %v228, %v849
    %v851 = vpop.f32.mrf.mxu0
    %v852 = vadd.f32 %v228, %v851
    %853 = vmatmul.bf16.gmra.mxu0 %v165
    %v854 = vpop.f32.mrf.mxu0
    %v855 = vadd.f32 %v228, %v854
    %v856 = vpop.f32.mrf.mxu0
    %v857 = vadd.f32 %v228, %v856
    %858 = vmatmul.bf16.gmra.mxu0 %v166
    %v859 = vpop.f32.mrf.mxu0
    %v860 = vadd.f32 %v228, %v859
    %v861 = vpop.f32.mrf.mxu0
    %v862 = vadd.f32 %v228, %v861
    %863 = vmatmul.bf16.gmra.mxu0 %v167
    %v864 = vpop.f32.mrf.mxu0
    %v865 = vadd.f32 %v228, %v864
    %v866 = vpop.f32.mrf.mxu0
    %v867 = vadd.f32 %v228, %v866
    %868 = vmatmul.bf16.gmra.mxu0 %v168
    %v869 = vpop.f32.mrf.mxu0
    %v870 = vadd.f32 %v228, %v869
    %v871 = vpop.f32.mrf.mxu0
    %v872 = vadd.f32 %v228, %v871
    %873 = vmatmul.bf16.gmra.mxu0 %v169
    %v874 = vpop.f32.mrf.mxu0
    %v875 = vadd.f32 %v228, %v874
    %v876 = vpop.f32.mrf.mxu0
    %v877 = vadd.f32 %v228, %v876
    %878 = vmatmul.bf16.gmra.mxu0 %v170
    %v879 = vpop.f32.mrf.mxu0
    %v880 = vadd.f32 %v228, %v879
    %v881 = vpop.f32.mrf.mxu0
    %v882 = vadd.f32 %v228, %v881
    %883 = vmatmul.bf16.gmra.mxu0 %v171
    %v884 = vpop.f32.mrf.mxu0
    %v885 = vadd.f32 %v228, %v884
    %v886 = vpop.f32.mrf.mxu0
    %v887 = vadd.f32 %v228, %v886
    %888 = vmatmul.bf16.gmra.mxu0 %v172
    %v889 = vpop.f32.mrf.mxu0
    %v890 = vadd.f32 %v228, %v889
    %v891 = vpop.f32.mrf.mxu0
    %v892 = vadd.f32 %v228, %v891
    %893 = vmatmul.bf16.gmra.mxu0 %v173
    %v894 = vpop.f32.mrf.mxu0
    %v895 = vadd.f32 %v228, %v894
    %v896 = vpop.f32.mrf.mxu0
    %v897 = vadd.f32 %v228, %v896
    %898 = vmatmul.bf16.gmra.mxu0 %v174
    %v899 = vpop.f32.mrf.mxu0
    %v900 = vadd.f32 %v228, %v899
    %v901 = vpop.f32.mrf.mxu0
    %v902 = vadd.f32 %v228, %v901
    %903 = vmatmul.bf16.gmra.mxu0 %v175
    %v904 = vpop.f32.mrf.mxu0
    %v905 = vadd.f32 %v228, %v904
    %v906 = vpop.f32.mrf.mxu0
    %v907 = vadd.f32 %v228, %v906
    %908 = vmatmul.bf16.gmra.mxu0 %v176
    %v909 = vpop.f32.mrf.mxu0
    %v910 = vadd.f32 %v228, %v909
    %v911 = vpop.f32.mrf.mxu0
    %v912 = vadd.f32 %v228, %v911
    %913 = vmatmul.bf16.gmra.mxu0 %v177
    %v914 = vpop.f32.mrf.mxu0
    %v915 = vadd.f32 %v228, %v914
    %v916 = vpop.f32.mrf.mxu0
    %v917 = vadd.f32 %v228, %v916
    %918 = vmatmul.bf16.gmra.mxu0 %v178
    %v919 = vpop.f32.mrf.mxu0
    %v920 = vadd.f32 %v228, %v919
    %v921 = vpop.f32.mrf.mxu0
    %v922 = vadd.f32 %v228, %v921
    %923 = vmatmul.bf16.gmra.mxu0 %v179
    %v924 = vpop.f32.mrf.mxu0
    %v925 = vadd.f32 %v228, %v924
    %v926 = vpop.f32.mrf.mxu0
    %v927 = vadd.f32 %v228, %v926
    %928 = vmatmul.bf16.gmra.mxu0 %v180
    %v929 = vpop.f32.mrf.mxu0
    %v930 = vadd.f32 %v228, %v929
    %v931 = vpop.f32.mrf.mxu0
    %v932 = vadd.f32 %v228, %v931
    %933 = vmatmul.bf16.gmra.mxu0 %v181
    %v934 = vpop.f32.mrf.mxu0
    %v935 = vadd.f32 %v228, %v934
    %v936 = vpop.f32.mrf.mxu0
    %v937 = vadd.f32 %v228, %v936
    %938 = vmatmul.bf16.gmra.mxu0 %v182
    %v939 = vpop.f32.mrf.mxu0
    %v940 = vadd.f32 %v228, %v939
    %v941 = vpop.f32.mrf.mxu0
    %v942 = vadd.f32 %v228, %v941
    %943 = vmatmul.bf16.gmra.mxu0 %v183
    %v944 = vpop.f32.mrf.mxu0
    %v945 = vadd.f32 %v228, %v944
    %v946 = vpop.f32.mrf.mxu0
    %v947 = vadd.f32 %v228, %v946
    %948 = vmatmul.bf16.gmra.mxu0 %v184
    %v949 = vpop.f32.mrf.mxu0
    %v950 = vadd.f32 %v228, %v949
    %v951 = vpop.f32.mrf.mxu0
    %v952 = vadd.f32 %v228, %v951
    %953 = vmatmul.bf16.gmra.mxu0 %v185
    %v954 = vpop.f32.mrf.mxu0
    %v955 = vadd.f32 %v228, %v954
    %v956 = vpop.f32.mrf.mxu0
    %v957 = vadd.f32 %v228, %v956
    %958 = vmatmul.bf16.gmra.mxu0 %v186
    %v959 = vpop.f32.mrf.mxu0
    %v960 = vadd.f32 %v228, %v959
    %v961 = vpop.f32.mrf.mxu0
    %v962 = vadd.f32 %v228, %v961
    %963 = vmatmul.bf16.gmra.mxu0 %v187
    %v964 = vpop.f32.mrf.mxu0
    %v965 = vadd.f32 %v228, %v964
    %v966 = vpop.f32.mrf.mxu0
    %v967 = vadd.f32 %v228, %v966
    %968 = vmatmul.bf16.gmra.mxu0 %v188
    %v969 = vpop.f32.mrf.mxu0
    %v970 = vadd.f32 %v228, %v969
    %v971 = vpop.f32.mrf.mxu0
    %v972 = vadd.f32 %v228, %v971
    %973 = vmatmul.bf16.gmra.mxu0 %v189
    %v974 = vpop.f32.mrf.mxu0
    %v975 = vadd.f32 %v228, %v974
    %v976 = vpop.f32.mrf.mxu0
    %v977 = vadd.f32 %v228, %v976
    %978 = vmatmul.bf16.gmra.mxu0 %v190
    %v979 = vpop.f32.mrf.mxu0
    %v980 = vadd.f32 %v228, %v979
    %v981 = vpop.f32.mrf.mxu0
    %v982 = vadd.f32 %v228, %v981
    %983 = vmatmul.bf16.gmra.mxu0 %v191
    %v984 = vpop.f32.mrf.mxu0
    %v985 = vadd.f32 %v228, %v984
    %v986 = vpop.f32.mrf.mxu0
    %987 = vdwg.mxu0
    %988 = vmatpush.bf16.msra.mxu0 %v361
    %989 = vmatpush.bf16.msra.mxu0 %v357
    %990 = vmatpush.bf16.msra.mxu0 %v353
    %991 = vmatpush.bf16.msra.mxu0 %v349
    %992 = vmatpush.bf16.msra.mxu0 %v345
    %993 = vmatpush.bf16.msra.mxu0 %v341
    %994 = vmatpush.bf16.msra.mxu0 %v337
    %995 = vmatpush.bf16.msra.mxu0 %v333
    %996 = vmatmul.bf16.gmra.mxu0 %v154
    %v997 = vpop.f32.mrf.mxu0
    %v998 = vadd.f32 %v229, %v997
    %v999 = vpop.f32.mrf.mxu0
    %v1000 = vadd.f32 %v229, %v999
    %1001 = vmatmul.bf16.gmra.mxu0 %v155
    %v1002 = vpop.f32.mrf.mxu0
    %v1003 = vadd.f32 %v229, %v1002
    %v1004 = vpop.f32.mrf.mxu0
    %v1005 = vadd.f32 %v229, %v1004
    %1006 = vmatmul.bf16.gmra.mxu0 %v156
    %v1007 = vpop.f32.mrf.mxu0
    %v1008 = vadd.f32 %v229, %v1007
    %v1009 = vpop.f32.mrf.mxu0
    %v1010 = vadd.f32 %v229, %v1009
    %1011 = vmatmul.bf16.gmra.mxu0 %v157
    %v1012 = vpop.f32.mrf.mxu0
    %v1013 = vadd.f32 %v229, %v1012
    %v1014 = vpop.f32.mrf.mxu0
    %v1015 = vadd.f32 %v229, %v1014
    %1016 = vmatmul.bf16.gmra.mxu0 %v158
    %v1017 = vpop.f32.mrf.mxu0
    %v1018 = vadd.f32 %v229, %v1017
    %v1019 = vpop.f32.mrf.mxu0
    %v1020 = vadd.f32 %v229, %v1019
    %1021 = vmatmul.bf16.gmra.mxu0 %v159
    %v1022 = vpop.f32.mrf.mxu0
    %v1023 = vadd.f32 %v229, %v1022
    %v1024 = vpop.f32.mrf.mxu0
    %v1025 = vadd.f32 %v229, %v1024
    %1026 = vmatmul.bf16.gmra.mxu0 %v160
    %v1027 = vpop.f32.mrf.mxu0
    %v1028 = vadd.f32 %v229, %v1027
    %v1029 = vpop.f32.mrf.mxu0
    %v1030 = vadd.f32 %v229, %v1029
    %1031 = vmatmul.bf16.gmra.mxu0 %v161
    %v1032 = vpop.f32.mrf.mxu0
    %v1033 = vadd.f32 %v229, %v1032
    %v1034 = vpop.f32.mrf.mxu0
    %v1035 = vadd.f32 %v229, %v1034
    %1036 = vmatmul.bf16.gmra.mxu0 %v162
    %v1037 = vpop.f32.mrf.mxu0
    %v1038 = vadd.f32 %v229, %v1037
    %v1039 = vpop.f32.mrf.mxu0
    %v1040 = vadd.f32 %v229, %v1039
    %1041 = vmatmul.bf16.gmra.mxu0 %v163
    %v1042 = vpop.f32.mrf.mxu0
    %v1043 = vadd.f32 %v229, %v1042
    %v1044 = vpop.f32.mrf.mxu0
    %v1045 = vadd.f32 %v229, %v1044
    %1046 = vmatmul.bf16.gmra.mxu0 %v164
    %v1047 = vpop.f32.mrf.mxu0
    %v1048 = vadd.f32 %v229, %v1047
    %v1049 = vpop.f32.mrf.mxu0
    %v1050 = vadd.f32 %v229, %v1049
    %1051 = vmatmul.bf16.gmra.mxu0 %v165
    %v1052 = vpop.f32.mrf.mxu0
    %v1053 = vadd.f32 %v229, %v1052
    %v1054 = vpop.f32.mrf.mxu0
    %v1055 = vadd.f32 %v229, %v1054
    %1056 = vmatmul.bf16.gmra.mxu0 %v166
    %v1057 = vpop.f32.mrf.mxu0
    %v1058 = vadd.f32 %v229, %v1057
    %v1059 = vpop.f32.mrf.mxu0
    %v1060 = vadd.f32 %v229, %v1059
    %1061 = vmatmul.bf16.gmra.mxu0 %v167
    %v1062 = vpop.f32.mrf.mxu0
    %v1063 = vadd.f32 %v229, %v1062
    %v1064 = vpop.f32.mrf.mxu0
    %v1065 = vadd.f32 %v229, %v1064
    %1066 = vmatmul.bf16.gmra.mxu0 %v168
    %v1067 = vpop.f32.mrf.mxu0
    %v1068 = vadd.f32 %v229, %v1067
    %v1069 = vpop.f32.mrf.mxu0
    %v1070 = vadd.f32 %v229, %v1069
    %1071 = vmatmul.bf16.gmra.mxu0 %v169
    %v1072 = vpop.f32.mrf.mxu0
    %v1073 = vadd.f32 %v229, %v1072
    %v1074 = vpop.f32.mrf.mxu0
    %v1075 = vadd.f32 %v229, %v1074
    %1076 = vmatmul.bf16.gmra.mxu0 %v170
    %v1077 = vpop.f32.mrf.mxu0
    %v1078 = vadd.f32 %v229, %v1077
    %v1079 = vpop.f32.mrf.mxu0
    %v1080 = vadd.f32 %v229, %v1079
    %1081 = vmatmul.bf16.gmra.mxu0 %v171
    %v1082 = vpop.f32.mrf.mxu0
    %v1083 = vadd.f32 %v229, %v1082
    %v1084 = vpop.f32.mrf.mxu0
    %v1085 = vadd.f32 %v229, %v1084
    %1086 = vmatmul.bf16.gmra.mxu0 %v172
    %v1087 = vpop.f32.mrf.mxu0
    %v1088 = vadd.f32 %v229, %v1087
    %v1089 = vpop.f32.mrf.mxu0
    %v1090 = vadd.f32 %v229, %v1089
    %1091 = vmatmul.bf16.gmra.mxu0 %v173
    %v1092 = vpop.f32.mrf.mxu0
    %v1093 = vadd.f32 %v229, %v1092
    %v1094 = vpop.f32.mrf.mxu0
    %v1095 = vadd.f32 %v229, %v1094
    %1096 = vmatmul.bf16.gmra.mxu0 %v174
    %v1097 = vpop.f32.mrf.mxu0
    %v1098 = vadd.f32 %v229, %v1097
    %v1099 = vpop.f32.mrf.mxu0
    %v1100 = vadd.f32 %v229, %v1099
    %1101 = vmatmul.bf16.gmra.mxu0 %v175
    %v1102 = vpop.f32.mrf.mxu0
    %v1103 = vadd.f32 %v229, %v1102
    %v1104 = vpop.f32.mrf.mxu0
    %v1105 = vadd.f32 %v229, %v1104
    %1106 = vmatmul.bf16.gmra.mxu0 %v176
    %v1107 = vpop.f32.mrf.mxu0
    %v1108 = vadd.f32 %v229, %v1107
    %v1109 = vpop.f32.mrf.mxu0
    %v1110 = vadd.f32 %v229, %v1109
    %1111 = vmatmul.bf16.gmra.mxu0 %v177
    %v1112 = vpop.f32.mrf.mxu0
    %v1113 = vadd.f32 %v229, %v1112
    %v1114 = vpop.f32.mrf.mxu0
    %v1115 = vadd.f32 %v229, %v1114
    %1116 = vmatmul.bf16.gmra.mxu0 %v178
    %v1117 = vpop.f32.mrf.mxu0
    %v1118 = vadd.f32 %v229, %v1117
    %v1119 = vpop.f32.mrf.mxu0
    %v1120 = vadd.f32 %v229, %v1119
    %1121 = vmatmul.bf16.gmra.mxu0 %v179
    %v1122 = vpop.f32.mrf.mxu0
    %v1123 = vadd.f32 %v229, %v1122
    %v1124 = vpop.f32.mrf.mxu0
    %v1125 = vadd.f32 %v229, %v1124
    %1126 = vmatmul.bf16.gmra.mxu0 %v180
    %v1127 = vpop.f32.mrf.mxu0
    %v1128 = vadd.f32 %v229, %v1127
    %v1129 = vpop.f32.mrf.mxu0
    %v1130 = vadd.f32 %v229, %v1129
    %1131 = vmatmul.bf16.gmra.mxu0 %v181
    %v1132 = vpop.f32.mrf.mxu0
    %v1133 = vadd.f32 %v229, %v1132
    %v1134 = vpop.f32.mrf.mxu0
    %v1135 = vadd.f32 %v229, %v1134
    %1136 = vmatmul.bf16.gmra.mxu0 %v182
    %v1137 = vpop.f32.mrf.mxu0
    %v1138 = vadd.f32 %v229, %v1137
    %v1139 = vpop.f32.mrf.mxu0
    %v1140 = vadd.f32 %v229, %v1139
    %1141 = vmatmul.bf16.gmra.mxu0 %v183
    %v1142 = vpop.f32.mrf.mxu0
    %v1143 = vadd.f32 %v229, %v1142
    %v1144 = vpop.f32.mrf.mxu0
    %v1145 = vadd.f32 %v229, %v1144
    %1146 = vmatmul.bf16.gmra.mxu0 %v184
    %v1147 = vpop.f32.mrf.mxu0
    %v1148 = vadd.f32 %v229, %v1147
    %v1149 = vpop.f32.mrf.mxu0
    %v1150 = vadd.f32 %v229, %v1149
    %1151 = vmatmul.bf16.gmra.mxu0 %v185
    %v1152 = vpop.f32.mrf.mxu0
    %v1153 = vadd.f32 %v229, %v1152
    %v1154 = vpop.f32.mrf.mxu0
    %v1155 = vadd.f32 %v229, %v1154
    %1156 = vmatmul.bf16.gmra.mxu0 %v186
    %v1157 = vpop.f32.mrf.mxu0
    %v1158 = vadd.f32 %v229, %v1157
    %v1159 = vpop.f32.mrf.mxu0
    %v1160 = vadd.f32 %v229, %v1159
    %1161 = vmatmul.bf16.gmra.mxu0 %v187
    %v1162 = vpop.f32.mrf.mxu0
    %v1163 = vadd.f32 %v229, %v1162
    %v1164 = vpop.f32.mrf.mxu0
    %v1165 = vadd.f32 %v229, %v1164
    %1166 = vmatmul.bf16.gmra.mxu0 %v188
    %v1167 = vpop.f32.mrf.mxu0
    %v1168 = vadd.f32 %v229, %v1167
    %v1169 = vpop.f32.mrf.mxu0
    %v1170 = vadd.f32 %v229, %v1169
    %1171 = vmatmul.bf16.gmra.mxu0 %v189
    %v1172 = vpop.f32.mrf.mxu0
    %v1173 = vadd.f32 %v229, %v1172
    %v1174 = vpop.f32.mrf.mxu0
    %v1175 = vadd.f32 %v229, %v1174
    %1176 = vmatmul.bf16.gmra.mxu0 %v190
    %v1177 = vpop.f32.mrf.mxu0
    %v1178 = vadd.f32 %v229, %v1177
    %v1179 = vpop.f32.mrf.mxu0
    %v1180 = vadd.f32 %v229, %v1179
    %1181 = vmatmul.bf16.gmra.mxu0 %v191
    %v1182 = vpop.f32.mrf.mxu0
    %v1183 = vadd.f32 %v229, %v1182
    %v1184 = vpop.f32.mrf.mxu0
    %1185 = vdwg.mxu0
    %v1186 = vmax.f32 %v404, 0.0
    %v1187 = vmax.f32 %v602, 0.0
    %v1188 = vmax.f32 %v800, 0.0
    %v1189 = vmax.f32 %v998, 0.0
    %v1190 = vmax.f32 %v406, 0.0
    %v1191 = vmax.f32 %v604, 0.0
    %v1192 = vmax.f32 %v802, 0.0
    %v1193 = vmax.f32 %v1000, 0.0
    %v1194 = vmax.f32 %v409, 0.0
    %v1195 = vmax.f32 %v607, 0.0
    %v1196 = vmax.f32 %v805, 0.0
    %v1197 = vmax.f32 %v1003, 0.0
    %v1198 = vmax.f32 %v411, 0.0
    %v1199 = vmax.f32 %v609, 0.0
    %v1200 = vmax.f32 %v807, 0.0
    %v1201 = vmax.f32 %v1005, 0.0
    %v1202 = vmax.f32 %v414, 0.0
    %v1203 = vmax.f32 %v612, 0.0
    %v1204 = vmax.f32 %v810, 0.0
    %v1205 = vmax.f32 %v1008, 0.0
    %v1206 = vmax.f32 %v416, 0.0
    %v1207 = vmax.f32 %v614, 0.0
    %v1208 = vmax.f32 %v812, 0.0
    %v1209 = vmax.f32 %v1010, 0.0
    %v1210 = vmax.f32 %v419, 0.0
    %v1211 = vmax.f32 %v617, 0.0
    %v1212 = vmax.f32 %v815, 0.0
    %v1213 = vmax.f32 %v1013, 0.0
    %v1214 = vmax.f32 %v421, 0.0
    %v1215 = vmax.f32 %v619, 0.0
    %v1216 = vmax.f32 %v817, 0.0
    %v1217 = vmax.f32 %v1015, 0.0
    %v1218 = vmax.f32 %v424, 0.0
    %v1219 = vmax.f32 %v622, 0.0
    %v1220 = vmax.f32 %v820, 0.0
    %v1221 = vmax.f32 %v1018, 0.0
    %v1222 = vmax.f32 %v426, 0.0
    %v1223 = vmax.f32 %v624, 0.0
    %v1224 = vmax.f32 %v822, 0.0
    %v1225 = vmax.f32 %v1020, 0.0
    %v1226 = vmax.f32 %v429, 0.0
    %v1227 = vmax.f32 %v627, 0.0
    %v1228 = vmax.f32 %v825, 0.0
    %v1229 = vmax.f32 %v1023, 0.0
    %v1230 = vmax.f32 %v431, 0.0
    %v1231 = vmax.f32 %v629, 0.0
    %v1232 = vmax.f32 %v827, 0.0
    %v1233 = vmax.f32 %v1025, 0.0
    %v1234 = vmax.f32 %v434, 0.0
    %v1235 = vmax.f32 %v632, 0.0
    %v1236 = vmax.f32 %v830, 0.0
    %v1237 = vmax.f32 %v1028, 0.0
    %v1238 = vmax.f32 %v436, 0.0
    %v1239 = vmax.f32 %v634, 0.0
    %v1240 = vmax.f32 %v832, 0.0
    %v1241 = vmax.f32 %v1030, 0.0
    %v1242 = vmax.f32 %v439, 0.0
    %v1243 = vmax.f32 %v637, 0.0
    %v1244 = vmax.f32 %v835, 0.0
    %v1245 = vmax.f32 %v1033, 0.0
    %v1246 = vmax.f32 %v441, 0.0
    %v1247 = vmax.f32 %v639, 0.0
    %v1248 = vmax.f32 %v837, 0.0
    %v1249 = vmax.f32 %v1035, 0.0
    %v1250 = vmax.f32 %v444, 0.0
    %v1251 = vmax.f32 %v642, 0.0
    %v1252 = vmax.f32 %v840, 0.0
    %v1253 = vmax.f32 %v1038, 0.0
    %v1254 = vmax.f32 %v446, 0.0
    %v1255 = vmax.f32 %v644, 0.0
    %v1256 = vmax.f32 %v842, 0.0
    %v1257 = vmax.f32 %v1040, 0.0
    %v1258 = vmax.f32 %v449, 0.0
    %v1259 = vmax.f32 %v647, 0.0
    %v1260 = vmax.f32 %v845, 0.0
    %v1261 = vmax.f32 %v1043, 0.0
    %v1262 = vmax.f32 %v451, 0.0
    %v1263 = vmax.f32 %v649, 0.0
    %v1264 = vmax.f32 %v847, 0.0
    %v1265 = vmax.f32 %v1045, 0.0
    %v1266 = vmax.f32 %v454, 0.0
    %v1267 = vmax.f32 %v652, 0.0
    %v1268 = vmax.f32 %v850, 0.0
    %v1269 = vmax.f32 %v1048, 0.0
    %v1270 = vmax.f32 %v456, 0.0
    %v1271 = vmax.f32 %v654, 0.0
    %v1272 = vmax.f32 %v852, 0.0
    %v1273 = vmax.f32 %v1050, 0.0
    %v1274 = vmax.f32 %v459, 0.0
    %v1275 = vmax.f32 %v657, 0.0
    %v1276 = vmax.f32 %v855, 0.0
    %v1277 = vmax.f32 %v1053, 0.0
    %v1278 = vmax.f32 %v461, 0.0
    %v1279 = vmax.f32 %v659, 0.0
    %v1280 = vmax.f32 %v857, 0.0
    %v1281 = vmax.f32 %v1055, 0.0
    %v1282 = vmax.f32 %v464, 0.0
    %v1283 = vmax.f32 %v662, 0.0
    %v1284 = vmax.f32 %v860, 0.0
    %v1285 = vmax.f32 %v1058, 0.0
    %v1286 = vmax.f32 %v466, 0.0
    %v1287 = vmax.f32 %v664, 0.0
    %v1288 = vmax.f32 %v862, 0.0
    %v1289 = vmax.f32 %v1060, 0.0
    %v1290 = vmax.f32 %v469, 0.0
    %v1291 = vmax.f32 %v667, 0.0
    %v1292 = vmax.f32 %v865, 0.0
    %v1293 = vmax.f32 %v1063, 0.0
    %v1294 = vmax.f32 %v471, 0.0
    %v1295 = vmax.f32 %v669, 0.0
    %v1296 = vmax.f32 %v867, 0.0
    %v1297 = vmax.f32 %v1065, 0.0
    %v1298 = vmax.f32 %v474, 0.0
    %v1299 = vmax.f32 %v672, 0.0
    %v1300 = vmax.f32 %v870, 0.0
    %v1301 = vmax.f32 %v1068, 0.0
    %v1302 = vmax.f32 %v476, 0.0
    %v1303 = vmax.f32 %v674, 0.0
    %v1304 = vmax.f32 %v872, 0.0
    %v1305 = vmax.f32 %v1070, 0.0
    %v1306 = vmax.f32 %v479, 0.0
    %v1307 = vmax.f32 %v677, 0.0
    %v1308 = vmax.f32 %v875, 0.0
    %v1309 = vmax.f32 %v1073, 0.0
    %v1310 = vmax.f32 %v481, 0.0
    %v1311 = vmax.f32 %v679, 0.0
    %v1312 = vmax.f32 %v877, 0.0
    %v1313 = vmax.f32 %v1075, 0.0
    %v1314 = vmax.f32 %v484, 0.0
    %v1315 = vmax.f32 %v682, 0.0
    %v1316 = vmax.f32 %v880, 0.0
    %v1317 = vmax.f32 %v1078, 0.0
    %v1318 = vmax.f32 %v486, 0.0
    %v1319 = vmax.f32 %v684, 0.0
    %v1320 = vmax.f32 %v882, 0.0
    %v1321 = vmax.f32 %v1080, 0.0
    %v1322 = vmax.f32 %v489, 0.0
    %v1323 = vmax.f32 %v687, 0.0
    %v1324 = vmax.f32 %v885, 0.0
    %v1325 = vmax.f32 %v1083, 0.0
    %v1326 = vmax.f32 %v491, 0.0
    %v1327 = vmax.f32 %v689, 0.0
    %v1328 = vmax.f32 %v887, 0.0
    %v1329 = vmax.f32 %v1085, 0.0
    %v1330 = vmax.f32 %v494, 0.0
    %v1331 = vmax.f32 %v692, 0.0
    %v1332 = vmax.f32 %v890, 0.0
    %v1333 = vmax.f32 %v1088, 0.0
    %v1334 = vmax.f32 %v496, 0.0
    %v1335 = vmax.f32 %v694, 0.0
    %v1336 = vmax.f32 %v892, 0.0
    %v1337 = vmax.f32 %v1090, 0.0
    %v1338 = vmax.f32 %v499, 0.0
    %v1339 = vmax.f32 %v697, 0.0
    %v1340 = vmax.f32 %v895, 0.0
    %v1341 = vmax.f32 %v1093, 0.0
    %v1342 = vmax.f32 %v501, 0.0
    %v1343 = vmax.f32 %v699, 0.0
    %v1344 = vmax.f32 %v897, 0.0
    %v1345 = vmax.f32 %v1095, 0.0
    %v1346 = vmax.f32 %v504, 0.0
    %v1347 = vmax.f32 %v702, 0.0
    %v1348 = vmax.f32 %v900, 0.0
    %v1349 = vmax.f32 %v1098, 0.0
    %v1350 = vmax.f32 %v506, 0.0
    %v1351 = vmax.f32 %v704, 0.0
    %v1352 = vmax.f32 %v902, 0.0
    %v1353 = vmax.f32 %v1100, 0.0
    %v1354 = vmax.f32 %v509, 0.0
    %v1355 = vmax.f32 %v707, 0.0
    %v1356 = vmax.f32 %v905, 0.0
    %v1357 = vmax.f32 %v1103, 0.0
    %v1358 = vmax.f32 %v511, 0.0
    %v1359 = vmax.f32 %v709, 0.0
    %v1360 = vmax.f32 %v907, 0.0
    %v1361 = vmax.f32 %v1105, 0.0
    %v1362 = vmax.f32 %v514, 0.0
    %v1363 = vmax.f32 %v712, 0.0
    %v1364 = vmax.f32 %v910, 0.0
    %v1365 = vmax.f32 %v1108, 0.0
    %v1366 = vmax.f32 %v516, 0.0
    %v1367 = vmax.f32 %v714, 0.0
    %v1368 = vmax.f32 %v912, 0.0
    %v1369 = vmax.f32 %v1110, 0.0
    %v1370 = vmax.f32 %v519, 0.0
    %v1371 = vmax.f32 %v717, 0.0
    %v1372 = vmax.f32 %v915, 0.0
    %v1373 = vmax.f32 %v1113, 0.0
    %v1374 = vmax.f32 %v521, 0.0
    %v1375 = vmax.f32 %v719, 0.0
    %v1376 = vmax.f32 %v917, 0.0
    %v1377 = vmax.f32 %v1115, 0.0
    %v1378 = vmax.f32 %v524, 0.0
    %v1379 = vmax.f32 %v722, 0.0
    %v1380 = vmax.f32 %v920, 0.0
    %v1381 = vmax.f32 %v1118, 0.0
    %v1382 = vmax.f32 %v526, 0.0
    %v1383 = vmax.f32 %v724, 0.0
    %v1384 = vmax.f32 %v922, 0.0
    %v1385 = vmax.f32 %v1120, 0.0
    %v1386 = vmax.f32 %v529, 0.0
    %v1387 = vmax.f32 %v727, 0.0
    %v1388 = vmax.f32 %v925, 0.0
    %v1389 = vmax.f32 %v1123, 0.0
    %v1390 = vmax.f32 %v531, 0.0
    %v1391 = vmax.f32 %v729, 0.0
    %v1392 = vmax.f32 %v927, 0.0
    %v1393 = vmax.f32 %v1125, 0.0
    %v1394 = vmax.f32 %v534, 0.0
    %v1395 = vmax.f32 %v732, 0.0
    %v1396 = vmax.f32 %v930, 0.0
    %v1397 = vmax.f32 %v1128, 0.0
    %v1398 = vmax.f32 %v536, 0.0
    %v1399 = vmax.f32 %v734, 0.0
    %v1400 = vmax.f32 %v932, 0.0
    %v1401 = vmax.f32 %v1130, 0.0
    %v1402 = vmax.f32 %v539, 0.0
    %v1403 = vmax.f32 %v737, 0.0
    %v1404 = vmax.f32 %v935, 0.0
    %v1405 = vmax.f32 %v1133, 0.0
    %v1406 = vmax.f32 %v541, 0.0
    %v1407 = vmax.f32 %v739, 0.0
    %v1408 = vmax.f32 %v937, 0.0
    %v1409 = vmax.f32 %v1135, 0.0
    %v1410 = vmax.f32 %v544, 0.0
    %v1411 = vmax.f32 %v742, 0.0
    %v1412 = vmax.f32 %v940, 0.0
    %v1413 = vmax.f32 %v1138, 0.0
    %v1414 = vmax.f32 %v546, 0.0
    %v1415 = vmax.f32 %v744, 0.0
    %v1416 = vmax.f32 %v942, 0.0
    %v1417 = vmax.f32 %v1140, 0.0
    %v1418 = vmax.f32 %v549, 0.0
    %v1419 = vmax.f32 %v747, 0.0
    %v1420 = vmax.f32 %v945, 0.0
    %v1421 = vmax.f32 %v1143, 0.0
    %v1422 = vmax.f32 %v551, 0.0
    %v1423 = vmax.f32 %v749, 0.0
    %v1424 = vmax.f32 %v947, 0.0
    %v1425 = vmax.f32 %v1145, 0.0
    %v1426 = vmax.f32 %v554, 0.0
    %v1427 = vmax.f32 %v752, 0.0
    %v1428 = vmax.f32 %v950, 0.0
    %v1429 = vmax.f32 %v1148, 0.0
    %v1430 = vmax.f32 %v556, 0.0
    %v1431 = vmax.f32 %v754, 0.0
    %v1432 = vmax.f32 %v952, 0.0
    %v1433 = vmax.f32 %v1150, 0.0
    %v1434 = vmax.f32 %v559, 0.0
    %v1435 = vmax.f32 %v757, 0.0
    %v1436 = vmax.f32 %v955, 0.0
    %v1437 = vmax.f32 %v1153, 0.0
    %v1438 = vmax.f32 %v561, 0.0
    %v1439 = vmax.f32 %v759, 0.0
    %v1440 = vmax.f32 %v957, 0.0
    %v1441 = vmax.f32 %v1155, 0.0
    %v1442 = vmax.f32 %v564, 0.0
    %v1443 = vmax.f32 %v762, 0.0
    %v1444 = vmax.f32 %v960, 0.0
    %v1445 = vmax.f32 %v1158, 0.0
    %v1446 = vmax.f32 %v566, 0.0
    %v1447 = vmax.f32 %v764, 0.0
    %v1448 = vmax.f32 %v962, 0.0
    %v1449 = vmax.f32 %v1160, 0.0
    %v1450 = vmax.f32 %v569, 0.0
    %v1451 = vmax.f32 %v767, 0.0
    %v1452 = vmax.f32 %v965, 0.0
    %v1453 = vmax.f32 %v1163, 0.0
    %v1454 = vmax.f32 %v571, 0.0
    %v1455 = vmax.f32 %v769, 0.0
    %v1456 = vmax.f32 %v967, 0.0
    %v1457 = vmax.f32 %v1165, 0.0
    %v1458 = vmax.f32 %v574, 0.0
    %v1459 = vmax.f32 %v772, 0.0
    %v1460 = vmax.f32 %v970, 0.0
    %v1461 = vmax.f32 %v1168, 0.0
    %v1462 = vmax.f32 %v576, 0.0
    %v1463 = vmax.f32 %v774, 0.0
    %v1464 = vmax.f32 %v972, 0.0
    %v1465 = vmax.f32 %v1170, 0.0
    %v1466 = vmax.f32 %v579, 0.0
    %v1467 = vmax.f32 %v777, 0.0
    %v1468 = vmax.f32 %v975, 0.0
    %v1469 = vmax.f32 %v1173, 0.0
    %v1470 = vmax.f32 %v581, 0.0
    %v1471 = vmax.f32 %v779, 0.0
    %v1472 = vmax.f32 %v977, 0.0
    %v1473 = vmax.f32 %v1175, 0.0
    %v1474 = vmax.f32 %v584, 0.0
    %v1475 = vmax.f32 %v782, 0.0
    %v1476 = vmax.f32 %v980, 0.0
    %v1477 = vmax.f32 %v1178, 0.0
    %v1478 = vmax.f32 %v586, 0.0
    %v1479 = vmax.f32 %v784, 0.0
    %v1480 = vmax.f32 %v982, 0.0
    %v1481 = vmax.f32 %v1180, 0.0
    %v1482 = vmax.f32 %v589, 0.0
    %v1483 = vmax.f32 %v787, 0.0
    %v1484 = vmax.f32 %v985, 0.0
    %v1485 = vmax.f32 %v1183, 0.0
    %s1486 = smul.u32 0, 600
    %v1487 = vlaneseq
    %v1488 = vshrl.u32 %v1487, 7
    %v1489 = vadd.s32 %v1488, 8
    %v1490 = vadd.s32 %v1488, 16
    %v1491 = vadd.s32 %v1488, 24
    %v1492 = vadd.s32 %v1488, 32
    %v1493 = vadd.s32 %v1488, 40
    %v1494 = vadd.s32 %v1488, 48
    %v1495 = vadd.s32 %v1488, 56
    %v1496 = vadd.s32 %v1488, 64
    %v1497 = vadd.s32 %v1488, 72
    %v1498 = vadd.s32 %v1488, 80
    %v1499 = vadd.s32 %v1488, 88
    %v1500 = vadd.s32 %v1488, 96
    %v1501 = vadd.s32 %v1488, 104
    %v1502 = vadd.s32 %v1488, 112
    %v1503 = vadd.s32 %v1488, 120
    %v1504 = vadd.s32 %v1488, 128
    %v1505 = vadd.s32 %v1488, 136
    %v1506 = vadd.s32 %v1488, 144
    %v1507 = vadd.s32 %v1488, 152
    %v1508 = vadd.s32 %v1488, 160
    %v1509 = vadd.s32 %v1488, 168
    %v1510 = vadd.s32 %v1488, 176
    %v1511 = vadd.s32 %v1488, 184
    %v1512 = vadd.s32 %v1488, 192
    %v1513 = vadd.s32 %v1488, 200
    %v1514 = vadd.s32 %v1488, 208
    %v1515 = vadd.s32 %v1488, 216
    %v1516 = vadd.s32 %v1488, 224
    %v1517 = vadd.s32 %v1488, 232
    %v1518 = vadd.s32 %v1488, 240
    %v1519 = vadd.s32 %v1488, 248
    %v1520 = vadd.s32 %v1488, 256
    %v1521 = vadd.s32 %v1488, 264
    %v1522 = vadd.s32 %v1488, 272
    %v1523 = vadd.s32 %v1488, 280
    %v1524 = vadd.s32 %v1488, 288
    %v1525 = vadd.s32 %v1488, 296
    %v1526 = vadd.s32 %v1488, 304
    %v1527 = vadd.s32 %v1488, 312
    %v1528 = vadd.s32 %v1488, 320
    %v1529 = vadd.s32 %v1488, 328
    %v1530 = vadd.s32 %v1488, 336
    %v1531 = vadd.s32 %v1488, 344
    %v1532 = vadd.s32 %v1488, 352
    %v1533 = vadd.s32 %v1488, 360
    %v1534 = vadd.s32 %v1488, 368
    %v1535 = vadd.s32 %v1488, 376
    %v1536 = vadd.s32 %v1488, 384
    %v1537 = vadd.s32 %v1488, 392
    %v1538 = vadd.s32 %v1488, 400
    %v1539 = vadd.s32 %v1488, 408
    %v1540 = vadd.s32 %v1488, 416
    %v1541 = vadd.s32 %v1488, 424
    %v1542 = vadd.s32 %v1488, 432
    %v1543 = vadd.s32 %v1488, 440
    %v1544 = vadd.s32 %v1488, 448
    %v1545 = vadd.s32 %v1488, 456
    %v1546 = vadd.s32 %v1488, 464
    %v1547 = vadd.s32 %v1488, 472
    %v1548 = vadd.s32 %v1488, 480
    %v1549 = vadd.s32 %v1488, 488
    %v1550 = vadd.s32 %v1488, 496
    %v1551 = vadd.s32 %v1488, 504
    %v1552 = vadd.s32 %v1488, 512
    %v1553 = vadd.s32 %v1488, 520
    %v1554 = vadd.s32 %v1488, 528
    %v1555 = vadd.s32 %v1488, 536
    %v1556 = vadd.s32 %v1488, 544
    %v1557 = vadd.s32 %v1488, 552
    %v1558 = vadd.s32 %v1488, 560
    %v1559 = vadd.s32 %v1488, 568
    %v1560 = vadd.s32 %v1488, 576
    %v1561 = vadd.s32 %v1488, 584
    %v1562 = vadd.s32 %v1488, 592
    %v1563 = vstv %s1486
    %v1564 = vadd.s32 %v1563, %v1488
    %v1565 = vadd.s32 %v1563, %v1489
    %v1566 = vadd.s32 %v1563, %v1490
    %v1567 = vadd.s32 %v1563, %v1491
    %v1568 = vadd.s32 %v1563, %v1492
    %v1569 = vadd.s32 %v1563, %v1493
    %v1570 = vadd.s32 %v1563, %v1494
    %v1571 = vadd.s32 %v1563, %v1495
    %v1572 = vadd.s32 %v1563, %v1496
    %v1573 = vadd.s32 %v1563, %v1497
    %v1574 = vadd.s32 %v1563, %v1498
    %v1575 = vadd.s32 %v1563, %v1499
    %v1576 = vadd.s32 %v1563, %v1500
    %v1577 = vadd.s32 %v1563, %v1501
    %v1578 = vadd.s32 %v1563, %v1502
    %v1579 = vadd.s32 %v1563, %v1503
    %v1580 = vadd.s32 %v1563, %v1504
    %v1581 = vadd.s32 %v1563, %v1505
    %v1582 = vadd.s32 %v1563, %v1506
    %v1583 = vadd.s32 %v1563, %v1507
    %v1584 = vadd.s32 %v1563, %v1508
    %v1585 = vadd.s32 %v1563, %v1509
    %v1586 = vadd.s32 %v1563, %v1510
    %v1587 = vadd.s32 %v1563, %v1511
    %v1588 = vadd.s32 %v1563, %v1512
    %v1589 = vadd.s32 %v1563, %v1513
    %v1590 = vadd.s32 %v1563, %v1514
    %v1591 = vadd.s32 %v1563, %v1515
    %v1592 = vadd.s32 %v1563, %v1516
    %v1593 = vadd.s32 %v1563, %v1517
    %v1594 = vadd.s32 %v1563, %v1518
    %v1595 = vadd.s32 %v1563, %v1519
    %v1596 = vadd.s32 %v1563, %v1520
    %v1597 = vadd.s32 %v1563, %v1521
    %v1598 = vadd.s32 %v1563, %v1522
    %v1599 = vadd.s32 %v1563, %v1523
    %v1600 = vadd.s32 %v1563, %v1524
    %v1601 = vadd.s32 %v1563, %v1525
    %v1602 = vadd.s32 %v1563, %v1526
    %v1603 = vadd.s32 %v1563, %v1527
    %v1604 = vadd.s32 %v1563, %v1528
    %v1605 = vadd.s32 %v1563, %v1529
    %v1606 = vadd.s32 %v1563, %v1530
    %v1607 = vadd.s32 %v1563, %v1531
    %v1608 = vadd.s32 %v1563, %v1532
    %v1609 = vadd.s32 %v1563, %v1533
    %v1610 = vadd.s32 %v1563, %v1534
    %v1611 = vadd.s32 %v1563, %v1535
    %v1612 = vadd.s32 %v1563, %v1536
    %v1613 = vadd.s32 %v1563, %v1537
    %v1614 = vadd.s32 %v1563, %v1538
    %v1615 = vadd.s32 %v1563, %v1539
    %v1616 = vadd.s32 %v1563, %v1540
    %v1617 = vadd.s32 %v1563, %v1541
    %v1618 = vadd.s32 %v1563, %v1542
    %v1619 = vadd.s32 %v1563, %v1543
    %v1620 = vadd.s32 %v1563, %v1544
    %v1621 = vadd.s32 %v1563, %v1545
    %v1622 = vadd.s32 %v1563, %v1546
    %v1623 = vadd.s32 %v1563, %v1547
    %v1624 = vadd.s32 %v1563, %v1548
    %v1625 = vadd.s32 %v1563, %v1549
    %v1626 = vadd.s32 %v1563, %v1550
    %v1627 = vadd.s32 %v1563, %v1551
    %v1628 = vadd.s32 %v1563, %v1552
    %v1629 = vadd.s32 %v1563, %v1553
    %v1630 = vadd.s32 %v1563, %v1554
    %v1631 = vadd.s32 %v1563, %v1555
    %v1632 = vadd.s32 %v1563, %v1556
    %v1633 = vadd.s32 %v1563, %v1557
    %v1634 = vadd.s32 %v1563, %v1558
    %v1635 = vadd.s32 %v1563, %v1559
    %v1636 = vadd.s32 %v1563, %v1560
    %v1637 = vadd.s32 %v1563, %v1561
    %v1638 = vadd.s32 %v1563, %v1562
    %vm1639 = vcmp.lt.s32.totalorder %v1564, 600
    %vm1640 = vcmp.lt.s32.totalorder %v1565, 600
    %vm1641 = vcmp.lt.s32.totalorder %v1566, 600
    %vm1642 = vcmp.lt.s32.totalorder %v1567, 600
    %vm1643 = vcmp.lt.s32.totalorder %v1568, 600
    %vm1644 = vcmp.lt.s32.totalorder %v1569, 600
    %vm1645 = vcmp.lt.s32.totalorder %v1570, 600
    %vm1646 = vcmp.lt.s32.totalorder %v1571, 600
    %vm1647 = vcmp.lt.s32.totalorder %v1572, 600
    %vm1648 = vcmp.lt.s32.totalorder %v1573, 600
    %vm1649 = vcmp.lt.s32.totalorder %v1574, 600
    %vm1650 = vcmp.lt.s32.totalorder %v1575, 600
    %vm1651 = vcmp.lt.s32.totalorder %v1576, 600
    %vm1652 = vcmp.lt.s32.totalorder %v1577, 600
    %vm1653 = vcmp.lt.s32.totalorder %v1578, 600
    %vm1654 = vcmp.lt.s32.totalorder %v1579, 600
    %vm1655 = vcmp.lt.s32.totalorder %v1580, 600
    %vm1656 = vcmp.lt.s32.totalorder %v1581, 600
    %vm1657 = vcmp.lt.s32.totalorder %v1582, 600
    %vm1658 = vcmp.lt.s32.totalorder %v1583, 600
    %vm1659 = vcmp.lt.s32.totalorder %v1584, 600
    %vm1660 = vcmp.lt.s32.totalorder %v1585, 600
    %vm1661 = vcmp.lt.s32.totalorder %v1586, 600
    %vm1662 = vcmp.lt.s32.totalorder %v1587, 600
    %vm1663 = vcmp.lt.s32.totalorder %v1588, 600
    %vm1664 = vcmp.lt.s32.totalorder %v1589, 600
    %vm1665 = vcmp.lt.s32.totalorder %v1590, 600
    %vm1666 = vcmp.lt.s32.totalorder %v1591, 600
    %vm1667 = vcmp.lt.s32.totalorder %v1592, 600
    %vm1668 = vcmp.lt.s32.totalorder %v1593, 600
    %vm1669 = vcmp.lt.s32.totalorder %v1594, 600
    %vm1670 = vcmp.lt.s32.totalorder %v1595, 600
    %vm1671 = vcmp.lt.s32.totalorder %v1596, 600
    %vm1672 = vcmp.lt.s32.totalorder %v1597, 600
    %vm1673 = vcmp.lt.s32.totalorder %v1598, 600
    %vm1674 = vcmp.lt.s32.totalorder %v1599, 600
    %vm1675 = vcmp.lt.s32.totalorder %v1600, 600
    %vm1676 = vcmp.lt.s32.totalorder %v1601, 600
    %vm1677 = vcmp.lt.s32.totalorder %v1602, 600
    %vm1678 = vcmp.lt.s32.totalorder %v1603, 600
    %vm1679 = vcmp.lt.s32.totalorder %v1604, 600
    %vm1680 = vcmp.lt.s32.totalorder %v1605, 600
    %vm1681 = vcmp.lt.s32.totalorder %v1606, 600
    %vm1682 = vcmp.lt.s32.totalorder %v1607, 600
    %vm1683 = vcmp.lt.s32.totalorder %v1608, 600
    %vm1684 = vcmp.lt.s32.totalorder %v1609, 600
    %vm1685 = vcmp.lt.s32.totalorder %v1610, 600
    %vm1686 = vcmp.lt.s32.totalorder %v1611, 600
    %vm1687 = vcmp.lt.s32.totalorder %v1612, 600
    %vm1688 = vcmp.lt.s32.totalorder %v1613, 600
    %vm1689 = vcmp.lt.s32.totalorder %v1614, 600
    %vm1690 = vcmp.lt.s32.totalorder %v1615, 600
    %vm1691 = vcmp.lt.s32.totalorder %v1616, 600
    %vm1692 = vcmp.lt.s32.totalorder %v1617, 600
    %vm1693 = vcmp.lt.s32.totalorder %v1618, 600
    %vm1694 = vcmp.lt.s32.totalorder %v1619, 600
    %vm1695 = vcmp.lt.s32.totalorder %v1620, 600
    %vm1696 = vcmp.lt.s32.totalorder %v1621, 600
    %vm1697 = vcmp.lt.s32.totalorder %v1622, 600
    %vm1698 = vcmp.lt.s32.totalorder %v1623, 600
    %vm1699 = vcmp.lt.s32.totalorder %v1624, 600
    %vm1700 = vcmp.lt.s32.totalorder %v1625, 600
    %vm1701 = vcmp.lt.s32.totalorder %v1626, 600
    %vm1702 = vcmp.lt.s32.totalorder %v1627, 600
    %vm1703 = vcmp.lt.s32.totalorder %v1628, 600
    %vm1704 = vcmp.lt.s32.totalorder %v1629, 600
    %vm1705 = vcmp.lt.s32.totalorder %v1630, 600
    %vm1706 = vcmp.lt.s32.totalorder %v1631, 600
    %vm1707 = vcmp.lt.s32.totalorder %v1632, 600
    %vm1708 = vcmp.lt.s32.totalorder %v1633, 600
    %vm1709 = vcmp.lt.s32.totalorder %v1634, 600
    %vm1710 = vcmp.lt.s32.totalorder %v1635, 600
    %vm1711 = vcmp.lt.s32.totalorder %v1636, 600
    %vm1712 = vcmp.lt.s32.totalorder %v1637, 600
    %vm1713 = vcmp.lt.s32.totalorder %v1638, 600
    %v1714 = vsel %vm1639, 1, 0
    %v1715 = vsel %vm1640, 1, 0
    %v1716 = vsel %vm1641, 1, 0
    %v1717 = vsel %vm1642, 1, 0
    %v1718 = vsel %vm1643, 1, 0
    %v1719 = vsel %vm1644, 1, 0
    %v1720 = vsel %vm1645, 1, 0
    %v1721 = vsel %vm1646, 1, 0
    %v1722 = vsel %vm1647, 1, 0
    %v1723 = vsel %vm1648, 1, 0
    %v1724 = vsel %vm1649, 1, 0
    %v1725 = vsel %vm1650, 1, 0
    %v1726 = vsel %vm1651, 1, 0
    %v1727 = vsel %vm1652, 1, 0
    %v1728 = vsel %vm1653, 1, 0
    %v1729 = vsel %vm1654, 1, 0
    %v1730 = vsel %vm1655, 1, 0
    %v1731 = vsel %vm1656, 1, 0
    %v1732 = vsel %vm1657, 1, 0
    %v1733 = vsel %vm1658, 1, 0
    %v1734 = vsel %vm1659, 1, 0
    %v1735 = vsel %vm1660, 1, 0
    %v1736 = vsel %vm1661, 1, 0
    %v1737 = vsel %vm1662, 1, 0
    %v1738 = vsel %vm1663, 1, 0
    %v1739 = vsel %vm1664, 1, 0
    %v1740 = vsel %vm1665, 1, 0
    %v1741 = vsel %vm1666, 1, 0
    %v1742 = vsel %vm1667, 1, 0
    %v1743 = vsel %vm1668, 1, 0
    %v1744 = vsel %vm1669, 1, 0
    %v1745 = vsel %vm1670, 1, 0
    %v1746 = vsel %vm1671, 1, 0
    %v1747 = vsel %vm1672, 1, 0
    %v1748 = vsel %vm1673, 1, 0
    %v1749 = vsel %vm1674, 1, 0
    %v1750 = vsel %vm1675, 1, 0
    %v1751 = vsel %vm1676, 1, 0
    %v1752 = vsel %vm1677, 1, 0
    %v1753 = vsel %vm1678, 1, 0
    %v1754 = vsel %vm1679, 1, 0
    %v1755 = vsel %vm1680, 1, 0
    %v1756 = vsel %vm1681, 1, 0
    %v1757 = vsel %vm1682, 1, 0
    %v1758 = vsel %vm1683, 1, 0
    %v1759 = vsel %vm1684, 1, 0
    %v1760 = vsel %vm1685, 1, 0
    %v1761 = vsel %vm1686, 1, 0
    %v1762 = vsel %vm1687, 1, 0
    %v1763 = vsel %vm1688, 1, 0
    %v1764 = vsel %vm1689, 1, 0
    %v1765 = vsel %vm1690, 1, 0
    %v1766 = vsel %vm1691, 1, 0
    %v1767 = vsel %vm1692, 1, 0
    %v1768 = vsel %vm1693, 1, 0
    %v1769 = vsel %vm1694, 1, 0
    %v1770 = vsel %vm1695, 1, 0
    %v1771 = vsel %vm1696, 1, 0
    %v1772 = vsel %vm1697, 1, 0
    %v1773 = vsel %vm1698, 1, 0
    %v1774 = vsel %vm1699, 1, 0
    %v1775 = vsel %vm1700, 1, 0
    %v1776 = vsel %vm1701, 1, 0
    %v1777 = vsel %vm1702, 1, 0
    %v1778 = vsel %vm1703, 1, 0
    %v1779 = vsel %vm1704, 1, 0
    %v1780 = vsel %vm1705, 1, 0
    %v1781 = vsel %vm1706, 1, 0
    %v1782 = vsel %vm1707, 1, 0
    %v1783 = vsel %vm1708, 1, 0
    %v1784 = vsel %vm1709, 1, 0
    %v1785 = vsel %vm1710, 1, 0
    %v1786 = vsel %vm1711, 1, 0
    %v1787 = vsel %vm1712, 1, 0
    %v1788 = vsel %vm1713, 1, 0
    %vm1789 = vcmp.eq.s32.totalorder %v1714, 1
    %vm1790 = vcmp.eq.s32.totalorder %v1715, 1
    %vm1791 = vcmp.eq.s32.totalorder %v1716, 1
    %vm1792 = vcmp.eq.s32.totalorder %v1717, 1
    %vm1793 = vcmp.eq.s32.totalorder %v1718, 1
    %vm1794 = vcmp.eq.s32.totalorder %v1719, 1
    %vm1795 = vcmp.eq.s32.totalorder %v1720, 1
    %vm1796 = vcmp.eq.s32.totalorder %v1721, 1
    %vm1797 = vcmp.eq.s32.totalorder %v1722, 1
    %vm1798 = vcmp.eq.s32.totalorder %v1723, 1
    %vm1799 = vcmp.eq.s32.totalorder %v1724, 1
    %vm1800 = vcmp.eq.s32.totalorder %v1725, 1
    %vm1801 = vcmp.eq.s32.totalorder %v1726, 1
    %vm1802 = vcmp.eq.s32.totalorder %v1727, 1
    %vm1803 = vcmp.eq.s32.totalorder %v1728, 1
    %vm1804 = vcmp.eq.s32.totalorder %v1729, 1
    %vm1805 = vcmp.eq.s32.totalorder %v1730, 1
    %vm1806 = vcmp.eq.s32.totalorder %v1731, 1
    %vm1807 = vcmp.eq.s32.totalorder %v1732, 1
    %vm1808 = vcmp.eq.s32.totalorder %v1733, 1
    %vm1809 = vcmp.eq.s32.totalorder %v1734, 1
    %vm1810 = vcmp.eq.s32.totalorder %v1735, 1
    %vm1811 = vcmp.eq.s32.totalorder %v1736, 1
    %vm1812 = vcmp.eq.s32.totalorder %v1737, 1
    %vm1813 = vcmp.eq.s32.totalorder %v1738, 1
    %vm1814 = vcmp.eq.s32.totalorder %v1739, 1
    %vm1815 = vcmp.eq.s32.totalorder %v1740, 1
    %vm1816 = vcmp.eq.s32.totalorder %v1741, 1
    %vm1817 = vcmp.eq.s32.totalorder %v1742, 1
    %vm1818 = vcmp.eq.s32.totalorder %v1743, 1
    %vm1819 = vcmp.eq.s32.totalorder %v1744, 1
    %vm1820 = vcmp.eq.s32.totalorder %v1745, 1
    %vm1821 = vcmp.eq.s32.totalorder %v1746, 1
    %vm1822 = vcmp.eq.s32.totalorder %v1747, 1
    %vm1823 = vcmp.eq.s32.totalorder %v1748, 1
    %vm1824 = vcmp.eq.s32.totalorder %v1749, 1
    %vm1825 = vcmp.eq.s32.totalorder %v1750, 1
    %vm1826 = vcmp.eq.s32.totalorder %v1751, 1
    %vm1827 = vcmp.eq.s32.totalorder %v1752, 1
    %vm1828 = vcmp.eq.s32.totalorder %v1753, 1
    %vm1829 = vcmp.eq.s32.totalorder %v1754, 1
    %vm1830 = vcmp.eq.s32.totalorder %v1755, 1
    %vm1831 = vcmp.eq.s32.totalorder %v1756, 1
    %vm1832 = vcmp.eq.s32.totalorder %v1757, 1
    %vm1833 = vcmp.eq.s32.totalorder %v1758, 1
    %vm1834 = vcmp.eq.s32.totalorder %v1759, 1
    %vm1835 = vcmp.eq.s32.totalorder %v1760, 1
    %vm1836 = vcmp.eq.s32.totalorder %v1761, 1
    %vm1837 = vcmp.eq.s32.totalorder %v1762, 1
    %vm1838 = vcmp.eq.s32.totalorder %v1763, 1
    %vm1839 = vcmp.eq.s32.totalorder %v1764, 1
    %vm1840 = vcmp.eq.s32.totalorder %v1765, 1
    %vm1841 = vcmp.eq.s32.totalorder %v1766, 1
    %vm1842 = vcmp.eq.s32.totalorder %v1767, 1
    %vm1843 = vcmp.eq.s32.totalorder %v1768, 1
    %vm1844 = vcmp.eq.s32.totalorder %v1769, 1
    %vm1845 = vcmp.eq.s32.totalorder %v1770, 1
    %vm1846 = vcmp.eq.s32.totalorder %v1771, 1
    %vm1847 = vcmp.eq.s32.totalorder %v1772, 1
    %vm1848 = vcmp.eq.s32.totalorder %v1773, 1
    %vm1849 = vcmp.eq.s32.totalorder %v1774, 1
    %vm1850 = vcmp.eq.s32.totalorder %v1775, 1
    %vm1851 = vcmp.eq.s32.totalorder %v1776, 1
    %vm1852 = vcmp.eq.s32.totalorder %v1777, 1
    %vm1853 = vcmp.eq.s32.totalorder %v1778, 1
    %vm1854 = vcmp.eq.s32.totalorder %v1779, 1
    %vm1855 = vcmp.eq.s32.totalorder %v1780, 1
    %vm1856 = vcmp.eq.s32.totalorder %v1781, 1
    %vm1857 = vcmp.eq.s32.totalorder %v1782, 1
    %vm1858 = vcmp.eq.s32.totalorder %v1783, 1
    %vm1859 = vcmp.eq.s32.totalorder %v1784, 1
    %vm1860 = vcmp.eq.s32.totalorder %v1785, 1
    %vm1861 = vcmp.eq.s32.totalorder %v1786, 1
    %vm1862 = vcmp.eq.s32.totalorder %v1787, 1
    %vm1863 = vcmp.eq.s32.totalorder %v1788, 1
    %v1864 = vsel %vm1789, %v1186, 0.0
    %v1865 = vsel %vm1789, %v1187, 0.0
    %v1866 = vsel %vm1789, %v1188, 0.0
    %v1867 = vsel %vm1789, %v1189, 0.0
    %v1868 = vsel %vm1790, %v1190, 0.0
    %v1869 = vsel %vm1790, %v1191, 0.0
    %v1870 = vsel %vm1790, %v1192, 0.0
    %v1871 = vsel %vm1790, %v1193, 0.0
    %v1872 = vsel %vm1791, %v1194, 0.0
    %v1873 = vsel %vm1791, %v1195, 0.0
    %v1874 = vsel %vm1791, %v1196, 0.0
    %v1875 = vsel %vm1791, %v1197, 0.0
    %v1876 = vsel %vm1792, %v1198, 0.0
    %v1877 = vsel %vm1792, %v1199, 0.0
    %v1878 = vsel %vm1792, %v1200, 0.0
    %v1879 = vsel %vm1792, %v1201, 0.0
    %v1880 = vsel %vm1793, %v1202, 0.0
    %v1881 = vsel %vm1793, %v1203, 0.0
    %v1882 = vsel %vm1793, %v1204, 0.0
    %v1883 = vsel %vm1793, %v1205, 0.0
    %v1884 = vsel %vm1794, %v1206, 0.0
    %v1885 = vsel %vm1794, %v1207, 0.0
    %v1886 = vsel %vm1794, %v1208, 0.0
    %v1887 = vsel %vm1794, %v1209, 0.0
    %v1888 = vsel %vm1795, %v1210, 0.0
    %v1889 = vsel %vm1795, %v1211, 0.0
    %v1890 = vsel %vm1795, %v1212, 0.0
    %v1891 = vsel %vm1795, %v1213, 0.0
    %v1892 = vsel %vm1796, %v1214, 0.0
    %v1893 = vsel %vm1796, %v1215, 0.0
    %v1894 = vsel %vm1796, %v1216, 0.0
    %v1895 = vsel %vm1796, %v1217, 0.0
    %v1896 = vsel %vm1797, %v1218, 0.0
    %v1897 = vsel %vm1797, %v1219, 0.0
    %v1898 = vsel %vm1797, %v1220, 0.0
    %v1899 = vsel %vm1797, %v1221, 0.0
    %v1900 = vsel %vm1798, %v1222, 0.0
    %v1901 = vsel %vm1798, %v1223, 0.0
    %v1902 = vsel %vm1798, %v1224, 0.0
    %v1903 = vsel %vm1798, %v1225, 0.0
    %v1904 = vsel %vm1799, %v1226, 0.0
    %v1905 = vsel %vm1799, %v1227, 0.0
    %v1906 = vsel %vm1799, %v1228, 0.0
    %v1907 = vsel %vm1799, %v1229, 0.0
    %v1908 = vsel %vm1800, %v1230, 0.0
    %v1909 = vsel %vm1800, %v1231, 0.0
    %v1910 = vsel %vm1800, %v1232, 0.0
    %v1911 = vsel %vm1800, %v1233, 0.0
    %v1912 = vsel %vm1801, %v1234, 0.0
    %v1913 = vsel %vm1801, %v1235, 0.0
    %v1914 = vsel %vm1801, %v1236, 0.0
    %v1915 = vsel %vm1801, %v1237, 0.0
    %v1916 = vsel %vm1802, %v1238, 0.0
    %v1917 = vsel %vm1802, %v1239, 0.0
    %v1918 = vsel %vm1802, %v1240, 0.0
    %v1919 = vsel %vm1802, %v1241, 0.0
    %v1920 = vsel %vm1803, %v1242, 0.0
    %v1921 = vsel %vm1803, %v1243, 0.0
    %v1922 = vsel %vm1803, %v1244, 0.0
    %v1923 = vsel %vm1803, %v1245, 0.0
    %v1924 = vsel %vm1804, %v1246, 0.0
    %v1925 = vsel %vm1804, %v1247, 0.0
    %v1926 = vsel %vm1804, %v1248, 0.0
    %v1927 = vsel %vm1804, %v1249, 0.0
    %v1928 = vsel %vm1805, %v1250, 0.0
    %v1929 = vsel %vm1805, %v1251, 0.0
    %v1930 = vsel %vm1805, %v1252, 0.0
    %v1931 = vsel %vm1805, %v1253, 0.0
    %v1932 = vsel %vm1806, %v1254, 0.0
    %v1933 = vsel %vm1806, %v1255, 0.0
    %v1934 = vsel %vm1806, %v1256, 0.0
    %v1935 = vsel %vm1806, %v1257, 0.0
    %v1936 = vsel %vm1807, %v1258, 0.0
    %v1937 = vsel %vm1807, %v1259, 0.0
    %v1938 = vsel %vm1807, %v1260, 0.0
    %v1939 = vsel %vm1807, %v1261, 0.0
    %v1940 = vsel %vm1808, %v1262, 0.0
    %v1941 = vsel %vm1808, %v1263, 0.0
    %v1942 = vsel %vm1808, %v1264, 0.0
    %v1943 = vsel %vm1808, %v1265, 0.0
    %v1944 = vsel %vm1809, %v1266, 0.0
    %v1945 = vsel %vm1809, %v1267, 0.0
    %v1946 = vsel %vm1809, %v1268, 0.0
    %v1947 = vsel %vm1809, %v1269, 0.0
    %v1948 = vsel %vm1810, %v1270, 0.0
    %v1949 = vsel %vm1810, %v1271, 0.0
    %v1950 = vsel %vm1810, %v1272, 0.0
    %v1951 = vsel %vm1810, %v1273, 0.0
    %v1952 = vsel %vm1811, %v1274, 0.0
    %v1953 = vsel %vm1811, %v1275, 0.0
    %v1954 = vsel %vm1811, %v1276, 0.0
    %v1955 = vsel %vm1811, %v1277, 0.0
    %v1956 = vsel %vm1812, %v1278, 0.0
    %v1957 = vsel %vm1812, %v1279, 0.0
    %v1958 = vsel %vm1812, %v1280, 0.0
    %v1959 = vsel %vm1812, %v1281, 0.0
    %v1960 = vsel %vm1813, %v1282, 0.0
    %v1961 = vsel %vm1813, %v1283, 0.0
    %v1962 = vsel %vm1813, %v1284, 0.0
    %v1963 = vsel %vm1813, %v1285, 0.0
    %v1964 = vsel %vm1814, %v1286, 0.0
    %v1965 = vsel %vm1814, %v1287, 0.0
    %v1966 = vsel %vm1814, %v1288, 0.0
    %v1967 = vsel %vm1814, %v1289, 0.0
    %v1968 = vsel %vm1815, %v1290, 0.0
    %v1969 = vsel %vm1815, %v1291, 0.0
    %v1970 = vsel %vm1815, %v1292, 0.0
    %v1971 = vsel %vm1815, %v1293, 0.0
    %v1972 = vsel %vm1816, %v1294, 0.0
    %v1973 = vsel %vm1816, %v1295, 0.0
    %v1974 = vsel %vm1816, %v1296, 0.0
    %v1975 = vsel %vm1816, %v1297, 0.0
    %v1976 = vsel %vm1817, %v1298, 0.0
    %v1977 = vsel %vm1817, %v1299, 0.0
    %v1978 = vsel %vm1817, %v1300, 0.0
    %v1979 = vsel %vm1817, %v1301, 0.0
    %v1980 = vsel %vm1818, %v1302, 0.0
    %v1981 = vsel %vm1818, %v1303, 0.0
    %v1982 = vsel %vm1818, %v1304, 0.0
    %v1983 = vsel %vm1818, %v1305, 0.0
    %v1984 = vsel %vm1819, %v1306, 0.0
    %v1985 = vsel %vm1819, %v1307, 0.0
    %v1986 = vsel %vm1819, %v1308, 0.0
    %v1987 = vsel %vm1819, %v1309, 0.0
    %v1988 = vsel %vm1820, %v1310, 0.0
    %v1989 = vsel %vm1820, %v1311, 0.0
    %v1990 = vsel %vm1820, %v1312, 0.0
    %v1991 = vsel %vm1820, %v1313, 0.0
    %v1992 = vsel %vm1821, %v1314, 0.0
    %v1993 = vsel %vm1821, %v1315, 0.0
    %v1994 = vsel %vm1821, %v1316, 0.0
    %v1995 = vsel %vm1821, %v1317, 0.0
    %v1996 = vsel %vm1822, %v1318, 0.0
    %v1997 = vsel %vm1822, %v1319, 0.0
    %v1998 = vsel %vm1822, %v1320, 0.0
    %v1999 = vsel %vm1822, %v1321, 0.0
    %v2000 = vsel %vm1823, %v1322, 0.0
    %v2001 = vsel %vm1823, %v1323, 0.0
    %v2002 = vsel %vm1823, %v1324, 0.0
    %v2003 = vsel %vm1823, %v1325, 0.0
    %v2004 = vsel %vm1824, %v1326, 0.0
    %v2005 = vsel %vm1824, %v1327, 0.0
    %v2006 = vsel %vm1824, %v1328, 0.0
    %v2007 = vsel %vm1824, %v1329, 0.0
    %v2008 = vsel %vm1825, %v1330, 0.0
    %v2009 = vsel %vm1825, %v1331, 0.0
    %v2010 = vsel %vm1825, %v1332, 0.0
    %v2011 = vsel %vm1825, %v1333, 0.0
    %v2012 = vsel %vm1826, %v1334, 0.0
    %v2013 = vsel %vm1826, %v1335, 0.0
    %v2014 = vsel %vm1826, %v1336, 0.0
    %v2015 = vsel %vm1826, %v1337, 0.0
    %v2016 = vsel %vm1827, %v1338, 0.0
    %v2017 = vsel %vm1827, %v1339, 0.0
    %v2018 = vsel %vm1827, %v1340, 0.0
    %v2019 = vsel %vm1827, %v1341, 0.0
    %v2020 = vsel %vm1828, %v1342, 0.0
    %v2021 = vsel %vm1828, %v1343, 0.0
    %v2022 = vsel %vm1828, %v1344, 0.0
    %v2023 = vsel %vm1828, %v1345, 0.0
    %v2024 = vsel %vm1829, %v1346, 0.0
    %v2025 = vsel %vm1829, %v1347, 0.0
    %v2026 = vsel %vm1829, %v1348, 0.0
    %v2027 = vsel %vm1829, %v1349, 0.0
    %v2028 = vsel %vm1830, %v1350, 0.0
    %v2029 = vsel %vm1830, %v1351, 0.0
    %v2030 = vsel %vm1830, %v1352, 0.0
    %v2031 = vsel %vm1830, %v1353, 0.0
    %v2032 = vsel %vm1831, %v1354, 0.0
    %v2033 = vsel %vm1831, %v1355, 0.0
    %v2034 = vsel %vm1831, %v1356, 0.0
    %v2035 = vsel %vm1831, %v1357, 0.0
    %v2036 = vsel %vm1832, %v1358, 0.0
    %v2037 = vsel %vm1832, %v1359, 0.0
    %v2038 = vsel %vm1832, %v1360, 0.0
    %v2039 = vsel %vm1832, %v1361, 0.0
    %v2040 = vsel %vm1833, %v1362, 0.0
    %v2041 = vsel %vm1833, %v1363, 0.0
    %v2042 = vsel %vm1833, %v1364, 0.0
    %v2043 = vsel %vm1833, %v1365, 0.0
    %v2044 = vsel %vm1834, %v1366, 0.0
    %v2045 = vsel %vm1834, %v1367, 0.0
    %v2046 = vsel %vm1834, %v1368, 0.0
    %v2047 = vsel %vm1834, %v1369, 0.0
    %v2048 = vsel %vm1835, %v1370, 0.0
    %v2049 = vsel %vm1835, %v1371, 0.0
    %v2050 = vsel %vm1835, %v1372, 0.0
    %v2051 = vsel %vm1835, %v1373, 0.0
    %v2052 = vsel %vm1836, %v1374, 0.0
    %v2053 = vsel %vm1836, %v1375, 0.0
    %v2054 = vsel %vm1836, %v1376, 0.0
    %v2055 = vsel %vm1836, %v1377, 0.0
    %v2056 = vsel %vm1837, %v1378, 0.0
    %v2057 = vsel %vm1837, %v1379, 0.0
    %v2058 = vsel %vm1837, %v1380, 0.0
    %v2059 = vsel %vm1837, %v1381, 0.0
    %v2060 = vsel %vm1838, %v1382, 0.0
    %v2061 = vsel %vm1838, %v1383, 0.0
    %v2062 = vsel %vm1838, %v1384, 0.0
    %v2063 = vsel %vm1838, %v1385, 0.0
    %v2064 = vsel %vm1839, %v1386, 0.0
    %v2065 = vsel %vm1839, %v1387, 0.0
    %v2066 = vsel %vm1839, %v1388, 0.0
    %v2067 = vsel %vm1839, %v1389, 0.0
    %v2068 = vsel %vm1840, %v1390, 0.0
    %v2069 = vsel %vm1840, %v1391, 0.0
    %v2070 = vsel %vm1840, %v1392, 0.0
    %v2071 = vsel %vm1840, %v1393, 0.0
    %v2072 = vsel %vm1841, %v1394, 0.0
    %v2073 = vsel %vm1841, %v1395, 0.0
    %v2074 = vsel %vm1841, %v1396, 0.0
    %v2075 = vsel %vm1841, %v1397, 0.0
    %v2076 = vsel %vm1842, %v1398, 0.0
    %v2077 = vsel %vm1842, %v1399, 0.0
    %v2078 = vsel %vm1842, %v1400, 0.0
    %v2079 = vsel %vm1842, %v1401, 0.0
    %v2080 = vsel %vm1843, %v1402, 0.0
    %v2081 = vsel %vm1843, %v1403, 0.0
    %v2082 = vsel %vm1843, %v1404, 0.0
    %v2083 = vsel %vm1843, %v1405, 0.0
    %v2084 = vsel %vm1844, %v1406, 0.0
    %v2085 = vsel %vm1844, %v1407, 0.0
    %v2086 = vsel %vm1844, %v1408, 0.0
    %v2087 = vsel %vm1844, %v1409, 0.0
    %v2088 = vsel %vm1845, %v1410, 0.0
    %v2089 = vsel %vm1845, %v1411, 0.0
    %v2090 = vsel %vm1845, %v1412, 0.0
    %v2091 = vsel %vm1845, %v1413, 0.0
    %v2092 = vsel %vm1846, %v1414, 0.0
    %v2093 = vsel %vm1846, %v1415, 0.0
    %v2094 = vsel %vm1846, %v1416, 0.0
    %v2095 = vsel %vm1846, %v1417, 0.0
    %v2096 = vsel %vm1847, %v1418, 0.0
    %v2097 = vsel %vm1847, %v1419, 0.0
    %v2098 = vsel %vm1847, %v1420, 0.0
    %v2099 = vsel %vm1847, %v1421, 0.0
    %v2100 = vsel %vm1848, %v1422, 0.0
    %v2101 = vsel %vm1848, %v1423, 0.0
    %v2102 = vsel %vm1848, %v1424, 0.0
    %v2103 = vsel %vm1848, %v1425, 0.0
    %v2104 = vsel %vm1849, %v1426, 0.0
    %v2105 = vsel %vm1849, %v1427, 0.0
    %v2106 = vsel %vm1849, %v1428, 0.0
    %v2107 = vsel %vm1849, %v1429, 0.0
    %v2108 = vsel %vm1850, %v1430, 0.0
    %v2109 = vsel %vm1850, %v1431, 0.0
    %v2110 = vsel %vm1850, %v1432, 0.0
    %v2111 = vsel %vm1850, %v1433, 0.0
    %v2112 = vsel %vm1851, %v1434, 0.0
    %v2113 = vsel %vm1851, %v1435, 0.0
    %v2114 = vsel %vm1851, %v1436, 0.0
    %v2115 = vsel %vm1851, %v1437, 0.0
    %v2116 = vsel %vm1852, %v1438, 0.0
    %v2117 = vsel %vm1852, %v1439, 0.0
    %v2118 = vsel %vm1852, %v1440, 0.0
    %v2119 = vsel %vm1852, %v1441, 0.0
    %v2120 = vsel %vm1853, %v1442, 0.0
    %v2121 = vsel %vm1853, %v1443, 0.0
    %v2122 = vsel %vm1853, %v1444, 0.0
    %v2123 = vsel %vm1853, %v1445, 0.0
    %v2124 = vsel %vm1854, %v1446, 0.0
    %v2125 = vsel %vm1854, %v1447, 0.0
    %v2126 = vsel %vm1854, %v1448, 0.0
    %v2127 = vsel %vm1854, %v1449, 0.0
    %v2128 = vsel %vm1855, %v1450, 0.0
    %v2129 = vsel %vm1855, %v1451, 0.0
    %v2130 = vsel %vm1855, %v1452, 0.0
    %v2131 = vsel %vm1855, %v1453, 0.0
    %v2132 = vsel %vm1856, %v1454, 0.0
    %v2133 = vsel %vm1856, %v1455, 0.0
    %v2134 = vsel %vm1856, %v1456, 0.0
    %v2135 = vsel %vm1856, %v1457, 0.0
    %v2136 = vsel %vm1857, %v1458, 0.0
    %v2137 = vsel %vm1857, %v1459, 0.0
    %v2138 = vsel %vm1857, %v1460, 0.0
    %v2139 = vsel %vm1857, %v1461, 0.0
    %v2140 = vsel %vm1858, %v1462, 0.0
    %v2141 = vsel %vm1858, %v1463, 0.0
    %v2142 = vsel %vm1858, %v1464, 0.0
    %v2143 = vsel %vm1858, %v1465, 0.0
    %v2144 = vsel %vm1859, %v1466, 0.0
    %v2145 = vsel %vm1859, %v1467, 0.0
    %v2146 = vsel %vm1859, %v1468, 0.0
    %v2147 = vsel %vm1859, %v1469, 0.0
    %v2148 = vsel %vm1860, %v1470, 0.0
    %v2149 = vsel %vm1860, %v1471, 0.0
    %v2150 = vsel %vm1860, %v1472, 0.0
    %v2151 = vsel %vm1860, %v1473, 0.0
    %v2152 = vsel %vm1861, %v1474, 0.0
    %v2153 = vsel %vm1861, %v1475, 0.0
    %v2154 = vsel %vm1861, %v1476, 0.0
    %v2155 = vsel %vm1861, %v1477, 0.0
    %v2156 = vsel %vm1862, %v1478, 0.0
    %v2157 = vsel %vm1862, %v1479, 0.0
    %v2158 = vsel %vm1862, %v1480, 0.0
    %v2159 = vsel %vm1862, %v1481, 0.0
    %v2160 = vsel %vm1863, %v1482, 0.0
    %v2161 = vsel %vm1863, %v1483, 0.0
    %v2162 = vsel %vm1863, %v1484, 0.0
    %v2163 = vsel %vm1863, %v1485, 0.0
    %v2164 = vpack.c.bf16 %v1868, %v1864
    %v2165 = vpack.c.bf16 %v1869, %v1865
    %v2166 = vpack.c.bf16 %v1870, %v1866
    %v2167 = vpack.c.bf16 %v1871, %v1867
    %v2168 = vpack.c.bf16 %v1876, %v1872
    %v2169 = vpack.c.bf16 %v1877, %v1873
    %v2170 = vpack.c.bf16 %v1878, %v1874
    %v2171 = vpack.c.bf16 %v1879, %v1875
    %v2172 = vpack.c.bf16 %v1884, %v1880
    %v2173 = vpack.c.bf16 %v1885, %v1881
    %v2174 = vpack.c.bf16 %v1886, %v1882
    %v2175 = vpack.c.bf16 %v1887, %v1883
    %v2176 = vpack.c.bf16 %v1892, %v1888
    %v2177 = vpack.c.bf16 %v1893, %v1889
    %v2178 = vpack.c.bf16 %v1894, %v1890
    %v2179 = vpack.c.bf16 %v1895, %v1891
    %v2180 = vpack.c.bf16 %v1900, %v1896
    %v2181 = vpack.c.bf16 %v1901, %v1897
    %v2182 = vpack.c.bf16 %v1902, %v1898
    %v2183 = vpack.c.bf16 %v1903, %v1899
    %v2184 = vpack.c.bf16 %v1908, %v1904
    %v2185 = vpack.c.bf16 %v1909, %v1905
    %v2186 = vpack.c.bf16 %v1910, %v1906
    %v2187 = vpack.c.bf16 %v1911, %v1907
    %v2188 = vpack.c.bf16 %v1916, %v1912
    %v2189 = vpack.c.bf16 %v1917, %v1913
    %v2190 = vpack.c.bf16 %v1918, %v1914
    %v2191 = vpack.c.bf16 %v1919, %v1915
    %v2192 = vpack.c.bf16 %v1924, %v1920
    %v2193 = vpack.c.bf16 %v1925, %v1921
    %v2194 = vpack.c.bf16 %v1926, %v1922
    %v2195 = vpack.c.bf16 %v1927, %v1923
    %v2196 = vpack.c.bf16 %v1932, %v1928
    %v2197 = vpack.c.bf16 %v1933, %v1929
    %v2198 = vpack.c.bf16 %v1934, %v1930
    %v2199 = vpack.c.bf16 %v1935, %v1931
    %v2200 = vpack.c.bf16 %v1940, %v1936
    %v2201 = vpack.c.bf16 %v1941, %v1937
    %v2202 = vpack.c.bf16 %v1942, %v1938
    %v2203 = vpack.c.bf16 %v1943, %v1939
    %v2204 = vpack.c.bf16 %v1948, %v1944
    %v2205 = vpack.c.bf16 %v1949, %v1945
    %v2206 = vpack.c.bf16 %v1950, %v1946
    %v2207 = vpack.c.bf16 %v1951, %v1947
    %v2208 = vpack.c.bf16 %v1956, %v1952
    %v2209 = vpack.c.bf16 %v1957, %v1953
    %v2210 = vpack.c.bf16 %v1958, %v1954
    %v2211 = vpack.c.bf16 %v1959, %v1955
    %v2212 = vpack.c.bf16 %v1964, %v1960
    %v2213 = vpack.c.bf16 %v1965, %v1961
    %v2214 = vpack.c.bf16 %v1966, %v1962
    %v2215 = vpack.c.bf16 %v1967, %v1963
    %v2216 = vpack.c.bf16 %v1972, %v1968
    %v2217 = vpack.c.bf16 %v1973, %v1969
    %v2218 = vpack.c.bf16 %v1974, %v1970
    %v2219 = vpack.c.bf16 %v1975, %v1971
    %v2220 = vpack.c.bf16 %v1980, %v1976
    %v2221 = vpack.c.bf16 %v1981, %v1977
    %v2222 = vpack.c.bf16 %v1982, %v1978
    %v2223 = vpack.c.bf16 %v1983, %v1979
    %v2224 = vpack.c.bf16 %v1988, %v1984
    %v2225 = vpack.c.bf16 %v1989, %v1985
    %v2226 = vpack.c.bf16 %v1990, %v1986
    %v2227 = vpack.c.bf16 %v1991, %v1987
    %v2228 = vpack.c.bf16 %v1996, %v1992
    %v2229 = vpack.c.bf16 %v1997, %v1993
    %v2230 = vpack.c.bf16 %v1998, %v1994
    %v2231 = vpack.c.bf16 %v1999, %v1995
    %v2232 = vpack.c.bf16 %v2004, %v2000
    %v2233 = vpack.c.bf16 %v2005, %v2001
    %v2234 = vpack.c.bf16 %v2006, %v2002
    %v2235 = vpack.c.bf16 %v2007, %v2003
    %v2236 = vpack.c.bf16 %v2012, %v2008
    %v2237 = vpack.c.bf16 %v2013, %v2009
    %v2238 = vpack.c.bf16 %v2014, %v2010
    %v2239 = vpack.c.bf16 %v2015, %v2011
    %v2240 = vpack.c.bf16 %v2020, %v2016
    %v2241 = vpack.c.bf16 %v2021, %v2017
    %v2242 = vpack.c.bf16 %v2022, %v2018
    %v2243 = vpack.c.bf16 %v2023, %v2019
    %v2244 = vpack.c.bf16 %v2028, %v2024
    %v2245 = vpack.c.bf16 %v2029, %v2025
    %v2246 = vpack.c.bf16 %v2030, %v2026
    %v2247 = vpack.c.bf16 %v2031, %v2027
    %v2248 = vpack.c.bf16 %v2036, %v2032
    %v2249 = vpack.c.bf16 %v2037, %v2033
    %v2250 = vpack.c.bf16 %v2038, %v2034
    %v2251 = vpack.c.bf16 %v2039, %v2035
    %v2252 = vpack.c.bf16 %v2044, %v2040
    %v2253 = vpack.c.bf16 %v2045, %v2041
    %v2254 = vpack.c.bf16 %v2046, %v2042
    %v2255 = vpack.c.bf16 %v2047, %v2043
    %v2256 = vpack.c.bf16 %v2052, %v2048
    %v2257 = vpack.c.bf16 %v2053, %v2049
    %v2258 = vpack.c.bf16 %v2054, %v2050
    %v2259 = vpack.c.bf16 %v2055, %v2051
    %v2260 = vpack.c.bf16 %v2060, %v2056
    %v2261 = vpack.c.bf16 %v2061, %v2057
    %v2262 = vpack.c.bf16 %v2062, %v2058
    %v2263 = vpack.c.bf16 %v2063, %v2059
    %v2264 = vpack.c.bf16 %v2068, %v2064
    %v2265 = vpack.c.bf16 %v2069, %v2065
    %v2266 = vpack.c.bf16 %v2070, %v2066
    %v2267 = vpack.c.bf16 %v2071, %v2067
    %v2268 = vpack.c.bf16 %v2076, %v2072
    %v2269 = vpack.c.bf16 %v2077, %v2073
    %v2270 = vpack.c.bf16 %v2078, %v2074
    %v2271 = vpack.c.bf16 %v2079, %v2075
    %v2272 = vpack.c.bf16 %v2084, %v2080
    %v2273 = vpack.c.bf16 %v2085, %v2081
    %v2274 = vpack.c.bf16 %v2086, %v2082
    %v2275 = vpack.c.bf16 %v2087, %v2083
    %v2276 = vpack.c.bf16 %v2092, %v2088
    %v2277 = vpack.c.bf16 %v2093, %v2089
    %v2278 = vpack.c.bf16 %v2094, %v2090
    %v2279 = vpack.c.bf16 %v2095, %v2091
    %v2280 = vpack.c.bf16 %v2100, %v2096
    %v2281 = vpack.c.bf16 %v2101, %v2097
    %v2282 = vpack.c.bf16 %v2102, %v2098
    %v2283 = vpack.c.bf16 %v2103, %v2099
    %v2284 = vpack.c.bf16 %v2108, %v2104
    %v2285 = vpack.c.bf16 %v2109, %v2105
    %v2286 = vpack.c.bf16 %v2110, %v2106
    %v2287 = vpack.c.bf16 %v2111, %v2107
    %v2288 = vpack.c.bf16 %v2116, %v2112
    %v2289 = vpack.c.bf16 %v2117, %v2113
    %v2290 = vpack.c.bf16 %v2118, %v2114
    %v2291 = vpack.c.bf16 %v2119, %v2115
    %v2292 = vpack.c.bf16 %v2124, %v2120
    %v2293 = vpack.c.bf16 %v2125, %v2121
    %v2294 = vpack.c.bf16 %v2126, %v2122
    %v2295 = vpack.c.bf16 %v2127, %v2123
    %v2296 = vpack.c.bf16 %v2132, %v2128
    %v2297 = vpack.c.bf16 %v2133, %v2129
    %v2298 = vpack.c.bf16 %v2134, %v2130
    %v2299 = vpack.c.bf16 %v2135, %v2131
    %v2300 = vpack.c.bf16 %v2140, %v2136
    %v2301 = vpack.c.bf16 %v2141, %v2137
    %v2302 = vpack.c.bf16 %v2142, %v2138
    %v2303 = vpack.c.bf16 %v2143, %v2139
    %v2304 = vpack.c.bf16 %v2148, %v2144
    %v2305 = vpack.c.bf16 %v2149, %v2145
    %v2306 = vpack.c.bf16 %v2150, %v2146
    %v2307 = vpack.c.bf16 %v2151, %v2147
    %v2308 = vpack.c.bf16 %v2156, %v2152
    %v2309 = vpack.c.bf16 %v2157, %v2153
    %v2310 = vpack.c.bf16 %v2158, %v2154
    %v2311 = vpack.c.bf16 %v2159, %v2155
    %v2312 = vpack.c.bf16 %v2160, %v2160
    %v2313 = vpack.c.bf16 %v2161, %v2161
    %v2314 = vpack.c.bf16 %v2162, %v2162
    %v2315 = vpack.c.bf16 %v2163, %v2163
    %v2316 = vld [vmem:[%s3] sm:$0xff]
    %v2317 = vld [vmem:[%s3 + $0x8] sm:$0xff]
    %v2318 = vld [vmem:[%s3 + $0x10] sm:$0xff]
    %v2319 = vld [vmem:[%s3 + $0x18] sm:$0xff]
    %v2320 = vld [vmem:[%s3 + $0x20] sm:$0xff]
    %v2321 = vld [vmem:[%s3 + $0x28] sm:$0xff]
    %v2322 = vld [vmem:[%s3 + $0x30] sm:$0xff]
    %v2323 = vld [vmem:[%s3 + $0x38] sm:$0xff]
    %v2324 = vld [vmem:[%s3 + $0x40] sm:$0xff]
    %v2325 = vld [vmem:[%s3 + $0x48] sm:$0xff]
    %v2326 = vld [vmem:[%s3 + $0x50] sm:$0xff]
    %v2327 = vld [vmem:[%s3 + $0x58] sm:$0xff]
    %v2328 = vld [vmem:[%s3 + $0x60] sm:$0xff]
    %v2329 = vld [vmem:[%s3 + $0x68] sm:$0xff]
    %v2330 = vld [vmem:[%s3 + $0x70] sm:$0xff]
    %v2331 = vld [vmem:[%s3 + $0x78] sm:$0xff]
    %v2332 = vld [vmem:[%s3 + $0x80] sm:$0xff]
    %v2333 = vld [vmem:[%s3 + $0x88] sm:$0xff]
    %v2334 = vld [vmem:[%s3 + $0x90] sm:$0xff]
    %v2335 = vld [vmem:[%s3 + $0x98] sm:$0xff]
    %v2336 = vld [vmem:[%s3 + $0xa0] sm:$0xff]
    %v2337 = vld [vmem:[%s3 + $0xa8] sm:$0xff]
    %v2338 = vld [vmem:[%s3 + $0xb0] sm:$0xff]
    %v2339 = vld [vmem:[%s3 + $0xb8] sm:$0xff]
    %v2340 = vld [vmem:[%s3 + $0xc0] sm:$0xff]
    %v2341 = vld [vmem:[%s3 + $0xc8] sm:$0xff]
    %v2342 = vld [vmem:[%s3 + $0xd0] sm:$0xff]
    %v2343 = vld [vmem:[%s3 + $0xd8] sm:$0xff]
    %v2344 = vld [vmem:[%s3 + $0xe0] sm:$0xff]
    %v2345 = vld [vmem:[%s3 + $0xe8] sm:$0xff]
    %v2346 = vld [vmem:[%s3 + $0xf0] sm:$0xff]
    %v2347 = vld [vmem:[%s3 + $0xf8] sm:$0xff]
    %v2348 = vld [vmem:[%s3 + $0x100] sm:$0xff]
    %v2349 = vld [vmem:[%s3 + $0x108] sm:$0xff]
    %v2350 = vld [vmem:[%s3 + $0x110] sm:$0xff]
    %v2351 = vld [vmem:[%s3 + $0x118] sm:$0xff]
    %v2352 = vld [vmem:[%s3 + $0x120] sm:$0xff]
    %v2353 = vld [vmem:[%s3 + $0x128] sm:$0xff]
    %v2354 = vld [vmem:[%s3 + $0x130] sm:$0xff]
    %v2355 = vld [vmem:[%s3 + $0x138] sm:$0xff]
    %v2356 = vld [vmem:[%s3 + $0x140] sm:$0xff]
    %v2357 = vld [vmem:[%s3 + $0x148] sm:$0xff]
    %v2358 = vld [vmem:[%s3 + $0x150] sm:$0xff]
    %v2359 = vld [vmem:[%s3 + $0x158] sm:$0xff]
    %v2360 = vld [vmem:[%s3 + $0x160] sm:$0xff]
    %v2361 = vld [vmem:[%s3 + $0x168] sm:$0xff]
    %v2362 = vld [vmem:[%s3 + $0x170] sm:$0xff]
    %v2363 = vld [vmem:[%s3 + $0x178] sm:$0xff]
    %v2364 = vld [vmem:[%s3 + $0x180] sm:$0xff]
    %v2365 = vld [vmem:[%s3 + $0x188] sm:$0xff]
    %v2366 = vld [vmem:[%s3 + $0x190] sm:$0xff]
    %v2367 = vld [vmem:[%s3 + $0x198] sm:$0xff]
    %v2368 = vld [vmem:[%s3 + $0x1a0] sm:$0xff]
    %v2369 = vld [vmem:[%s3 + $0x1a8] sm:$0xff]
    %v2370 = vld [vmem:[%s3 + $0x1b0] sm:$0xff]
    %v2371 = vld [vmem:[%s3 + $0x1b8] sm:$0xff]
    %v2372 = vld [vmem:[%s3 + $0x1c0] sm:$0xff]
    %v2373 = vld [vmem:[%s3 + $0x1c8] sm:$0xff]
    %v2374 = vld [vmem:[%s3 + $0x1d0] sm:$0xff]
    %v2375 = vld [vmem:[%s3 + $0x1d8] sm:$0xff]
    %v2376 = vld [vmem:[%s3 + $0x1e0] sm:$0xff]
    %v2377 = vld [vmem:[%s3 + $0x1e8] sm:$0xff]
    %v2378 = vld [vmem:[%s3 + $0x1f0] sm:$0xff]
    %v2379 = vld [vmem:[%s3 + $0x1f8] sm:$0xff]
    %v2380 = vld [vmem:[%s4] sm:$0x3]
    %v2382 = vperm.slane %v2380, 0
    %v2383 = vperm.slane %v2380, 1
    %v2450 = vunpack.c.l.b16 %v2316
    %v2451 = vunpack.c.h.b16 %v2316
    %v2452 = vunpack.c.l.b16 %v2317
    %v2453 = vunpack.c.h.b16 %v2317
    %v2454 = vunpack.c.l.b16 %v2318
    %v2455 = vunpack.c.h.b16 %v2318
    %v2456 = vunpack.c.l.b16 %v2319
    %v2457 = vunpack.c.h.b16 %v2319
    %v2458 = vunpack.c.l.b16 %v2320
    %v2459 = vunpack.c.h.b16 %v2320
    %v2460 = vunpack.c.l.b16 %v2321
    %v2461 = vunpack.c.h.b16 %v2321
    %v2462 = vunpack.c.l.b16 %v2322
    %v2463 = vunpack.c.h.b16 %v2322
    %v2464 = vunpack.c.l.b16 %v2323
    %v2465 = vunpack.c.h.b16 %v2323
    %v2466 = vunpack.c.l.b16 %v2324
    %v2467 = vunpack.c.h.b16 %v2324
    %v2468 = vunpack.c.l.b16 %v2325
    %v2469 = vunpack.c.h.b16 %v2325
    %v2470 = vunpack.c.l.b16 %v2326
    %v2471 = vunpack.c.h.b16 %v2326
    %v2472 = vunpack.c.l.b16 %v2327
    %v2473 = vunpack.c.h.b16 %v2327
    %v2474 = vunpack.c.l.b16 %v2328
    %v2475 = vunpack.c.h.b16 %v2328
    %v2476 = vunpack.c.l.b16 %v2329
    %v2477 = vunpack.c.h.b16 %v2329
    %v2478 = vunpack.c.l.b16 %v2330
    %v2479 = vunpack.c.h.b16 %v2330
    %v2480 = vunpack.c.l.b16 %v2331
    %v2481 = vunpack.c.h.b16 %v2331
    %v2482 = vunpack.c.l.b16 %v2332
    %v2483 = vunpack.c.h.b16 %v2332
    %v2484 = vunpack.c.l.b16 %v2333
    %v2485 = vunpack.c.h.b16 %v2333
    %v2486 = vunpack.c.l.b16 %v2334
    %v2487 = vunpack.c.h.b16 %v2334
    %v2488 = vunpack.c.l.b16 %v2335
    %v2489 = vunpack.c.h.b16 %v2335
    %v2490 = vunpack.c.l.b16 %v2336
    %v2491 = vunpack.c.h.b16 %v2336
    %v2492 = vunpack.c.l.b16 %v2337
    %v2493 = vunpack.c.h.b16 %v2337
    %v2494 = vunpack.c.l.b16 %v2338
    %v2495 = vunpack.c.h.b16 %v2338
    %v2496 = vunpack.c.l.b16 %v2339
    %v2497 = vunpack.c.h.b16 %v2339
    %v2498 = vunpack.c.l.b16 %v2340
    %v2499 = vunpack.c.h.b16 %v2340
    %v2500 = vunpack.c.l.b16 %v2341
    %v2501 = vunpack.c.h.b16 %v2341
    %v2502 = vunpack.c.l.b16 %v2342
    %v2503 = vunpack.c.h.b16 %v2342
    %v2504 = vunpack.c.l.b16 %v2343
    %v2505 = vunpack.c.h.b16 %v2343
    %v2506 = vunpack.c.l.b16 %v2344
    %v2507 = vunpack.c.h.b16 %v2344
    %v2508 = vunpack.c.l.b16 %v2345
    %v2509 = vunpack.c.h.b16 %v2345
    %v2510 = vunpack.c.l.b16 %v2346
    %v2511 = vunpack.c.h.b16 %v2346
    %v2512 = vunpack.c.l.b16 %v2347
    %v2513 = vunpack.c.h.b16 %v2347
    %v2514 = vunpack.c.l.b16 %v2348
    %v2515 = vunpack.c.h.b16 %v2348
    %v2516 = vunpack.c.l.b16 %v2349
    %v2517 = vunpack.c.h.b16 %v2349
    %v2518 = vunpack.c.l.b16 %v2350
    %v2519 = vunpack.c.h.b16 %v2350
    %v2520 = vunpack.c.l.b16 %v2351
    %v2521 = vunpack.c.h.b16 %v2351
    %v2522 = vunpack.c.l.b16 %v2352
    %v2523 = vunpack.c.h.b16 %v2352
    %v2524 = vunpack.c.l.b16 %v2353
    %v2525 = vunpack.c.h.b16 %v2353
    %v2526 = vunpack.c.l.b16 %v2354
    %v2527 = vunpack.c.h.b16 %v2354
    %v2528 = vunpack.c.l.b16 %v2355
    %v2529 = vunpack.c.h.b16 %v2355
    %v2530 = vunpack.c.l.b16 %v2356
    %v2531 = vunpack.c.h.b16 %v2356
    %v2532 = vunpack.c.l.b16 %v2357
    %v2533 = vunpack.c.h.b16 %v2357
    %v2534 = vunpack.c.l.b16 %v2358
    %v2535 = vunpack.c.h.b16 %v2358
    %v2536 = vunpack.c.l.b16 %v2359
    %v2537 = vunpack.c.h.b16 %v2359
    %v2538 = vunpack.c.l.b16 %v2360
    %v2539 = vunpack.c.h.b16 %v2360
    %v2540 = vunpack.c.l.b16 %v2361
    %v2541 = vunpack.c.h.b16 %v2361
    %v2542 = vunpack.c.l.b16 %v2362
    %v2543 = vunpack.c.h.b16 %v2362
    %v2544 = vunpack.c.l.b16 %v2363
    %v2545 = vunpack.c.h.b16 %v2363
    %v2546 = vunpack.c.l.b16 %v2364
    %v2547 = vunpack.c.h.b16 %v2364
    %v2548 = vunpack.c.l.b16 %v2365
    %v2549 = vunpack.c.h.b16 %v2365
    %v2550 = vunpack.c.l.b16 %v2366
    %v2551 = vunpack.c.h.b16 %v2366
    %v2552 = vunpack.c.l.b16 %v2367
    %v2553 = vunpack.c.h.b16 %v2367
    %v2554 = vunpack.c.l.b16 %v2368
    %v2555 = vunpack.c.h.b16 %v2368
    %v2556 = vunpack.c.l.b16 %v2369
    %v2557 = vunpack.c.h.b16 %v2369
    %v2558 = vunpack.c.l.b16 %v2370
    %v2559 = vunpack.c.h.b16 %v2370
    %v2560 = vunpack.c.l.b16 %v2371
    %v2561 = vunpack.c.h.b16 %v2371
    %v2562 = vunpack.c.l.b16 %v2372
    %v2563 = vunpack.c.h.b16 %v2372
    %v2564 = vunpack.c.l.b16 %v2373
    %v2565 = vunpack.c.h.b16 %v2373
    %v2566 = vunpack.c.l.b16 %v2374
    %v2567 = vunpack.c.h.b16 %v2374
    %v2568 = vunpack.c.l.b16 %v2375
    %v2569 = vunpack.c.h.b16 %v2375
    %v2570 = vunpack.c.l.b16 %v2376
    %v2571 = vunpack.c.h.b16 %v2376
    %v2572 = vunpack.c.l.b16 %v2377
    %v2573 = vunpack.c.h.b16 %v2377
    %v2574 = vunpack.c.l.b16 %v2378
    %v2575 = vunpack.c.h.b16 %v2378
    %v2576 = vunpack.c.l.b16 %v2379
    %v2577 = vunpack.c.h.b16 %v2379
    %v2578 = vpack.c.b16 %v2452, %v2450
    %v2579 = vpack.c.b16 %v2453, %v2451
    %v2580 = vpack.c.b16 %v2456, %v2454
    %v2581 = vpack.c.b16 %v2457, %v2455
    %v2582 = vpack.c.b16 %v2460, %v2458
    %v2583 = vpack.c.b16 %v2461, %v2459
    %v2584 = vpack.c.b16 %v2464, %v2462
    %v2585 = vpack.c.b16 %v2465, %v2463
    %v2586 = vpack.c.b16 %v2468, %v2466
    %v2587 = vpack.c.b16 %v2469, %v2467
    %v2588 = vpack.c.b16 %v2472, %v2470
    %v2589 = vpack.c.b16 %v2473, %v2471
    %v2590 = vpack.c.b16 %v2476, %v2474
    %v2591 = vpack.c.b16 %v2477, %v2475
    %v2592 = vpack.c.b16 %v2480, %v2478
    %v2593 = vpack.c.b16 %v2481, %v2479
    %v2594 = vpack.c.b16 %v2484, %v2482
    %v2595 = vpack.c.b16 %v2485, %v2483
    %v2596 = vpack.c.b16 %v2488, %v2486
    %v2597 = vpack.c.b16 %v2489, %v2487
    %v2598 = vpack.c.b16 %v2492, %v2490
    %v2599 = vpack.c.b16 %v2493, %v2491
    %v2600 = vpack.c.b16 %v2496, %v2494
    %v2601 = vpack.c.b16 %v2497, %v2495
    %v2602 = vpack.c.b16 %v2500, %v2498
    %v2603 = vpack.c.b16 %v2501, %v2499
    %v2604 = vpack.c.b16 %v2504, %v2502
    %v2605 = vpack.c.b16 %v2505, %v2503
    %v2606 = vpack.c.b16 %v2508, %v2506
    %v2607 = vpack.c.b16 %v2509, %v2507
    %v2608 = vpack.c.b16 %v2512, %v2510
    %v2609 = vpack.c.b16 %v2513, %v2511
    %v2610 = vpack.c.b16 %v2516, %v2514
    %v2611 = vpack.c.b16 %v2517, %v2515
    %v2612 = vpack.c.b16 %v2520, %v2518
    %v2613 = vpack.c.b16 %v2521, %v2519
    %v2614 = vpack.c.b16 %v2524, %v2522
    %v2615 = vpack.c.b16 %v2525, %v2523
    %v2616 = vpack.c.b16 %v2528, %v2526
    %v2617 = vpack.c.b16 %v2529, %v2527
    %v2618 = vpack.c.b16 %v2532, %v2530
    %v2619 = vpack.c.b16 %v2533, %v2531
    %v2620 = vpack.c.b16 %v2536, %v2534
    %v2621 = vpack.c.b16 %v2537, %v2535
    %v2622 = vpack.c.b16 %v2540, %v2538
    %v2623 = vpack.c.b16 %v2541, %v2539
    %v2624 = vpack.c.b16 %v2544, %v2542
    %v2625 = vpack.c.b16 %v2545, %v2543
    %v2626 = vpack.c.b16 %v2548, %v2546
    %v2627 = vpack.c.b16 %v2549, %v2547
    %v2628 = vpack.c.b16 %v2552, %v2550
    %v2629 = vpack.c.b16 %v2553, %v2551
    %v2630 = vpack.c.b16 %v2556, %v2554
    %v2631 = vpack.c.b16 %v2557, %v2555
    %v2632 = vpack.c.b16 %v2560, %v2558
    %v2633 = vpack.c.b16 %v2561, %v2559
    %v2634 = vpack.c.b16 %v2564, %v2562
    %v2635 = vpack.c.b16 %v2565, %v2563
    %v2636 = vpack.c.b16 %v2568, %v2566
    %v2637 = vpack.c.b16 %v2569, %v2567
    %v2638 = vpack.c.b16 %v2572, %v2570
    %v2639 = vpack.c.b16 %v2573, %v2571
    %v2640 = vpack.c.b16 %v2576, %v2574
    %v2641 = vpack.c.b16 %v2577, %v2575
    %2706 = vmatpush.bf16.msra.mxu0 %v2592
    %2707 = vmatpush.bf16.msra.mxu0 %v2590
    %2708 = vmatpush.bf16.msra.mxu0 %v2588
    %2709 = vmatpush.bf16.msra.mxu0 %v2586
    %2710 = vmatpush.bf16.msra.mxu0 %v2584
    %2711 = vmatpush.bf16.msra.mxu0 %v2582
    %2712 = vmatpush.bf16.msra.mxu0 %v2580
    %2713 = vmatpush.bf16.msra.mxu0 %v2578
    %2714 = vmatmul.bf16.gmra.mxu0 %v2164
    %v2715 = vpop.f32.mrf.mxu0
    %v2716 = vadd.f32 %v2382, %v2715
    %v2717 = vpop.f32.mrf.mxu0
    %v2718 = vadd.f32 %v2382, %v2717
    %2719 = vmatmul.bf16.gmra.mxu0 %v2168
    %v2720 = vpop.f32.mrf.mxu0
    %v2721 = vadd.f32 %v2382, %v2720
    %v2722 = vpop.f32.mrf.mxu0
    %v2723 = vadd.f32 %v2382, %v2722
    %2724 = vmatmul.bf16.gmra.mxu0 %v2172
    %v2725 = vpop.f32.mrf.mxu0
    %v2726 = vadd.f32 %v2382, %v2725
    %v2727 = vpop.f32.mrf.mxu0
    %v2728 = vadd.f32 %v2382, %v2727
    %2729 = vmatmul.bf16.gmra.mxu0 %v2176
    %v2730 = vpop.f32.mrf.mxu0
    %v2731 = vadd.f32 %v2382, %v2730
    %v2732 = vpop.f32.mrf.mxu0
    %v2733 = vadd.f32 %v2382, %v2732
    %2734 = vmatmul.bf16.gmra.mxu0 %v2180
    %v2735 = vpop.f32.mrf.mxu0
    %v2736 = vadd.f32 %v2382, %v2735
    %v2737 = vpop.f32.mrf.mxu0
    %v2738 = vadd.f32 %v2382, %v2737
    %2739 = vmatmul.bf16.gmra.mxu0 %v2184
    %v2740 = vpop.f32.mrf.mxu0
    %v2741 = vadd.f32 %v2382, %v2740
    %v2742 = vpop.f32.mrf.mxu0
    %v2743 = vadd.f32 %v2382, %v2742
    %2744 = vmatmul.bf16.gmra.mxu0 %v2188
    %v2745 = vpop.f32.mrf.mxu0
    %v2746 = vadd.f32 %v2382, %v2745
    %v2747 = vpop.f32.mrf.mxu0
    %v2748 = vadd.f32 %v2382, %v2747
    %2749 = vmatmul.bf16.gmra.mxu0 %v2192
    %v2750 = vpop.f32.mrf.mxu0
    %v2751 = vadd.f32 %v2382, %v2750
    %v2752 = vpop.f32.mrf.mxu0
    %v2753 = vadd.f32 %v2382, %v2752
    %2754 = vmatmul.bf16.gmra.mxu0 %v2196
    %v2755 = vpop.f32.mrf.mxu0
    %v2756 = vadd.f32 %v2382, %v2755
    %v2757 = vpop.f32.mrf.mxu0
    %v2758 = vadd.f32 %v2382, %v2757
    %2759 = vmatmul.bf16.gmra.mxu0 %v2200
    %v2760 = vpop.f32.mrf.mxu0
    %v2761 = vadd.f32 %v2382, %v2760
    %v2762 = vpop.f32.mrf.mxu0
    %v2763 = vadd.f32 %v2382, %v2762
    %2764 = vmatmul.bf16.gmra.mxu0 %v2204
    %v2765 = vpop.f32.mrf.mxu0
    %v2766 = vadd.f32 %v2382, %v2765
    %v2767 = vpop.f32.mrf.mxu0
    %v2768 = vadd.f32 %v2382, %v2767
    %2769 = vmatmul.bf16.gmra.mxu0 %v2208
    %v2770 = vpop.f32.mrf.mxu0
    %v2771 = vadd.f32 %v2382, %v2770
    %v2772 = vpop.f32.mrf.mxu0
    %v2773 = vadd.f32 %v2382, %v2772
    %2774 = vmatmul.bf16.gmra.mxu0 %v2212
    %v2775 = vpop.f32.mrf.mxu0
    %v2776 = vadd.f32 %v2382, %v2775
    %v2777 = vpop.f32.mrf.mxu0
    %v2778 = vadd.f32 %v2382, %v2777
    %2779 = vmatmul.bf16.gmra.mxu0 %v2216
    %v2780 = vpop.f32.mrf.mxu0
    %v2781 = vadd.f32 %v2382, %v2780
    %v2782 = vpop.f32.mrf.mxu0
    %v2783 = vadd.f32 %v2382, %v2782
    %2784 = vmatmul.bf16.gmra.mxu0 %v2220
    %v2785 = vpop.f32.mrf.mxu0
    %v2786 = vadd.f32 %v2382, %v2785
    %v2787 = vpop.f32.mrf.mxu0
    %v2788 = vadd.f32 %v2382, %v2787
    %2789 = vmatmul.bf16.gmra.mxu0 %v2224
    %v2790 = vpop.f32.mrf.mxu0
    %v2791 = vadd.f32 %v2382, %v2790
    %v2792 = vpop.f32.mrf.mxu0
    %v2793 = vadd.f32 %v2382, %v2792
    %2794 = vmatmul.bf16.gmra.mxu0 %v2228
    %v2795 = vpop.f32.mrf.mxu0
    %v2796 = vadd.f32 %v2382, %v2795
    %v2797 = vpop.f32.mrf.mxu0
    %v2798 = vadd.f32 %v2382, %v2797
    %2799 = vmatmul.bf16.gmra.mxu0 %v2232
    %v2800 = vpop.f32.mrf.mxu0
    %v2801 = vadd.f32 %v2382, %v2800
    %v2802 = vpop.f32.mrf.mxu0
    %v2803 = vadd.f32 %v2382, %v2802
    %2804 = vmatmul.bf16.gmra.mxu0 %v2236
    %v2805 = vpop.f32.mrf.mxu0
    %v2806 = vadd.f32 %v2382, %v2805
    %v2807 = vpop.f32.mrf.mxu0
    %v2808 = vadd.f32 %v2382, %v2807
    %2809 = vmatmul.bf16.gmra.mxu0 %v2240
    %v2810 = vpop.f32.mrf.mxu0
    %v2811 = vadd.f32 %v2382, %v2810
    %v2812 = vpop.f32.mrf.mxu0
    %v2813 = vadd.f32 %v2382, %v2812
    %2814 = vmatmul.bf16.gmra.mxu0 %v2244
    %v2815 = vpop.f32.mrf.mxu0
    %v2816 = vadd.f32 %v2382, %v2815
    %v2817 = vpop.f32.mrf.mxu0
    %v2818 = vadd.f32 %v2382, %v2817
    %2819 = vmatmul.bf16.gmra.mxu0 %v2248
    %v2820 = vpop.f32.mrf.mxu0
    %v2821 = vadd.f32 %v2382, %v2820
    %v2822 = vpop.f32.mrf.mxu0
    %v2823 = vadd.f32 %v2382, %v2822
    %2824 = vmatmul.bf16.gmra.mxu0 %v2252
    %v2825 = vpop.f32.mrf.mxu0
    %v2826 = vadd.f32 %v2382, %v2825
    %v2827 = vpop.f32.mrf.mxu0
    %v2828 = vadd.f32 %v2382, %v2827
    %2829 = vmatmul.bf16.gmra.mxu0 %v2256
    %v2830 = vpop.f32.mrf.mxu0
    %v2831 = vadd.f32 %v2382, %v2830
    %v2832 = vpop.f32.mrf.mxu0
    %v2833 = vadd.f32 %v2382, %v2832
    %2834 = vmatmul.bf16.gmra.mxu0 %v2260
    %v2835 = vpop.f32.mrf.mxu0
    %v2836 = vadd.f32 %v2382, %v2835
    %v2837 = vpop.f32.mrf.mxu0
    %v2838 = vadd.f32 %v2382, %v2837
    %2839 = vmatmul.bf16.gmra.mxu0 %v2264
    %v2840 = vpop.f32.mrf.mxu0
    %v2841 = vadd.f32 %v2382, %v2840
    %v2842 = vpop.f32.mrf.mxu0
    %v2843 = vadd.f32 %v2382, %v2842
    %2844 = vmatmul.bf16.gmra.mxu0 %v2268
    %v2845 = vpop.f32.mrf.mxu0
    %v2846 = vadd.f32 %v2382, %v2845
    %v2847 = vpop.f32.mrf.mxu0
    %v2848 = vadd.f32 %v2382, %v2847
    %2849 = vmatmul.bf16.gmra.mxu0 %v2272
    %v2850 = vpop.f32.mrf.mxu0
    %v2851 = vadd.f32 %v2382, %v2850
    %v2852 = vpop.f32.mrf.mxu0
    %v2853 = vadd.f32 %v2382, %v2852
    %2854 = vmatmul.bf16.gmra.mxu0 %v2276
    %v2855 = vpop.f32.mrf.mxu0
    %v2856 = vadd.f32 %v2382, %v2855
    %v2857 = vpop.f32.mrf.mxu0
    %v2858 = vadd.f32 %v2382, %v2857
    %2859 = vmatmul.bf16.gmra.mxu0 %v2280
    %v2860 = vpop.f32.mrf.mxu0
    %v2861 = vadd.f32 %v2382, %v2860
    %v2862 = vpop.f32.mrf.mxu0
    %v2863 = vadd.f32 %v2382, %v2862
    %2864 = vmatmul.bf16.gmra.mxu0 %v2284
    %v2865 = vpop.f32.mrf.mxu0
    %v2866 = vadd.f32 %v2382, %v2865
    %v2867 = vpop.f32.mrf.mxu0
    %v2868 = vadd.f32 %v2382, %v2867
    %2869 = vmatmul.bf16.gmra.mxu0 %v2288
    %v2870 = vpop.f32.mrf.mxu0
    %v2871 = vadd.f32 %v2382, %v2870
    %v2872 = vpop.f32.mrf.mxu0
    %v2873 = vadd.f32 %v2382, %v2872
    %2874 = vmatmul.bf16.gmra.mxu0 %v2292
    %v2875 = vpop.f32.mrf.mxu0
    %v2876 = vadd.f32 %v2382, %v2875
    %v2877 = vpop.f32.mrf.mxu0
    %v2878 = vadd.f32 %v2382, %v2877
    %2879 = vmatmul.bf16.gmra.mxu0 %v2296
    %v2880 = vpop.f32.mrf.mxu0
    %v2881 = vadd.f32 %v2382, %v2880
    %v2882 = vpop.f32.mrf.mxu0
    %v2883 = vadd.f32 %v2382, %v2882
    %2884 = vmatmul.bf16.gmra.mxu0 %v2300
    %v2885 = vpop.f32.mrf.mxu0
    %v2886 = vadd.f32 %v2382, %v2885
    %v2887 = vpop.f32.mrf.mxu0
    %v2888 = vadd.f32 %v2382, %v2887
    %2889 = vmatmul.bf16.gmra.mxu0 %v2304
    %v2890 = vpop.f32.mrf.mxu0
    %v2891 = vadd.f32 %v2382, %v2890
    %v2892 = vpop.f32.mrf.mxu0
    %v2893 = vadd.f32 %v2382, %v2892
    %2894 = vmatmul.bf16.gmra.mxu0 %v2308
    %v2895 = vpop.f32.mrf.mxu0
    %v2896 = vadd.f32 %v2382, %v2895
    %v2897 = vpop.f32.mrf.mxu0
    %v2898 = vadd.f32 %v2382, %v2897
    %2899 = vmatmul.bf16.gmra.mxu0 %v2312
    %v2900 = vpop.f32.mrf.mxu0
    %v2901 = vadd.f32 %v2382, %v2900
    %v2902 = vpop.f32.mrf.mxu0
    %2903 = vdwg.mxu0
    %2904 = vmatpush.bf16.msra.mxu0 %v2608
    %2905 = vmatpush.bf16.msra.mxu0 %v2606
    %2906 = vmatpush.bf16.msra.mxu0 %v2604
    %2907 = vmatpush.bf16.msra.mxu0 %v2602
    %2908 = vmatpush.bf16.msra.mxu0 %v2600
    %2909 = vmatpush.bf16.msra.mxu0 %v2598
    %2910 = vmatpush.bf16.msra.mxu0 %v2596
    %2911 = vmatpush.bf16.msra.mxu0 %v2594
    %2912 = vmatmul.bf16.gmra.mxu0 %v2165
    %v2913 = vpop.f32.mrf.mxu0
    %v2914 = vadd.f32 %v2716, %v2913
    %v2915 = vpop.f32.mrf.mxu0
    %v2916 = vadd.f32 %v2718, %v2915
    %2917 = vmatmul.bf16.gmra.mxu0 %v2169
    %v2918 = vpop.f32.mrf.mxu0
    %v2919 = vadd.f32 %v2721, %v2918
    %v2920 = vpop.f32.mrf.mxu0
    %v2921 = vadd.f32 %v2723, %v2920
    %2922 = vmatmul.bf16.gmra.mxu0 %v2173
    %v2923 = vpop.f32.mrf.mxu0
    %v2924 = vadd.f32 %v2726, %v2923
    %v2925 = vpop.f32.mrf.mxu0
    %v2926 = vadd.f32 %v2728, %v2925
    %2927 = vmatmul.bf16.gmra.mxu0 %v2177
    %v2928 = vpop.f32.mrf.mxu0
    %v2929 = vadd.f32 %v2731, %v2928
    %v2930 = vpop.f32.mrf.mxu0
    %v2931 = vadd.f32 %v2733, %v2930
    %2932 = vmatmul.bf16.gmra.mxu0 %v2181
    %v2933 = vpop.f32.mrf.mxu0
    %v2934 = vadd.f32 %v2736, %v2933
    %v2935 = vpop.f32.mrf.mxu0
    %v2936 = vadd.f32 %v2738, %v2935
    %2937 = vmatmul.bf16.gmra.mxu0 %v2185
    %v2938 = vpop.f32.mrf.mxu0
    %v2939 = vadd.f32 %v2741, %v2938
    %v2940 = vpop.f32.mrf.mxu0
    %v2941 = vadd.f32 %v2743, %v2940
    %2942 = vmatmul.bf16.gmra.mxu0 %v2189
    %v2943 = vpop.f32.mrf.mxu0
    %v2944 = vadd.f32 %v2746, %v2943
    %v2945 = vpop.f32.mrf.mxu0
    %v2946 = vadd.f32 %v2748, %v2945
    %2947 = vmatmul.bf16.gmra.mxu0 %v2193
    %v2948 = vpop.f32.mrf.mxu0
    %v2949 = vadd.f32 %v2751, %v2948
    %v2950 = vpop.f32.mrf.mxu0
    %v2951 = vadd.f32 %v2753, %v2950
    %2952 = vmatmul.bf16.gmra.mxu0 %v2197
    %v2953 = vpop.f32.mrf.mxu0
    %v2954 = vadd.f32 %v2756, %v2953
    %v2955 = vpop.f32.mrf.mxu0
    %v2956 = vadd.f32 %v2758, %v2955
    %2957 = vmatmul.bf16.gmra.mxu0 %v2201
    %v2958 = vpop.f32.mrf.mxu0
    %v2959 = vadd.f32 %v2761, %v2958
    %v2960 = vpop.f32.mrf.mxu0
    %v2961 = vadd.f32 %v2763, %v2960
    %2962 = vmatmul.bf16.gmra.mxu0 %v2205
    %v2963 = vpop.f32.mrf.mxu0
    %v2964 = vadd.f32 %v2766, %v2963
    %v2965 = vpop.f32.mrf.mxu0
    %v2966 = vadd.f32 %v2768, %v2965
    %2967 = vmatmul.bf16.gmra.mxu0 %v2209
    %v2968 = vpop.f32.mrf.mxu0
    %v2969 = vadd.f32 %v2771, %v2968
    %v2970 = vpop.f32.mrf.mxu0
    %v2971 = vadd.f32 %v2773, %v2970
    %2972 = vmatmul.bf16.gmra.mxu0 %v2213
    %v2973 = vpop.f32.mrf.mxu0
    %v2974 = vadd.f32 %v2776, %v2973
    %v2975 = vpop.f32.mrf.mxu0
    %v2976 = vadd.f32 %v2778, %v2975
    %2977 = vmatmul.bf16.gmra.mxu0 %v2217
    %v2978 = vpop.f32.mrf.mxu0
    %v2979 = vadd.f32 %v2781, %v2978
    %v2980 = vpop.f32.mrf.mxu0
    %v2981 = vadd.f32 %v2783, %v2980
    %2982 = vmatmul.bf16.gmra.mxu0 %v2221
    %v2983 = vpop.f32.mrf.mxu0
    %v2984 = vadd.f32 %v2786, %v2983
    %v2985 = vpop.f32.mrf.mxu0
    %v2986 = vadd.f32 %v2788, %v2985
    %2987 = vmatmul.bf16.gmra.mxu0 %v2225
    %v2988 = vpop.f32.mrf.mxu0
    %v2989 = vadd.f32 %v2791, %v2988
    %v2990 = vpop.f32.mrf.mxu0
    %v2991 = vadd.f32 %v2793, %v2990
    %2992 = vmatmul.bf16.gmra.mxu0 %v2229
    %v2993 = vpop.f32.mrf.mxu0
    %v2994 = vadd.f32 %v2796, %v2993
    %v2995 = vpop.f32.mrf.mxu0
    %v2996 = vadd.f32 %v2798, %v2995
    %2997 = vmatmul.bf16.gmra.mxu0 %v2233
    %v2998 = vpop.f32.mrf.mxu0
    %v2999 = vadd.f32 %v2801, %v2998
    %v3000 = vpop.f32.mrf.mxu0
    %v3001 = vadd.f32 %v2803, %v3000
    %3002 = vmatmul.bf16.gmra.mxu0 %v2237
    %v3003 = vpop.f32.mrf.mxu0
    %v3004 = vadd.f32 %v2806, %v3003
    %v3005 = vpop.f32.mrf.mxu0
    %v3006 = vadd.f32 %v2808, %v3005
    %3007 = vmatmul.bf16.gmra.mxu0 %v2241
    %v3008 = vpop.f32.mrf.mxu0
    %v3009 = vadd.f32 %v2811, %v3008
    %v3010 = vpop.f32.mrf.mxu0
    %v3011 = vadd.f32 %v2813, %v3010
    %3012 = vmatmul.bf16.gmra.mxu0 %v2245
    %v3013 = vpop.f32.mrf.mxu0
    %v3014 = vadd.f32 %v2816, %v3013
    %v3015 = vpop.f32.mrf.mxu0
    %v3016 = vadd.f32 %v2818, %v3015
    %3017 = vmatmul.bf16.gmra.mxu0 %v2249
    %v3018 = vpop.f32.mrf.mxu0
    %v3019 = vadd.f32 %v2821, %v3018
    %v3020 = vpop.f32.mrf.mxu0
    %v3021 = vadd.f32 %v2823, %v3020
    %3022 = vmatmul.bf16.gmra.mxu0 %v2253
    %v3023 = vpop.f32.mrf.mxu0
    %v3024 = vadd.f32 %v2826, %v3023
    %v3025 = vpop.f32.mrf.mxu0
    %v3026 = vadd.f32 %v2828, %v3025
    %3027 = vmatmul.bf16.gmra.mxu0 %v2257
    %v3028 = vpop.f32.mrf.mxu0
    %v3029 = vadd.f32 %v2831, %v3028
    %v3030 = vpop.f32.mrf.mxu0
    %v3031 = vadd.f32 %v2833, %v3030
    %3032 = vmatmul.bf16.gmra.mxu0 %v2261
    %v3033 = vpop.f32.mrf.mxu0
    %v3034 = vadd.f32 %v2836, %v3033
    %v3035 = vpop.f32.mrf.mxu0
    %v3036 = vadd.f32 %v2838, %v3035
    %3037 = vmatmul.bf16.gmra.mxu0 %v2265
    %v3038 = vpop.f32.mrf.mxu0
    %v3039 = vadd.f32 %v2841, %v3038
    %v3040 = vpop.f32.mrf.mxu0
    %v3041 = vadd.f32 %v2843, %v3040
    %3042 = vmatmul.bf16.gmra.mxu0 %v2269
    %v3043 = vpop.f32.mrf.mxu0
    %v3044 = vadd.f32 %v2846, %v3043
    %v3045 = vpop.f32.mrf.mxu0
    %v3046 = vadd.f32 %v2848, %v3045
    %3047 = vmatmul.bf16.gmra.mxu0 %v2273
    %v3048 = vpop.f32.mrf.mxu0
    %v3049 = vadd.f32 %v2851, %v3048
    %v3050 = vpop.f32.mrf.mxu0
    %v3051 = vadd.f32 %v2853, %v3050
    %3052 = vmatmul.bf16.gmra.mxu0 %v2277
    %v3053 = vpop.f32.mrf.mxu0
    %v3054 = vadd.f32 %v2856, %v3053
    %v3055 = vpop.f32.mrf.mxu0
    %v3056 = vadd.f32 %v2858, %v3055
    %3057 = vmatmul.bf16.gmra.mxu0 %v2281
    %v3058 = vpop.f32.mrf.mxu0
    %v3059 = vadd.f32 %v2861, %v3058
    %v3060 = vpop.f32.mrf.mxu0
    %v3061 = vadd.f32 %v2863, %v3060
    %3062 = vmatmul.bf16.gmra.mxu0 %v2285
    %v3063 = vpop.f32.mrf.mxu0
    %v3064 = vadd.f32 %v2866, %v3063
    %v3065 = vpop.f32.mrf.mxu0
    %v3066 = vadd.f32 %v2868, %v3065
    %3067 = vmatmul.bf16.gmra.mxu0 %v2289
    %v3068 = vpop.f32.mrf.mxu0
    %v3069 = vadd.f32 %v2871, %v3068
    %v3070 = vpop.f32.mrf.mxu0
    %v3071 = vadd.f32 %v2873, %v3070
    %3072 = vmatmul.bf16.gmra.mxu0 %v2293
    %v3073 = vpop.f32.mrf.mxu0
    %v3074 = vadd.f32 %v2876, %v3073
    %v3075 = vpop.f32.mrf.mxu0
    %v3076 = vadd.f32 %v2878, %v3075
    %3077 = vmatmul.bf16.gmra.mxu0 %v2297
    %v3078 = vpop.f32.mrf.mxu0
    %v3079 = vadd.f32 %v2881, %v3078
    %v3080 = vpop.f32.mrf.mxu0
    %v3081 = vadd.f32 %v2883, %v3080
    %3082 = vmatmul.bf16.gmra.mxu0 %v2301
    %v3083 = vpop.f32.mrf.mxu0
    %v3084 = vadd.f32 %v2886, %v3083
    %v3085 = vpop.f32.mrf.mxu0
    %v3086 = vadd.f32 %v2888, %v3085
    %3087 = vmatmul.bf16.gmra.mxu0 %v2305
    %v3088 = vpop.f32.mrf.mxu0
    %v3089 = vadd.f32 %v2891, %v3088
    %v3090 = vpop.f32.mrf.mxu0
    %v3091 = vadd.f32 %v2893, %v3090
    %3092 = vmatmul.bf16.gmra.mxu0 %v2309
    %v3093 = vpop.f32.mrf.mxu0
    %v3094 = vadd.f32 %v2896, %v3093
    %v3095 = vpop.f32.mrf.mxu0
    %v3096 = vadd.f32 %v2898, %v3095
    %3097 = vmatmul.bf16.gmra.mxu0 %v2313
    %v3098 = vpop.f32.mrf.mxu0
    %v3099 = vadd.f32 %v2901, %v3098
    %v3100 = vpop.f32.mrf.mxu0
    %3101 = vdwg.mxu0
    %3102 = vmatpush.bf16.msra.mxu0 %v2624
    %3103 = vmatpush.bf16.msra.mxu0 %v2622
    %3104 = vmatpush.bf16.msra.mxu0 %v2620
    %3105 = vmatpush.bf16.msra.mxu0 %v2618
    %3106 = vmatpush.bf16.msra.mxu0 %v2616
    %3107 = vmatpush.bf16.msra.mxu0 %v2614
    %3108 = vmatpush.bf16.msra.mxu0 %v2612
    %3109 = vmatpush.bf16.msra.mxu0 %v2610
    %3110 = vmatmul.bf16.gmra.mxu0 %v2166
    %v3111 = vpop.f32.mrf.mxu0
    %v3112 = vadd.f32 %v2914, %v3111
    %v3113 = vpop.f32.mrf.mxu0
    %v3114 = vadd.f32 %v2916, %v3113
    %3115 = vmatmul.bf16.gmra.mxu0 %v2170
    %v3116 = vpop.f32.mrf.mxu0
    %v3117 = vadd.f32 %v2919, %v3116
    %v3118 = vpop.f32.mrf.mxu0
    %v3119 = vadd.f32 %v2921, %v3118
    %3120 = vmatmul.bf16.gmra.mxu0 %v2174
    %v3121 = vpop.f32.mrf.mxu0
    %v3122 = vadd.f32 %v2924, %v3121
    %v3123 = vpop.f32.mrf.mxu0
    %v3124 = vadd.f32 %v2926, %v3123
    %3125 = vmatmul.bf16.gmra.mxu0 %v2178
    %v3126 = vpop.f32.mrf.mxu0
    %v3127 = vadd.f32 %v2929, %v3126
    %v3128 = vpop.f32.mrf.mxu0
    %v3129 = vadd.f32 %v2931, %v3128
    %3130 = vmatmul.bf16.gmra.mxu0 %v2182
    %v3131 = vpop.f32.mrf.mxu0
    %v3132 = vadd.f32 %v2934, %v3131
    %v3133 = vpop.f32.mrf.mxu0
    %v3134 = vadd.f32 %v2936, %v3133
    %3135 = vmatmul.bf16.gmra.mxu0 %v2186
    %v3136 = vpop.f32.mrf.mxu0
    %v3137 = vadd.f32 %v2939, %v3136
    %v3138 = vpop.f32.mrf.mxu0
    %v3139 = vadd.f32 %v2941, %v3138
    %3140 = vmatmul.bf16.gmra.mxu0 %v2190
    %v3141 = vpop.f32.mrf.mxu0
    %v3142 = vadd.f32 %v2944, %v3141
    %v3143 = vpop.f32.mrf.mxu0
    %v3144 = vadd.f32 %v2946, %v3143
    %3145 = vmatmul.bf16.gmra.mxu0 %v2194
    %v3146 = vpop.f32.mrf.mxu0
    %v3147 = vadd.f32 %v2949, %v3146
    %v3148 = vpop.f32.mrf.mxu0
    %v3149 = vadd.f32 %v2951, %v3148
    %3150 = vmatmul.bf16.gmra.mxu0 %v2198
    %v3151 = vpop.f32.mrf.mxu0
    %v3152 = vadd.f32 %v2954, %v3151
    %v3153 = vpop.f32.mrf.mxu0
    %v3154 = vadd.f32 %v2956, %v3153
    %3155 = vmatmul.bf16.gmra.mxu0 %v2202
    %v3156 = vpop.f32.mrf.mxu0
    %v3157 = vadd.f32 %v2959, %v3156
    %v3158 = vpop.f32.mrf.mxu0
    %v3159 = vadd.f32 %v2961, %v3158
    %3160 = vmatmul.bf16.gmra.mxu0 %v2206
    %v3161 = vpop.f32.mrf.mxu0
    %v3162 = vadd.f32 %v2964, %v3161
    %v3163 = vpop.f32.mrf.mxu0
    %v3164 = vadd.f32 %v2966, %v3163
    %3165 = vmatmul.bf16.gmra.mxu0 %v2210
    %v3166 = vpop.f32.mrf.mxu0
    %v3167 = vadd.f32 %v2969, %v3166
    %v3168 = vpop.f32.mrf.mxu0
    %v3169 = vadd.f32 %v2971, %v3168
    %3170 = vmatmul.bf16.gmra.mxu0 %v2214
    %v3171 = vpop.f32.mrf.mxu0
    %v3172 = vadd.f32 %v2974, %v3171
    %v3173 = vpop.f32.mrf.mxu0
    %v3174 = vadd.f32 %v2976, %v3173
    %3175 = vmatmul.bf16.gmra.mxu0 %v2218
    %v3176 = vpop.f32.mrf.mxu0
    %v3177 = vadd.f32 %v2979, %v3176
    %v3178 = vpop.f32.mrf.mxu0
    %v3179 = vadd.f32 %v2981, %v3178
    %3180 = vmatmul.bf16.gmra.mxu0 %v2222
    %v3181 = vpop.f32.mrf.mxu0
    %v3182 = vadd.f32 %v2984, %v3181
    %v3183 = vpop.f32.mrf.mxu0
    %v3184 = vadd.f32 %v2986, %v3183
    %3185 = vmatmul.bf16.gmra.mxu0 %v2226
    %v3186 = vpop.f32.mrf.mxu0
    %v3187 = vadd.f32 %v2989, %v3186
    %v3188 = vpop.f32.mrf.mxu0
    %v3189 = vadd.f32 %v2991, %v3188
    %3190 = vmatmul.bf16.gmra.mxu0 %v2230
    %v3191 = vpop.f32.mrf.mxu0
    %v3192 = vadd.f32 %v2994, %v3191
    %v3193 = vpop.f32.mrf.mxu0
    %v3194 = vadd.f32 %v2996, %v3193
    %3195 = vmatmul.bf16.gmra.mxu0 %v2234
    %v3196 = vpop.f32.mrf.mxu0
    %v3197 = vadd.f32 %v2999, %v3196
    %v3198 = vpop.f32.mrf.mxu0
    %v3199 = vadd.f32 %v3001, %v3198
    %3200 = vmatmul.bf16.gmra.mxu0 %v2238
    %v3201 = vpop.f32.mrf.mxu0
    %v3202 = vadd.f32 %v3004, %v3201
    %v3203 = vpop.f32.mrf.mxu0
    %v3204 = vadd.f32 %v3006, %v3203
    %3205 = vmatmul.bf16.gmra.mxu0 %v2242
    %v3206 = vpop.f32.mrf.mxu0
    %v3207 = vadd.f32 %v3009, %v3206
    %v3208 = vpop.f32.mrf.mxu0
    %v3209 = vadd.f32 %v3011, %v3208
    %3210 = vmatmul.bf16.gmra.mxu0 %v2246
    %v3211 = vpop.f32.mrf.mxu0
    %v3212 = vadd.f32 %v3014, %v3211
    %v3213 = vpop.f32.mrf.mxu0
    %v3214 = vadd.f32 %v3016, %v3213
    %3215 = vmatmul.bf16.gmra.mxu0 %v2250
    %v3216 = vpop.f32.mrf.mxu0
    %v3217 = vadd.f32 %v3019, %v3216
    %v3218 = vpop.f32.mrf.mxu0
    %v3219 = vadd.f32 %v3021, %v3218
    %3220 = vmatmul.bf16.gmra.mxu0 %v2254
    %v3221 = vpop.f32.mrf.mxu0
    %v3222 = vadd.f32 %v3024, %v3221
    %v3223 = vpop.f32.mrf.mxu0
    %v3224 = vadd.f32 %v3026, %v3223
    %3225 = vmatmul.bf16.gmra.mxu0 %v2258
    %v3226 = vpop.f32.mrf.mxu0
    %v3227 = vadd.f32 %v3029, %v3226
    %v3228 = vpop.f32.mrf.mxu0
    %v3229 = vadd.f32 %v3031, %v3228
    %3230 = vmatmul.bf16.gmra.mxu0 %v2262
    %v3231 = vpop.f32.mrf.mxu0
    %v3232 = vadd.f32 %v3034, %v3231
    %v3233 = vpop.f32.mrf.mxu0
    %v3234 = vadd.f32 %v3036, %v3233
    %3235 = vmatmul.bf16.gmra.mxu0 %v2266
    %v3236 = vpop.f32.mrf.mxu0
    %v3237 = vadd.f32 %v3039, %v3236
    %v3238 = vpop.f32.mrf.mxu0
    %v3239 = vadd.f32 %v3041, %v3238
    %3240 = vmatmul.bf16.gmra.mxu0 %v2270
    %v3241 = vpop.f32.mrf.mxu0
    %v3242 = vadd.f32 %v3044, %v3241
    %v3243 = vpop.f32.mrf.mxu0
    %v3244 = vadd.f32 %v3046, %v3243
    %3245 = vmatmul.bf16.gmra.mxu0 %v2274
    %v3246 = vpop.f32.mrf.mxu0
    %v3247 = vadd.f32 %v3049, %v3246
    %v3248 = vpop.f32.mrf.mxu0
    %v3249 = vadd.f32 %v3051, %v3248
    %3250 = vmatmul.bf16.gmra.mxu0 %v2278
    %v3251 = vpop.f32.mrf.mxu0
    %v3252 = vadd.f32 %v3054, %v3251
    %v3253 = vpop.f32.mrf.mxu0
    %v3254 = vadd.f32 %v3056, %v3253
    %3255 = vmatmul.bf16.gmra.mxu0 %v2282
    %v3256 = vpop.f32.mrf.mxu0
    %v3257 = vadd.f32 %v3059, %v3256
    %v3258 = vpop.f32.mrf.mxu0
    %v3259 = vadd.f32 %v3061, %v3258
    %3260 = vmatmul.bf16.gmra.mxu0 %v2286
    %v3261 = vpop.f32.mrf.mxu0
    %v3262 = vadd.f32 %v3064, %v3261
    %v3263 = vpop.f32.mrf.mxu0
    %v3264 = vadd.f32 %v3066, %v3263
    %3265 = vmatmul.bf16.gmra.mxu0 %v2290
    %v3266 = vpop.f32.mrf.mxu0
    %v3267 = vadd.f32 %v3069, %v3266
    %v3268 = vpop.f32.mrf.mxu0
    %v3269 = vadd.f32 %v3071, %v3268
    %3270 = vmatmul.bf16.gmra.mxu0 %v2294
    %v3271 = vpop.f32.mrf.mxu0
    %v3272 = vadd.f32 %v3074, %v3271
    %v3273 = vpop.f32.mrf.mxu0
    %v3274 = vadd.f32 %v3076, %v3273
    %3275 = vmatmul.bf16.gmra.mxu0 %v2298
    %v3276 = vpop.f32.mrf.mxu0
    %v3277 = vadd.f32 %v3079, %v3276
    %v3278 = vpop.f32.mrf.mxu0
    %v3279 = vadd.f32 %v3081, %v3278
    %3280 = vmatmul.bf16.gmra.mxu0 %v2302
    %v3281 = vpop.f32.mrf.mxu0
    %v3282 = vadd.f32 %v3084, %v3281
    %v3283 = vpop.f32.mrf.mxu0
    %v3284 = vadd.f32 %v3086, %v3283
    %3285 = vmatmul.bf16.gmra.mxu0 %v2306
    %v3286 = vpop.f32.mrf.mxu0
    %v3287 = vadd.f32 %v3089, %v3286
    %v3288 = vpop.f32.mrf.mxu0
    %v3289 = vadd.f32 %v3091, %v3288
    %3290 = vmatmul.bf16.gmra.mxu0 %v2310
    %v3291 = vpop.f32.mrf.mxu0
    %v3292 = vadd.f32 %v3094, %v3291
    %v3293 = vpop.f32.mrf.mxu0
    %v3294 = vadd.f32 %v3096, %v3293
    %3295 = vmatmul.bf16.gmra.mxu0 %v2314
    %v3296 = vpop.f32.mrf.mxu0
    %v3297 = vadd.f32 %v3099, %v3296
    %v3298 = vpop.f32.mrf.mxu0
    %3299 = vdwg.mxu0
    %3300 = vmatpush.bf16.msra.mxu0 %v2640
    %3301 = vmatpush.bf16.msra.mxu0 %v2638
    %3302 = vmatpush.bf16.msra.mxu0 %v2636
    %3303 = vmatpush.bf16.msra.mxu0 %v2634
    %3304 = vmatpush.bf16.msra.mxu0 %v2632
    %3305 = vmatpush.bf16.msra.mxu0 %v2630
    %3306 = vmatpush.bf16.msra.mxu0 %v2628
    %3307 = vmatpush.bf16.msra.mxu0 %v2626
    %3308 = vmatmul.bf16.gmra.mxu0 %v2167
    %v3309 = vpop.f32.mrf.mxu0
    %v3310 = vadd.f32 %v3112, %v3309
    %v3311 = vpop.f32.mrf.mxu0
    %v3312 = vadd.f32 %v3114, %v3311
    %3313 = vmatmul.bf16.gmra.mxu0 %v2171
    %v3314 = vpop.f32.mrf.mxu0
    %v3315 = vadd.f32 %v3117, %v3314
    %v3316 = vpop.f32.mrf.mxu0
    %v3317 = vadd.f32 %v3119, %v3316
    %3318 = vmatmul.bf16.gmra.mxu0 %v2175
    %v3319 = vpop.f32.mrf.mxu0
    %v3320 = vadd.f32 %v3122, %v3319
    %v3321 = vpop.f32.mrf.mxu0
    %v3322 = vadd.f32 %v3124, %v3321
    %3323 = vmatmul.bf16.gmra.mxu0 %v2179
    %v3324 = vpop.f32.mrf.mxu0
    %v3325 = vadd.f32 %v3127, %v3324
    %v3326 = vpop.f32.mrf.mxu0
    %v3327 = vadd.f32 %v3129, %v3326
    %3328 = vmatmul.bf16.gmra.mxu0 %v2183
    %v3329 = vpop.f32.mrf.mxu0
    %v3330 = vadd.f32 %v3132, %v3329
    %v3331 = vpop.f32.mrf.mxu0
    %v3332 = vadd.f32 %v3134, %v3331
    %3333 = vmatmul.bf16.gmra.mxu0 %v2187
    %v3334 = vpop.f32.mrf.mxu0
    %v3335 = vadd.f32 %v3137, %v3334
    %v3336 = vpop.f32.mrf.mxu0
    %v3337 = vadd.f32 %v3139, %v3336
    %3338 = vmatmul.bf16.gmra.mxu0 %v2191
    %v3339 = vpop.f32.mrf.mxu0
    %v3340 = vadd.f32 %v3142, %v3339
    %v3341 = vpop.f32.mrf.mxu0
    %v3342 = vadd.f32 %v3144, %v3341
    %3343 = vmatmul.bf16.gmra.mxu0 %v2195
    %v3344 = vpop.f32.mrf.mxu0
    %v3345 = vadd.f32 %v3147, %v3344
    %v3346 = vpop.f32.mrf.mxu0
    %v3347 = vadd.f32 %v3149, %v3346
    %3348 = vmatmul.bf16.gmra.mxu0 %v2199
    %v3349 = vpop.f32.mrf.mxu0
    %v3350 = vadd.f32 %v3152, %v3349
    %v3351 = vpop.f32.mrf.mxu0
    %v3352 = vadd.f32 %v3154, %v3351
    %3353 = vmatmul.bf16.gmra.mxu0 %v2203
    %v3354 = vpop.f32.mrf.mxu0
    %v3355 = vadd.f32 %v3157, %v3354
    %v3356 = vpop.f32.mrf.mxu0
    %v3357 = vadd.f32 %v3159, %v3356
    %3358 = vmatmul.bf16.gmra.mxu0 %v2207
    %v3359 = vpop.f32.mrf.mxu0
    %v3360 = vadd.f32 %v3162, %v3359
    %v3361 = vpop.f32.mrf.mxu0
    %v3362 = vadd.f32 %v3164, %v3361
    %3363 = vmatmul.bf16.gmra.mxu0 %v2211
    %v3364 = vpop.f32.mrf.mxu0
    %v3365 = vadd.f32 %v3167, %v3364
    %v3366 = vpop.f32.mrf.mxu0
    %v3367 = vadd.f32 %v3169, %v3366
    %3368 = vmatmul.bf16.gmra.mxu0 %v2215
    %v3369 = vpop.f32.mrf.mxu0
    %v3370 = vadd.f32 %v3172, %v3369
    %v3371 = vpop.f32.mrf.mxu0
    %v3372 = vadd.f32 %v3174, %v3371
    %3373 = vmatmul.bf16.gmra.mxu0 %v2219
    %v3374 = vpop.f32.mrf.mxu0
    %v3375 = vadd.f32 %v3177, %v3374
    %v3376 = vpop.f32.mrf.mxu0
    %v3377 = vadd.f32 %v3179, %v3376
    %3378 = vmatmul.bf16.gmra.mxu0 %v2223
    %v3379 = vpop.f32.mrf.mxu0
    %v3380 = vadd.f32 %v3182, %v3379
    %v3381 = vpop.f32.mrf.mxu0
    %v3382 = vadd.f32 %v3184, %v3381
    %3383 = vmatmul.bf16.gmra.mxu0 %v2227
    %v3384 = vpop.f32.mrf.mxu0
    %v3385 = vadd.f32 %v3187, %v3384
    %v3386 = vpop.f32.mrf.mxu0
    %v3387 = vadd.f32 %v3189, %v3386
    %3388 = vmatmul.bf16.gmra.mxu0 %v2231
    %v3389 = vpop.f32.mrf.mxu0
    %v3390 = vadd.f32 %v3192, %v3389
    %v3391 = vpop.f32.mrf.mxu0
    %v3392 = vadd.f32 %v3194, %v3391
    %3393 = vmatmul.bf16.gmra.mxu0 %v2235
    %v3394 = vpop.f32.mrf.mxu0
    %v3395 = vadd.f32 %v3197, %v3394
    %v3396 = vpop.f32.mrf.mxu0
    %v3397 = vadd.f32 %v3199, %v3396
    %3398 = vmatmul.bf16.gmra.mxu0 %v2239
    %v3399 = vpop.f32.mrf.mxu0
    %v3400 = vadd.f32 %v3202, %v3399
    %v3401 = vpop.f32.mrf.mxu0
    %v3402 = vadd.f32 %v3204, %v3401
    %3403 = vmatmul.bf16.gmra.mxu0 %v2243
    %v3404 = vpop.f32.mrf.mxu0
    %v3405 = vadd.f32 %v3207, %v3404
    %v3406 = vpop.f32.mrf.mxu0
    %v3407 = vadd.f32 %v3209, %v3406
    %3408 = vmatmul.bf16.gmra.mxu0 %v2247
    %v3409 = vpop.f32.mrf.mxu0
    %v3410 = vadd.f32 %v3212, %v3409
    %v3411 = vpop.f32.mrf.mxu0
    %v3412 = vadd.f32 %v3214, %v3411
    %3413 = vmatmul.bf16.gmra.mxu0 %v2251
    %v3414 = vpop.f32.mrf.mxu0
    %v3415 = vadd.f32 %v3217, %v3414
    %v3416 = vpop.f32.mrf.mxu0
    %v3417 = vadd.f32 %v3219, %v3416
    %3418 = vmatmul.bf16.gmra.mxu0 %v2255
    %v3419 = vpop.f32.mrf.mxu0
    %v3420 = vadd.f32 %v3222, %v3419
    %v3421 = vpop.f32.mrf.mxu0
    %v3422 = vadd.f32 %v3224, %v3421
    %3423 = vmatmul.bf16.gmra.mxu0 %v2259
    %v3424 = vpop.f32.mrf.mxu0
    %v3425 = vadd.f32 %v3227, %v3424
    %v3426 = vpop.f32.mrf.mxu0
    %v3427 = vadd.f32 %v3229, %v3426
    %3428 = vmatmul.bf16.gmra.mxu0 %v2263
    %v3429 = vpop.f32.mrf.mxu0
    %v3430 = vadd.f32 %v3232, %v3429
    %v3431 = vpop.f32.mrf.mxu0
    %v3432 = vadd.f32 %v3234, %v3431
    %3433 = vmatmul.bf16.gmra.mxu0 %v2267
    %v3434 = vpop.f32.mrf.mxu0
    %v3435 = vadd.f32 %v3237, %v3434
    %v3436 = vpop.f32.mrf.mxu0
    %v3437 = vadd.f32 %v3239, %v3436
    %3438 = vmatmul.bf16.gmra.mxu0 %v2271
    %v3439 = vpop.f32.mrf.mxu0
    %v3440 = vadd.f32 %v3242, %v3439
    %v3441 = vpop.f32.mrf.mxu0
    %v3442 = vadd.f32 %v3244, %v3441
    %3443 = vmatmul.bf16.gmra.mxu0 %v2275
    %v3444 = vpop.f32.mrf.mxu0
    %v3445 = vadd.f32 %v3247, %v3444
    %v3446 = vpop.f32.mrf.mxu0
    %v3447 = vadd.f32 %v3249, %v3446
    %3448 = vmatmul.bf16.gmra.mxu0 %v2279
    %v3449 = vpop.f32.mrf.mxu0
    %v3450 = vadd.f32 %v3252, %v3449
    %v3451 = vpop.f32.mrf.mxu0
    %v3452 = vadd.f32 %v3254, %v3451
    %3453 = vmatmul.bf16.gmra.mxu0 %v2283
    %v3454 = vpop.f32.mrf.mxu0
    %v3455 = vadd.f32 %v3257, %v3454
    %v3456 = vpop.f32.mrf.mxu0
    %v3457 = vadd.f32 %v3259, %v3456
    %3458 = vmatmul.bf16.gmra.mxu0 %v2287
    %v3459 = vpop.f32.mrf.mxu0
    %v3460 = vadd.f32 %v3262, %v3459
    %v3461 = vpop.f32.mrf.mxu0
    %v3462 = vadd.f32 %v3264, %v3461
    %3463 = vmatmul.bf16.gmra.mxu0 %v2291
    %v3464 = vpop.f32.mrf.mxu0
    %v3465 = vadd.f32 %v3267, %v3464
    %v3466 = vpop.f32.mrf.mxu0
    %v3467 = vadd.f32 %v3269, %v3466
    %3468 = vmatmul.bf16.gmra.mxu0 %v2295
    %v3469 = vpop.f32.mrf.mxu0
    %v3470 = vadd.f32 %v3272, %v3469
    %v3471 = vpop.f32.mrf.mxu0
    %v3472 = vadd.f32 %v3274, %v3471
    %3473 = vmatmul.bf16.gmra.mxu0 %v2299
    %v3474 = vpop.f32.mrf.mxu0
    %v3475 = vadd.f32 %v3277, %v3474
    %v3476 = vpop.f32.mrf.mxu0
    %v3477 = vadd.f32 %v3279, %v3476
    %3478 = vmatmul.bf16.gmra.mxu0 %v2303
    %v3479 = vpop.f32.mrf.mxu0
    %v3480 = vadd.f32 %v3282, %v3479
    %v3481 = vpop.f32.mrf.mxu0
    %v3482 = vadd.f32 %v3284, %v3481
    %3483 = vmatmul.bf16.gmra.mxu0 %v2307
    %v3484 = vpop.f32.mrf.mxu0
    %v3485 = vadd.f32 %v3287, %v3484
    %v3486 = vpop.f32.mrf.mxu0
    %v3487 = vadd.f32 %v3289, %v3486
    %3488 = vmatmul.bf16.gmra.mxu0 %v2311
    %v3489 = vpop.f32.mrf.mxu0
    %v3490 = vadd.f32 %v3292, %v3489
    %v3491 = vpop.f32.mrf.mxu0
    %v3492 = vadd.f32 %v3294, %v3491
    %3493 = vmatmul.bf16.gmra.mxu0 %v2315
    %v3494 = vpop.f32.mrf.mxu0
    %v3495 = vadd.f32 %v3297, %v3494
    %v3496 = vpop.f32.mrf.mxu0
    %3497 = vdwg.mxu0
    %3498 = vmatpush.bf16.msra.mxu0 %v2593
    %3499 = vmatpush.bf16.msra.mxu0 %v2591
    %3500 = vmatpush.bf16.msra.mxu0 %v2589
    %3501 = vmatpush.bf16.msra.mxu0 %v2587
    %3502 = vmatpush.bf16.msra.mxu0 %v2585
    %3503 = vmatpush.bf16.msra.mxu0 %v2583
    %3504 = vmatpush.bf16.msra.mxu0 %v2581
    %3505 = vmatpush.bf16.msra.mxu0 %v2579
    %3506 = vmatmul.bf16.gmra.mxu0 %v2164
    %v3507 = vpop.f32.mrf.mxu0
    %v3508 = vadd.f32 %v2383, %v3507
    %v3509 = vpop.f32.mrf.mxu0
    %v3510 = vadd.f32 %v2383, %v3509
    %3511 = vmatmul.bf16.gmra.mxu0 %v2168
    %v3512 = vpop.f32.mrf.mxu0
    %v3513 = vadd.f32 %v2383, %v3512
    %v3514 = vpop.f32.mrf.mxu0
    %v3515 = vadd.f32 %v2383, %v3514
    %3516 = vmatmul.bf16.gmra.mxu0 %v2172
    %v3517 = vpop.f32.mrf.mxu0
    %v3518 = vadd.f32 %v2383, %v3517
    %v3519 = vpop.f32.mrf.mxu0
    %v3520 = vadd.f32 %v2383, %v3519
    %3521 = vmatmul.bf16.gmra.mxu0 %v2176
    %v3522 = vpop.f32.mrf.mxu0
    %v3523 = vadd.f32 %v2383, %v3522
    %v3524 = vpop.f32.mrf.mxu0
    %v3525 = vadd.f32 %v2383, %v3524
    %3526 = vmatmul.bf16.gmra.mxu0 %v2180
    %v3527 = vpop.f32.mrf.mxu0
    %v3528 = vadd.f32 %v2383, %v3527
    %v3529 = vpop.f32.mrf.mxu0
    %v3530 = vadd.f32 %v2383, %v3529
    %3531 = vmatmul.bf16.gmra.mxu0 %v2184
    %v3532 = vpop.f32.mrf.mxu0
    %v3533 = vadd.f32 %v2383, %v3532
    %v3534 = vpop.f32.mrf.mxu0
    %v3535 = vadd.f32 %v2383, %v3534
    %3536 = vmatmul.bf16.gmra.mxu0 %v2188
    %v3537 = vpop.f32.mrf.mxu0
    %v3538 = vadd.f32 %v2383, %v3537
    %v3539 = vpop.f32.mrf.mxu0
    %v3540 = vadd.f32 %v2383, %v3539
    %3541 = vmatmul.bf16.gmra.mxu0 %v2192
    %v3542 = vpop.f32.mrf.mxu0
    %v3543 = vadd.f32 %v2383, %v3542
    %v3544 = vpop.f32.mrf.mxu0
    %v3545 = vadd.f32 %v2383, %v3544
    %3546 = vmatmul.bf16.gmra.mxu0 %v2196
    %v3547 = vpop.f32.mrf.mxu0
    %v3548 = vadd.f32 %v2383, %v3547
    %v3549 = vpop.f32.mrf.mxu0
    %v3550 = vadd.f32 %v2383, %v3549
    %3551 = vmatmul.bf16.gmra.mxu0 %v2200
    %v3552 = vpop.f32.mrf.mxu0
    %v3553 = vadd.f32 %v2383, %v3552
    %v3554 = vpop.f32.mrf.mxu0
    %v3555 = vadd.f32 %v2383, %v3554
    %3556 = vmatmul.bf16.gmra.mxu0 %v2204
    %v3557 = vpop.f32.mrf.mxu0
    %v3558 = vadd.f32 %v2383, %v3557
    %v3559 = vpop.f32.mrf.mxu0
    %v3560 = vadd.f32 %v2383, %v3559
    %3561 = vmatmul.bf16.gmra.mxu0 %v2208
    %v3562 = vpop.f32.mrf.mxu0
    %v3563 = vadd.f32 %v2383, %v3562
    %v3564 = vpop.f32.mrf.mxu0
    %v3565 = vadd.f32 %v2383, %v3564
    %3566 = vmatmul.bf16.gmra.mxu0 %v2212
    %v3567 = vpop.f32.mrf.mxu0
    %v3568 = vadd.f32 %v2383, %v3567
    %v3569 = vpop.f32.mrf.mxu0
    %v3570 = vadd.f32 %v2383, %v3569
    %3571 = vmatmul.bf16.gmra.mxu0 %v2216
    %v3572 = vpop.f32.mrf.mxu0
    %v3573 = vadd.f32 %v2383, %v3572
    %v3574 = vpop.f32.mrf.mxu0
    %v3575 = vadd.f32 %v2383, %v3574
    %3576 = vmatmul.bf16.gmra.mxu0 %v2220
    %v3577 = vpop.f32.mrf.mxu0
    %v3578 = vadd.f32 %v2383, %v3577
    %v3579 = vpop.f32.mrf.mxu0
    %v3580 = vadd.f32 %v2383, %v3579
    %3581 = vmatmul.bf16.gmra.mxu0 %v2224
    %v3582 = vpop.f32.mrf.mxu0
    %v3583 = vadd.f32 %v2383, %v3582
    %v3584 = vpop.f32.mrf.mxu0
    %v3585 = vadd.f32 %v2383, %v3584
    %3586 = vmatmul.bf16.gmra.mxu0 %v2228
    %v3587 = vpop.f32.mrf.mxu0
    %v3588 = vadd.f32 %v2383, %v3587
    %v3589 = vpop.f32.mrf.mxu0
    %v3590 = vadd.f32 %v2383, %v3589
    %3591 = vmatmul.bf16.gmra.mxu0 %v2232
    %v3592 = vpop.f32.mrf.mxu0
    %v3593 = vadd.f32 %v2383, %v3592
    %v3594 = vpop.f32.mrf.mxu0
    %v3595 = vadd.f32 %v2383, %v3594
    %3596 = vmatmul.bf16.gmra.mxu0 %v2236
    %v3597 = vpop.f32.mrf.mxu0
    %v3598 = vadd.f32 %v2383, %v3597
    %v3599 = vpop.f32.mrf.mxu0
    %v3600 = vadd.f32 %v2383, %v3599
    %3601 = vmatmul.bf16.gmra.mxu0 %v2240
    %v3602 = vpop.f32.mrf.mxu0
    %v3603 = vadd.f32 %v2383, %v3602
    %v3604 = vpop.f32.mrf.mxu0
    %v3605 = vadd.f32 %v2383, %v3604
    %3606 = vmatmul.bf16.gmra.mxu0 %v2244
    %v3607 = vpop.f32.mrf.mxu0
    %v3608 = vadd.f32 %v2383, %v3607
    %v3609 = vpop.f32.mrf.mxu0
    %v3610 = vadd.f32 %v2383, %v3609
    %3611 = vmatmul.bf16.gmra.mxu0 %v2248
    %v3612 = vpop.f32.mrf.mxu0
    %v3613 = vadd.f32 %v2383, %v3612
    %v3614 = vpop.f32.mrf.mxu0
    %v3615 = vadd.f32 %v2383, %v3614
    %3616 = vmatmul.bf16.gmra.mxu0 %v2252
    %v3617 = vpop.f32.mrf.mxu0
    %v3618 = vadd.f32 %v2383, %v3617
    %v3619 = vpop.f32.mrf.mxu0
    %v3620 = vadd.f32 %v2383, %v3619
    %3621 = vmatmul.bf16.gmra.mxu0 %v2256
    %v3622 = vpop.f32.mrf.mxu0
    %v3623 = vadd.f32 %v2383, %v3622
    %v3624 = vpop.f32.mrf.mxu0
    %v3625 = vadd.f32 %v2383, %v3624
    %3626 = vmatmul.bf16.gmra.mxu0 %v2260
    %v3627 = vpop.f32.mrf.mxu0
    %v3628 = vadd.f32 %v2383, %v3627
    %v3629 = vpop.f32.mrf.mxu0
    %v3630 = vadd.f32 %v2383, %v3629
    %3631 = vmatmul.bf16.gmra.mxu0 %v2264
    %v3632 = vpop.f32.mrf.mxu0
    %v3633 = vadd.f32 %v2383, %v3632
    %v3634 = vpop.f32.mrf.mxu0
    %v3635 = vadd.f32 %v2383, %v3634
    %3636 = vmatmul.bf16.gmra.mxu0 %v2268
    %v3637 = vpop.f32.mrf.mxu0
    %v3638 = vadd.f32 %v2383, %v3637
    %v3639 = vpop.f32.mrf.mxu0
    %v3640 = vadd.f32 %v2383, %v3639
    %3641 = vmatmul.bf16.gmra.mxu0 %v2272
    %v3642 = vpop.f32.mrf.mxu0
    %v3643 = vadd.f32 %v2383, %v3642
    %v3644 = vpop.f32.mrf.mxu0
    %v3645 = vadd.f32 %v2383, %v3644
    %3646 = vmatmul.bf16.gmra.mxu0 %v2276
    %v3647 = vpop.f32.mrf.mxu0
    %v3648 = vadd.f32 %v2383, %v3647
    %v3649 = vpop.f32.mrf.mxu0
    %v3650 = vadd.f32 %v2383, %v3649
    %3651 = vmatmul.bf16.gmra.mxu0 %v2280
    %v3652 = vpop.f32.mrf.mxu0
    %v3653 = vadd.f32 %v2383, %v3652
    %v3654 = vpop.f32.mrf.mxu0
    %v3655 = vadd.f32 %v2383, %v3654
    %3656 = vmatmul.bf16.gmra.mxu0 %v2284
    %v3657 = vpop.f32.mrf.mxu0
    %v3658 = vadd.f32 %v2383, %v3657
    %v3659 = vpop.f32.mrf.mxu0
    %v3660 = vadd.f32 %v2383, %v3659
    %3661 = vmatmul.bf16.gmra.mxu0 %v2288
    %v3662 = vpop.f32.mrf.mxu0
    %v3663 = vadd.f32 %v2383, %v3662
    %v3664 = vpop.f32.mrf.mxu0
    %v3665 = vadd.f32 %v2383, %v3664
    %3666 = vmatmul.bf16.gmra.mxu0 %v2292
    %v3667 = vpop.f32.mrf.mxu0
    %v3668 = vadd.f32 %v2383, %v3667
    %v3669 = vpop.f32.mrf.mxu0
    %v3670 = vadd.f32 %v2383, %v3669
    %3671 = vmatmul.bf16.gmra.mxu0 %v2296
    %v3672 = vpop.f32.mrf.mxu0
    %v3673 = vadd.f32 %v2383, %v3672
    %v3674 = vpop.f32.mrf.mxu0
    %v3675 = vadd.f32 %v2383, %v3674
    %3676 = vmatmul.bf16.gmra.mxu0 %v2300
    %v3677 = vpop.f32.mrf.mxu0
    %v3678 = vadd.f32 %v2383, %v3677
    %v3679 = vpop.f32.mrf.mxu0
    %v3680 = vadd.f32 %v2383, %v3679
    %3681 = vmatmul.bf16.gmra.mxu0 %v2304
    %v3682 = vpop.f32.mrf.mxu0
    %v3683 = vadd.f32 %v2383, %v3682
    %v3684 = vpop.f32.mrf.mxu0
    %v3685 = vadd.f32 %v2383, %v3684
    %3686 = vmatmul.bf16.gmra.mxu0 %v2308
    %v3687 = vpop.f32.mrf.mxu0
    %v3688 = vadd.f32 %v2383, %v3687
    %v3689 = vpop.f32.mrf.mxu0
    %v3690 = vadd.f32 %v2383, %v3689
    %3691 = vmatmul.bf16.gmra.mxu0 %v2312
    %v3692 = vpop.f32.mrf.mxu0
    %v3693 = vadd.f32 %v2383, %v3692
    %v3694 = vpop.f32.mrf.mxu0
    %3695 = vdwg.mxu0
    %3696 = vmatpush.bf16.msra.mxu0 %v2609
    %3697 = vmatpush.bf16.msra.mxu0 %v2607
    %3698 = vmatpush.bf16.msra.mxu0 %v2605
    %3699 = vmatpush.bf16.msra.mxu0 %v2603
    %3700 = vmatpush.bf16.msra.mxu0 %v2601
    %3701 = vmatpush.bf16.msra.mxu0 %v2599
    %3702 = vmatpush.bf16.msra.mxu0 %v2597
    %3703 = vmatpush.bf16.msra.mxu0 %v2595
    %3704 = vmatmul.bf16.gmra.mxu0 %v2165
    %v3705 = vpop.f32.mrf.mxu0
    %v3706 = vadd.f32 %v3508, %v3705
    %v3707 = vpop.f32.mrf.mxu0
    %v3708 = vadd.f32 %v3510, %v3707
    %3709 = vmatmul.bf16.gmra.mxu0 %v2169
    %v3710 = vpop.f32.mrf.mxu0
    %v3711 = vadd.f32 %v3513, %v3710
    %v3712 = vpop.f32.mrf.mxu0
    %v3713 = vadd.f32 %v3515, %v3712
    %3714 = vmatmul.bf16.gmra.mxu0 %v2173
    %v3715 = vpop.f32.mrf.mxu0
    %v3716 = vadd.f32 %v3518, %v3715
    %v3717 = vpop.f32.mrf.mxu0
    %v3718 = vadd.f32 %v3520, %v3717
    %3719 = vmatmul.bf16.gmra.mxu0 %v2177
    %v3720 = vpop.f32.mrf.mxu0
    %v3721 = vadd.f32 %v3523, %v3720
    %v3722 = vpop.f32.mrf.mxu0
    %v3723 = vadd.f32 %v3525, %v3722
    %3724 = vmatmul.bf16.gmra.mxu0 %v2181
    %v3725 = vpop.f32.mrf.mxu0
    %v3726 = vadd.f32 %v3528, %v3725
    %v3727 = vpop.f32.mrf.mxu0
    %v3728 = vadd.f32 %v3530, %v3727
    %3729 = vmatmul.bf16.gmra.mxu0 %v2185
    %v3730 = vpop.f32.mrf.mxu0
    %v3731 = vadd.f32 %v3533, %v3730
    %v3732 = vpop.f32.mrf.mxu0
    %v3733 = vadd.f32 %v3535, %v3732
    %3734 = vmatmul.bf16.gmra.mxu0 %v2189
    %v3735 = vpop.f32.mrf.mxu0
    %v3736 = vadd.f32 %v3538, %v3735
    %v3737 = vpop.f32.mrf.mxu0
    %v3738 = vadd.f32 %v3540, %v3737
    %3739 = vmatmul.bf16.gmra.mxu0 %v2193
    %v3740 = vpop.f32.mrf.mxu0
    %v3741 = vadd.f32 %v3543, %v3740
    %v3742 = vpop.f32.mrf.mxu0
    %v3743 = vadd.f32 %v3545, %v3742
    %3744 = vmatmul.bf16.gmra.mxu0 %v2197
    %v3745 = vpop.f32.mrf.mxu0
    %v3746 = vadd.f32 %v3548, %v3745
    %v3747 = vpop.f32.mrf.mxu0
    %v3748 = vadd.f32 %v3550, %v3747
    %3749 = vmatmul.bf16.gmra.mxu0 %v2201
    %v3750 = vpop.f32.mrf.mxu0
    %v3751 = vadd.f32 %v3553, %v3750
    %v3752 = vpop.f32.mrf.mxu0
    %v3753 = vadd.f32 %v3555, %v3752
    %3754 = vmatmul.bf16.gmra.mxu0 %v2205
    %v3755 = vpop.f32.mrf.mxu0
    %v3756 = vadd.f32 %v3558, %v3755
    %v3757 = vpop.f32.mrf.mxu0
    %v3758 = vadd.f32 %v3560, %v3757
    %3759 = vmatmul.bf16.gmra.mxu0 %v2209
    %v3760 = vpop.f32.mrf.mxu0
    %v3761 = vadd.f32 %v3563, %v3760
    %v3762 = vpop.f32.mrf.mxu0
    %v3763 = vadd.f32 %v3565, %v3762
    %3764 = vmatmul.bf16.gmra.mxu0 %v2213
    %v3765 = vpop.f32.mrf.mxu0
    %v3766 = vadd.f32 %v3568, %v3765
    %v3767 = vpop.f32.mrf.mxu0
    %v3768 = vadd.f32 %v3570, %v3767
    %3769 = vmatmul.bf16.gmra.mxu0 %v2217
    %v3770 = vpop.f32.mrf.mxu0
    %v3771 = vadd.f32 %v3573, %v3770
    %v3772 = vpop.f32.mrf.mxu0
    %v3773 = vadd.f32 %v3575, %v3772
    %3774 = vmatmul.bf16.gmra.mxu0 %v2221
    %v3775 = vpop.f32.mrf.mxu0
    %v3776 = vadd.f32 %v3578, %v3775
    %v3777 = vpop.f32.mrf.mxu0
    %v3778 = vadd.f32 %v3580, %v3777
    %3779 = vmatmul.bf16.gmra.mxu0 %v2225
    %v3780 = vpop.f32.mrf.mxu0
    %v3781 = vadd.f32 %v3583, %v3780
    %v3782 = vpop.f32.mrf.mxu0
    %v3783 = vadd.f32 %v3585, %v3782
    %3784 = vmatmul.bf16.gmra.mxu0 %v2229
    %v3785 = vpop.f32.mrf.mxu0
    %v3786 = vadd.f32 %v3588, %v3785
    %v3787 = vpop.f32.mrf.mxu0
    %v3788 = vadd.f32 %v3590, %v3787
    %3789 = vmatmul.bf16.gmra.mxu0 %v2233
    %v3790 = vpop.f32.mrf.mxu0
    %v3791 = vadd.f32 %v3593, %v3790
    %v3792 = vpop.f32.mrf.mxu0
    %v3793 = vadd.f32 %v3595, %v3792
    %3794 = vmatmul.bf16.gmra.mxu0 %v2237
    %v3795 = vpop.f32.mrf.mxu0
    %v3796 = vadd.f32 %v3598, %v3795
    %v3797 = vpop.f32.mrf.mxu0
    %v3798 = vadd.f32 %v3600, %v3797
    %3799 = vmatmul.bf16.gmra.mxu0 %v2241
    %v3800 = vpop.f32.mrf.mxu0
    %v3801 = vadd.f32 %v3603, %v3800
    %v3802 = vpop.f32.mrf.mxu0
    %v3803 = vadd.f32 %v3605, %v3802
    %3804 = vmatmul.bf16.gmra.mxu0 %v2245
    %v3805 = vpop.f32.mrf.mxu0
    %v3806 = vadd.f32 %v3608, %v3805
    %v3807 = vpop.f32.mrf.mxu0
    %v3808 = vadd.f32 %v3610, %v3807
    %3809 = vmatmul.bf16.gmra.mxu0 %v2249
    %v3810 = vpop.f32.mrf.mxu0
    %v3811 = vadd.f32 %v3613, %v3810
    %v3812 = vpop.f32.mrf.mxu0
    %v3813 = vadd.f32 %v3615, %v3812
    %3814 = vmatmul.bf16.gmra.mxu0 %v2253
    %v3815 = vpop.f32.mrf.mxu0
    %v3816 = vadd.f32 %v3618, %v3815
    %v3817 = vpop.f32.mrf.mxu0
    %v3818 = vadd.f32 %v3620, %v3817
    %3819 = vmatmul.bf16.gmra.mxu0 %v2257
    %v3820 = vpop.f32.mrf.mxu0
    %v3821 = vadd.f32 %v3623, %v3820
    %v3822 = vpop.f32.mrf.mxu0
    %v3823 = vadd.f32 %v3625, %v3822
    %3824 = vmatmul.bf16.gmra.mxu0 %v2261
    %v3825 = vpop.f32.mrf.mxu0
    %v3826 = vadd.f32 %v3628, %v3825
    %v3827 = vpop.f32.mrf.mxu0
    %v3828 = vadd.f32 %v3630, %v3827
    %3829 = vmatmul.bf16.gmra.mxu0 %v2265
    %v3830 = vpop.f32.mrf.mxu0
    %v3831 = vadd.f32 %v3633, %v3830
    %v3832 = vpop.f32.mrf.mxu0
    %v3833 = vadd.f32 %v3635, %v3832
    %3834 = vmatmul.bf16.gmra.mxu0 %v2269
    %v3835 = vpop.f32.mrf.mxu0
    %v3836 = vadd.f32 %v3638, %v3835
    %v3837 = vpop.f32.mrf.mxu0
    %v3838 = vadd.f32 %v3640, %v3837
    %3839 = vmatmul.bf16.gmra.mxu0 %v2273
    %v3840 = vpop.f32.mrf.mxu0
    %v3841 = vadd.f32 %v3643, %v3840
    %v3842 = vpop.f32.mrf.mxu0
    %v3843 = vadd.f32 %v3645, %v3842
    %3844 = vmatmul.bf16.gmra.mxu0 %v2277
    %v3845 = vpop.f32.mrf.mxu0
    %v3846 = vadd.f32 %v3648, %v3845
    %v3847 = vpop.f32.mrf.mxu0
    %v3848 = vadd.f32 %v3650, %v3847
    %3849 = vmatmul.bf16.gmra.mxu0 %v2281
    %v3850 = vpop.f32.mrf.mxu0
    %v3851 = vadd.f32 %v3653, %v3850
    %v3852 = vpop.f32.mrf.mxu0
    %v3853 = vadd.f32 %v3655, %v3852
    %3854 = vmatmul.bf16.gmra.mxu0 %v2285
    %v3855 = vpop.f32.mrf.mxu0
    %v3856 = vadd.f32 %v3658, %v3855
    %v3857 = vpop.f32.mrf.mxu0
    %v3858 = vadd.f32 %v3660, %v3857
    %3859 = vmatmul.bf16.gmra.mxu0 %v2289
    %v3860 = vpop.f32.mrf.mxu0
    %v3861 = vadd.f32 %v3663, %v3860
    %v3862 = vpop.f32.mrf.mxu0
    %v3863 = vadd.f32 %v3665, %v3862
    %3864 = vmatmul.bf16.gmra.mxu0 %v2293
    %v3865 = vpop.f32.mrf.mxu0
    %v3866 = vadd.f32 %v3668, %v3865
    %v3867 = vpop.f32.mrf.mxu0
    %v3868 = vadd.f32 %v3670, %v3867
    %3869 = vmatmul.bf16.gmra.mxu0 %v2297
    %v3870 = vpop.f32.mrf.mxu0
    %v3871 = vadd.f32 %v3673, %v3870
    %v3872 = vpop.f32.mrf.mxu0
    %v3873 = vadd.f32 %v3675, %v3872
    %3874 = vmatmul.bf16.gmra.mxu0 %v2301
    %v3875 = vpop.f32.mrf.mxu0
    %v3876 = vadd.f32 %v3678, %v3875
    %v3877 = vpop.f32.mrf.mxu0
    %v3878 = vadd.f32 %v3680, %v3877
    %3879 = vmatmul.bf16.gmra.mxu0 %v2305
    %v3880 = vpop.f32.mrf.mxu0
    %v3881 = vadd.f32 %v3683, %v3880
    %v3882 = vpop.f32.mrf.mxu0
    %v3883 = vadd.f32 %v3685, %v3882
    %3884 = vmatmul.bf16.gmra.mxu0 %v2309
    %v3885 = vpop.f32.mrf.mxu0
    %v3886 = vadd.f32 %v3688, %v3885
    %v3887 = vpop.f32.mrf.mxu0
    %v3888 = vadd.f32 %v3690, %v3887
    %3889 = vmatmul.bf16.gmra.mxu0 %v2313
    %v3890 = vpop.f32.mrf.mxu0
    %v3891 = vadd.f32 %v3693, %v3890
    %v3892 = vpop.f32.mrf.mxu0
    %3893 = vdwg.mxu0
    %3894 = vmatpush.bf16.msra.mxu0 %v2625
    %3895 = vmatpush.bf16.msra.mxu0 %v2623
    %3896 = vmatpush.bf16.msra.mxu0 %v2621
    %3897 = vmatpush.bf16.msra.mxu0 %v2619
    %3898 = vmatpush.bf16.msra.mxu0 %v2617
    %3899 = vmatpush.bf16.msra.mxu0 %v2615
    %3900 = vmatpush.bf16.msra.mxu0 %v2613
    %3901 = vmatpush.bf16.msra.mxu0 %v2611
    %3902 = vmatmul.bf16.gmra.mxu0 %v2166
    %v3903 = vpop.f32.mrf.mxu0
    %v3904 = vadd.f32 %v3706, %v3903
    %v3905 = vpop.f32.mrf.mxu0
    %v3906 = vadd.f32 %v3708, %v3905
    %3907 = vmatmul.bf16.gmra.mxu0 %v2170
    %v3908 = vpop.f32.mrf.mxu0
    %v3909 = vadd.f32 %v3711, %v3908
    %v3910 = vpop.f32.mrf.mxu0
    %v3911 = vadd.f32 %v3713, %v3910
    %3912 = vmatmul.bf16.gmra.mxu0 %v2174
    %v3913 = vpop.f32.mrf.mxu0
    %v3914 = vadd.f32 %v3716, %v3913
    %v3915 = vpop.f32.mrf.mxu0
    %v3916 = vadd.f32 %v3718, %v3915
    %3917 = vmatmul.bf16.gmra.mxu0 %v2178
    %v3918 = vpop.f32.mrf.mxu0
    %v3919 = vadd.f32 %v3721, %v3918
    %v3920 = vpop.f32.mrf.mxu0
    %v3921 = vadd.f32 %v3723, %v3920
    %3922 = vmatmul.bf16.gmra.mxu0 %v2182
    %v3923 = vpop.f32.mrf.mxu0
    %v3924 = vadd.f32 %v3726, %v3923
    %v3925 = vpop.f32.mrf.mxu0
    %v3926 = vadd.f32 %v3728, %v3925
    %3927 = vmatmul.bf16.gmra.mxu0 %v2186
    %v3928 = vpop.f32.mrf.mxu0
    %v3929 = vadd.f32 %v3731, %v3928
    %v3930 = vpop.f32.mrf.mxu0
    %v3931 = vadd.f32 %v3733, %v3930
    %3932 = vmatmul.bf16.gmra.mxu0 %v2190
    %v3933 = vpop.f32.mrf.mxu0
    %v3934 = vadd.f32 %v3736, %v3933
    %v3935 = vpop.f32.mrf.mxu0
    %v3936 = vadd.f32 %v3738, %v3935
    %3937 = vmatmul.bf16.gmra.mxu0 %v2194
    %v3938 = vpop.f32.mrf.mxu0
    %v3939 = vadd.f32 %v3741, %v3938
    %v3940 = vpop.f32.mrf.mxu0
    %v3941 = vadd.f32 %v3743, %v3940
    %3942 = vmatmul.bf16.gmra.mxu0 %v2198
    %v3943 = vpop.f32.mrf.mxu0
    %v3944 = vadd.f32 %v3746, %v3943
    %v3945 = vpop.f32.mrf.mxu0
    %v3946 = vadd.f32 %v3748, %v3945
    %3947 = vmatmul.bf16.gmra.mxu0 %v2202
    %v3948 = vpop.f32.mrf.mxu0
    %v3949 = vadd.f32 %v3751, %v3948
    %v3950 = vpop.f32.mrf.mxu0
    %v3951 = vadd.f32 %v3753, %v3950
    %3952 = vmatmul.bf16.gmra.mxu0 %v2206
    %v3953 = vpop.f32.mrf.mxu0
    %v3954 = vadd.f32 %v3756, %v3953
    %v3955 = vpop.f32.mrf.mxu0
    %v3956 = vadd.f32 %v3758, %v3955
    %3957 = vmatmul.bf16.gmra.mxu0 %v2210
    %v3958 = vpop.f32.mrf.mxu0
    %v3959 = vadd.f32 %v3761, %v3958
    %v3960 = vpop.f32.mrf.mxu0
    %v3961 = vadd.f32 %v3763, %v3960
    %3962 = vmatmul.bf16.gmra.mxu0 %v2214
    %v3963 = vpop.f32.mrf.mxu0
    %v3964 = vadd.f32 %v3766, %v3963
    %v3965 = vpop.f32.mrf.mxu0
    %v3966 = vadd.f32 %v3768, %v3965
    %3967 = vmatmul.bf16.gmra.mxu0 %v2218
    %v3968 = vpop.f32.mrf.mxu0
    %v3969 = vadd.f32 %v3771, %v3968
    %v3970 = vpop.f32.mrf.mxu0
    %v3971 = vadd.f32 %v3773, %v3970
    %3972 = vmatmul.bf16.gmra.mxu0 %v2222
    %v3973 = vpop.f32.mrf.mxu0
    %v3974 = vadd.f32 %v3776, %v3973
    %v3975 = vpop.f32.mrf.mxu0
    %v3976 = vadd.f32 %v3778, %v3975
    %3977 = vmatmul.bf16.gmra.mxu0 %v2226
    %v3978 = vpop.f32.mrf.mxu0
    %v3979 = vadd.f32 %v3781, %v3978
    %v3980 = vpop.f32.mrf.mxu0
    %v3981 = vadd.f32 %v3783, %v3980
    %3982 = vmatmul.bf16.gmra.mxu0 %v2230
    %v3983 = vpop.f32.mrf.mxu0
    %v3984 = vadd.f32 %v3786, %v3983
    %v3985 = vpop.f32.mrf.mxu0
    %v3986 = vadd.f32 %v3788, %v3985
    %3987 = vmatmul.bf16.gmra.mxu0 %v2234
    %v3988 = vpop.f32.mrf.mxu0
    %v3989 = vadd.f32 %v3791, %v3988
    %v3990 = vpop.f32.mrf.mxu0
    %v3991 = vadd.f32 %v3793, %v3990
    %3992 = vmatmul.bf16.gmra.mxu0 %v2238
    %v3993 = vpop.f32.mrf.mxu0
    %v3994 = vadd.f32 %v3796, %v3993
    %v3995 = vpop.f32.mrf.mxu0
    %v3996 = vadd.f32 %v3798, %v3995
    %3997 = vmatmul.bf16.gmra.mxu0 %v2242
    %v3998 = vpop.f32.mrf.mxu0
    %v3999 = vadd.f32 %v3801, %v3998
    %v4000 = vpop.f32.mrf.mxu0
    %v4001 = vadd.f32 %v3803, %v4000
    %4002 = vmatmul.bf16.gmra.mxu0 %v2246
    %v4003 = vpop.f32.mrf.mxu0
    %v4004 = vadd.f32 %v3806, %v4003
    %v4005 = vpop.f32.mrf.mxu0
    %v4006 = vadd.f32 %v3808, %v4005
    %4007 = vmatmul.bf16.gmra.mxu0 %v2250
    %v4008 = vpop.f32.mrf.mxu0
    %v4009 = vadd.f32 %v3811, %v4008
    %v4010 = vpop.f32.mrf.mxu0
    %v4011 = vadd.f32 %v3813, %v4010
    %4012 = vmatmul.bf16.gmra.mxu0 %v2254
    %v4013 = vpop.f32.mrf.mxu0
    %v4014 = vadd.f32 %v3816, %v4013
    %v4015 = vpop.f32.mrf.mxu0
    %v4016 = vadd.f32 %v3818, %v4015
    %4017 = vmatmul.bf16.gmra.mxu0 %v2258
    %v4018 = vpop.f32.mrf.mxu0
    %v4019 = vadd.f32 %v3821, %v4018
    %v4020 = vpop.f32.mrf.mxu0
    %v4021 = vadd.f32 %v3823, %v4020
    %4022 = vmatmul.bf16.gmra.mxu0 %v2262
    %v4023 = vpop.f32.mrf.mxu0
    %v4024 = vadd.f32 %v3826, %v4023
    %v4025 = vpop.f32.mrf.mxu0
    %v4026 = vadd.f32 %v3828, %v4025
    %4027 = vmatmul.bf16.gmra.mxu0 %v2266
    %v4028 = vpop.f32.mrf.mxu0
    %v4029 = vadd.f32 %v3831, %v4028
    %v4030 = vpop.f32.mrf.mxu0
    %v4031 = vadd.f32 %v3833, %v4030
    %4032 = vmatmul.bf16.gmra.mxu0 %v2270
    %v4033 = vpop.f32.mrf.mxu0
    %v4034 = vadd.f32 %v3836, %v4033
    %v4035 = vpop.f32.mrf.mxu0
    %v4036 = vadd.f32 %v3838, %v4035
    %4037 = vmatmul.bf16.gmra.mxu0 %v2274
    %v4038 = vpop.f32.mrf.mxu0
    %v4039 = vadd.f32 %v3841, %v4038
    %v4040 = vpop.f32.mrf.mxu0
    %v4041 = vadd.f32 %v3843, %v4040
    %4042 = vmatmul.bf16.gmra.mxu0 %v2278
    %v4043 = vpop.f32.mrf.mxu0
    %v4044 = vadd.f32 %v3846, %v4043
    %v4045 = vpop.f32.mrf.mxu0
    %v4046 = vadd.f32 %v3848, %v4045
    %4047 = vmatmul.bf16.gmra.mxu0 %v2282
    %v4048 = vpop.f32.mrf.mxu0
    %v4049 = vadd.f32 %v3851, %v4048
    %v4050 = vpop.f32.mrf.mxu0
    %v4051 = vadd.f32 %v3853, %v4050
    %4052 = vmatmul.bf16.gmra.mxu0 %v2286
    %v4053 = vpop.f32.mrf.mxu0
    %v4054 = vadd.f32 %v3856, %v4053
    %v4055 = vpop.f32.mrf.mxu0
    %v4056 = vadd.f32 %v3858, %v4055
    %4057 = vmatmul.bf16.gmra.mxu0 %v2290
    %v4058 = vpop.f32.mrf.mxu0
    %v4059 = vadd.f32 %v3861, %v4058
    %v4060 = vpop.f32.mrf.mxu0
    %v4061 = vadd.f32 %v3863, %v4060
    %4062 = vmatmul.bf16.gmra.mxu0 %v2294
    %v4063 = vpop.f32.mrf.mxu0
    %v4064 = vadd.f32 %v3866, %v4063
    %v4065 = vpop.f32.mrf.mxu0
    %v4066 = vadd.f32 %v3868, %v4065
    %4067 = vmatmul.bf16.gmra.mxu0 %v2298
    %v4068 = vpop.f32.mrf.mxu0
    %v4069 = vadd.f32 %v3871, %v4068
    %v4070 = vpop.f32.mrf.mxu0
    %v4071 = vadd.f32 %v3873, %v4070
    %4072 = vmatmul.bf16.gmra.mxu0 %v2302
    %v4073 = vpop.f32.mrf.mxu0
    %v4074 = vadd.f32 %v3876, %v4073
    %v4075 = vpop.f32.mrf.mxu0
    %v4076 = vadd.f32 %v3878, %v4075
    %4077 = vmatmul.bf16.gmra.mxu0 %v2306
    %v4078 = vpop.f32.mrf.mxu0
    %v4079 = vadd.f32 %v3881, %v4078
    %v4080 = vpop.f32.mrf.mxu0
    %v4081 = vadd.f32 %v3883, %v4080
    %4082 = vmatmul.bf16.gmra.mxu0 %v2310
    %v4083 = vpop.f32.mrf.mxu0
    %v4084 = vadd.f32 %v3886, %v4083
    %v4085 = vpop.f32.mrf.mxu0
    %v4086 = vadd.f32 %v3888, %v4085
    %4087 = vmatmul.bf16.gmra.mxu0 %v2314
    %v4088 = vpop.f32.mrf.mxu0
    %v4089 = vadd.f32 %v3891, %v4088
    %v4090 = vpop.f32.mrf.mxu0
    %4091 = vdwg.mxu0
    %4092 = vmatpush.bf16.msra.mxu0 %v2641
    %4093 = vmatpush.bf16.msra.mxu0 %v2639
    %4094 = vmatpush.bf16.msra.mxu0 %v2637
    %4095 = vmatpush.bf16.msra.mxu0 %v2635
    %4096 = vmatpush.bf16.msra.mxu0 %v2633
    %4097 = vmatpush.bf16.msra.mxu0 %v2631
    %4098 = vmatpush.bf16.msra.mxu0 %v2629
    %4099 = vmatpush.bf16.msra.mxu0 %v2627
    %4100 = vmatmul.bf16.gmra.mxu0 %v2167
    %v4101 = vpop.f32.mrf.mxu0
    %v4102 = vadd.f32 %v3904, %v4101
    %v4103 = vpop.f32.mrf.mxu0
    %v4104 = vadd.f32 %v3906, %v4103
    %4105 = vmatmul.bf16.gmra.mxu0 %v2171
    %v4106 = vpop.f32.mrf.mxu0
    %v4107 = vadd.f32 %v3909, %v4106
    %v4108 = vpop.f32.mrf.mxu0
    %v4109 = vadd.f32 %v3911, %v4108
    %4110 = vmatmul.bf16.gmra.mxu0 %v2175
    %v4111 = vpop.f32.mrf.mxu0
    %v4112 = vadd.f32 %v3914, %v4111
    %v4113 = vpop.f32.mrf.mxu0
    %v4114 = vadd.f32 %v3916, %v4113
    %4115 = vmatmul.bf16.gmra.mxu0 %v2179
    %v4116 = vpop.f32.mrf.mxu0
    %v4117 = vadd.f32 %v3919, %v4116
    %v4118 = vpop.f32.mrf.mxu0
    %v4119 = vadd.f32 %v3921, %v4118
    %4120 = vmatmul.bf16.gmra.mxu0 %v2183
    %v4121 = vpop.f32.mrf.mxu0
    %v4122 = vadd.f32 %v3924, %v4121
    %v4123 = vpop.f32.mrf.mxu0
    %v4124 = vadd.f32 %v3926, %v4123
    %4125 = vmatmul.bf16.gmra.mxu0 %v2187
    %v4126 = vpop.f32.mrf.mxu0
    %v4127 = vadd.f32 %v3929, %v4126
    %v4128 = vpop.f32.mrf.mxu0
    %v4129 = vadd.f32 %v3931, %v4128
    %4130 = vmatmul.bf16.gmra.mxu0 %v2191
    %v4131 = vpop.f32.mrf.mxu0
    %v4132 = vadd.f32 %v3934, %v4131
    %v4133 = vpop.f32.mrf.mxu0
    %v4134 = vadd.f32 %v3936, %v4133
    %4135 = vmatmul.bf16.gmra.mxu0 %v2195
    %v4136 = vpop.f32.mrf.mxu0
    %v4137 = vadd.f32 %v3939, %v4136
    %v4138 = vpop.f32.mrf.mxu0
    %v4139 = vadd.f32 %v3941, %v4138
    %4140 = vmatmul.bf16.gmra.mxu0 %v2199
    %v4141 = vpop.f32.mrf.mxu0
    %v4142 = vadd.f32 %v3944, %v4141
    %v4143 = vpop.f32.mrf.mxu0
    %v4144 = vadd.f32 %v3946, %v4143
    %4145 = vmatmul.bf16.gmra.mxu0 %v2203
    %v4146 = vpop.f32.mrf.mxu0
    %v4147 = vadd.f32 %v3949, %v4146
    %v4148 = vpop.f32.mrf.mxu0
    %v4149 = vadd.f32 %v3951, %v4148
    %4150 = vmatmul.bf16.gmra.mxu0 %v2207
    %v4151 = vpop.f32.mrf.mxu0
    %v4152 = vadd.f32 %v3954, %v4151
    %v4153 = vpop.f32.mrf.mxu0
    %v4154 = vadd.f32 %v3956, %v4153
    %4155 = vmatmul.bf16.gmra.mxu0 %v2211
    %v4156 = vpop.f32.mrf.mxu0
    %v4157 = vadd.f32 %v3959, %v4156
    %v4158 = vpop.f32.mrf.mxu0
    %v4159 = vadd.f32 %v3961, %v4158
    %4160 = vmatmul.bf16.gmra.mxu0 %v2215
    %v4161 = vpop.f32.mrf.mxu0
    %v4162 = vadd.f32 %v3964, %v4161
    %v4163 = vpop.f32.mrf.mxu0
    %v4164 = vadd.f32 %v3966, %v4163
    %4165 = vmatmul.bf16.gmra.mxu0 %v2219
    %v4166 = vpop.f32.mrf.mxu0
    %v4167 = vadd.f32 %v3969, %v4166
    %v4168 = vpop.f32.mrf.mxu0
    %v4169 = vadd.f32 %v3971, %v4168
    %4170 = vmatmul.bf16.gmra.mxu0 %v2223
    %v4171 = vpop.f32.mrf.mxu0
    %v4172 = vadd.f32 %v3974, %v4171
    %v4173 = vpop.f32.mrf.mxu0
    %v4174 = vadd.f32 %v3976, %v4173
    %4175 = vmatmul.bf16.gmra.mxu0 %v2227
    %v4176 = vpop.f32.mrf.mxu0
    %v4177 = vadd.f32 %v3979, %v4176
    %v4178 = vpop.f32.mrf.mxu0
    %v4179 = vadd.f32 %v3981, %v4178
    %4180 = vmatmul.bf16.gmra.mxu0 %v2231
    %v4181 = vpop.f32.mrf.mxu0
    %v4182 = vadd.f32 %v3984, %v4181
    %v4183 = vpop.f32.mrf.mxu0
    %v4184 = vadd.f32 %v3986, %v4183
    %4185 = vmatmul.bf16.gmra.mxu0 %v2235
    %v4186 = vpop.f32.mrf.mxu0
    %v4187 = vadd.f32 %v3989, %v4186
    %v4188 = vpop.f32.mrf.mxu0
    %v4189 = vadd.f32 %v3991, %v4188
    %4190 = vmatmul.bf16.gmra.mxu0 %v2239
    %v4191 = vpop.f32.mrf.mxu0
    %v4192 = vadd.f32 %v3994, %v4191
    %v4193 = vpop.f32.mrf.mxu0
    %v4194 = vadd.f32 %v3996, %v4193
    %4195 = vmatmul.bf16.gmra.mxu0 %v2243
    %v4196 = vpop.f32.mrf.mxu0
    %v4197 = vadd.f32 %v3999, %v4196
    %v4198 = vpop.f32.mrf.mxu0
    %v4199 = vadd.f32 %v4001, %v4198
    %4200 = vmatmul.bf16.gmra.mxu0 %v2247
    %v4201 = vpop.f32.mrf.mxu0
    %v4202 = vadd.f32 %v4004, %v4201
    %v4203 = vpop.f32.mrf.mxu0
    %v4204 = vadd.f32 %v4006, %v4203
    %4205 = vmatmul.bf16.gmra.mxu0 %v2251
    %v4206 = vpop.f32.mrf.mxu0
    %v4207 = vadd.f32 %v4009, %v4206
    %v4208 = vpop.f32.mrf.mxu0
    %v4209 = vadd.f32 %v4011, %v4208
    %4210 = vmatmul.bf16.gmra.mxu0 %v2255
    %v4211 = vpop.f32.mrf.mxu0
    %v4212 = vadd.f32 %v4014, %v4211
    %v4213 = vpop.f32.mrf.mxu0
    %v4214 = vadd.f32 %v4016, %v4213
    %4215 = vmatmul.bf16.gmra.mxu0 %v2259
    %v4216 = vpop.f32.mrf.mxu0
    %v4217 = vadd.f32 %v4019, %v4216
    %v4218 = vpop.f32.mrf.mxu0
    %v4219 = vadd.f32 %v4021, %v4218
    %4220 = vmatmul.bf16.gmra.mxu0 %v2263
    %v4221 = vpop.f32.mrf.mxu0
    %v4222 = vadd.f32 %v4024, %v4221
    %v4223 = vpop.f32.mrf.mxu0
    %v4224 = vadd.f32 %v4026, %v4223
    %4225 = vmatmul.bf16.gmra.mxu0 %v2267
    %v4226 = vpop.f32.mrf.mxu0
    %v4227 = vadd.f32 %v4029, %v4226
    %v4228 = vpop.f32.mrf.mxu0
    %v4229 = vadd.f32 %v4031, %v4228
    %4230 = vmatmul.bf16.gmra.mxu0 %v2271
    %v4231 = vpop.f32.mrf.mxu0
    %v4232 = vadd.f32 %v4034, %v4231
    %v4233 = vpop.f32.mrf.mxu0
    %v4234 = vadd.f32 %v4036, %v4233
    %4235 = vmatmul.bf16.gmra.mxu0 %v2275
    %v4236 = vpop.f32.mrf.mxu0
    %v4237 = vadd.f32 %v4039, %v4236
    %v4238 = vpop.f32.mrf.mxu0
    %v4239 = vadd.f32 %v4041, %v4238
    %4240 = vmatmul.bf16.gmra.mxu0 %v2279
    %v4241 = vpop.f32.mrf.mxu0
    %v4242 = vadd.f32 %v4044, %v4241
    %v4243 = vpop.f32.mrf.mxu0
    %v4244 = vadd.f32 %v4046, %v4243
    %4245 = vmatmul.bf16.gmra.mxu0 %v2283
    %v4246 = vpop.f32.mrf.mxu0
    %v4247 = vadd.f32 %v4049, %v4246
    %v4248 = vpop.f32.mrf.mxu0
    %v4249 = vadd.f32 %v4051, %v4248
    %4250 = vmatmul.bf16.gmra.mxu0 %v2287
    %v4251 = vpop.f32.mrf.mxu0
    %v4252 = vadd.f32 %v4054, %v4251
    %v4253 = vpop.f32.mrf.mxu0
    %v4254 = vadd.f32 %v4056, %v4253
    %4255 = vmatmul.bf16.gmra.mxu0 %v2291
    %v4256 = vpop.f32.mrf.mxu0
    %v4257 = vadd.f32 %v4059, %v4256
    %v4258 = vpop.f32.mrf.mxu0
    %v4259 = vadd.f32 %v4061, %v4258
    %4260 = vmatmul.bf16.gmra.mxu0 %v2295
    %v4261 = vpop.f32.mrf.mxu0
    %v4262 = vadd.f32 %v4064, %v4261
    %v4263 = vpop.f32.mrf.mxu0
    %v4264 = vadd.f32 %v4066, %v4263
    %4265 = vmatmul.bf16.gmra.mxu0 %v2299
    %v4266 = vpop.f32.mrf.mxu0
    %v4267 = vadd.f32 %v4069, %v4266
    %v4268 = vpop.f32.mrf.mxu0
    %v4269 = vadd.f32 %v4071, %v4268
    %4270 = vmatmul.bf16.gmra.mxu0 %v2303
    %v4271 = vpop.f32.mrf.mxu0
    %v4272 = vadd.f32 %v4074, %v4271
    %v4273 = vpop.f32.mrf.mxu0
    %v4274 = vadd.f32 %v4076, %v4273
    %4275 = vmatmul.bf16.gmra.mxu0 %v2307
    %v4276 = vpop.f32.mrf.mxu0
    %v4277 = vadd.f32 %v4079, %v4276
    %v4278 = vpop.f32.mrf.mxu0
    %v4279 = vadd.f32 %v4081, %v4278
    %4280 = vmatmul.bf16.gmra.mxu0 %v2311
    %v4281 = vpop.f32.mrf.mxu0
    %v4282 = vadd.f32 %v4084, %v4281
    %v4283 = vpop.f32.mrf.mxu0
    %v4284 = vadd.f32 %v4086, %v4283
    %4285 = vmatmul.bf16.gmra.mxu0 %v2315
    %v4286 = vpop.f32.mrf.mxu0
    %v4287 = vadd.f32 %v4089, %v4286
    %v4288 = vpop.f32.mrf.mxu0
    %4289 = vdwg.mxu0
    %v4290 = vtanh.pop %v3310
    %v4291 = vtanh.pop %v4102
    %v4292 = vtanh.pop %v3312
    %v4293 = vtanh.pop %v4104
    %v4294 = vtanh.pop %v3315
    %v4295 = vtanh.pop %v4107
    %v4296 = vtanh.pop %v3317
    %v4297 = vtanh.pop %v4109
    %v4298 = vtanh.pop %v3320
    %v4299 = vtanh.pop %v4112
    %v4300 = vtanh.pop %v3322
    %v4301 = vtanh.pop %v4114
    %v4302 = vtanh.pop %v3325
    %v4303 = vtanh.pop %v4117
    %v4304 = vtanh.pop %v3327
    %v4305 = vtanh.pop %v4119
    %v4306 = vtanh.pop %v3330
    %v4307 = vtanh.pop %v4122
    %v4308 = vtanh.pop %v3332
    %v4309 = vtanh.pop %v4124
    %v4310 = vtanh.pop %v3335
    %v4311 = vtanh.pop %v4127
    %v4312 = vtanh.pop %v3337
    %v4313 = vtanh.pop %v4129
    %v4314 = vtanh.pop %v3340
    %v4315 = vtanh.pop %v4132
    %v4316 = vtanh.pop %v3342
    %v4317 = vtanh.pop %v4134
    %v4318 = vtanh.pop %v3345
    %v4319 = vtanh.pop %v4137
    %v4320 = vtanh.pop %v3347
    %v4321 = vtanh.pop %v4139
    %v4322 = vtanh.pop %v3350
    %v4323 = vtanh.pop %v4142
    %v4324 = vtanh.pop %v3352
    %v4325 = vtanh.pop %v4144
    %v4326 = vtanh.pop %v3355
    %v4327 = vtanh.pop %v4147
    %v4328 = vtanh.pop %v3357
    %v4329 = vtanh.pop %v4149
    %v4330 = vtanh.pop %v3360
    %v4331 = vtanh.pop %v4152
    %v4332 = vtanh.pop %v3362
    %v4333 = vtanh.pop %v4154
    %v4334 = vtanh.pop %v3365
    %v4335 = vtanh.pop %v4157
    %v4336 = vtanh.pop %v3367
    %v4337 = vtanh.pop %v4159
    %v4338 = vtanh.pop %v3370
    %v4339 = vtanh.pop %v4162
    %v4340 = vtanh.pop %v3372
    %v4341 = vtanh.pop %v4164
    %v4342 = vtanh.pop %v3375
    %v4343 = vtanh.pop %v4167
    %v4344 = vtanh.pop %v3377
    %v4345 = vtanh.pop %v4169
    %v4346 = vtanh.pop %v3380
    %v4347 = vtanh.pop %v4172
    %v4348 = vtanh.pop %v3382
    %v4349 = vtanh.pop %v4174
    %v4350 = vtanh.pop %v3385
    %v4351 = vtanh.pop %v4177
    %v4352 = vtanh.pop %v3387
    %v4353 = vtanh.pop %v4179
    %v4354 = vtanh.pop %v3390
    %v4355 = vtanh.pop %v4182
    %v4356 = vtanh.pop %v3392
    %v4357 = vtanh.pop %v4184
    %v4358 = vtanh.pop %v3395
    %v4359 = vtanh.pop %v4187
    %v4360 = vtanh.pop %v3397
    %v4361 = vtanh.pop %v4189
    %v4362 = vtanh.pop %v3400
    %v4363 = vtanh.pop %v4192
    %v4364 = vtanh.pop %v3402
    %v4365 = vtanh.pop %v4194
    %v4366 = vtanh.pop %v3405
    %v4367 = vtanh.pop %v4197
    %v4368 = vtanh.pop %v3407
    %v4369 = vtanh.pop %v4199
    %v4370 = vtanh.pop %v3410
    %v4371 = vtanh.pop %v4202
    %v4372 = vtanh.pop %v3412
    %v4373 = vtanh.pop %v4204
    %v4374 = vtanh.pop %v3415
    %v4375 = vtanh.pop %v4207
    %v4376 = vtanh.pop %v3417
    %v4377 = vtanh.pop %v4209
    %v4378 = vtanh.pop %v3420
    %v4379 = vtanh.pop %v4212
    %v4380 = vtanh.pop %v3422
    %v4381 = vtanh.pop %v4214
    %v4382 = vtanh.pop %v3425
    %v4383 = vtanh.pop %v4217
    %v4384 = vtanh.pop %v3427
    %v4385 = vtanh.pop %v4219
    %v4386 = vtanh.pop %v3430
    %v4387 = vtanh.pop %v4222
    %v4388 = vtanh.pop %v3432
    %v4389 = vtanh.pop %v4224
    %v4390 = vtanh.pop %v3435
    %v4391 = vtanh.pop %v4227
    %v4392 = vtanh.pop %v3437
    %v4393 = vtanh.pop %v4229
    %v4394 = vtanh.pop %v3440
    %v4395 = vtanh.pop %v4232
    %v4396 = vtanh.pop %v3442
    %v4397 = vtanh.pop %v4234
    %v4398 = vtanh.pop %v3445
    %v4399 = vtanh.pop %v4237
    %v4400 = vtanh.pop %v3447
    %v4401 = vtanh.pop %v4239
    %v4402 = vtanh.pop %v3450
    %v4403 = vtanh.pop %v4242
    %v4404 = vtanh.pop %v3452
    %v4405 = vtanh.pop %v4244
    %v4406 = vtanh.pop %v3455
    %v4407 = vtanh.pop %v4247
    %v4408 = vtanh.pop %v3457
    %v4409 = vtanh.pop %v4249
    %v4410 = vtanh.pop %v3460
    %v4411 = vtanh.pop %v4252
    %v4412 = vtanh.pop %v3462
    %v4413 = vtanh.pop %v4254
    %v4414 = vtanh.pop %v3465
    %v4415 = vtanh.pop %v4257
    %v4416 = vtanh.pop %v3467
    %v4417 = vtanh.pop %v4259
    %v4418 = vtanh.pop %v3470
    %v4419 = vtanh.pop %v4262
    %v4420 = vtanh.pop %v3472
    %v4421 = vtanh.pop %v4264
    %v4422 = vtanh.pop %v3475
    %v4423 = vtanh.pop %v4267
    %v4424 = vtanh.pop %v3477
    %v4425 = vtanh.pop %v4269
    %v4426 = vtanh.pop %v3480
    %v4427 = vtanh.pop %v4272
    %v4428 = vtanh.pop %v3482
    %v4429 = vtanh.pop %v4274
    %v4430 = vtanh.pop %v3485
    %v4431 = vtanh.pop %v4277
    %v4432 = vtanh.pop %v3487
    %v4433 = vtanh.pop %v4279
    %v4434 = vtanh.pop %v3490
    %v4435 = vtanh.pop %v4282
    %v4436 = vtanh.pop %v3492
    %v4437 = vtanh.pop %v4284
    %v4438 = vtanh.pop %v3495
    %v4439 = vtanh.pop %v4287
    %v4440 = vld [vmem:[%s5] sm:$0x3]
    %v4442 = vperm.slane %v4440, 0
    %v4443 = vperm.slane %v4440, 1
    %v4446 = vmul.f32 %v4290, %v4442
    %v4447 = vmul.f32 %v4291, %v4443
    %v4448 = vmul.f32 %v4292, %v4442
    %v4449 = vmul.f32 %v4293, %v4443
    %v4450 = vmul.f32 %v4294, %v4442
    %v4451 = vmul.f32 %v4295, %v4443
    %v4452 = vmul.f32 %v4296, %v4442
    %v4453 = vmul.f32 %v4297, %v4443
    %v4454 = vmul.f32 %v4298, %v4442
    %v4455 = vmul.f32 %v4299, %v4443
    %v4456 = vmul.f32 %v4300, %v4442
    %v4457 = vmul.f32 %v4301, %v4443
    %v4458 = vmul.f32 %v4302, %v4442
    %v4459 = vmul.f32 %v4303, %v4443
    %v4460 = vmul.f32 %v4304, %v4442
    %v4461 = vmul.f32 %v4305, %v4443
    %v4462 = vmul.f32 %v4306, %v4442
    %v4463 = vmul.f32 %v4307, %v4443
    %v4464 = vmul.f32 %v4308, %v4442
    %v4465 = vmul.f32 %v4309, %v4443
    %v4466 = vmul.f32 %v4310, %v4442
    %v4467 = vmul.f32 %v4311, %v4443
    %v4468 = vmul.f32 %v4312, %v4442
    %v4469 = vmul.f32 %v4313, %v4443
    %v4470 = vmul.f32 %v4314, %v4442
    %v4471 = vmul.f32 %v4315, %v4443
    %v4472 = vmul.f32 %v4316, %v4442
    %v4473 = vmul.f32 %v4317, %v4443
    %v4474 = vmul.f32 %v4318, %v4442
    %v4475 = vmul.f32 %v4319, %v4443
    %v4476 = vmul.f32 %v4320, %v4442
    %v4477 = vmul.f32 %v4321, %v4443
    %v4478 = vmul.f32 %v4322, %v4442
    %v4479 = vmul.f32 %v4323, %v4443
    %v4480 = vmul.f32 %v4324, %v4442
    %v4481 = vmul.f32 %v4325, %v4443
    %v4482 = vmul.f32 %v4326, %v4442
    %v4483 = vmul.f32 %v4327, %v4443
    %v4484 = vmul.f32 %v4328, %v4442
    %v4485 = vmul.f32 %v4329, %v4443
    %v4486 = vmul.f32 %v4330, %v4442
    %v4487 = vmul.f32 %v4331, %v4443
    %v4488 = vmul.f32 %v4332, %v4442
    %v4489 = vmul.f32 %v4333, %v4443
    %v4490 = vmul.f32 %v4334, %v4442
    %v4491 = vmul.f32 %v4335, %v4443
    %v4492 = vmul.f32 %v4336, %v4442
    %v4493 = vmul.f32 %v4337, %v4443
    %v4494 = vmul.f32 %v4338, %v4442
    %v4495 = vmul.f32 %v4339, %v4443
    %v4496 = vmul.f32 %v4340, %v4442
    %v4497 = vmul.f32 %v4341, %v4443
    %v4498 = vmul.f32 %v4342, %v4442
    %v4499 = vmul.f32 %v4343, %v4443
    %v4500 = vmul.f32 %v4344, %v4442
    %v4501 = vmul.f32 %v4345, %v4443
    %v4502 = vmul.f32 %v4346, %v4442
    %v4503 = vmul.f32 %v4347, %v4443
    %v4504 = vmul.f32 %v4348, %v4442
    %v4505 = vmul.f32 %v4349, %v4443
    %v4506 = vmul.f32 %v4350, %v4442
    %v4507 = vmul.f32 %v4351, %v4443
    %v4508 = vmul.f32 %v4352, %v4442
    %v4509 = vmul.f32 %v4353, %v4443
    %v4510 = vmul.f32 %v4354, %v4442
    %v4511 = vmul.f32 %v4355, %v4443
    %v4512 = vmul.f32 %v4356, %v4442
    %v4513 = vmul.f32 %v4357, %v4443
    %v4514 = vmul.f32 %v4358, %v4442
    %v4515 = vmul.f32 %v4359, %v4443
    %v4516 = vmul.f32 %v4360, %v4442
    %v4517 = vmul.f32 %v4361, %v4443
    %v4518 = vmul.f32 %v4362, %v4442
    %v4519 = vmul.f32 %v4363, %v4443
    %v4520 = vmul.f32 %v4364, %v4442
    %v4521 = vmul.f32 %v4365, %v4443
    %v4522 = vmul.f32 %v4366, %v4442
    %v4523 = vmul.f32 %v4367, %v4443
    %v4524 = vmul.f32 %v4368, %v4442
    %v4525 = vmul.f32 %v4369, %v4443
    %v4526 = vmul.f32 %v4370, %v4442
    %v4527 = vmul.f32 %v4371, %v4443
    %v4528 = vmul.f32 %v4372, %v4442
    %v4529 = vmul.f32 %v4373, %v4443
    %v4530 = vmul.f32 %v4374, %v4442
    %v4531 = vmul.f32 %v4375, %v4443
    %v4532 = vmul.f32 %v4376, %v4442
    %v4533 = vmul.f32 %v4377, %v4443
    %v4534 = vmul.f32 %v4378, %v4442
    %v4535 = vmul.f32 %v4379, %v4443
    %v4536 = vmul.f32 %v4380, %v4442
    %v4537 = vmul.f32 %v4381, %v4443
    %v4538 = vmul.f32 %v4382, %v4442
    %v4539 = vmul.f32 %v4383, %v4443
    %v4540 = vmul.f32 %v4384, %v4442
    %v4541 = vmul.f32 %v4385, %v4443
    %v4542 = vmul.f32 %v4386, %v4442
    %v4543 = vmul.f32 %v4387, %v4443
    %v4544 = vmul.f32 %v4388, %v4442
    %v4545 = vmul.f32 %v4389, %v4443
    %v4546 = vmul.f32 %v4390, %v4442
    %v4547 = vmul.f32 %v4391, %v4443
    %v4548 = vmul.f32 %v4392, %v4442
    %v4549 = vmul.f32 %v4393, %v4443
    %v4550 = vmul.f32 %v4394, %v4442
    %v4551 = vmul.f32 %v4395, %v4443
    %v4552 = vmul.f32 %v4396, %v4442
    %v4553 = vmul.f32 %v4397, %v4443
    %v4554 = vmul.f32 %v4398, %v4442
    %v4555 = vmul.f32 %v4399, %v4443
    %v4556 = vmul.f32 %v4400, %v4442
    %v4557 = vmul.f32 %v4401, %v4443
    %v4558 = vmul.f32 %v4402, %v4442
    %v4559 = vmul.f32 %v4403, %v4443
    %v4560 = vmul.f32 %v4404, %v4442
    %v4561 = vmul.f32 %v4405, %v4443
    %v4562 = vmul.f32 %v4406, %v4442
    %v4563 = vmul.f32 %v4407, %v4443
    %v4564 = vmul.f32 %v4408, %v4442
    %v4565 = vmul.f32 %v4409, %v4443
    %v4566 = vmul.f32 %v4410, %v4442
    %v4567 = vmul.f32 %v4411, %v4443
    %v4568 = vmul.f32 %v4412, %v4442
    %v4569 = vmul.f32 %v4413, %v4443
    %v4570 = vmul.f32 %v4414, %v4442
    %v4571 = vmul.f32 %v4415, %v4443
    %v4572 = vmul.f32 %v4416, %v4442
    %v4573 = vmul.f32 %v4417, %v4443
    %v4574 = vmul.f32 %v4418, %v4442
    %v4575 = vmul.f32 %v4419, %v4443
    %v4576 = vmul.f32 %v4420, %v4442
    %v4577 = vmul.f32 %v4421, %v4443
    %v4578 = vmul.f32 %v4422, %v4442
    %v4579 = vmul.f32 %v4423, %v4443
    %v4580 = vmul.f32 %v4424, %v4442
    %v4581 = vmul.f32 %v4425, %v4443
    %v4582 = vmul.f32 %v4426, %v4442
    %v4583 = vmul.f32 %v4427, %v4443
    %v4584 = vmul.f32 %v4428, %v4442
    %v4585 = vmul.f32 %v4429, %v4443
    %v4586 = vmul.f32 %v4430, %v4442
    %v4587 = vmul.f32 %v4431, %v4443
    %v4588 = vmul.f32 %v4432, %v4442
    %v4589 = vmul.f32 %v4433, %v4443
    %v4590 = vmul.f32 %v4434, %v4442
    %v4591 = vmul.f32 %v4435, %v4443
    %v4592 = vmul.f32 %v4436, %v4442
    %v4593 = vmul.f32 %v4437, %v4443
    %v4594 = vmul.f32 %v4438, %v4442
    %v4595 = vmul.f32 %v4439, %v4443
    %v4596 = vadd.f32 %v4446, %v4447
    %4597 = vadd.xlane.f32.xlu0 %v4596
    %v4598 = vpop.xlane.xlu0 %4597
    %v4599 = vadd.f32 %v4448, %v4449
    %4600 = vadd.xlane.f32.xlu0 %v4599
    %v4601 = vpop.xlane.xlu0 %4600
    %v4602 = vadd.f32 %v4450, %v4451
    %4603 = vadd.xlane.f32.xlu0 %v4602
    %v4604 = vpop.xlane.xlu0 %4603
    %v4605 = vadd.f32 %v4452, %v4453
    %4606 = vadd.xlane.f32.xlu0 %v4605
    %v4607 = vpop.xlane.xlu0 %4606
    %v4608 = vadd.f32 %v4454, %v4455
    %4609 = vadd.xlane.f32.xlu0 %v4608
    %v4610 = vpop.xlane.xlu0 %4609
    %v4611 = vadd.f32 %v4456, %v4457
    %4612 = vadd.xlane.f32.xlu0 %v4611
    %v4613 = vpop.xlane.xlu0 %4612
    %v4614 = vadd.f32 %v4458, %v4459
    %4615 = vadd.xlane.f32.xlu0 %v4614
    %v4616 = vpop.xlane.xlu0 %4615
    %v4617 = vadd.f32 %v4460, %v4461
    %4618 = vadd.xlane.f32.xlu0 %v4617
    %v4619 = vpop.xlane.xlu0 %4618
    %v4620 = vadd.f32 %v4462, %v4463
    %4621 = vadd.xlane.f32.xlu0 %v4620
    %v4622 = vpop.xlane.xlu0 %4621
    %v4623 = vadd.f32 %v4464, %v4465
    %4624 = vadd.xlane.f32.xlu0 %v4623
    %v4625 = vpop.xlane.xlu0 %4624
    %v4626 = vadd.f32 %v4466, %v4467
    %4627 = vadd.xlane.f32.xlu0 %v4626
    %v4628 = vpop.xlane.xlu0 %4627
    %v4629 = vadd.f32 %v4468, %v4469
    %4630 = vadd.xlane.f32.xlu0 %v4629
    %v4631 = vpop.xlane.xlu0 %4630
    %v4632 = vadd.f32 %v4470, %v4471
    %4633 = vadd.xlane.f32.xlu0 %v4632
    %v4634 = vpop.xlane.xlu0 %4633
    %v4635 = vadd.f32 %v4472, %v4473
    %4636 = vadd.xlane.f32.xlu0 %v4635
    %v4637 = vpop.xlane.xlu0 %4636
    %v4638 = vadd.f32 %v4474, %v4475
    %4639 = vadd.xlane.f32.xlu0 %v4638
    %v4640 = vpop.xlane.xlu0 %4639
    %v4641 = vadd.f32 %v4476, %v4477
    %4642 = vadd.xlane.f32.xlu0 %v4641
    %v4643 = vpop.xlane.xlu0 %4642
    %v4644 = vadd.f32 %v4478, %v4479
    %4645 = vadd.xlane.f32.xlu0 %v4644
    %v4646 = vpop.xlane.xlu0 %4645
    %v4647 = vadd.f32 %v4480, %v4481
    %4648 = vadd.xlane.f32.xlu0 %v4647
    %v4649 = vpop.xlane.xlu0 %4648
    %v4650 = vadd.f32 %v4482, %v4483
    %4651 = vadd.xlane.f32.xlu0 %v4650
    %v4652 = vpop.xlane.xlu0 %4651
    %v4653 = vadd.f32 %v4484, %v4485
    %4654 = vadd.xlane.f32.xlu0 %v4653
    %v4655 = vpop.xlane.xlu0 %4654
    %v4656 = vadd.f32 %v4486, %v4487
    %4657 = vadd.xlane.f32.xlu0 %v4656
    %v4658 = vpop.xlane.xlu0 %4657
    %v4659 = vadd.f32 %v4488, %v4489
    %4660 = vadd.xlane.f32.xlu0 %v4659
    %v4661 = vpop.xlane.xlu0 %4660
    %v4662 = vadd.f32 %v4490, %v4491
    %4663 = vadd.xlane.f32.xlu0 %v4662
    %v4664 = vpop.xlane.xlu0 %4663
    %v4665 = vadd.f32 %v4492, %v4493
    %4666 = vadd.xlane.f32.xlu0 %v4665
    %v4667 = vpop.xlane.xlu0 %4666
    %v4668 = vadd.f32 %v4494, %v4495
    %4669 = vadd.xlane.f32.xlu0 %v4668
    %v4670 = vpop.xlane.xlu0 %4669
    %v4671 = vadd.f32 %v4496, %v4497
    %4672 = vadd.xlane.f32.xlu0 %v4671
    %v4673 = vpop.xlane.xlu0 %4672
    %v4674 = vadd.f32 %v4498, %v4499
    %4675 = vadd.xlane.f32.xlu0 %v4674
    %v4676 = vpop.xlane.xlu0 %4675
    %v4677 = vadd.f32 %v4500, %v4501
    %4678 = vadd.xlane.f32.xlu0 %v4677
    %v4679 = vpop.xlane.xlu0 %4678
    %v4680 = vadd.f32 %v4502, %v4503
    %4681 = vadd.xlane.f32.xlu0 %v4680
    %v4682 = vpop.xlane.xlu0 %4681
    %v4683 = vadd.f32 %v4504, %v4505
    %4684 = vadd.xlane.f32.xlu0 %v4683
    %v4685 = vpop.xlane.xlu0 %4684
    %v4686 = vadd.f32 %v4506, %v4507
    %4687 = vadd.xlane.f32.xlu0 %v4686
    %v4688 = vpop.xlane.xlu0 %4687
    %v4689 = vadd.f32 %v4508, %v4509
    %4690 = vadd.xlane.f32.xlu0 %v4689
    %v4691 = vpop.xlane.xlu0 %4690
    %v4692 = vadd.f32 %v4510, %v4511
    %4693 = vadd.xlane.f32.xlu0 %v4692
    %v4694 = vpop.xlane.xlu0 %4693
    %v4695 = vadd.f32 %v4512, %v4513
    %4696 = vadd.xlane.f32.xlu0 %v4695
    %v4697 = vpop.xlane.xlu0 %4696
    %v4698 = vadd.f32 %v4514, %v4515
    %4699 = vadd.xlane.f32.xlu0 %v4698
    %v4700 = vpop.xlane.xlu0 %4699
    %v4701 = vadd.f32 %v4516, %v4517
    %4702 = vadd.xlane.f32.xlu0 %v4701
    %v4703 = vpop.xlane.xlu0 %4702
    %v4704 = vadd.f32 %v4518, %v4519
    %4705 = vadd.xlane.f32.xlu0 %v4704
    %v4706 = vpop.xlane.xlu0 %4705
    %v4707 = vadd.f32 %v4520, %v4521
    %4708 = vadd.xlane.f32.xlu0 %v4707
    %v4709 = vpop.xlane.xlu0 %4708
    %v4710 = vadd.f32 %v4522, %v4523
    %4711 = vadd.xlane.f32.xlu0 %v4710
    %v4712 = vpop.xlane.xlu0 %4711
    %v4713 = vadd.f32 %v4524, %v4525
    %4714 = vadd.xlane.f32.xlu0 %v4713
    %v4715 = vpop.xlane.xlu0 %4714
    %v4716 = vadd.f32 %v4526, %v4527
    %4717 = vadd.xlane.f32.xlu0 %v4716
    %v4718 = vpop.xlane.xlu0 %4717
    %v4719 = vadd.f32 %v4528, %v4529
    %4720 = vadd.xlane.f32.xlu0 %v4719
    %v4721 = vpop.xlane.xlu0 %4720
    %v4722 = vadd.f32 %v4530, %v4531
    %4723 = vadd.xlane.f32.xlu0 %v4722
    %v4724 = vpop.xlane.xlu0 %4723
    %v4725 = vadd.f32 %v4532, %v4533
    %4726 = vadd.xlane.f32.xlu0 %v4725
    %v4727 = vpop.xlane.xlu0 %4726
    %v4728 = vadd.f32 %v4534, %v4535
    %4729 = vadd.xlane.f32.xlu0 %v4728
    %v4730 = vpop.xlane.xlu0 %4729
    %v4731 = vadd.f32 %v4536, %v4537
    %4732 = vadd.xlane.f32.xlu0 %v4731
    %v4733 = vpop.xlane.xlu0 %4732
    %v4734 = vadd.f32 %v4538, %v4539
    %4735 = vadd.xlane.f32.xlu0 %v4734
    %v4736 = vpop.xlane.xlu0 %4735
    %v4737 = vadd.f32 %v4540, %v4541
    %4738 = vadd.xlane.f32.xlu0 %v4737
    %v4739 = vpop.xlane.xlu0 %4738
    %v4740 = vadd.f32 %v4542, %v4543
    %4741 = vadd.xlane.f32.xlu0 %v4740
    %v4742 = vpop.xlane.xlu0 %4741
    %v4743 = vadd.f32 %v4544, %v4545
    %4744 = vadd.xlane.f32.xlu0 %v4743
    %v4745 = vpop.xlane.xlu0 %4744
    %v4746 = vadd.f32 %v4546, %v4547
    %4747 = vadd.xlane.f32.xlu0 %v4746
    %v4748 = vpop.xlane.xlu0 %4747
    %v4749 = vadd.f32 %v4548, %v4549
    %4750 = vadd.xlane.f32.xlu0 %v4749
    %v4751 = vpop.xlane.xlu0 %4750
    %v4752 = vadd.f32 %v4550, %v4551
    %4753 = vadd.xlane.f32.xlu0 %v4752
    %v4754 = vpop.xlane.xlu0 %4753
    %v4755 = vadd.f32 %v4552, %v4553
    %4756 = vadd.xlane.f32.xlu0 %v4755
    %v4757 = vpop.xlane.xlu0 %4756
    %v4758 = vadd.f32 %v4554, %v4555
    %4759 = vadd.xlane.f32.xlu0 %v4758
    %v4760 = vpop.xlane.xlu0 %4759
    %v4761 = vadd.f32 %v4556, %v4557
    %4762 = vadd.xlane.f32.xlu0 %v4761
    %v4763 = vpop.xlane.xlu0 %4762
    %v4764 = vadd.f32 %v4558, %v4559
    %4765 = vadd.xlane.f32.xlu0 %v4764
    %v4766 = vpop.xlane.xlu0 %4765
    %v4767 = vadd.f32 %v4560, %v4561
    %4768 = vadd.xlane.f32.xlu0 %v4767
    %v4769 = vpop.xlane.xlu0 %4768
    %v4770 = vadd.f32 %v4562, %v4563
    %4771 = vadd.xlane.f32.xlu0 %v4770
    %v4772 = vpop.xlane.xlu0 %4771
    %v4773 = vadd.f32 %v4564, %v4565
    %4774 = vadd.xlane.f32.xlu0 %v4773
    %v4775 = vpop.xlane.xlu0 %4774
    %v4776 = vadd.f32 %v4566, %v4567
    %4777 = vadd.xlane.f32.xlu0 %v4776
    %v4778 = vpop.xlane.xlu0 %4777
    %v4779 = vadd.f32 %v4568, %v4569
    %4780 = vadd.xlane.f32.xlu0 %v4779
    %v4781 = vpop.xlane.xlu0 %4780
    %v4782 = vadd.f32 %v4570, %v4571
    %4783 = vadd.xlane.f32.xlu0 %v4782
    %v4784 = vpop.xlane.xlu0 %4783
    %v4785 = vadd.f32 %v4572, %v4573
    %4786 = vadd.xlane.f32.xlu0 %v4785
    %v4787 = vpop.xlane.xlu0 %4786
    %v4788 = vadd.f32 %v4574, %v4575
    %4789 = vadd.xlane.f32.xlu0 %v4788
    %v4790 = vpop.xlane.xlu0 %4789
    %v4791 = vadd.f32 %v4576, %v4577
    %4792 = vadd.xlane.f32.xlu0 %v4791
    %v4793 = vpop.xlane.xlu0 %4792
    %v4794 = vadd.f32 %v4578, %v4579
    %4795 = vadd.xlane.f32.xlu0 %v4794
    %v4796 = vpop.xlane.xlu0 %4795
    %v4797 = vadd.f32 %v4580, %v4581
    %4798 = vadd.xlane.f32.xlu0 %v4797
    %v4799 = vpop.xlane.xlu0 %4798
    %v4800 = vadd.f32 %v4582, %v4583
    %4801 = vadd.xlane.f32.xlu0 %v4800
    %v4802 = vpop.xlane.xlu0 %4801
    %v4803 = vadd.f32 %v4584, %v4585
    %4804 = vadd.xlane.f32.xlu0 %v4803
    %v4805 = vpop.xlane.xlu0 %4804
    %v4806 = vadd.f32 %v4586, %v4587
    %4807 = vadd.xlane.f32.xlu0 %v4806
    %v4808 = vpop.xlane.xlu0 %4807
    %v4809 = vadd.f32 %v4588, %v4589
    %4810 = vadd.xlane.f32.xlu0 %v4809
    %v4811 = vpop.xlane.xlu0 %4810
    %v4812 = vadd.f32 %v4590, %v4591
    %4813 = vadd.xlane.f32.xlu0 %v4812
    %v4814 = vpop.xlane.xlu0 %4813
    %v4815 = vadd.f32 %v4592, %v4593
    %4816 = vadd.xlane.f32.xlu0 %v4815
    %v4817 = vpop.xlane.xlu0 %4816
    %v4818 = vadd.f32 %v4594, %v4595
    %4819 = vadd.xlane.f32.xlu0 %v4818
    %v4820 = vpop.xlane.xlu0 %4819
    %v4821 = vld [vmem:[#allocation5] sm:$0x1]
    %v4823 = vperm.slane %v4821, 0
    %v4825 = vadd.f32 %v4598, %v4823
    %v4826 = vadd.f32 %v4601, %v4823
    %v4827 = vadd.f32 %v4604, %v4823
    %v4828 = vadd.f32 %v4607, %v4823
    %v4829 = vadd.f32 %v4610, %v4823
    %v4830 = vadd.f32 %v4613, %v4823
    %v4831 = vadd.f32 %v4616, %v4823
    %v4832 = vadd.f32 %v4619, %v4823
    %v4833 = vadd.f32 %v4622, %v4823
    %v4834 = vadd.f32 %v4625, %v4823
    %v4835 = vadd.f32 %v4628, %v4823
    %v4836 = vadd.f32 %v4631, %v4823
    %v4837 = vadd.f32 %v4634, %v4823
    %v4838 = vadd.f32 %v4637, %v4823
    %v4839 = vadd.f32 %v4640, %v4823
    %v4840 = vadd.f32 %v4643, %v4823
    %v4841 = vadd.f32 %v4646, %v4823
    %v4842 = vadd.f32 %v4649, %v4823
    %v4843 = vadd.f32 %v4652, %v4823
    %v4844 = vadd.f32 %v4655, %v4823
    %v4845 = vadd.f32 %v4658, %v4823
    %v4846 = vadd.f32 %v4661, %v4823
    %v4847 = vadd.f32 %v4664, %v4823
    %v4848 = vadd.f32 %v4667, %v4823
    %v4849 = vadd.f32 %v4670, %v4823
    %v4850 = vadd.f32 %v4673, %v4823
    %v4851 = vadd.f32 %v4676, %v4823
    %v4852 = vadd.f32 %v4679, %v4823
    %v4853 = vadd.f32 %v4682, %v4823
    %v4854 = vadd.f32 %v4685, %v4823
    %v4855 = vadd.f32 %v4688, %v4823
    %v4856 = vadd.f32 %v4691, %v4823
    %v4857 = vadd.f32 %v4694, %v4823
    %v4858 = vadd.f32 %v4697, %v4823
    %v4859 = vadd.f32 %v4700, %v4823
    %v4860 = vadd.f32 %v4703, %v4823
    %v4861 = vadd.f32 %v4706, %v4823
    %v4862 = vadd.f32 %v4709, %v4823
    %v4863 = vadd.f32 %v4712, %v4823
    %v4864 = vadd.f32 %v4715, %v4823
    %v4865 = vadd.f32 %v4718, %v4823
    %v4866 = vadd.f32 %v4721, %v4823
    %v4867 = vadd.f32 %v4724, %v4823
    %v4868 = vadd.f32 %v4727, %v4823
    %v4869 = vadd.f32 %v4730, %v4823
    %v4870 = vadd.f32 %v4733, %v4823
    %v4871 = vadd.f32 %v4736, %v4823
    %v4872 = vadd.f32 %v4739, %v4823
    %v4873 = vadd.f32 %v4742, %v4823
    %v4874 = vadd.f32 %v4745, %v4823
    %v4875 = vadd.f32 %v4748, %v4823
    %v4876 = vadd.f32 %v4751, %v4823
    %v4877 = vadd.f32 %v4754, %v4823
    %v4878 = vadd.f32 %v4757, %v4823
    %v4879 = vadd.f32 %v4760, %v4823
    %v4880 = vadd.f32 %v4763, %v4823
    %v4881 = vadd.f32 %v4766, %v4823
    %v4882 = vadd.f32 %v4769, %v4823
    %v4883 = vadd.f32 %v4772, %v4823
    %v4884 = vadd.f32 %v4775, %v4823
    %v4885 = vadd.f32 %v4778, %v4823
    %v4886 = vadd.f32 %v4781, %v4823
    %v4887 = vadd.f32 %v4784, %v4823
    %v4888 = vadd.f32 %v4787, %v4823
    %v4889 = vadd.f32 %v4790, %v4823
    %v4890 = vadd.f32 %v4793, %v4823
    %v4891 = vadd.f32 %v4796, %v4823
    %v4892 = vadd.f32 %v4799, %v4823
    %v4893 = vadd.f32 %v4802, %v4823
    %v4894 = vadd.f32 %v4805, %v4823
    %v4895 = vadd.f32 %v4808, %v4823
    %v4896 = vadd.f32 %v4811, %v4823
    %v4897 = vadd.f32 %v4814, %v4823
    %v4898 = vadd.f32 %v4817, %v4823
    %v4899 = vadd.f32 %v4820, %v4823
    %v4900 = vsel %vm1639, %v4825, -inf
    %v4901 = vsel %vm1640, %v4826, -inf
    %v4902 = vsel %vm1641, %v4827, -inf
    %v4903 = vsel %vm1642, %v4828, -inf
    %v4904 = vsel %vm1643, %v4829, -inf
    %v4905 = vsel %vm1644, %v4830, -inf
    %v4906 = vsel %vm1645, %v4831, -inf
    %v4907 = vsel %vm1646, %v4832, -inf
    %v4908 = vsel %vm1647, %v4833, -inf
    %v4909 = vsel %vm1648, %v4834, -inf
    %v4910 = vsel %vm1649, %v4835, -inf
    %v4911 = vsel %vm1650, %v4836, -inf
    %v4912 = vsel %vm1651, %v4837, -inf
    %v4913 = vsel %vm1652, %v4838, -inf
    %v4914 = vsel %vm1653, %v4839, -inf
    %v4915 = vsel %vm1654, %v4840, -inf
    %v4916 = vsel %vm1655, %v4841, -inf
    %v4917 = vsel %vm1656, %v4842, -inf
    %v4918 = vsel %vm1657, %v4843, -inf
    %v4919 = vsel %vm1658, %v4844, -inf
    %v4920 = vsel %vm1659, %v4845, -inf
    %v4921 = vsel %vm1660, %v4846, -inf
    %v4922 = vsel %vm1661, %v4847, -inf
    %v4923 = vsel %vm1662, %v4848, -inf
    %v4924 = vsel %vm1663, %v4849, -inf
    %v4925 = vsel %vm1664, %v4850, -inf
    %v4926 = vsel %vm1665, %v4851, -inf
    %v4927 = vsel %vm1666, %v4852, -inf
    %v4928 = vsel %vm1667, %v4853, -inf
    %v4929 = vsel %vm1668, %v4854, -inf
    %v4930 = vsel %vm1669, %v4855, -inf
    %v4931 = vsel %vm1670, %v4856, -inf
    %v4932 = vsel %vm1671, %v4857, -inf
    %v4933 = vsel %vm1672, %v4858, -inf
    %v4934 = vsel %vm1673, %v4859, -inf
    %v4935 = vsel %vm1674, %v4860, -inf
    %v4936 = vsel %vm1675, %v4861, -inf
    %v4937 = vsel %vm1676, %v4862, -inf
    %v4938 = vsel %vm1677, %v4863, -inf
    %v4939 = vsel %vm1678, %v4864, -inf
    %v4940 = vsel %vm1679, %v4865, -inf
    %v4941 = vsel %vm1680, %v4866, -inf
    %v4942 = vsel %vm1681, %v4867, -inf
    %v4943 = vsel %vm1682, %v4868, -inf
    %v4944 = vsel %vm1683, %v4869, -inf
    %v4945 = vsel %vm1684, %v4870, -inf
    %v4946 = vsel %vm1685, %v4871, -inf
    %v4947 = vsel %vm1686, %v4872, -inf
    %v4948 = vsel %vm1687, %v4873, -inf
    %v4949 = vsel %vm1688, %v4874, -inf
    %v4950 = vsel %vm1689, %v4875, -inf
    %v4951 = vsel %vm1690, %v4876, -inf
    %v4952 = vsel %vm1691, %v4877, -inf
    %v4953 = vsel %vm1692, %v4878, -inf
    %v4954 = vsel %vm1693, %v4879, -inf
    %v4955 = vsel %vm1694, %v4880, -inf
    %v4956 = vsel %vm1695, %v4881, -inf
    %v4957 = vsel %vm1696, %v4882, -inf
    %v4958 = vsel %vm1697, %v4883, -inf
    %v4959 = vsel %vm1698, %v4884, -inf
    %v4960 = vsel %vm1699, %v4885, -inf
    %v4961 = vsel %vm1700, %v4886, -inf
    %v4962 = vsel %vm1701, %v4887, -inf
    %v4963 = vsel %vm1702, %v4888, -inf
    %v4964 = vsel %vm1703, %v4889, -inf
    %v4965 = vsel %vm1704, %v4890, -inf
    %v4966 = vsel %vm1705, %v4891, -inf
    %v4967 = vsel %vm1706, %v4892, -inf
    %v4968 = vsel %vm1707, %v4893, -inf
    %v4969 = vsel %vm1708, %v4894, -inf
    %v4970 = vsel %vm1709, %v4895, -inf
    %v4971 = vsel %vm1710, %v4896, -inf
    %v4972 = vsel %vm1711, %v4897, -inf
    %v4973 = vsel %vm1712, %v4898, -inf
    %v4974 = vsel %vm1713, %v4899, -inf
    %v4975 = vld [vmem:[#allocation2] sm:$0x1]
    %vm4976 = vcmask 7168
    %v4977 = vsel %vm4976, %v4900, -inf
    %v4978 = vsel %vm4976, %v4901, -inf
    %v4979 = vsel %vm4976, %v4902, -inf
    %v4980 = vsel %vm4976, %v4903, -inf
    %v4981 = vsel %vm4976, %v4904, -inf
    %v4982 = vmax.f32 %v4977, %v4981
    %v4983 = vsel %vm4976, %v4905, -inf
    %v4984 = vmax.f32 %v4978, %v4983
    %v4985 = vsel %vm4976, %v4906, -inf
    %v4986 = vmax.f32 %v4979, %v4985
    %v4987 = vsel %vm4976, %v4907, -inf
    %v4988 = vmax.f32 %v4980, %v4987
    %v4989 = vsel %vm4976, %v4908, -inf
    %v4990 = vmax.f32 %v4982, %v4989
    %v4991 = vsel %vm4976, %v4909, -inf
    %v4992 = vmax.f32 %v4984, %v4991
    %v4993 = vsel %vm4976, %v4910, -inf
    %v4994 = vmax.f32 %v4986, %v4993
    %v4995 = vsel %vm4976, %v4911, -inf
    %v4996 = vmax.f32 %v4988, %v4995
    %v4997 = vsel %vm4976, %v4912, -inf
    %v4998 = vmax.f32 %v4990, %v4997
    %v4999 = vsel %vm4976, %v4913, -inf
    %v5000 = vmax.f32 %v4992, %v4999
    %v5001 = vsel %vm4976, %v4914, -inf
    %v5002 = vmax.f32 %v4994, %v5001
    %v5003 = vsel %vm4976, %v4915, -inf
    %v5004 = vmax.f32 %v4996, %v5003
    %v5005 = vsel %vm4976, %v4916, -inf
    %v5006 = vmax.f32 %v4998, %v5005
    %v5007 = vsel %vm4976, %v4917, -inf
    %v5008 = vmax.f32 %v5000, %v5007
    %v5009 = vsel %vm4976, %v4918, -inf
    %v5010 = vmax.f32 %v5002, %v5009
    %v5011 = vsel %vm4976, %v4919, -inf
    %v5012 = vmax.f32 %v5004, %v5011
    %v5013 = vsel %vm4976, %v4920, -inf
    %v5014 = vmax.f32 %v5006, %v5013
    %v5015 = vsel %vm4976, %v4921, -inf
    %v5016 = vmax.f32 %v5008, %v5015
    %v5017 = vsel %vm4976, %v4922, -inf
    %v5018 = vmax.f32 %v5010, %v5017
    %v5019 = vsel %vm4976, %v4923, -inf
    %v5020 = vmax.f32 %v5012, %v5019
    %v5021 = vsel %vm4976, %v4924, -inf
    %v5022 = vmax.f32 %v5014, %v5021
    %v5023 = vsel %vm4976, %v4925, -inf
    %v5024 = vmax.f32 %v5016, %v5023
    %v5025 = vsel %vm4976, %v4926, -inf
    %v5026 = vmax.f32 %v5018, %v5025
    %v5027 = vsel %vm4976, %v4927, -inf
    %v5028 = vmax.f32 %v5020, %v5027
    %v5029 = vsel %vm4976, %v4928, -inf
    %v5030 = vmax.f32 %v5022, %v5029
    %v5031 = vsel %vm4976, %v4929, -inf
    %v5032 = vmax.f32 %v5024, %v5031
    %v5033 = vsel %vm4976, %v4930, -inf
    %v5034 = vmax.f32 %v5026, %v5033
    %v5035 = vsel %vm4976, %v4931, -inf
    %v5036 = vmax.f32 %v5028, %v5035
    %v5037 = vsel %vm4976, %v4932, -inf
    %v5038 = vmax.f32 %v5030, %v5037
    %v5039 = vsel %vm4976, %v4933, -inf
    %v5040 = vmax.f32 %v5032, %v5039
    %v5041 = vsel %vm4976, %v4934, -inf
    %v5042 = vmax.f32 %v5034, %v5041
    %v5043 = vsel %vm4976, %v4935, -inf
    %v5044 = vmax.f32 %v5036, %v5043
    %v5045 = vsel %vm4976, %v4936, -inf
    %v5046 = vmax.f32 %v5038, %v5045
    %v5047 = vsel %vm4976, %v4937, -inf
    %v5048 = vmax.f32 %v5040, %v5047
    %v5049 = vsel %vm4976, %v4938, -inf
    %v5050 = vmax.f32 %v5042, %v5049
    %v5051 = vsel %vm4976, %v4939, -inf
    %v5052 = vmax.f32 %v5044, %v5051
    %v5053 = vsel %vm4976, %v4940, -inf
    %v5054 = vmax.f32 %v5046, %v5053
    %v5055 = vsel %vm4976, %v4941, -inf
    %v5056 = vmax.f32 %v5048, %v5055
    %v5057 = vsel %vm4976, %v4942, -inf
    %v5058 = vmax.f32 %v5050, %v5057
    %v5059 = vsel %vm4976, %v4943, -inf
    %v5060 = vmax.f32 %v5052, %v5059
    %v5061 = vsel %vm4976, %v4944, -inf
    %v5062 = vmax.f32 %v5054, %v5061
    %v5063 = vsel %vm4976, %v4945, -inf
    %v5064 = vmax.f32 %v5056, %v5063
    %v5065 = vsel %vm4976, %v4946, -inf
    %v5066 = vmax.f32 %v5058, %v5065
    %v5067 = vsel %vm4976, %v4947, -inf
    %v5068 = vmax.f32 %v5060, %v5067
    %v5069 = vsel %vm4976, %v4948, -inf
    %v5070 = vmax.f32 %v5062, %v5069
    %v5071 = vsel %vm4976, %v4949, -inf
    %v5072 = vmax.f32 %v5064, %v5071
    %v5073 = vsel %vm4976, %v4950, -inf
    %v5074 = vmax.f32 %v5066, %v5073
    %v5075 = vsel %vm4976, %v4951, -inf
    %v5076 = vmax.f32 %v5068, %v5075
    %v5077 = vsel %vm4976, %v4952, -inf
    %v5078 = vmax.f32 %v5070, %v5077
    %v5079 = vsel %vm4976, %v4953, -inf
    %v5080 = vmax.f32 %v5072, %v5079
    %v5081 = vsel %vm4976, %v4954, -inf
    %v5082 = vmax.f32 %v5074, %v5081
    %v5083 = vsel %vm4976, %v4955, -inf
    %v5084 = vmax.f32 %v5076, %v5083
    %v5085 = vsel %vm4976, %v4956, -inf
    %v5086 = vmax.f32 %v5078, %v5085
    %v5087 = vsel %vm4976, %v4957, -inf
    %v5088 = vmax.f32 %v5080, %v5087
    %v5089 = vsel %vm4976, %v4958, -inf
    %v5090 = vmax.f32 %v5082, %v5089
    %v5091 = vsel %vm4976, %v4959, -inf
    %v5092 = vmax.f32 %v5084, %v5091
    %v5093 = vsel %vm4976, %v4960, -inf
    %v5094 = vmax.f32 %v5086, %v5093
    %v5095 = vsel %vm4976, %v4961, -inf
    %v5096 = vmax.f32 %v5088, %v5095
    %v5097 = vsel %vm4976, %v4962, -inf
    %v5098 = vmax.f32 %v5090, %v5097
    %v5099 = vsel %vm4976, %v4963, -inf
    %v5100 = vmax.f32 %v5092, %v5099
    %v5101 = vsel %vm4976, %v4964, -inf
    %v5102 = vmax.f32 %v5094, %v5101
    %v5103 = vsel %vm4976, %v4965, -inf
    %v5104 = vmax.f32 %v5096, %v5103
    %v5105 = vsel %vm4976, %v4966, -inf
    %v5106 = vmax.f32 %v5098, %v5105
    %v5107 = vsel %vm4976, %v4967, -inf
    %v5108 = vmax.f32 %v5100, %v5107
    %v5109 = vsel %vm4976, %v4968, -inf
    %v5110 = vmax.f32 %v5102, %v5109
    %v5111 = vsel %vm4976, %v4969, -inf
    %v5112 = vmax.f32 %v5104, %v5111
    %v5113 = vsel %vm4976, %v4970, -inf
    %v5114 = vmax.f32 %v5106, %v5113
    %v5115 = vsel %vm4976, %v4971, -inf
    %v5116 = vmax.f32 %v5108, %v5115
    %v5117 = vsel %vm4976, %v4972, -inf
    %v5118 = vmax.f32 %v5110, %v5117
    %v5119 = vsel %vm4976, %v4973, -inf
    %v5120 = vmax.f32 %v5112, %v5119
    %v5121 = vsel %vm4976, %v4974, -inf
    %v5122 = vmax.f32 %v5114, %v5121
    %v5123 = vmax.f32 %v5118, %v5120
    %v5124 = vmax.f32 %v5122, %v5116
    %v5125 = vmax.f32 %v5123, %v5124
    %v5126 = vrot.slane %v5125, 4
    %v5127 = vmax.f32 %v5125, %v5126
    %v5128 = vrot.slane %v5127, 2
    %v5129 = vmax.f32 %v5127, %v5128
    %v5130 = vrot.slane %v5129, 1
    %v5131 = vmax.f32 %v5129, %v5130
    %v5132 = vmax.f32 %v4975, %v5131
    %v5133 = vsub.f32 %v4975, %v5132
    %v5134 = vmul.f32 %v5133, 1.442695
    %v5135 = vpow.pop %v5134
    %v5137 = vperm.slane %v5132, 0
    %v5139 = vsub.f32 %v4900, %v5137
    %v5140 = vsub.f32 %v4901, %v5137
    %v5141 = vsub.f32 %v4902, %v5137
    %v5142 = vsub.f32 %v4903, %v5137
    %v5143 = vsub.f32 %v4904, %v5137
    %v5144 = vsub.f32 %v4905, %v5137
    %v5145 = vsub.f32 %v4906, %v5137
    %v5146 = vsub.f32 %v4907, %v5137
    %v5147 = vsub.f32 %v4908, %v5137
    %v5148 = vsub.f32 %v4909, %v5137
    %v5149 = vsub.f32 %v4910, %v5137
    %v5150 = vsub.f32 %v4911, %v5137
    %v5151 = vsub.f32 %v4912, %v5137
    %v5152 = vsub.f32 %v4913, %v5137
    %v5153 = vsub.f32 %v4914, %v5137
    %v5154 = vsub.f32 %v4915, %v5137
    %v5155 = vsub.f32 %v4916, %v5137
    %v5156 = vsub.f32 %v4917, %v5137
    %v5157 = vsub.f32 %v4918, %v5137
    %v5158 = vsub.f32 %v4919, %v5137
    %v5159 = vsub.f32 %v4920, %v5137
    %v5160 = vsub.f32 %v4921, %v5137
    %v5161 = vsub.f32 %v4922, %v5137
    %v5162 = vsub.f32 %v4923, %v5137
    %v5163 = vsub.f32 %v4924, %v5137
    %v5164 = vsub.f32 %v4925, %v5137
    %v5165 = vsub.f32 %v4926, %v5137
    %v5166 = vsub.f32 %v4927, %v5137
    %v5167 = vsub.f32 %v4928, %v5137
    %v5168 = vsub.f32 %v4929, %v5137
    %v5169 = vsub.f32 %v4930, %v5137
    %v5170 = vsub.f32 %v4931, %v5137
    %v5171 = vsub.f32 %v4932, %v5137
    %v5172 = vsub.f32 %v4933, %v5137
    %v5173 = vsub.f32 %v4934, %v5137
    %v5174 = vsub.f32 %v4935, %v5137
    %v5175 = vsub.f32 %v4936, %v5137
    %v5176 = vsub.f32 %v4937, %v5137
    %v5177 = vsub.f32 %v4938, %v5137
    %v5178 = vsub.f32 %v4939, %v5137
    %v5179 = vsub.f32 %v4940, %v5137
    %v5180 = vsub.f32 %v4941, %v5137
    %v5181 = vsub.f32 %v4942, %v5137
    %v5182 = vsub.f32 %v4943, %v5137
    %v5183 = vsub.f32 %v4944, %v5137
    %v5184 = vsub.f32 %v4945, %v5137
    %v5185 = vsub.f32 %v4946, %v5137
    %v5186 = vsub.f32 %v4947, %v5137
    %v5187 = vsub.f32 %v4948, %v5137
    %v5188 = vsub.f32 %v4949, %v5137
    %v5189 = vsub.f32 %v4950, %v5137
    %v5190 = vsub.f32 %v4951, %v5137
    %v5191 = vsub.f32 %v4952, %v5137
    %v5192 = vsub.f32 %v4953, %v5137
    %v5193 = vsub.f32 %v4954, %v5137
    %v5194 = vsub.f32 %v4955, %v5137
    %v5195 = vsub.f32 %v4956, %v5137
    %v5196 = vsub.f32 %v4957, %v5137
    %v5197 = vsub.f32 %v4958, %v5137
    %v5198 = vsub.f32 %v4959, %v5137
    %v5199 = vsub.f32 %v4960, %v5137
    %v5200 = vsub.f32 %v4961, %v5137
    %v5201 = vsub.f32 %v4962, %v5137
    %v5202 = vsub.f32 %v4963, %v5137
    %v5203 = vsub.f32 %v4964, %v5137
    %v5204 = vsub.f32 %v4965, %v5137
    %v5205 = vsub.f32 %v4966, %v5137
    %v5206 = vsub.f32 %v4967, %v5137
    %v5207 = vsub.f32 %v4968, %v5137
    %v5208 = vsub.f32 %v4969, %v5137
    %v5209 = vsub.f32 %v4970, %v5137
    %v5210 = vsub.f32 %v4971, %v5137
    %v5211 = vsub.f32 %v4972, %v5137
    %v5212 = vsub.f32 %v4973, %v5137
    %v5213 = vsub.f32 %v4974, %v5137
    %v5214 = vmul.f32 %v5139, 1.442695
    %v5215 = vpow.pop %v5214
    %v5216 = vmul.f32 %v5140, 1.442695
    %v5217 = vpow.pop %v5216
    %v5218 = vmul.f32 %v5141, 1.442695
    %v5219 = vpow.pop %v5218
    %v5220 = vmul.f32 %v5142, 1.442695
    %v5221 = vpow.pop %v5220
    %v5222 = vmul.f32 %v5143, 1.442695
    %v5223 = vpow.pop %v5222
    %v5224 = vmul.f32 %v5144, 1.442695
    %v5225 = vpow.pop %v5224
    %v5226 = vmul.f32 %v5145, 1.442695
    %v5227 = vpow.pop %v5226
    %v5228 = vmul.f32 %v5146, 1.442695
    %v5229 = vpow.pop %v5228
    %v5230 = vmul.f32 %v5147, 1.442695
    %v5231 = vpow.pop %v5230
    %v5232 = vmul.f32 %v5148, 1.442695
    %v5233 = vpow.pop %v5232
    %v5234 = vmul.f32 %v5149, 1.442695
    %v5235 = vpow.pop %v5234
    %v5236 = vmul.f32 %v5150, 1.442695
    %v5237 = vpow.pop %v5236
    %v5238 = vmul.f32 %v5151, 1.442695
    %v5239 = vpow.pop %v5238
    %v5240 = vmul.f32 %v5152, 1.442695
    %v5241 = vpow.pop %v5240
    %v5242 = vmul.f32 %v5153, 1.442695
    %v5243 = vpow.pop %v5242
    %v5244 = vmul.f32 %v5154, 1.442695
    %v5245 = vpow.pop %v5244
    %v5246 = vmul.f32 %v5155, 1.442695
    %v5247 = vpow.pop %v5246
    %v5248 = vmul.f32 %v5156, 1.442695
    %v5249 = vpow.pop %v5248
    %v5250 = vmul.f32 %v5157, 1.442695
    %v5251 = vpow.pop %v5250
    %v5252 = vmul.f32 %v5158, 1.442695
    %v5253 = vpow.pop %v5252
    %v5254 = vmul.f32 %v5159, 1.442695
    %v5255 = vpow.pop %v5254
    %v5256 = vmul.f32 %v5160, 1.442695
    %v5257 = vpow.pop %v5256
    %v5258 = vmul.f32 %v5161, 1.442695
    %v5259 = vpow.pop %v5258
    %v5260 = vmul.f32 %v5162, 1.442695
    %v5261 = vpow.pop %v5260
    %v5262 = vmul.f32 %v5163, 1.442695
    %v5263 = vpow.pop %v5262
    %v5264 = vmul.f32 %v5164, 1.442695
    %v5265 = vpow.pop %v5264
    %v5266 = vmul.f32 %v5165, 1.442695
    %v5267 = vpow.pop %v5266
    %v5268 = vmul.f32 %v5166, 1.442695
    %v5269 = vpow.pop %v5268
    %v5270 = vmul.f32 %v5167, 1.442695
    %v5271 = vpow.pop %v5270
    %v5272 = vmul.f32 %v5168, 1.442695
    %v5273 = vpow.pop %v5272
    %v5274 = vmul.f32 %v5169, 1.442695
    %v5275 = vpow.pop %v5274
    %v5276 = vmul.f32 %v5170, 1.442695
    %v5277 = vpow.pop %v5276
    %v5278 = vmul.f32 %v5171, 1.442695
    %v5279 = vpow.pop %v5278
    %v5280 = vmul.f32 %v5172, 1.442695
    %v5281 = vpow.pop %v5280
    %v5282 = vmul.f32 %v5173, 1.442695
    %v5283 = vpow.pop %v5282
    %v5284 = vmul.f32 %v5174, 1.442695
    %v5285 = vpow.pop %v5284
    %v5286 = vmul.f32 %v5175, 1.442695
    %v5287 = vpow.pop %v5286
    %v5288 = vmul.f32 %v5176, 1.442695
    %v5289 = vpow.pop %v5288
    %v5290 = vmul.f32 %v5177, 1.442695
    %v5291 = vpow.pop %v5290
    %v5292 = vmul.f32 %v5178, 1.442695
    %v5293 = vpow.pop %v5292
    %v5294 = vmul.f32 %v5179, 1.442695
    %v5295 = vpow.pop %v5294
    %v5296 = vmul.f32 %v5180, 1.442695
    %v5297 = vpow.pop %v5296
    %v5298 = vmul.f32 %v5181, 1.442695
    %v5299 = vpow.pop %v5298
    %v5300 = vmul.f32 %v5182, 1.442695
    %v5301 = vpow.pop %v5300
    %v5302 = vmul.f32 %v5183, 1.442695
    %v5303 = vpow.pop %v5302
    %v5304 = vmul.f32 %v5184, 1.442695
    %v5305 = vpow.pop %v5304
    %v5306 = vmul.f32 %v5185, 1.442695
    %v5307 = vpow.pop %v5306
    %v5308 = vmul.f32 %v5186, 1.442695
    %v5309 = vpow.pop %v5308
    %v5310 = vmul.f32 %v5187, 1.442695
    %v5311 = vpow.pop %v5310
    %v5312 = vmul.f32 %v5188, 1.442695
    %v5313 = vpow.pop %v5312
    %v5314 = vmul.f32 %v5189, 1.442695
    %v5315 = vpow.pop %v5314
    %v5316 = vmul.f32 %v5190, 1.442695
    %v5317 = vpow.pop %v5316
    %v5318 = vmul.f32 %v5191, 1.442695
    %v5319 = vpow.pop %v5318
    %v5320 = vmul.f32 %v5192, 1.442695
    %v5321 = vpow.pop %v5320
    %v5322 = vmul.f32 %v5193, 1.442695
    %v5323 = vpow.pop %v5322
    %v5324 = vmul.f32 %v5194, 1.442695
    %v5325 = vpow.pop %v5324
    %v5326 = vmul.f32 %v5195, 1.442695
    %v5327 = vpow.pop %v5326
    %v5328 = vmul.f32 %v5196, 1.442695
    %v5329 = vpow.pop %v5328
    %v5330 = vmul.f32 %v5197, 1.442695
    %v5331 = vpow.pop %v5330
    %v5332 = vmul.f32 %v5198, 1.442695
    %v5333 = vpow.pop %v5332
    %v5334 = vmul.f32 %v5199, 1.442695
    %v5335 = vpow.pop %v5334
    %v5336 = vmul.f32 %v5200, 1.442695
    %v5337 = vpow.pop %v5336
    %v5338 = vmul.f32 %v5201, 1.442695
    %v5339 = vpow.pop %v5338
    %v5340 = vmul.f32 %v5202, 1.442695
    %v5341 = vpow.pop %v5340
    %v5342 = vmul.f32 %v5203, 1.442695
    %v5343 = vpow.pop %v5342
    %v5344 = vmul.f32 %v5204, 1.442695
    %v5345 = vpow.pop %v5344
    %v5346 = vmul.f32 %v5205, 1.442695
    %v5347 = vpow.pop %v5346
    %v5348 = vmul.f32 %v5206, 1.442695
    %v5349 = vpow.pop %v5348
    %v5350 = vmul.f32 %v5207, 1.442695
    %v5351 = vpow.pop %v5350
    %v5352 = vmul.f32 %v5208, 1.442695
    %v5353 = vpow.pop %v5352
    %v5354 = vmul.f32 %v5209, 1.442695
    %v5355 = vpow.pop %v5354
    %v5356 = vmul.f32 %v5210, 1.442695
    %v5357 = vpow.pop %v5356
    %v5358 = vmul.f32 %v5211, 1.442695
    %v5359 = vpow.pop %v5358
    %v5360 = vmul.f32 %v5212, 1.442695
    %v5361 = vpow.pop %v5360
    %v5362 = vmul.f32 %v5213, 1.442695
    %v5363 = vpow.pop %v5362
    %v5364 = vld [vmem:[#allocation3] sm:$0x1]
    %v5365 = vmul.f32 %v5135, %v5364
    %v5366 = vsel %vm4976, %v5215, 0.0
    %v5367 = vsel %vm4976, %v5217, 0.0
    %v5368 = vadd.f32 %v5366, %v5367
    %v5369 = vsel %vm4976, %v5219, 0.0
    %v5370 = vadd.f32 %v5368, %v5369
    %v5371 = vsel %vm4976, %v5221, 0.0
    %v5372 = vadd.f32 %v5370, %v5371
    %v5373 = vsel %vm4976, %v5223, 0.0
    %v5374 = vadd.f32 %v5372, %v5373
    %v5375 = vsel %vm4976, %v5225, 0.0
    %v5376 = vadd.f32 %v5374, %v5375
    %v5377 = vsel %vm4976, %v5227, 0.0
    %v5378 = vadd.f32 %v5376, %v5377
    %v5379 = vsel %vm4976, %v5229, 0.0
    %v5380 = vadd.f32 %v5378, %v5379
    %v5381 = vsel %vm4976, %v5231, 0.0
    %v5382 = vadd.f32 %v5380, %v5381
    %v5383 = vsel %vm4976, %v5233, 0.0
    %v5384 = vadd.f32 %v5382, %v5383
    %v5385 = vsel %vm4976, %v5235, 0.0
    %v5386 = vadd.f32 %v5384, %v5385
    %v5387 = vsel %vm4976, %v5237, 0.0
    %v5388 = vadd.f32 %v5386, %v5387
    %v5389 = vsel %vm4976, %v5239, 0.0
    %v5390 = vadd.f32 %v5388, %v5389
    %v5391 = vsel %vm4976, %v5241, 0.0
    %v5392 = vadd.f32 %v5390, %v5391
    %v5393 = vsel %vm4976, %v5243, 0.0
    %v5394 = vadd.f32 %v5392, %v5393
    %v5395 = vsel %vm4976, %v5245, 0.0
    %v5396 = vadd.f32 %v5394, %v5395
    %v5397 = vsel %vm4976, %v5247, 0.0
    %v5398 = vadd.f32 %v5396, %v5397
    %v5399 = vsel %vm4976, %v5249, 0.0
    %v5400 = vadd.f32 %v5398, %v5399
    %v5401 = vsel %vm4976, %v5251, 0.0
    %v5402 = vadd.f32 %v5400, %v5401
    %v5403 = vsel %vm4976, %v5253, 0.0
    %v5404 = vadd.f32 %v5402, %v5403
    %v5405 = vsel %vm4976, %v5255, 0.0
    %v5406 = vadd.f32 %v5404, %v5405
    %v5407 = vsel %vm4976, %v5257, 0.0
    %v5408 = vadd.f32 %v5406, %v5407
    %v5409 = vsel %vm4976, %v5259, 0.0
    %v5410 = vadd.f32 %v5408, %v5409
    %v5411 = vsel %vm4976, %v5261, 0.0
    %v5412 = vadd.f32 %v5410, %v5411
    %v5413 = vsel %vm4976, %v5263, 0.0
    %v5414 = vadd.f32 %v5412, %v5413
    %v5415 = vsel %vm4976, %v5265, 0.0
    %v5416 = vadd.f32 %v5414, %v5415
    %v5417 = vsel %vm4976, %v5267, 0.0
    %v5418 = vadd.f32 %v5416, %v5417
    %v5419 = vsel %vm4976, %v5269, 0.0
    %v5420 = vadd.f32 %v5418, %v5419
    %v5421 = vsel %vm4976, %v5271, 0.0
    %v5422 = vadd.f32 %v5420, %v5421
    %v5423 = vsel %vm4976, %v5273, 0.0
    %v5424 = vadd.f32 %v5422, %v5423
    %v5425 = vsel %vm4976, %v5275, 0.0
    %v5426 = vadd.f32 %v5424, %v5425
    %v5427 = vsel %vm4976, %v5277, 0.0
    %v5428 = vadd.f32 %v5426, %v5427
    %v5429 = vsel %vm4976, %v5279, 0.0
    %v5430 = vadd.f32 %v5428, %v5429
    %v5431 = vsel %vm4976, %v5281, 0.0
    %v5432 = vadd.f32 %v5430, %v5431
    %v5433 = vsel %vm4976, %v5283, 0.0
    %v5434 = vadd.f32 %v5432, %v5433
    %v5435 = vsel %vm4976, %v5285, 0.0
    %v5436 = vadd.f32 %v5434, %v5435
    %v5437 = vsel %vm4976, %v5287, 0.0
    %v5438 = vadd.f32 %v5436, %v5437
    %v5439 = vsel %vm4976, %v5289, 0.0
    %v5440 = vadd.f32 %v5438, %v5439
    %v5441 = vsel %vm4976, %v5291, 0.0
    %v5442 = vadd.f32 %v5440, %v5441
    %v5443 = vsel %vm4976, %v5293, 0.0
    %v5444 = vadd.f32 %v5442, %v5443
    %v5445 = vsel %vm4976, %v5295, 0.0
    %v5446 = vadd.f32 %v5444, %v5445
    %v5447 = vsel %vm4976, %v5297, 0.0
    %v5448 = vadd.f32 %v5446, %v5447
    %v5449 = vsel %vm4976, %v5299, 0.0
    %v5450 = vadd.f32 %v5448, %v5449
    %v5451 = vsel %vm4976, %v5301, 0.0
    %v5452 = vadd.f32 %v5450, %v5451
    %v5453 = vsel %vm4976, %v5303, 0.0
    %v5454 = vadd.f32 %v5452, %v5453
    %v5455 = vsel %vm4976, %v5305, 0.0
    %v5456 = vadd.f32 %v5454, %v5455
    %v5457 = vsel %vm4976, %v5307, 0.0
    %v5458 = vadd.f32 %v5456, %v5457
    %v5459 = vsel %vm4976, %v5309, 0.0
    %v5460 = vadd.f32 %v5458, %v5459
    %v5461 = vsel %vm4976, %v5311, 0.0
    %v5462 = vadd.f32 %v5460, %v5461
    %v5463 = vsel %vm4976, %v5313, 0.0
    %v5464 = vadd.f32 %v5462, %v5463
    %v5465 = vsel %vm4976, %v5315, 0.0
    %v5466 = vadd.f32 %v5464, %v5465
    %v5467 = vsel %vm4976, %v5317, 0.0
    %v5468 = vadd.f32 %v5466, %v5467
    %v5469 = vsel %vm4976, %v5319, 0.0
    %v5470 = vadd.f32 %v5468, %v5469
    %v5471 = vsel %vm4976, %v5321, 0.0
    %v5472 = vadd.f32 %v5470, %v5471
    %v5473 = vsel %vm4976, %v5323, 0.0
    %v5474 = vadd.f32 %v5472, %v5473
    %v5475 = vsel %vm4976, %v5325, 0.0
    %v5476 = vadd.f32 %v5474, %v5475
    %v5477 = vsel %vm4976, %v5327, 0.0
    %v5478 = vadd.f32 %v5476, %v5477
    %v5479 = vsel %vm4976, %v5329, 0.0
    %v5480 = vadd.f32 %v5478, %v5479
    %v5481 = vsel %vm4976, %v5331, 0.0
    %v5482 = vadd.f32 %v5480, %v5481
    %v5483 = vsel %vm4976, %v5333, 0.0
    %v5484 = vadd.f32 %v5482, %v5483
    %v5485 = vsel %vm4976, %v5335, 0.0
    %v5486 = vadd.f32 %v5484, %v5485
    %v5487 = vsel %vm4976, %v5337, 0.0
    %v5488 = vadd.f32 %v5486, %v5487
    %v5489 = vsel %vm4976, %v5339, 0.0
    %v5490 = vadd.f32 %v5488, %v5489
    %v5491 = vsel %vm4976, %v5341, 0.0
    %v5492 = vadd.f32 %v5490, %v5491
    %v5493 = vsel %vm4976, %v5343, 0.0
    %v5494 = vadd.f32 %v5492, %v5493
    %v5495 = vsel %vm4976, %v5345, 0.0
    %v5496 = vadd.f32 %v5494, %v5495
    %v5497 = vsel %vm4976, %v5347, 0.0
    %v5498 = vadd.f32 %v5496, %v5497
    %v5499 = vsel %vm4976, %v5349, 0.0
    %v5500 = vadd.f32 %v5498, %v5499
    %v5501 = vsel %vm4976, %v5351, 0.0
    %v5502 = vadd.f32 %v5500, %v5501
    %v5503 = vsel %vm4976, %v5353, 0.0
    %v5504 = vadd.f32 %v5502, %v5503
    %v5505 = vsel %vm4976, %v5355, 0.0
    %v5506 = vadd.f32 %v5504, %v5505
    %v5507 = vsel %vm4976, %v5357, 0.0
    %v5508 = vadd.f32 %v5506, %v5507
    %v5509 = vsel %vm4976, %v5359, 0.0
    %v5510 = vadd.f32 %v5508, %v5509
    %v5511 = vsel %vm4976, %v5361, 0.0
    %v5512 = vadd.f32 %v5510, %v5511
    %v5513 = vsel %vm4976, %v5363, 0.0
    %v5514 = vadd.f32 %v5512, %v5513
    %v5515 = vrot.slane %v5514, 4
    %v5516 = vadd.f32 %v5514, %v5515
    %v5517 = vrot.slane %v5516, 2
    %v5518 = vadd.f32 %v5516, %v5517
    %v5519 = vrot.slane %v5518, 1
    %v5520 = vadd.f32 %v5518, %v5519
    %v5521 = vadd.f32 %v5365, %v5520
    %vm5522 = vcmask 0
    %5523 = vst.msk [vmem:[#allocation3] sm:$0x1] %vm5522, %v5521
    %v5524 = vld [vmem:[#allocation4] sm:$0xf]
    %5526 = vset.pattern.permute.xlu0 0
    %5527 = vperm.xlu0 %5526, %v5135
    %v5528 = vpop.permute.xlu0 %5527
    %v5530 = vperm.slane %v5528, 0
    %v5531 = vmul.f32 %v5530, %v5524
    %5533 = vset.pattern.permute.xlu0 0
    %5534 = vperm.xlu0 %5533, %v5215
    %v5535 = vpop.permute.xlu0 %5534
    %5538 = vset.pattern.permute.xlu0 0
    %5539 = vperm.xlu0 %5538, %v5217
    %v5540 = vpop.permute.xlu0 %5539
    %5543 = vset.pattern.permute.xlu0 0
    %5544 = vperm.xlu0 %5543, %v5219
    %v5545 = vpop.permute.xlu0 %5544
    %5548 = vset.pattern.permute.xlu0 0
    %5549 = vperm.xlu0 %5548, %v5221
    %v5550 = vpop.permute.xlu0 %5549
    %5553 = vset.pattern.permute.xlu0 0
    %5554 = vperm.xlu0 %5553, %v5223
    %v5555 = vpop.permute.xlu0 %5554
    %5558 = vset.pattern.permute.xlu0 0
    %5559 = vperm.xlu0 %5558, %v5225
    %v5560 = vpop.permute.xlu0 %5559
    %5563 = vset.pattern.permute.xlu0 0
    %5564 = vperm.xlu0 %5563, %v5227
    %v5565 = vpop.permute.xlu0 %5564
    %5568 = vset.pattern.permute.xlu0 0
    %5569 = vperm.xlu0 %5568, %v5229
    %v5570 = vpop.permute.xlu0 %5569
    %5573 = vset.pattern.permute.xlu0 0
    %5574 = vperm.xlu0 %5573, %v5231
    %v5575 = vpop.permute.xlu0 %5574
    %5578 = vset.pattern.permute.xlu0 0
    %5579 = vperm.xlu0 %5578, %v5233
    %v5580 = vpop.permute.xlu0 %5579
    %5583 = vset.pattern.permute.xlu0 0
    %5584 = vperm.xlu0 %5583, %v5235
    %v5585 = vpop.permute.xlu0 %5584
    %5588 = vset.pattern.permute.xlu0 0
    %5589 = vperm.xlu0 %5588, %v5237
    %v5590 = vpop.permute.xlu0 %5589
    %5593 = vset.pattern.permute.xlu0 0
    %5594 = vperm.xlu0 %5593, %v5239
    %v5595 = vpop.permute.xlu0 %5594
    %5598 = vset.pattern.permute.xlu0 0
    %5599 = vperm.xlu0 %5598, %v5241
    %v5600 = vpop.permute.xlu0 %5599
    %5603 = vset.pattern.permute.xlu0 0
    %5604 = vperm.xlu0 %5603, %v5243
    %v5605 = vpop.permute.xlu0 %5604
    %5608 = vset.pattern.permute.xlu0 0
    %5609 = vperm.xlu0 %5608, %v5245
    %v5610 = vpop.permute.xlu0 %5609
    %5613 = vset.pattern.permute.xlu0 0
    %5614 = vperm.xlu0 %5613, %v5247
    %v5615 = vpop.permute.xlu0 %5614
    %5618 = vset.pattern.permute.xlu0 0
    %5619 = vperm.xlu0 %5618, %v5249
    %v5620 = vpop.permute.xlu0 %5619
    %5623 = vset.pattern.permute.xlu0 0
    %5624 = vperm.xlu0 %5623, %v5251
    %v5625 = vpop.permute.xlu0 %5624
    %5628 = vset.pattern.permute.xlu0 0
    %5629 = vperm.xlu0 %5628, %v5253
    %v5630 = vpop.permute.xlu0 %5629
    %5633 = vset.pattern.permute.xlu0 0
    %5634 = vperm.xlu0 %5633, %v5255
    %v5635 = vpop.permute.xlu0 %5634
    %5638 = vset.pattern.permute.xlu0 0
    %5639 = vperm.xlu0 %5638, %v5257
    %v5640 = vpop.permute.xlu0 %5639
    %5643 = vset.pattern.permute.xlu0 0
    %5644 = vperm.xlu0 %5643, %v5259
    %v5645 = vpop.permute.xlu0 %5644
    %5648 = vset.pattern.permute.xlu0 0
    %5649 = vperm.xlu0 %5648, %v5261
    %v5650 = vpop.permute.xlu0 %5649
    %5653 = vset.pattern.permute.xlu0 0
    %5654 = vperm.xlu0 %5653, %v5263
    %v5655 = vpop.permute.xlu0 %5654
    %5658 = vset.pattern.permute.xlu0 0
    %5659 = vperm.xlu0 %5658, %v5265
    %v5660 = vpop.permute.xlu0 %5659
    %5663 = vset.pattern.permute.xlu0 0
    %5664 = vperm.xlu0 %5663, %v5267
    %v5665 = vpop.permute.xlu0 %5664
    %5668 = vset.pattern.permute.xlu0 0
    %5669 = vperm.xlu0 %5668, %v5269
    %v5670 = vpop.permute.xlu0 %5669
    %5673 = vset.pattern.permute.xlu0 0
    %5674 = vperm.xlu0 %5673, %v5271
    %v5675 = vpop.permute.xlu0 %5674
    %5678 = vset.pattern.permute.xlu0 0
    %5679 = vperm.xlu0 %5678, %v5273
    %v5680 = vpop.permute.xlu0 %5679
    %5683 = vset.pattern.permute.xlu0 0
    %5684 = vperm.xlu0 %5683, %v5275
    %v5685 = vpop.permute.xlu0 %5684
    %5688 = vset.pattern.permute.xlu0 0
    %5689 = vperm.xlu0 %5688, %v5277
    %v5690 = vpop.permute.xlu0 %5689
    %5693 = vset.pattern.permute.xlu0 0
    %5694 = vperm.xlu0 %5693, %v5279
    %v5695 = vpop.permute.xlu0 %5694
    %5698 = vset.pattern.permute.xlu0 0
    %5699 = vperm.xlu0 %5698, %v5281
    %v5700 = vpop.permute.xlu0 %5699
    %5703 = vset.pattern.permute.xlu0 0
    %5704 = vperm.xlu0 %5703, %v5283
    %v5705 = vpop.permute.xlu0 %5704
    %5708 = vset.pattern.permute.xlu0 0
    %5709 = vperm.xlu0 %5708, %v5285
    %v5710 = vpop.permute.xlu0 %5709
    %5713 = vset.pattern.permute.xlu0 0
    %5714 = vperm.xlu0 %5713, %v5287
    %v5715 = vpop.permute.xlu0 %5714
    %5718 = vset.pattern.permute.xlu0 0
    %5719 = vperm.xlu0 %5718, %v5289
    %v5720 = vpop.permute.xlu0 %5719
    %5723 = vset.pattern.permute.xlu0 0
    %5724 = vperm.xlu0 %5723, %v5291
    %v5725 = vpop.permute.xlu0 %5724
    %5728 = vset.pattern.permute.xlu0 0
    %5729 = vperm.xlu0 %5728, %v5293
    %v5730 = vpop.permute.xlu0 %5729
    %5733 = vset.pattern.permute.xlu0 0
    %5734 = vperm.xlu0 %5733, %v5295
    %v5735 = vpop.permute.xlu0 %5734
    %5738 = vset.pattern.permute.xlu0 0
    %5739 = vperm.xlu0 %5738, %v5297
    %v5740 = vpop.permute.xlu0 %5739
    %5743 = vset.pattern.permute.xlu0 0
    %5744 = vperm.xlu0 %5743, %v5299
    %v5745 = vpop.permute.xlu0 %5744
    %5748 = vset.pattern.permute.xlu0 0
    %5749 = vperm.xlu0 %5748, %v5301
    %v5750 = vpop.permute.xlu0 %5749
    %5753 = vset.pattern.permute.xlu0 0
    %5754 = vperm.xlu0 %5753, %v5303
    %v5755 = vpop.permute.xlu0 %5754
    %5758 = vset.pattern.permute.xlu0 0
    %5759 = vperm.xlu0 %5758, %v5305
    %v5760 = vpop.permute.xlu0 %5759
    %5763 = vset.pattern.permute.xlu0 0
    %5764 = vperm.xlu0 %5763, %v5307
    %v5765 = vpop.permute.xlu0 %5764
    %5768 = vset.pattern.permute.xlu0 0
    %5769 = vperm.xlu0 %5768, %v5309
    %v5770 = vpop.permute.xlu0 %5769
    %5773 = vset.pattern.permute.xlu0 0
    %5774 = vperm.xlu0 %5773, %v5311
    %v5775 = vpop.permute.xlu0 %5774
    %5778 = vset.pattern.permute.xlu0 0
    %5779 = vperm.xlu0 %5778, %v5313
    %v5780 = vpop.permute.xlu0 %5779
    %5783 = vset.pattern.permute.xlu0 0
    %5784 = vperm.xlu0 %5783, %v5315
    %v5785 = vpop.permute.xlu0 %5784
    %5788 = vset.pattern.permute.xlu0 0
    %5789 = vperm.xlu0 %5788, %v5317
    %v5790 = vpop.permute.xlu0 %5789
    %5793 = vset.pattern.permute.xlu0 0
    %5794 = vperm.xlu0 %5793, %v5319
    %v5795 = vpop.permute.xlu0 %5794
    %5798 = vset.pattern.permute.xlu0 0
    %5799 = vperm.xlu0 %5798, %v5321
    %v5800 = vpop.permute.xlu0 %5799
    %5803 = vset.pattern.permute.xlu0 0
    %5804 = vperm.xlu0 %5803, %v5323
    %v5805 = vpop.permute.xlu0 %5804
    %5808 = vset.pattern.permute.xlu0 0
    %5809 = vperm.xlu0 %5808, %v5325
    %v5810 = vpop.permute.xlu0 %5809
    %5813 = vset.pattern.permute.xlu0 0
    %5814 = vperm.xlu0 %5813, %v5327
    %v5815 = vpop.permute.xlu0 %5814
    %5818 = vset.pattern.permute.xlu0 0
    %5819 = vperm.xlu0 %5818, %v5329
    %v5820 = vpop.permute.xlu0 %5819
    %5823 = vset.pattern.permute.xlu0 0
    %5824 = vperm.xlu0 %5823, %v5331
    %v5825 = vpop.permute.xlu0 %5824
    %5828 = vset.pattern.permute.xlu0 0
    %5829 = vperm.xlu0 %5828, %v5333
    %v5830 = vpop.permute.xlu0 %5829
    %5833 = vset.pattern.permute.xlu0 0
    %5834 = vperm.xlu0 %5833, %v5335
    %v5835 = vpop.permute.xlu0 %5834
    %5838 = vset.pattern.permute.xlu0 0
    %5839 = vperm.xlu0 %5838, %v5337
    %v5840 = vpop.permute.xlu0 %5839
    %5843 = vset.pattern.permute.xlu0 0
    %5844 = vperm.xlu0 %5843, %v5339
    %v5845 = vpop.permute.xlu0 %5844
    %5848 = vset.pattern.permute.xlu0 0
    %5849 = vperm.xlu0 %5848, %v5341
    %v5850 = vpop.permute.xlu0 %5849
    %5853 = vset.pattern.permute.xlu0 0
    %5854 = vperm.xlu0 %5853, %v5343
    %v5855 = vpop.permute.xlu0 %5854
    %5858 = vset.pattern.permute.xlu0 0
    %5859 = vperm.xlu0 %5858, %v5345
    %v5860 = vpop.permute.xlu0 %5859
    %5863 = vset.pattern.permute.xlu0 0
    %5864 = vperm.xlu0 %5863, %v5347
    %v5865 = vpop.permute.xlu0 %5864
    %5868 = vset.pattern.permute.xlu0 0
    %5869 = vperm.xlu0 %5868, %v5349
    %v5870 = vpop.permute.xlu0 %5869
    %5873 = vset.pattern.permute.xlu0 0
    %5874 = vperm.xlu0 %5873, %v5351
    %v5875 = vpop.permute.xlu0 %5874
    %5878 = vset.pattern.permute.xlu0 0
    %5879 = vperm.xlu0 %5878, %v5353
    %v5880 = vpop.permute.xlu0 %5879
    %5883 = vset.pattern.permute.xlu0 0
    %5884 = vperm.xlu0 %5883, %v5355
    %v5885 = vpop.permute.xlu0 %5884
    %5888 = vset.pattern.permute.xlu0 0
    %5889 = vperm.xlu0 %5888, %v5357
    %v5890 = vpop.permute.xlu0 %5889
    %5893 = vset.pattern.permute.xlu0 0
    %5894 = vperm.xlu0 %5893, %v5359
    %v5895 = vpop.permute.xlu0 %5894
    %5898 = vset.pattern.permute.xlu0 0
    %5899 = vperm.xlu0 %5898, %v5361
    %v5900 = vpop.permute.xlu0 %5899
    %5903 = vset.pattern.permute.xlu0 0
    %5904 = vperm.xlu0 %5903, %v5363
    %v5905 = vpop.permute.xlu0 %5904
    %v5907 = vmul.f32 %v5535, %v1864
    %v5908 = vmul.f32 %v5535, %v1865
    %v5909 = vmul.f32 %v5535, %v1866
    %v5910 = vmul.f32 %v5535, %v1867
    %v5911 = vmul.f32 %v5540, %v1868
    %v5912 = vmul.f32 %v5540, %v1869
    %v5913 = vmul.f32 %v5540, %v1870
    %v5914 = vmul.f32 %v5540, %v1871
    %v5915 = vmul.f32 %v5545, %v1872
    %v5916 = vmul.f32 %v5545, %v1873
    %v5917 = vmul.f32 %v5545, %v1874
    %v5918 = vmul.f32 %v5545, %v1875
    %v5919 = vmul.f32 %v5550, %v1876
    %v5920 = vmul.f32 %v5550, %v1877
    %v5921 = vmul.f32 %v5550, %v1878
    %v5922 = vmul.f32 %v5550, %v1879
    %v5923 = vmul.f32 %v5555, %v1880
    %v5924 = vmul.f32 %v5555, %v1881
    %v5925 = vmul.f32 %v5555, %v1882
    %v5926 = vmul.f32 %v5555, %v1883
    %v5927 = vmul.f32 %v5560, %v1884
    %v5928 = vmul.f32 %v5560, %v1885
    %v5929 = vmul.f32 %v5560, %v1886
    %v5930 = vmul.f32 %v5560, %v1887
    %v5931 = vmul.f32 %v5565, %v1888
    %v5932 = vmul.f32 %v5565, %v1889
    %v5933 = vmul.f32 %v5565, %v1890
    %v5934 = vmul.f32 %v5565, %v1891
    %v5935 = vmul.f32 %v5570, %v1892
    %v5936 = vmul.f32 %v5570, %v1893
    %v5937 = vmul.f32 %v5570, %v1894
    %v5938 = vmul.f32 %v5570, %v1895
    %v5939 = vmul.f32 %v5575, %v1896
    %v5940 = vmul.f32 %v5575, %v1897
    %v5941 = vmul.f32 %v5575, %v1898
    %v5942 = vmul.f32 %v5575, %v1899
    %v5943 = vmul.f32 %v5580, %v1900
    %v5944 = vmul.f32 %v5580, %v1901
    %v5945 = vmul.f32 %v5580, %v1902
    %v5946 = vmul.f32 %v5580, %v1903
    %v5947 = vmul.f32 %v5585, %v1904
    %v5948 = vmul.f32 %v5585, %v1905
    %v5949 = vmul.f32 %v5585, %v1906
    %v5950 = vmul.f32 %v5585, %v1907
    %v5951 = vmul.f32 %v5590, %v1908
    %v5952 = vmul.f32 %v5590, %v1909
    %v5953 = vmul.f32 %v5590, %v1910
    %v5954 = vmul.f32 %v5590, %v1911
    %v5955 = vmul.f32 %v5595, %v1912
    %v5956 = vmul.f32 %v5595, %v1913
    %v5957 = vmul.f32 %v5595, %v1914
    %v5958 = vmul.f32 %v5595, %v1915
    %v5959 = vmul.f32 %v5600, %v1916
    %v5960 = vmul.f32 %v5600, %v1917
    %v5961 = vmul.f32 %v5600, %v1918
    %v5962 = vmul.f32 %v5600, %v1919
    %v5963 = vmul.f32 %v5605, %v1920
    %v5964 = vmul.f32 %v5605, %v1921
    %v5965 = vmul.f32 %v5605, %v1922
    %v5966 = vmul.f32 %v5605, %v1923
    %v5967 = vmul.f32 %v5610, %v1924
    %v5968 = vmul.f32 %v5610, %v1925
    %v5969 = vmul.f32 %v5610, %v1926
    %v5970 = vmul.f32 %v5610, %v1927
    %v5971 = vmul.f32 %v5615, %v1928
    %v5972 = vmul.f32 %v5615, %v1929
    %v5973 = vmul.f32 %v5615, %v1930
    %v5974 = vmul.f32 %v5615, %v1931
    %v5975 = vmul.f32 %v5620, %v1932
    %v5976 = vmul.f32 %v5620, %v1933
    %v5977 = vmul.f32 %v5620, %v1934
    %v5978 = vmul.f32 %v5620, %v1935
    %v5979 = vmul.f32 %v5625, %v1936
    %v5980 = vmul.f32 %v5625, %v1937
    %v5981 = vmul.f32 %v5625, %v1938
    %v5982 = vmul.f32 %v5625, %v1939
    %v5983 = vmul.f32 %v5630, %v1940
    %v5984 = vmul.f32 %v5630, %v1941
    %v5985 = vmul.f32 %v5630, %v1942
    %v5986 = vmul.f32 %v5630, %v1943
    %v5987 = vmul.f32 %v5635, %v1944
    %v5988 = vmul.f32 %v5635, %v1945
    %v5989 = vmul.f32 %v5635, %v1946
    %v5990 = vmul.f32 %v5635, %v1947
    %v5991 = vmul.f32 %v5640, %v1948
    %v5992 = vmul.f32 %v5640, %v1949
    %v5993 = vmul.f32 %v5640, %v1950
    %v5994 = vmul.f32 %v5640, %v1951
    %v5995 = vmul.f32 %v5645, %v1952
    %v5996 = vmul.f32 %v5645, %v1953
    %v5997 = vmul.f32 %v5645, %v1954
    %v5998 = vmul.f32 %v5645, %v1955
    %v5999 = vmul.f32 %v5650, %v1956
    %v6000 = vmul.f32 %v5650, %v1957
    %v6001 = vmul.f32 %v5650, %v1958
    %v6002 = vmul.f32 %v5650, %v1959
    %v6003 = vmul.f32 %v5655, %v1960
    %v6004 = vmul.f32 %v5655, %v1961
    %v6005 = vmul.f32 %v5655, %v1962
    %v6006 = vmul.f32 %v5655, %v1963
    %v6007 = vmul.f32 %v5660, %v1964
    %v6008 = vmul.f32 %v5660, %v1965
    %v6009 = vmul.f32 %v5660, %v1966
    %v6010 = vmul.f32 %v5660, %v1967
    %v6011 = vmul.f32 %v5665, %v1968
    %v6012 = vmul.f32 %v5665, %v1969
    %v6013 = vmul.f32 %v5665, %v1970
    %v6014 = vmul.f32 %v5665, %v1971
    %v6015 = vmul.f32 %v5670, %v1972
    %v6016 = vmul.f32 %v5670, %v1973
    %v6017 = vmul.f32 %v5670, %v1974
    %v6018 = vmul.f32 %v5670, %v1975
    %v6019 = vmul.f32 %v5675, %v1976
    %v6020 = vmul.f32 %v5675, %v1977
    %v6021 = vmul.f32 %v5675, %v1978
    %v6022 = vmul.f32 %v5675, %v1979
    %v6023 = vmul.f32 %v5680, %v1980
    %v6024 = vmul.f32 %v5680, %v1981
    %v6025 = vmul.f32 %v5680, %v1982
    %v6026 = vmul.f32 %v5680, %v1983
    %v6027 = vmul.f32 %v5685, %v1984
    %v6028 = vmul.f32 %v5685, %v1985
    %v6029 = vmul.f32 %v5685, %v1986
    %v6030 = vmul.f32 %v5685, %v1987
    %v6031 = vmul.f32 %v5690, %v1988
    %v6032 = vmul.f32 %v5690, %v1989
    %v6033 = vmul.f32 %v5690, %v1990
    %v6034 = vmul.f32 %v5690, %v1991
    %v6035 = vmul.f32 %v5695, %v1992
    %v6036 = vmul.f32 %v5695, %v1993
    %v6037 = vmul.f32 %v5695, %v1994
    %v6038 = vmul.f32 %v5695, %v1995
    %v6039 = vmul.f32 %v5700, %v1996
    %v6040 = vmul.f32 %v5700, %v1997
    %v6041 = vmul.f32 %v5700, %v1998
    %v6042 = vmul.f32 %v5700, %v1999
    %v6043 = vmul.f32 %v5705, %v2000
    %v6044 = vmul.f32 %v5705, %v2001
    %v6045 = vmul.f32 %v5705, %v2002
    %v6046 = vmul.f32 %v5705, %v2003
    %v6047 = vmul.f32 %v5710, %v2004
    %v6048 = vmul.f32 %v5710, %v2005
    %v6049 = vmul.f32 %v5710, %v2006
    %v6050 = vmul.f32 %v5710, %v2007
    %v6051 = vmul.f32 %v5715, %v2008
    %v6052 = vmul.f32 %v5715, %v2009
    %v6053 = vmul.f32 %v5715, %v2010
    %v6054 = vmul.f32 %v5715, %v2011
    %v6055 = vmul.f32 %v5720, %v2012
    %v6056 = vmul.f32 %v5720, %v2013
    %v6057 = vmul.f32 %v5720, %v2014
    %v6058 = vmul.f32 %v5720, %v2015
    %v6059 = vmul.f32 %v5725, %v2016
    %v6060 = vmul.f32 %v5725, %v2017
    %v6061 = vmul.f32 %v5725, %v2018
    %v6062 = vmul.f32 %v5725, %v2019
    %v6063 = vmul.f32 %v5730, %v2020
    %v6064 = vmul.f32 %v5730, %v2021
    %v6065 = vmul.f32 %v5730, %v2022
    %v6066 = vmul.f32 %v5730, %v2023
    %v6067 = vmul.f32 %v5735, %v2024
    %v6068 = vmul.f32 %v5735, %v2025
    %v6069 = vmul.f32 %v5735, %v2026
    %v6070 = vmul.f32 %v5735, %v2027
    %v6071 = vmul.f32 %v5740, %v2028
    %v6072 = vmul.f32 %v5740, %v2029
    %v6073 = vmul.f32 %v5740, %v2030
    %v6074 = vmul.f32 %v5740, %v2031
    %v6075 = vmul.f32 %v5745, %v2032
    %v6076 = vmul.f32 %v5745, %v2033
    %v6077 = vmul.f32 %v5745, %v2034
    %v6078 = vmul.f32 %v5745, %v2035
    %v6079 = vmul.f32 %v5750, %v2036
    %v6080 = vmul.f32 %v5750, %v2037
    %v6081 = vmul.f32 %v5750, %v2038
    %v6082 = vmul.f32 %v5750, %v2039
    %v6083 = vmul.f32 %v5755, %v2040
    %v6084 = vmul.f32 %v5755, %v2041
    %v6085 = vmul.f32 %v5755, %v2042
    %v6086 = vmul.f32 %v5755, %v2043
    %v6087 = vmul.f32 %v5760, %v2044
    %v6088 = vmul.f32 %v5760, %v2045
    %v6089 = vmul.f32 %v5760, %v2046
    %v6090 = vmul.f32 %v5760, %v2047
    %v6091 = vmul.f32 %v5765, %v2048
    %v6092 = vmul.f32 %v5765, %v2049
    %v6093 = vmul.f32 %v5765, %v2050
    %v6094 = vmul.f32 %v5765, %v2051
    %v6095 = vmul.f32 %v5770, %v2052
    %v6096 = vmul.f32 %v5770, %v2053
    %v6097 = vmul.f32 %v5770, %v2054
    %v6098 = vmul.f32 %v5770, %v2055
    %v6099 = vmul.f32 %v5775, %v2056
    %v6100 = vmul.f32 %v5775, %v2057
    %v6101 = vmul.f32 %v5775, %v2058
    %v6102 = vmul.f32 %v5775, %v2059
    %v6103 = vmul.f32 %v5780, %v2060
    %v6104 = vmul.f32 %v5780, %v2061
    %v6105 = vmul.f32 %v5780, %v2062
    %v6106 = vmul.f32 %v5780, %v2063
    %v6107 = vmul.f32 %v5785, %v2064
    %v6108 = vmul.f32 %v5785, %v2065
    %v6109 = vmul.f32 %v5785, %v2066
    %v6110 = vmul.f32 %v5785, %v2067
    %v6111 = vmul.f32 %v5790, %v2068
    %v6112 = vmul.f32 %v5790, %v2069
    %v6113 = vmul.f32 %v5790, %v2070
    %v6114 = vmul.f32 %v5790, %v2071
    %v6115 = vmul.f32 %v5795, %v2072
    %v6116 = vmul.f32 %v5795, %v2073
    %v6117 = vmul.f32 %v5795, %v2074
    %v6118 = vmul.f32 %v5795, %v2075
    %v6119 = vmul.f32 %v5800, %v2076
    %v6120 = vmul.f32 %v5800, %v2077
    %v6121 = vmul.f32 %v5800, %v2078
    %v6122 = vmul.f32 %v5800, %v2079
    %v6123 = vmul.f32 %v5805, %v2080
    %v6124 = vmul.f32 %v5805, %v2081
    %v6125 = vmul.f32 %v5805, %v2082
    %v6126 = vmul.f32 %v5805, %v2083
    %v6127 = vmul.f32 %v5810, %v2084
    %v6128 = vmul.f32 %v5810, %v2085
    %v6129 = vmul.f32 %v5810, %v2086
    %v6130 = vmul.f32 %v5810, %v2087
    %v6131 = vmul.f32 %v5815, %v2088
    %v6132 = vmul.f32 %v5815, %v2089
    %v6133 = vmul.f32 %v5815, %v2090
    %v6134 = vmul.f32 %v5815, %v2091
    %v6135 = vmul.f32 %v5820, %v2092
    %v6136 = vmul.f32 %v5820, %v2093
    %v6137 = vmul.f32 %v5820, %v2094
    %v6138 = vmul.f32 %v5820, %v2095
    %v6139 = vmul.f32 %v5825, %v2096
    %v6140 = vmul.f32 %v5825, %v2097
    %v6141 = vmul.f32 %v5825, %v2098
    %v6142 = vmul.f32 %v5825, %v2099
    %v6143 = vmul.f32 %v5830, %v2100
    %v6144 = vmul.f32 %v5830, %v2101
    %v6145 = vmul.f32 %v5830, %v2102
    %v6146 = vmul.f32 %v5830, %v2103
    %v6147 = vmul.f32 %v5835, %v2104
    %v6148 = vmul.f32 %v5835, %v2105
    %v6149 = vmul.f32 %v5835, %v2106
    %v6150 = vmul.f32 %v5835, %v2107
    %v6151 = vmul.f32 %v5840, %v2108
    %v6152 = vmul.f32 %v5840, %v2109
    %v6153 = vmul.f32 %v5840, %v2110
    %v6154 = vmul.f32 %v5840, %v2111
    %v6155 = vmul.f32 %v5845, %v2112
    %v6156 = vmul.f32 %v5845, %v2113
    %v6157 = vmul.f32 %v5845, %v2114
    %v6158 = vmul.f32 %v5845, %v2115
    %v6159 = vmul.f32 %v5850, %v2116
    %v6160 = vmul.f32 %v5850, %v2117
    %v6161 = vmul.f32 %v5850, %v2118
    %v6162 = vmul.f32 %v5850, %v2119
    %v6163 = vmul.f32 %v5855, %v2120
    %v6164 = vmul.f32 %v5855, %v2121
    %v6165 = vmul.f32 %v5855, %v2122
    %v6166 = vmul.f32 %v5855, %v2123
    %v6167 = vmul.f32 %v5860, %v2124
    %v6168 = vmul.f32 %v5860, %v2125
    %v6169 = vmul.f32 %v5860, %v2126
    %v6170 = vmul.f32 %v5860, %v2127
    %v6171 = vmul.f32 %v5865, %v2128
    %v6172 = vmul.f32 %v5865, %v2129
    %v6173 = vmul.f32 %v5865, %v2130
    %v6174 = vmul.f32 %v5865, %v2131
    %v6175 = vmul.f32 %v5870, %v2132
    %v6176 = vmul.f32 %v5870, %v2133
    %v6177 = vmul.f32 %v5870, %v2134
    %v6178 = vmul.f32 %v5870, %v2135
    %v6179 = vmul.f32 %v5875, %v2136
    %v6180 = vmul.f32 %v5875, %v2137
    %v6181 = vmul.f32 %v5875, %v2138
    %v6182 = vmul.f32 %v5875, %v2139
    %v6183 = vmul.f32 %v5880, %v2140
    %v6184 = vmul.f32 %v5880, %v2141
    %v6185 = vmul.f32 %v5880, %v2142
    %v6186 = vmul.f32 %v5880, %v2143
    %v6187 = vmul.f32 %v5885, %v2144
    %v6188 = vmul.f32 %v5885, %v2145
    %v6189 = vmul.f32 %v5885, %v2146
    %v6190 = vmul.f32 %v5885, %v2147
    %v6191 = vmul.f32 %v5890, %v2148
    %v6192 = vmul.f32 %v5890, %v2149
    %v6193 = vmul.f32 %v5890, %v2150
    %v6194 = vmul.f32 %v5890, %v2151
    %v6195 = vmul.f32 %v5895, %v2152
    %v6196 = vmul.f32 %v5895, %v2153
    %v6197 = vmul.f32 %v5895, %v2154
    %v6198 = vmul.f32 %v5895, %v2155
    %v6199 = vmul.f32 %v5900, %v2156
    %v6200 = vmul.f32 %v5900, %v2157
    %v6201 = vmul.f32 %v5900, %v2158
    %v6202 = vmul.f32 %v5900, %v2159
    %v6203 = vmul.f32 %v5905, %v2160
    %v6204 = vmul.f32 %v5905, %v2161
    %v6205 = vmul.f32 %v5905, %v2162
    %v6206 = vmul.f32 %v5905, %v2163
    %v6207 = vadd.f32 %v5907, %v5911
    %v6208 = vadd.f32 %v6207, %v5915
    %v6209 = vadd.f32 %v6208, %v5919
    %v6210 = vadd.f32 %v6209, %v5923
    %v6211 = vadd.f32 %v6210, %v5927
    %v6212 = vadd.f32 %v6211, %v5931
    %v6213 = vadd.f32 %v6212, %v5935
    %v6214 = vadd.f32 %v6213, %v5939
    %v6215 = vadd.f32 %v6214, %v5943
    %v6216 = vadd.f32 %v6215, %v5947
    %v6217 = vadd.f32 %v6216, %v5951
    %v6218 = vadd.f32 %v6217, %v5955
    %v6219 = vadd.f32 %v6218, %v5959
    %v6220 = vadd.f32 %v6219, %v5963
    %v6221 = vadd.f32 %v6220, %v5967
    %v6222 = vadd.f32 %v6221, %v5971
    %v6223 = vadd.f32 %v6222, %v5975
    %v6224 = vadd.f32 %v6223, %v5979
    %v6225 = vadd.f32 %v6224, %v5983
    %v6226 = vadd.f32 %v6225, %v5987
    %v6227 = vadd.f32 %v6226, %v5991
    %v6228 = vadd.f32 %v6227, %v5995
    %v6229 = vadd.f32 %v6228, %v5999
    %v6230 = vadd.f32 %v6229, %v6003
    %v6231 = vadd.f32 %v6230, %v6007
    %v6232 = vadd.f32 %v6231, %v6011
    %v6233 = vadd.f32 %v6232, %v6015
    %v6234 = vadd.f32 %v6233, %v6019
    %v6235 = vadd.f32 %v6234, %v6023
    %v6236 = vadd.f32 %v6235, %v6027
    %v6237 = vadd.f32 %v6236, %v6031
    %v6238 = vadd.f32 %v6237, %v6035
    %v6239 = vadd.f32 %v6238, %v6039
    %v6240 = vadd.f32 %v6239, %v6043
    %v6241 = vadd.f32 %v6240, %v6047
    %v6242 = vadd.f32 %v6241, %v6051
    %v6243 = vadd.f32 %v6242, %v6055
    %v6244 = vadd.f32 %v6243, %v6059
    %v6245 = vadd.f32 %v6244, %v6063
    %v6246 = vadd.f32 %v6245, %v6067
    %v6247 = vadd.f32 %v6246, %v6071
    %v6248 = vadd.f32 %v6247, %v6075
    %v6249 = vadd.f32 %v6248, %v6079
    %v6250 = vadd.f32 %v6249, %v6083
    %v6251 = vadd.f32 %v6250, %v6087
    %v6252 = vadd.f32 %v6251, %v6091
    %v6253 = vadd.f32 %v6252, %v6095
    %v6254 = vadd.f32 %v6253, %v6099
    %v6255 = vadd.f32 %v6254, %v6103
    %v6256 = vadd.f32 %v6255, %v6107
    %v6257 = vadd.f32 %v6256, %v6111
    %v6258 = vadd.f32 %v6257, %v6115
    %v6259 = vadd.f32 %v6258, %v6119
    %v6260 = vadd.f32 %v6259, %v6123
    %v6261 = vadd.f32 %v6260, %v6127
    %v6262 = vadd.f32 %v6261, %v6131
    %v6263 = vadd.f32 %v6262, %v6135
    %v6264 = vadd.f32 %v6263, %v6139
    %v6265 = vadd.f32 %v6264, %v6143
    %v6266 = vadd.f32 %v6265, %v6147
    %v6267 = vadd.f32 %v6266, %v6151
    %v6268 = vadd.f32 %v6267, %v6155
    %v6269 = vadd.f32 %v6268, %v6159
    %v6270 = vadd.f32 %v6269, %v6163
    %v6271 = vadd.f32 %v6270, %v6167
    %v6272 = vadd.f32 %v6271, %v6171
    %v6273 = vadd.f32 %v6272, %v6175
    %v6274 = vadd.f32 %v6273, %v6179
    %v6275 = vadd.f32 %v6274, %v6183
    %v6276 = vadd.f32 %v6275, %v6187
    %v6277 = vadd.f32 %v6276, %v6191
    %v6278 = vadd.f32 %v6277, %v6195
    %v6279 = vadd.f32 %v6278, %v6199
    %v6280 = vadd.f32 %v6279, %v6203
    %v6281 = vrot.slane %v6280, 4
    %v6282 = vadd.f32 %v6280, %v6281
    %v6283 = vrot.slane %v6282, 2
    %v6284 = vadd.f32 %v6282, %v6283
    %v6285 = vrot.slane %v6284, 1
    %v6286 = vadd.f32 %v6284, %v6285
    %v6287 = vadd.f32 %v5908, %v5912
    %v6288 = vadd.f32 %v6287, %v5916
    %v6289 = vadd.f32 %v6288, %v5920
    %v6290 = vadd.f32 %v6289, %v5924
    %v6291 = vadd.f32 %v6290, %v5928
    %v6292 = vadd.f32 %v6291, %v5932
    %v6293 = vadd.f32 %v6292, %v5936
    %v6294 = vadd.f32 %v6293, %v5940
    %v6295 = vadd.f32 %v6294, %v5944
    %v6296 = vadd.f32 %v6295, %v5948
    %v6297 = vadd.f32 %v6296, %v5952
    %v6298 = vadd.f32 %v6297, %v5956
    %v6299 = vadd.f32 %v6298, %v5960
    %v6300 = vadd.f32 %v6299, %v5964
    %v6301 = vadd.f32 %v6300, %v5968
    %v6302 = vadd.f32 %v6301, %v5972
    %v6303 = vadd.f32 %v6302, %v5976
    %v6304 = vadd.f32 %v6303, %v5980
    %v6305 = vadd.f32 %v6304, %v5984
    %v6306 = vadd.f32 %v6305, %v5988
    %v6307 = vadd.f32 %v6306, %v5992
    %v6308 = vadd.f32 %v6307, %v5996
    %v6309 = vadd.f32 %v6308, %v6000
    %v6310 = vadd.f32 %v6309, %v6004
    %v6311 = vadd.f32 %v6310, %v6008
    %v6312 = vadd.f32 %v6311, %v6012
    %v6313 = vadd.f32 %v6312, %v6016
    %v6314 = vadd.f32 %v6313, %v6020
    %v6315 = vadd.f32 %v6314, %v6024
    %v6316 = vadd.f32 %v6315, %v6028
    %v6317 = vadd.f32 %v6316, %v6032
    %v6318 = vadd.f32 %v6317, %v6036
    %v6319 = vadd.f32 %v6318, %v6040
    %v6320 = vadd.f32 %v6319, %v6044
    %v6321 = vadd.f32 %v6320, %v6048
    %v6322 = vadd.f32 %v6321, %v6052
    %v6323 = vadd.f32 %v6322, %v6056
    %v6324 = vadd.f32 %v6323, %v6060
    %v6325 = vadd.f32 %v6324, %v6064
    %v6326 = vadd.f32 %v6325, %v6068
    %v6327 = vadd.f32 %v6326, %v6072
    %v6328 = vadd.f32 %v6327, %v6076
    %v6329 = vadd.f32 %v6328, %v6080
    %v6330 = vadd.f32 %v6329, %v6084
    %v6331 = vadd.f32 %v6330, %v6088
    %v6332 = vadd.f32 %v6331, %v6092
    %v6333 = vadd.f32 %v6332, %v6096
    %v6334 = vadd.f32 %v6333, %v6100
    %v6335 = vadd.f32 %v6334, %v6104
    %v6336 = vadd.f32 %v6335, %v6108
    %v6337 = vadd.f32 %v6336, %v6112
    %v6338 = vadd.f32 %v6337, %v6116
    %v6339 = vadd.f32 %v6338, %v6120
    %v6340 = vadd.f32 %v6339, %v6124
    %v6341 = vadd.f32 %v6340, %v6128
    %v6342 = vadd.f32 %v6341, %v6132
    %v6343 = vadd.f32 %v6342, %v6136
    %v6344 = vadd.f32 %v6343, %v6140
    %v6345 = vadd.f32 %v6344, %v6144
    %v6346 = vadd.f32 %v6345, %v6148
    %v6347 = vadd.f32 %v6346, %v6152
    %v6348 = vadd.f32 %v6347, %v6156
    %v6349 = vadd.f32 %v6348, %v6160
    %v6350 = vadd.f32 %v6349, %v6164
    %v6351 = vadd.f32 %v6350, %v6168
    %v6352 = vadd.f32 %v6351, %v6172
    %v6353 = vadd.f32 %v6352, %v6176
    %v6354 = vadd.f32 %v6353, %v6180
    %v6355 = vadd.f32 %v6354, %v6184
    %v6356 = vadd.f32 %v6355, %v6188
    %v6357 = vadd.f32 %v6356, %v6192
    %v6358 = vadd.f32 %v6357, %v6196
    %v6359 = vadd.f32 %v6358, %v6200
    %v6360 = vadd.f32 %v6359, %v6204
    %v6361 = vrot.slane %v6360, 4
    %v6362 = vadd.f32 %v6360, %v6361
    %v6363 = vrot.slane %v6362, 2
    %v6364 = vadd.f32 %v6362, %v6363
    %v6365 = vrot.slane %v6364, 1
    %v6366 = vadd.f32 %v6364, %v6365
    %v6367 = vadd.f32 %v5909, %v5913
    %v6368 = vadd.f32 %v6367, %v5917
    %v6369 = vadd.f32 %v6368, %v5921
    %v6370 = vadd.f32 %v6369, %v5925
    %v6371 = vadd.f32 %v6370, %v5929
    %v6372 = vadd.f32 %v6371, %v5933
    %v6373 = vadd.f32 %v6372, %v5937
    %v6374 = vadd.f32 %v6373, %v5941
    %v6375 = vadd.f32 %v6374, %v5945
    %v6376 = vadd.f32 %v6375, %v5949
    %v6377 = vadd.f32 %v6376, %v5953
    %v6378 = vadd.f32 %v6377, %v5957
    %v6379 = vadd.f32 %v6378, %v5961
    %v6380 = vadd.f32 %v6379, %v5965
    %v6381 = vadd.f32 %v6380, %v5969
    %v6382 = vadd.f32 %v6381, %v5973
    %v6383 = vadd.f32 %v6382, %v5977
    %v6384 = vadd.f32 %v6383, %v5981
    %v6385 = vadd.f32 %v6384, %v5985
    %v6386 = vadd.f32 %v6385, %v5989
    %v6387 = vadd.f32 %v6386, %v5993
    %v6388 = vadd.f32 %v6387, %v5997
    %v6389 = vadd.f32 %v6388, %v6001
    %v6390 = vadd.f32 %v6389, %v6005
    %v6391 = vadd.f32 %v6390, %v6009
    %v6392 = vadd.f32 %v6391, %v6013
    %v6393 = vadd.f32 %v6392, %v6017
    %v6394 = vadd.f32 %v6393, %v6021
    %v6395 = vadd.f32 %v6394, %v6025
    %v6396 = vadd.f32 %v6395, %v6029
    %v6397 = vadd.f32 %v6396, %v6033
    %v6398 = vadd.f32 %v6397, %v6037
    %v6399 = vadd.f32 %v6398, %v6041
    %v6400 = vadd.f32 %v6399, %v6045
    %v6401 = vadd.f32 %v6400, %v6049
    %v6402 = vadd.f32 %v6401, %v6053
    %v6403 = vadd.f32 %v6402, %v6057
    %v6404 = vadd.f32 %v6403, %v6061
    %v6405 = vadd.f32 %v6404, %v6065
    %v6406 = vadd.f32 %v6405, %v6069
    %v6407 = vadd.f32 %v6406, %v6073
    %v6408 = vadd.f32 %v6407, %v6077
    %v6409 = vadd.f32 %v6408, %v6081
    %v6410 = vadd.f32 %v6409, %v6085
    %v6411 = vadd.f32 %v6410, %v6089
    %v6412 = vadd.f32 %v6411, %v6093
    %v6413 = vadd.f32 %v6412, %v6097
    %v6414 = vadd.f32 %v6413, %v6101
    %v6415 = vadd.f32 %v6414, %v6105
    %v6416 = vadd.f32 %v6415, %v6109
    %v6417 = vadd.f32 %v6416, %v6113
    %v6418 = vadd.f32 %v6417, %v6117
    %v6419 = vadd.f32 %v6418, %v6121
    %v6420 = vadd.f32 %v6419, %v6125
    %v6421 = vadd.f32 %v6420, %v6129
    %v6422 = vadd.f32 %v6421, %v6133
    %v6423 = vadd.f32 %v6422, %v6137
    %v6424 = vadd.f32 %v6423, %v6141
    %v6425 = vadd.f32 %v6424, %v6145
    %v6426 = vadd.f32 %v6425, %v6149
    %v6427 = vadd.f32 %v6426, %v6153
    %v6428 = vadd.f32 %v6427, %v6157
    %v6429 = vadd.f32 %v6428, %v6161
    %v6430 = vadd.f32 %v6429, %v6165
    %v6431 = vadd.f32 %v6430, %v6169
    %v6432 = vadd.f32 %v6431, %v6173
    %v6433 = vadd.f32 %v6432, %v6177
    %v6434 = vadd.f32 %v6433, %v6181
    %v6435 = vadd.f32 %v6434, %v6185
    %v6436 = vadd.f32 %v6435, %v6189
    %v6437 = vadd.f32 %v6436, %v6193
    %v6438 = vadd.f32 %v6437, %v6197
    %v6439 = vadd.f32 %v6438, %v6201
    %v6440 = vadd.f32 %v6439, %v6205
    %v6441 = vrot.slane %v6440, 4
    %v6442 = vadd.f32 %v6440, %v6441
    %v6443 = vrot.slane %v6442, 2
    %v6444 = vadd.f32 %v6442, %v6443
    %v6445 = vrot.slane %v6444, 1
    %v6446 = vadd.f32 %v6444, %v6445
    %v6447 = vadd.f32 %v5910, %v5914
    %v6448 = vadd.f32 %v6447, %v5918
    %v6449 = vadd.f32 %v6448, %v5922
    %v6450 = vadd.f32 %v6449, %v5926
    %v6451 = vadd.f32 %v6450, %v5930
    %v6452 = vadd.f32 %v6451, %v5934
    %v6453 = vadd.f32 %v6452, %v5938
    %v6454 = vadd.f32 %v6453, %v5942
    %v6455 = vadd.f32 %v6454, %v5946
    %v6456 = vadd.f32 %v6455, %v5950
    %v6457 = vadd.f32 %v6456, %v5954
    %v6458 = vadd.f32 %v6457, %v5958
    %v6459 = vadd.f32 %v6458, %v5962
    %v6460 = vadd.f32 %v6459, %v5966
    %v6461 = vadd.f32 %v6460, %v5970
    %v6462 = vadd.f32 %v6461, %v5974
    %v6463 = vadd.f32 %v6462, %v5978
    %v6464 = vadd.f32 %v6463, %v5982
    %v6465 = vadd.f32 %v6464, %v5986
    %v6466 = vadd.f32 %v6465, %v5990
    %v6467 = vadd.f32 %v6466, %v5994
    %v6468 = vadd.f32 %v6467, %v5998
    %v6469 = vadd.f32 %v6468, %v6002
    %v6470 = vadd.f32 %v6469, %v6006
    %v6471 = vadd.f32 %v6470, %v6010
    %v6472 = vadd.f32 %v6471, %v6014
    %v6473 = vadd.f32 %v6472, %v6018
    %v6474 = vadd.f32 %v6473, %v6022
    %v6475 = vadd.f32 %v6474, %v6026
    %v6476 = vadd.f32 %v6475, %v6030
    %v6477 = vadd.f32 %v6476, %v6034
    %v6478 = vadd.f32 %v6477, %v6038
    %v6479 = vadd.f32 %v6478, %v6042
    %v6480 = vadd.f32 %v6479, %v6046
    %v6481 = vadd.f32 %v6480, %v6050
    %v6482 = vadd.f32 %v6481, %v6054
    %v6483 = vadd.f32 %v6482, %v6058
    %v6484 = vadd.f32 %v6483, %v6062
    %v6485 = vadd.f32 %v6484, %v6066
    %v6486 = vadd.f32 %v6485, %v6070
    %v6487 = vadd.f32 %v6486, %v6074
    %v6488 = vadd.f32 %v6487, %v6078
    %v6489 = vadd.f32 %v6488, %v6082
    %v6490 = vadd.f32 %v6489, %v6086
    %v6491 = vadd.f32 %v6490, %v6090
    %v6492 = vadd.f32 %v6491, %v6094
    %v6493 = vadd.f32 %v6492, %v6098
    %v6494 = vadd.f32 %v6493, %v6102
    %v6495 = vadd.f32 %v6494, %v6106
    %v6496 = vadd.f32 %v6495, %v6110
    %v6497 = vadd.f32 %v6496, %v6114
    %v6498 = vadd.f32 %v6497, %v6118
    %v6499 = vadd.f32 %v6498, %v6122
    %v6500 = vadd.f32 %v6499, %v6126
    %v6501 = vadd.f32 %v6500, %v6130
    %v6502 = vadd.f32 %v6501, %v6134
    %v6503 = vadd.f32 %v6502, %v6138
    %v6504 = vadd.f32 %v6503, %v6142
    %v6505 = vadd.f32 %v6504, %v6146
    %v6506 = vadd.f32 %v6505, %v6150
    %v6507 = vadd.f32 %v6506, %v6154
    %v6508 = vadd.f32 %v6507, %v6158
    %v6509 = vadd.f32 %v6508, %v6162
    %v6510 = vadd.f32 %v6509, %v6166
    %v6511 = vadd.f32 %v6510, %v6170
    %v6512 = vadd.f32 %v6511, %v6174
    %v6513 = vadd.f32 %v6512, %v6178
    %v6514 = vadd.f32 %v6513, %v6182
    %v6515 = vadd.f32 %v6514, %v6186
    %v6516 = vadd.f32 %v6515, %v6190
    %v6517 = vadd.f32 %v6516, %v6194
    %v6518 = vadd.f32 %v6517, %v6198
    %v6519 = vadd.f32 %v6518, %v6202
    %v6520 = vadd.f32 %v6519, %v6206
    %v6521 = vrot.slane %v6520, 4
    %v6522 = vadd.f32 %v6520, %v6521
    %v6523 = vrot.slane %v6522, 2
    %v6524 = vadd.f32 %v6522, %v6523
    %v6525 = vrot.slane %v6524, 1
    %v6526 = vadd.f32 %v6524, %v6525
    %v6531 = vrot.slane %v6366, 7
    %v6532 = vrot.slane %v6446, 6
    %v6533 = vrot.slane %v6526, 5
    %vm6534 = vcmask 1040384
    %v6535 = vsel %vm6534, %v6286, %v6531
    %vm6536 = vcmask 1042434
    %v6537 = vsel %vm6536, %v6532, %v6533
    %vm6538 = vcmask 1041408
    %v6539 = vsel %vm6538, %v6535, %v6537
    %v6541 = vadd.f32 %v5531, %v6539
    %v6542 = vlaneseq
    %vm6543 = vcmp.ge.s32.totalorder %v6542, 0
    %vm6544 = vcmp.lt.s32.totalorder %v6542, 512
    %vm6545 = vmand %vm6543, %vm6544
    %6546 = vst.msk [vmem:[#allocation4] sm:$0xf] %vm6545, %v6541
    %6547 = vst.msk [vmem:[#allocation2] sm:$0x1] %vm5522, %v5132
    // Predicated region
    $region50: #{tpu_custom_call.1} parent=1 // pred_check
      %p6548 = pneg %p67
    $region51: #{tpu_custom_call.1} parent=1 // pred_check_branch
      %6550 = sbr.rel (%p6548) target = $region53
    $region52: #{tpu_custom_call.1} parent=1 // pred_region
      %v6551 = vld [vmem:[#allocation4] sm:$0xf]
      %v6552 = vld [vmem:[#allocation3] sm:$0x1]
      %6554 = vset.pattern.permute.xlu0 0
      %6555 = vperm.xlu0 %6554, %v6552
      %v6556 = vpop.permute.xlu0 %6555
      %v6558 = vperm.slane %v6556, 0
      %v6559 = vrcp.pop %v6558
      %v6560 = vmul.f32 %v6558, %v6559
      %v6561 = vsub.f32 1.0, %v6560
      %v6562 = vmul.f32 %v6559, %v6561
      %v6563 = vadd.f32 %v6559, %v6562
      %vm6564 = vweird.f32 %v6558
      %vm6565 = vweird.f32 %v6559
      %vm6566 = vmor %vm6564, %vm6565
      %v6567 = vsel %vm6566, %v6559, %v6563
      %v6568 = vand.u32 2147483647, %v6558
      %vm6569 = vcmp.eq.f32.partialorder %v6568, 8.507059e+37
      %v6570 = vand.u32 %v6558, 2147483648
      %v6571 = vor.u32 1.1754944e-38, %v6570
      %v6572 = vsel %vm6569, %v6571, %v6567
      %v6573 = vmul.f32 %v6551, %v6572
      %v6574 = vld [vmem:[%s7] sm:$0xff]
      %v6575 = vld [vmem:[%s7 + $0x8] sm:$0xff]
      %v6576 = vld [vmem:[%s7 + $0x10] sm:$0xff]
      %v6577 = vld [vmem:[%s7 + $0x18] sm:$0xff]
      %v6578 = vld [vmem:[%s7 + $0x20] sm:$0xff]
      %v6579 = vld [vmem:[%s7 + $0x28] sm:$0xff]
      %v6580 = vld [vmem:[%s7 + $0x30] sm:$0xff]
      %v6581 = vld [vmem:[%s7 + $0x38] sm:$0xff]
      %v6582 = vld [vmem:[%s7 + $0x40] sm:$0xff]
      %v6583 = vld [vmem:[%s7 + $0x48] sm:$0xff]
      %v6584 = vld [vmem:[%s7 + $0x50] sm:$0xff]
      %v6585 = vld [vmem:[%s7 + $0x58] sm:$0xff]
      %v6586 = vld [vmem:[%s7 + $0x60] sm:$0xff]
      %v6587 = vld [vmem:[%s7 + $0x68] sm:$0xff]
      %v6588 = vld [vmem:[%s7 + $0x70] sm:$0xff]
      %v6589 = vld [vmem:[%s7 + $0x78] sm:$0xff]
      %v6590 = vld [vmem:[%s7 + $0x80] sm:$0xff]
      %v6591 = vld [vmem:[%s7 + $0x88] sm:$0xff]
      %v6592 = vld [vmem:[%s7 + $0x90] sm:$0xff]
      %v6593 = vld [vmem:[%s7 + $0x98] sm:$0xff]
      %v6594 = vld [vmem:[%s7 + $0xa0] sm:$0xff]
      %v6595 = vld [vmem:[%s7 + $0xa8] sm:$0xff]
      %v6596 = vld [vmem:[%s7 + $0xb0] sm:$0xff]
      %v6597 = vld [vmem:[%s7 + $0xb8] sm:$0xff]
      %v6598 = vld [vmem:[%s7 + $0xc0] sm:$0xff]
      %v6599 = vld [vmem:[%s7 + $0xc8] sm:$0xff]
      %v6600 = vld [vmem:[%s7 + $0xd0] sm:$0xff]
      %v6601 = vld [vmem:[%s7 + $0xd8] sm:$0xff]
      %v6602 = vld [vmem:[%s7 + $0xe0] sm:$0xff]
      %v6603 = vld [vmem:[%s7 + $0xe8] sm:$0xff]
      %v6604 = vld [vmem:[%s7 + $0xf0] sm:$0xff]
      %v6605 = vld [vmem:[%s7 + $0xf8] sm:$0xff]
      %v6606 = vld [vmem:[%s7 + $0x100] sm:$0xff]
      %v6607 = vld [vmem:[%s7 + $0x108] sm:$0xff]
      %v6608 = vld [vmem:[%s7 + $0x110] sm:$0xff]
      %v6609 = vld [vmem:[%s7 + $0x118] sm:$0xff]
      %v6610 = vld [vmem:[%s7 + $0x120] sm:$0xff]
      %v6611 = vld [vmem:[%s7 + $0x128] sm:$0xff]
      %v6612 = vld [vmem:[%s7 + $0x130] sm:$0xff]
      %v6613 = vld [vmem:[%s7 + $0x138] sm:$0xff]
      %v6614 = vld [vmem:[%s7 + $0x140] sm:$0xff]
      %v6615 = vld [vmem:[%s7 + $0x148] sm:$0xff]
      %v6616 = vld [vmem:[%s7 + $0x150] sm:$0xff]
      %v6617 = vld [vmem:[%s7 + $0x158] sm:$0xff]
      %v6618 = vld [vmem:[%s7 + $0x160] sm:$0xff]
      %v6619 = vld [vmem:[%s7 + $0x168] sm:$0xff]
      %v6620 = vld [vmem:[%s7 + $0x170] sm:$0xff]
      %v6621 = vld [vmem:[%s7 + $0x178] sm:$0xff]
      %v6622 = vld [vmem:[%s7 + $0x180] sm:$0xff]
      %v6623 = vld [vmem:[%s7 + $0x188] sm:$0xff]
      %v6624 = vld [vmem:[%s7 + $0x190] sm:$0xff]
      %v6625 = vld [vmem:[%s7 + $0x198] sm:$0xff]
      %v6626 = vld [vmem:[%s7 + $0x1a0] sm:$0xff]
      %v6627 = vld [vmem:[%s7 + $0x1a8] sm:$0xff]
      %v6628 = vld [vmem:[%s7 + $0x1b0] sm:$0xff]
      %v6629 = vld [vmem:[%s7 + $0x1b8] sm:$0xff]
      %v6630 = vld [vmem:[%s7 + $0x1c0] sm:$0xff]
      %v6631 = vld [vmem:[%s7 + $0x1c8] sm:$0xff]
      %v6632 = vld [vmem:[%s7 + $0x1d0] sm:$0xff]
      %v6633 = vld [vmem:[%s7 + $0x1d8] sm:$0xff]
      %v6634 = vld [vmem:[%s7 + $0x1e0] sm:$0xff]
      %v6635 = vld [vmem:[%s7 + $0x1e8] sm:$0xff]
      %v6636 = vld [vmem:[%s7 + $0x1f0] sm:$0xff]
      %v6637 = vld [vmem:[%s7 + $0x1f8] sm:$0xff]
      %v6638 = vld [vmem:[%s8] sm:$0x1]
      %v6640 = vperm.slane %v6573, 0
      %v6641 = vperm.slane %v6573, 1
      %v6642 = vperm.slane %v6573, 2
      %v6643 = vperm.slane %v6573, 3
      %6648 = vmatpush.msra.mxu0 %v6589
      %6649 = vmatpush.msra.mxu0 %v6588
      %6650 = vmatpush.msra.mxu0 %v6587
      %6651 = vmatpush.msra.mxu0 %v6586
      %6652 = vmatpush.msra.mxu0 %v6585
      %6653 = vmatpush.msra.mxu0 %v6584
      %6654 = vmatpush.msra.mxu0 %v6583
      %6655 = vmatpush.msra.mxu0 %v6582
      %6656 = vmatpush.msra.mxu0 %v6581
      %6657 = vmatpush.msra.mxu0 %v6580
      %6658 = vmatpush.msra.mxu0 %v6579
      %6659 = vmatpush.msra.mxu0 %v6578
      %6660 = vmatpush.msra.mxu0 %v6577
      %6661 = vmatpush.msra.mxu0 %v6576
      %6662 = vmatpush.msra.mxu0 %v6575
      %6663 = vmatpush.msra.mxu0 %v6574
      %6664 = vmatmul.f32.gmra.mxu0 %v6640
      %v6665 = vpop.f32.mrf.mxu0
      %v6666 = vadd.f32 %v6638, %v6665
      %6667 = vdwg.mxu0
      %6668 = vmatpush.msra.mxu0 %v6605
      %6669 = vmatpush.msra.mxu0 %v6604
      %6670 = vmatpush.msra.mxu0 %v6603
      %6671 = vmatpush.msra.mxu0 %v6602
      %6672 = vmatpush.msra.mxu0 %v6601
      %6673 = vmatpush.msra.mxu0 %v6600
      %6674 = vmatpush.msra.mxu0 %v6599
      %6675 = vmatpush.msra.mxu0 %v6598
      %6676 = vmatpush.msra.mxu0 %v6597
      %6677 = vmatpush.msra.mxu0 %v6596
      %6678 = vmatpush.msra.mxu0 %v6595
      %6679 = vmatpush.msra.mxu0 %v6594
      %6680 = vmatpush.msra.mxu0 %v6593
      %6681 = vmatpush.msra.mxu0 %v6592
      %6682 = vmatpush.msra.mxu0 %v6591
      %6683 = vmatpush.msra.mxu0 %v6590
      %6684 = vmatmul.f32.gmra.mxu0 %v6641
      %v6685 = vpop.f32.mrf.mxu0
      %v6686 = vadd.f32 %v6666, %v6685
      %6687 = vdwg.mxu0
      %6688 = vmatpush.msra.mxu0 %v6621
      %6689 = vmatpush.msra.mxu0 %v6620
      %6690 = vmatpush.msra.mxu0 %v6619
      %6691 = vmatpush.msra.mxu0 %v6618
      %6692 = vmatpush.msra.mxu0 %v6617
      %6693 = vmatpush.msra.mxu0 %v6616
      %6694 = vmatpush.msra.mxu0 %v6615
      %6695 = vmatpush.msra.mxu0 %v6614
      %6696 = vmatpush.msra.mxu0 %v6613
      %6697 = vmatpush.msra.mxu0 %v6612
      %6698 = vmatpush.msra.mxu0 %v6611
      %6699 = vmatpush.msra.mxu0 %v6610
      %6700 = vmatpush.msra.mxu0 %v6609
      %6701 = vmatpush.msra.mxu0 %v6608
      %6702 = vmatpush.msra.mxu0 %v6607
      %6703 = vmatpush.msra.mxu0 %v6606
      %6704 = vmatmul.f32.gmra.mxu0 %v6642
      %v6705 = vpop.f32.mrf.mxu0
      %v6706 = vadd.f32 %v6686, %v6705
      %6707 = vdwg.mxu0
      %6708 = vmatpush.msra.mxu0 %v6637
      %6709 = vmatpush.msra.mxu0 %v6636
      %6710 = vmatpush.msra.mxu0 %v6635
      %6711 = vmatpush.msra.mxu0 %v6634
      %6712 = vmatpush.msra.mxu0 %v6633
      %6713 = vmatpush.msra.mxu0 %v6632
      %6714 = vmatpush.msra.mxu0 %v6631
      %6715 = vmatpush.msra.mxu0 %v6630
      %6716 = vmatpush.msra.mxu0 %v6629
      %6717 = vmatpush.msra.mxu0 %v6628
      %6718 = vmatpush.msra.mxu0 %v6627
      %6719 = vmatpush.msra.mxu0 %v6626
      %6720 = vmatpush.msra.mxu0 %v6625
      %6721 = vmatpush.msra.mxu0 %v6624
      %6722 = vmatpush.msra.mxu0 %v6623
      %6723 = vmatpush.msra.mxu0 %v6622
      %6724 = vmatmul.f32.gmra.mxu0 %v6643
      %v6725 = vpop.f32.mrf.mxu0
      %v6726 = vadd.f32 %v6706, %v6725
      %6727 = vdwg.mxu0
      %vm6728 = vcmask 8192
      %6729 = vst.msk [vmem:[#allocation11] sm:$0x1] %vm6728, %v6726
    $region53: #{tpu_custom_call.1} parent=1 // pred_fallthru
      _
    // Predicated region
    $region54: #{tpu_custom_call.1} parent=1 // pred_check
      _
    $region55: #{tpu_custom_call.1} parent=1 // pred_check_branch
      %6731 = sbr.rel (0) target = $region57
    $region56: #{tpu_custom_call.1} parent=1 // pred_region
      %6733 = vsyncadd [#allocation8], 0
      %s6735 = sshll.u32 [#allocation11], 4
      %s6736 = int_to_ptr.vmem [resolvable:$true] %s6735
      %s6737 = sshll.u32 %s9, 4
      %s6738 = int_to_ptr.hbm [resolvable:$true] %s6737
      %6740 = dma.vmem_to_hbm [thread:$0]  %s6736, 16, %s6738, [#allocation8]
    $region57: #{tpu_custom_call.1} parent=1 // pred_fallthru
      _
    // Predicated region
    $region58: #{tpu_custom_call.1} parent=1 // pred_check
      _
    $region59: #{tpu_custom_call.1} parent=1 // pred_check_branch
      %6742 = sbr.rel (0) target = $region61
    $region60: #{tpu_custom_call.1} parent=1 // pred_region
      %6744 = dma.done [#allocation8], 16
    $region61: #{tpu_custom_call.1} parent=1 // pred_fallthru
      _
    %6745 = vsyncpa [#allocation7], 1
    %6746 = vsyncpa [#allocation10], 1
    %6747 = vsyncpa [#allocation8], 1

</llo_original>
